<compile_context>
chip_gen: v7x
topology: tpu7x:2x2x1
jax: 0.10.0
libtpu: 0.0.40
codegen_flags: <defaults>
</compile_context>

<pallas_src>
import numpy as np
import jax
import jax.numpy as jnp
from jax import lax
from jax.experimental import pallas as pl
from jax.experimental.pallas import tpu as pltpu

C_PAD = 128          # padded channel width (TPU lane dim)
C_MID = 256          # bottleneck expansion width (already lane aligned)


# ----------------------------- fused kernel --------------------------------

def _res_sf_kernel(x4_ref, w_stem_ref, b_stem_ref,
                   w_c1_ref, b_c1_ref, w_c2_ref, b_c2_ref,
                   w_c3_ref, b_c3_ref, w_dn_ref, b_dn_ref,
                   w_pj_ref, b_pj_ref, w_fc_ref, b_fc_ref,
                   out_ref, sbuf, c2pad):
    f32, bf16 = jnp.float32, jnp.bfloat16
    N = x4_ref.shape[0]
    M = N * 64                                    # rows of the (n, 8, 8) grid

    def mm(a, w_ref, b_ref=None, relu=False):
        y = jnp.dot(a.astype(bf16), w_ref[...], preferred_element_type=f32)
        if b_ref is not None:
            y = y + b_ref[...]
        return jnp.maximum(y, 0.0) if relu else y

    # --- stem 7x7/2 conv (+ReLU), one output-parity phase at a time ---------
    # x4 is the space-to-depth(4) input; each phase is a 3x3-tap stride-1 conv
    # with 48 input channels over a 10x10 block grid (contiguous slices only).
    x4 = x4_ref[...]                              # (N, 10, 10, 48) f32
    sbuf[...] = jnp.zeros_like(sbuf)              # zero border (== -inf post-ReLU)
    for p in range(4):                            # phase (ph, pw)
        acc = jnp.zeros((M, C_PAD), f32)
        for t in range(9):                        # tap (di, dj)
            di, dj = t // 3, t % 3
            patch = x4[:, di:di + 8, dj:dj + 8, :].reshape(M, 48)
            acc = acc + jnp.dot(patch.astype(bf16), w_stem_ref[p, t],
                                preferred_element_type=f32)
        s = jnp.maximum(acc + b_stem_ref[...], 0.0)
        sbuf[p, :, 1:9, 1:9, :] = s.reshape(N, 8, 8, C_PAD)

    # --- 3x3/2 maxpool (pad 1): max over phase terms shifted by 0 / -1 ------
    pool = sbuf[0, :, 1:9, 1:9, :]
    for p, r0, c0 in ((1, 1, 1), (1, 1, 0),
                      (2, 1, 1), (2, 0, 1),
                      (3, 1, 1), (3, 1, 0), (3, 0, 1), (3, 0, 0)):
        pool = jnp.maximum(pool, sbuf[p, :, r0:r0 + 8, c0:c0 + 8, :])
    pooled = pool.reshape(M, C_PAD)               # (M, 128) f32

    # --- bottleneck residual block -------------------------------------------
    z1 = mm(pooled, w_c1_ref, b_c1_ref, relu=True)            # 1x1 reduce
    c2pad[...] = jnp.zeros_like(c2pad)
    c2pad[:, 1:9, 1:9, :] = z1.reshape(N, 8, 8, C_PAD)
    acc2 = jnp.zeros((M, C_PAD), f32)
    for t in range(9):                                        # 3x3, pad 1
        di, dj = t // 3, t % 3
        patch = c2pad[:, di:di + 8, dj:dj + 8, :].reshape(M, C_PAD)
        acc2 = acc2 + jnp.dot(patch.astype(bf16), w_c2_ref[t],
                              preferred_element_type=f32)
    z2 = jnp.maximum(acc2 + b_c2_ref[...], 0.0)
    z3 = mm(z2, w_c3_ref, b_c3_ref)                           # 1x1 expand
    idn = mm(pooled, w_dn_ref, b_dn_ref)                      # 1x1 downsample
    res = jnp.maximum(z3 + idn, 0.0)                          # (M, 256)

    # --- 1x1 projection to SF feature map (24 real channels, 128 lanes) -----
    feat = mm(res, w_pj_ref, b_pj_ref, relu=True)             # (M, 128)

    # --- 2-way linear head, kept lane-dense (logits in lanes 0 / 1) ---------
    f3 = feat.reshape(N, 64, C_PAD)
    col = lax.broadcasted_iota(jnp.int32, (N, C_PAD), 1)
    logits = jnp.zeros((N, C_PAD), f32) + b_fc_ref[...]
    for o in range(2):
        prod = f3 * w_fc_ref[o][None, :, :]                   # (N, 64, 128)
        s = jnp.sum(jnp.sum(prod, axis=1, keepdims=True), axis=2, keepdims=True)
        sel = jnp.where(col == o, 1.0, 0.0)
        logits = logits + sel * s.reshape(N, 1)
    out_ref[...] = logits


# ----------------------------- weight folding ------------------------------

def _he_conv(key, cout, cin, kh, kw):
    kw_, kb_ = jax.random.split(key)
    fan_in = cin * kh * kw
    w = jax.random.normal(kw_, (cout, cin, kh, kw), jnp.float32) * (2.0 / fan_in) ** 0.5
    b = jax.random.normal(kb_, (cout,), jnp.float32) * 0.01
    return w, b


def _pad_bias(b, n):
    out = np.zeros((1, n), np.float32)
    b = np.asarray(b)
    out[0, :b.shape[0]] = b
    return jnp.asarray(out)


def _fold_1x1(w, cin_pad, cout_pad):
    w = np.asarray(w)[:, :, 0, 0]                  # (Cout, Cin)
    out = np.zeros((cin_pad, cout_pad), np.float32)
    out[:w.shape[1], :w.shape[0]] = w.T
    return jnp.asarray(out).astype(jnp.bfloat16)


def _fold_3x3(w, cin_pad, cout_pad):
    w = np.asarray(w)                               # (Cout, Cin, 3, 3)
    out = np.zeros((9, cin_pad, cout_pad), np.float32)
    for di in range(3):
        for dj in range(3):
            out[di * 3 + dj, :w.shape[1], :w.shape[0]] = w[:, :, di, dj].T
    return jnp.asarray(out).astype(jnp.bfloat16)


def _fold_stem(w, cout_pad):
    # (64, 3, 7, 7) OIHW stride-2 kernel -> per-phase 3x3-tap weights over the
    # space-to-depth(4) input: (4 phases, 9 taps, 48, cout_pad).
    w = np.asarray(w)
    cout, cin = w.shape[0], w.shape[1]
    out = np.zeros((4, 9, 16 * cin, cout_pad), np.float32)
    for ph in range(2):
        for pw in range(2):
            p = ph * 2 + pw
            for di in range(3):
                for dj in range(3):
                    t = di * 3 + dj
                    for u in range(4):
                        for v in range(4):
                            i = 4 * di + u - 2 * ph
                            j = 4 * dj + v - 2 * pw
                            if 0 <= i < 7 and 0 <= j < 7:
                                k0 = (u * 4 + v) * cin
                                out[p, t, k0:k0 + cin, :cout] = w[:, :, i, j].T
    return jnp.asarray(out).astype(jnp.bfloat16)


def _fold_fc(w, b, c_real=24):
    # w: (2, 1536) over the PyTorch flatten order (c, h, w) of a (24, 8, 8) map
    # -> (2, 64, 128) matching the kernel's channels-last (h*8+w, c_pad) rows.
    w = np.asarray(w).reshape(2, c_real, 8, 8)
    out = np.zeros((2, 64, C_PAD), np.float32)
    out[:, :, :c_real] = np.transpose(w, (0, 2, 3, 1)).reshape(2, 64, c_real)
    bias = np.zeros((1, C_PAD), np.float32)
    bias[0, :2] = np.asarray(b)
    return jnp.asarray(out), jnp.asarray(bias)


def init_params(key):
    ks = jax.random.split(key, 7)
    stem_w, stem_b = _he_conv(ks[0], 64, 3, 7, 7)     # 7x7/2 stem
    c1_w, c1_b = _he_conv(ks[1], 64, 64, 1, 1)        # bottleneck 1x1
    c2_w, c2_b = _he_conv(ks[2], 64, 64, 3, 3)        # bottleneck 3x3
    c3_w, c3_b = _he_conv(ks[3], 256, 64, 1, 1)       # bottleneck expand
    dn_w, dn_b = _he_conv(ks[4], 256, 64, 1, 1)       # identity downsample
    pj_w, pj_b = _he_conv(ks[5], 24, 256, 1, 1)       # -> (N, 24, 8, 8) for SF
    kf, kb = jax.random.split(ks[6])
    fc_w = jax.random.normal(kf, (2, 24 * 8 * 8), jnp.float32) * (1.0 / (24 * 8 * 8)) ** 0.5
    fc_b = jax.random.normal(kb, (2,), jnp.float32) * 0.01
    w_fc, b_fc = _fold_fc(fc_w, fc_b)
    return dict(
        w_stem=_fold_stem(stem_w, C_PAD), b_stem=_pad_bias(stem_b, C_PAD),
        w_c1=_fold_1x1(c1_w, C_PAD, C_PAD), b_c1=_pad_bias(c1_b, C_PAD),
        w_c2=_fold_3x3(c2_w, C_PAD, C_PAD), b_c2=_pad_bias(c2_b, C_PAD),
        w_c3=_fold_1x1(c3_w, C_PAD, C_MID), b_c3=_pad_bias(c3_b, C_MID),
        w_dn=_fold_1x1(dn_w, C_PAD, C_MID), b_dn=_pad_bias(dn_b, C_MID),
        w_pj=_fold_1x1(pj_w, C_MID, C_PAD), b_pj=_pad_bias(pj_b, C_PAD),
        w_fc=w_fc, b_fc=b_fc,
    )


# ----------------------------- forward --------------------------------------

def _full_spec(shape):
    rank = len(shape)
    return pl.BlockSpec(tuple(shape), lambda i, _r=rank: (0,) * _r)


@jax.jit
def res_sf_forward(params, images):
    N = images.shape[0]
    # One tiny NCHW -> channels-last relayout + space-to-depth(4) of the 24 KiB
    # input (pure relayout, no im2col blowup); everything else is in-kernel.
    x = jnp.transpose(images, (0, 2, 3, 1)).astype(jnp.float32)
    x = jnp.pad(x, ((0, 0), (3, 5), (3, 5), (0, 0)))              # (N, 40, 40, 3)
    x4 = x.reshape(N, 10, 4, 10, 4, 3).transpose(0, 1, 3, 2, 4, 5)
    x4 = x4.reshape(N, 10, 10, 48)

    args = (x4,
            params["w_stem"], params["b_stem"], params["w_c1"], params["b_c1"],
            params["w_c2"], params["b_c2"], params["w_c3"], params["b_c3"],
            params["w_dn"], params["b_dn"], params["w_pj"], params["b_pj"],
            params["w_fc"], params["b_fc"])

    logits = pl.pallas_call(
        _res_sf_kernel,
        out_shape=jax.ShapeDtypeStruct((N, C_PAD), jnp.float32),
        grid=(1,),
        in_specs=[_full_spec(a.shape) for a in args],
        out_specs=_full_spec((N, C_PAD)),
        scratch_shapes=[pltpu.VMEM((4, N, 9, 9, C_PAD), jnp.float32),   # stem phases (0-border)
                        pltpu.VMEM((N, 10, 10, C_PAD), jnp.float32)],   # 3x3 conv zero-pad
        compiler_params=pltpu.CompilerParams(
            dimension_semantics=("arbitrary",)),
    )(*args)
    return logits[:, :2]


if __name__ == "__main__":
    key = jax.random.PRNGKey(0)
    kp, kx = jax.random.split(key)
    params = init_params(kp)
    images = jax.random.normal(kx, (2, 3, 32, 32), jnp.float32)    # NCHW
    out = res_sf_forward(params, images)
    out = jax.block_until_ready(out)
    assert out.shape == (2, 2) and out.dtype == jnp.float32
    print("KERNEL_OK")
</pallas_src>

<mosaic_0001>
module attributes {stable_mosaic.version = 11 : i64} {
  func.func @_res_sf_kernel(%arg0: i32, %arg1: memref<2x10x10x48xf32, #tpu.memory_space<vmem>>, %arg2: memref<4x9x48x128xbf16, #tpu.memory_space<vmem>>, %arg3: memref<1x128xf32, #tpu.memory_space<vmem>>, %arg4: memref<128x128xbf16, #tpu.memory_space<vmem>>, %arg5: memref<1x128xf32, #tpu.memory_space<vmem>>, %arg6: memref<9x128x128xbf16, #tpu.memory_space<vmem>>, %arg7: memref<1x128xf32, #tpu.memory_space<vmem>>, %arg8: memref<128x256xbf16, #tpu.memory_space<vmem>>, %arg9: memref<1x256xf32, #tpu.memory_space<vmem>>, %arg10: memref<128x256xbf16, #tpu.memory_space<vmem>>, %arg11: memref<1x256xf32, #tpu.memory_space<vmem>>, %arg12: memref<256x128xbf16, #tpu.memory_space<vmem>>, %arg13: memref<1x128xf32, #tpu.memory_space<vmem>>, %arg14: memref<2x64x128xf32, #tpu.memory_space<vmem>>, %arg15: memref<1x128xf32, #tpu.memory_space<vmem>>, %arg16: memref<2x128xf32, #tpu.memory_space<vmem>>, %arg17: memref<4x2x9x9x128xf32, #tpu.memory_space<vmem>>, %arg18: memref<2x10x10x128xf32, #tpu.memory_space<vmem>>) attributes {dimension_semantics = [#tpu.dimension_semantics<arbitrary>], iteration_bounds = array<i64: 1>, scalar_prefetch = 0 : i64, scratch_operands = 2 : i64, tpu.core_type = #tpu.core_type<tc>, window_params = [{pipeline_mode = #tpu.pipeline_mode<synchronous>, transform_indices = @transform_0, window_bounds = array<i64: 2, 10, 10, 48>}, {pipeline_mode = #tpu.pipeline_mode<synchronous>, transform_indices = @transform_1, window_bounds = array<i64: 4, 9, 48, 128>}, {pipeline_mode = #tpu.pipeline_mode<synchronous>, transform_indices = @transform_2, window_bounds = array<i64: 1, 128>}, {pipeline_mode = #tpu.pipeline_mode<synchronous>, transform_indices = @transform_3, window_bounds = array<i64: 128, 128>}, {pipeline_mode = #tpu.pipeline_mode<synchronous>, transform_indices = @transform_4, window_bounds = array<i64: 1, 128>}, {pipeline_mode = #tpu.pipeline_mode<synchronous>, transform_indices = @transform_5, window_bounds = array<i64: 9, 128, 128>}, {pipeline_mode = #tpu.pipeline_mode<synchronous>, transform_indices = @transform_6, window_bounds = array<i64: 1, 128>}, {pipeline_mode = #tpu.pipeline_mode<synchronous>, transform_indices = @transform_7, window_bounds = array<i64: 128, 256>}, {pipeline_mode = #tpu.pipeline_mode<synchronous>, transform_indices = @transform_8, window_bounds = array<i64: 1, 256>}, {pipeline_mode = #tpu.pipeline_mode<synchronous>, transform_indices = @transform_9, window_bounds = array<i64: 128, 256>}, {pipeline_mode = #tpu.pipeline_mode<synchronous>, transform_indices = @transform_10, window_bounds = array<i64: 1, 256>}, {pipeline_mode = #tpu.pipeline_mode<synchronous>, transform_indices = @transform_11, window_bounds = array<i64: 256, 128>}, {pipeline_mode = #tpu.pipeline_mode<synchronous>, transform_indices = @transform_12, window_bounds = array<i64: 1, 128>}, {pipeline_mode = #tpu.pipeline_mode<synchronous>, transform_indices = @transform_13, window_bounds = array<i64: 2, 64, 128>}, {pipeline_mode = #tpu.pipeline_mode<synchronous>, transform_indices = @transform_14, window_bounds = array<i64: 1, 128>}, {pipeline_mode = #tpu.pipeline_mode<synchronous>, transform_indices = @transform_15, window_bounds = array<i64: 2, 128>}]} {
    %c0 = arith.constant 0 : index
    %c0_0 = arith.constant 0 : index
    %c0_1 = arith.constant 0 : index
    %c0_2 = arith.constant 0 : index
    %0 = vector.load %arg1[%c0, %c0_0, %c0_1, %c0_2] : memref<2x10x10x48xf32, #tpu.memory_space<vmem>>, vector<2x10x10x48xf32>
    %cst = arith.constant 0.000000e+00 : f32
    %1 = vector.broadcast %cst : f32 to vector<4x2x9x9x128xf32>
    %c0_3 = arith.constant 0 : index
    %c0_4 = arith.constant 0 : index
    %c0_5 = arith.constant 0 : index
    %c0_6 = arith.constant 0 : index
    %c0_7 = arith.constant 0 : index
    %2 = vector.load %arg17[%c0_3, %c0_4, %c0_5, %c0_6, %c0_7] : memref<4x2x9x9x128xf32, #tpu.memory_space<vmem>>, vector<4x2x9x9x128xf32>
    tpu.vector_store %arg17[%c0_3, %c0_4, %c0_5, %c0_6, %c0_7], %1 {strides = array<i32>} : memref<4x2x9x9x128xf32, #tpu.memory_space<vmem>>, vector<4x2x9x9x128xf32>,
    %cst_8 = arith.constant 0.000000e+00 : f32
    %3 = vector.broadcast %cst_8 : f32 to vector<128x128xf32>
    %4 = vector.extract_strided_slice %0 {offsets = [0, 0, 0, 0], sizes = [2, 8, 8, 48], strides = [1, 1, 1, 1]} : vector<2x10x10x48xf32> to vector<2x8x8x48xf32>
    %5 = vector.shape_cast %4 : vector<2x8x8x48xf32> to vector<128x48xf32>
    %6 = arith.truncf %5 : vector<128x48xf32> to vector<128x48xbf16>
    %c0_9 = arith.constant 0 : index
    %c0_10 = arith.constant 0 : index
    %c0_11 = arith.constant 0 : index
    %c0_12 = arith.constant 0 : index
    %7 = vector.load %arg2[%c0_9, %c0_10, %c0_11, %c0_12] : memref<4x9x48x128xbf16, #tpu.memory_space<vmem>>, vector<1x1x48x128xbf16>
    %8 = vector.shape_cast %7 : vector<1x1x48x128xbf16> to vector<48x128xbf16>
    %cst_13 = arith.constant dense<0.000000e+00> : vector<128x128xf32>
    %9 = tpu.matmul %6, %8, %cst_13 {dimension_numbers = #tpu.dot_dimension_numbers<[1], [0], [0], [1], [0, 0, 1, 1], [], []>} : vector<128x48xbf16>, vector<48x128xbf16>, vector<128x128xf32> -> vector<128x128xf32>
    %10 = arith.addf %3, %9 : vector<128x128xf32>
    %11 = vector.extract_strided_slice %0 {offsets = [0, 0, 1, 0], sizes = [2, 8, 8, 48], strides = [1, 1, 1, 1]} : vector<2x10x10x48xf32> to vector<2x8x8x48xf32>
    %12 = vector.shape_cast %11 : vector<2x8x8x48xf32> to vector<128x48xf32>
    %13 = arith.truncf %12 : vector<128x48xf32> to vector<128x48xbf16>
    %c0_14 = arith.constant 0 : index
    %c1 = arith.constant 1 : index
    %c0_15 = arith.constant 0 : index
    %c0_16 = arith.constant 0 : index
    %14 = vector.load %arg2[%c0_14, %c1, %c0_15, %c0_16] : memref<4x9x48x128xbf16, #tpu.memory_space<vmem>>, vector<1x1x48x128xbf16>
    %15 = vector.shape_cast %14 : vector<1x1x48x128xbf16> to vector<48x128xbf16>
    %cst_17 = arith.constant dense<0.000000e+00> : vector<128x128xf32>
    %16 = tpu.matmul %13, %15, %cst_17 {dimension_numbers = #tpu.dot_dimension_numbers<[1], [0], [0], [1], [0, 0, 1, 1], [], []>} : vector<128x48xbf16>, vector<48x128xbf16>, vector<128x128xf32> -> vector<128x128xf32>
    %17 = arith.addf %10, %16 : vector<128x128xf32>
    %18 = vector.extract_strided_slice %0 {offsets = [0, 0, 2, 0], sizes = [2, 8, 8, 48], strides = [1, 1, 1, 1]} : vector<2x10x10x48xf32> to vector<2x8x8x48xf32>
    %19 = vector.shape_cast %18 : vector<2x8x8x48xf32> to vector<128x48xf32>
    %20 = arith.truncf %19 : vector<128x48xf32> to vector<128x48xbf16>
    %c0_18 = arith.constant 0 : index
    %c2 = arith.constant 2 : index
    %c0_19 = arith.constant 0 : index
    %c0_20 = arith.constant 0 : index
    %21 = vector.load %arg2[%c0_18, %c2, %c0_19, %c0_20] : memref<4x9x48x128xbf16, #tpu.memory_space<vmem>>, vector<1x1x48x128xbf16>
    %22 = vector.shape_cast %21 : vector<1x1x48x128xbf16> to vector<48x128xbf16>
    %cst_21 = arith.constant dense<0.000000e+00> : vector<128x128xf32>
    %23 = tpu.matmul %20, %22, %cst_21 {dimension_numbers = #tpu.dot_dimension_numbers<[1], [0], [0], [1], [0, 0, 1, 1], [], []>} : vector<128x48xbf16>, vector<48x128xbf16>, vector<128x128xf32> -> vector<128x128xf32>
    %24 = arith.addf %17, %23 : vector<128x128xf32>
    %25 = vector.extract_strided_slice %0 {offsets = [0, 1, 0, 0], sizes = [2, 8, 8, 48], strides = [1, 1, 1, 1]} : vector<2x10x10x48xf32> to vector<2x8x8x48xf32>
    %26 = vector.shape_cast %25 : vector<2x8x8x48xf32> to vector<128x48xf32>
    %27 = arith.truncf %26 : vector<128x48xf32> to vector<128x48xbf16>
    %c0_22 = arith.constant 0 : index
    %c3 = arith.constant 3 : index
    %c0_23 = arith.constant 0 : index
    %c0_24 = arith.constant 0 : index
    %28 = vector.load %arg2[%c0_22, %c3, %c0_23, %c0_24] : memref<4x9x48x128xbf16, #tpu.memory_space<vmem>>, vector<1x1x48x128xbf16>
    %29 = vector.shape_cast %28 : vector<1x1x48x128xbf16> to vector<48x128xbf16>
    %cst_25 = arith.constant dense<0.000000e+00> : vector<128x128xf32>
    %30 = tpu.matmul %27, %29, %cst_25 {dimension_numbers = #tpu.dot_dimension_numbers<[1], [0], [0], [1], [0, 0, 1, 1], [], []>} : vector<128x48xbf16>, vector<48x128xbf16>, vector<128x128xf32> -> vector<128x128xf32>
    %31 = arith.addf %24, %30 : vector<128x128xf32>
    %32 = vector.extract_strided_slice %0 {offsets = [0, 1, 1, 0], sizes = [2, 8, 8, 48], strides = [1, 1, 1, 1]} : vector<2x10x10x48xf32> to vector<2x8x8x48xf32>
    %33 = vector.shape_cast %32 : vector<2x8x8x48xf32> to vector<128x48xf32>
    %34 = arith.truncf %33 : vector<128x48xf32> to vector<128x48xbf16>
    %c0_26 = arith.constant 0 : index
    %c4 = arith.constant 4 : index
    %c0_27 = arith.constant 0 : index
    %c0_28 = arith.constant 0 : index
    %35 = vector.load %arg2[%c0_26, %c4, %c0_27, %c0_28] : memref<4x9x48x128xbf16, #tpu.memory_space<vmem>>, vector<1x1x48x128xbf16>
    %36 = vector.shape_cast %35 : vector<1x1x48x128xbf16> to vector<48x128xbf16>
    %cst_29 = arith.constant dense<0.000000e+00> : vector<128x128xf32>
    %37 = tpu.matmul %34, %36, %cst_29 {dimension_numbers = #tpu.dot_dimension_numbers<[1], [0], [0], [1], [0, 0, 1, 1], [], []>} : vector<128x48xbf16>, vector<48x128xbf16>, vector<128x128xf32> -> vector<128x128xf32>
    %38 = arith.addf %31, %37 : vector<128x128xf32>
    %39 = vector.extract_strided_slice %0 {offsets = [0, 1, 2, 0], sizes = [2, 8, 8, 48], strides = [1, 1, 1, 1]} : vector<2x10x10x48xf32> to vector<2x8x8x48xf32>
    %40 = vector.shape_cast %39 : vector<2x8x8x48xf32> to vector<128x48xf32>
    %41 = arith.truncf %40 : vector<128x48xf32> to vector<128x48xbf16>
    %c0_30 = arith.constant 0 : index
    %c5 = arith.constant 5 : index
    %c0_31 = arith.constant 0 : index
    %c0_32 = arith.constant 0 : index
    %42 = vector.load %arg2[%c0_30, %c5, %c0_31, %c0_32] : memref<4x9x48x128xbf16, #tpu.memory_space<vmem>>, vector<1x1x48x128xbf16>
    %43 = vector.shape_cast %42 : vector<1x1x48x128xbf16> to vector<48x128xbf16>
    %cst_33 = arith.constant dense<0.000000e+00> : vector<128x128xf32>
    %44 = tpu.matmul %41, %43, %cst_33 {dimension_numbers = #tpu.dot_dimension_numbers<[1], [0], [0], [1], [0, 0, 1, 1], [], []>} : vector<128x48xbf16>, vector<48x128xbf16>, vector<128x128xf32> -> vector<128x128xf32>
    %45 = arith.addf %38, %44 : vector<128x128xf32>
    %46 = vector.extract_strided_slice %0 {offsets = [0, 2, 0, 0], sizes = [2, 8, 8, 48], strides = [1, 1, 1, 1]} : vector<2x10x10x48xf32> to vector<2x8x8x48xf32>
    %47 = vector.shape_cast %46 : vector<2x8x8x48xf32> to vector<128x48xf32>
    %48 = arith.truncf %47 : vector<128x48xf32> to vector<128x48xbf16>
    %c0_34 = arith.constant 0 : index
    %c6 = arith.constant 6 : index
    %c0_35 = arith.constant 0 : index
    %c0_36 = arith.constant 0 : index
    %49 = vector.load %arg2[%c0_34, %c6, %c0_35, %c0_36] : memref<4x9x48x128xbf16, #tpu.memory_space<vmem>>, vector<1x1x48x128xbf16>
    %50 = vector.shape_cast %49 : vector<1x1x48x128xbf16> to vector<48x128xbf16>
    %cst_37 = arith.constant dense<0.000000e+00> : vector<128x128xf32>
    %51 = tpu.matmul %48, %50, %cst_37 {dimension_numbers = #tpu.dot_dimension_numbers<[1], [0], [0], [1], [0, 0, 1, 1], [], []>} : vector<128x48xbf16>, vector<48x128xbf16>, vector<128x128xf32> -> vector<128x128xf32>
    %52 = arith.addf %45, %51 : vector<128x128xf32>
    %53 = vector.extract_strided_slice %0 {offsets = [0, 2, 1, 0], sizes = [2, 8, 8, 48], strides = [1, 1, 1, 1]} : vector<2x10x10x48xf32> to vector<2x8x8x48xf32>
    %54 = vector.shape_cast %53 : vector<2x8x8x48xf32> to vector<128x48xf32>
    %55 = arith.truncf %54 : vector<128x48xf32> to vector<128x48xbf16>
    %c0_38 = arith.constant 0 : index
    %c7 = arith.constant 7 : index
    %c0_39 = arith.constant 0 : index
    %c0_40 = arith.constant 0 : index
    %56 = vector.load %arg2[%c0_38, %c7, %c0_39, %c0_40] : memref<4x9x48x128xbf16, #tpu.memory_space<vmem>>, vector<1x1x48x128xbf16>
    %57 = vector.shape_cast %56 : vector<1x1x48x128xbf16> to vector<48x128xbf16>
    %cst_41 = arith.constant dense<0.000000e+00> : vector<128x128xf32>
    %58 = tpu.matmul %55, %57, %cst_41 {dimension_numbers = #tpu.dot_dimension_numbers<[1], [0], [0], [1], [0, 0, 1, 1], [], []>} : vector<128x48xbf16>, vector<48x128xbf16>, vector<128x128xf32> -> vector<128x128xf32>
    %59 = arith.addf %52, %58 : vector<128x128xf32>
    %60 = vector.extract_strided_slice %0 {offsets = [0, 2, 2, 0], sizes = [2, 8, 8, 48], strides = [1, 1, 1, 1]} : vector<2x10x10x48xf32> to vector<2x8x8x48xf32>
    %61 = vector.shape_cast %60 : vector<2x8x8x48xf32> to vector<128x48xf32>
    %62 = arith.truncf %61 : vector<128x48xf32> to vector<128x48xbf16>
    %c0_42 = arith.constant 0 : index
    %c8 = arith.constant 8 : index
    %c0_43 = arith.constant 0 : index
    %c0_44 = arith.constant 0 : index
    %63 = vector.load %arg2[%c0_42, %c8, %c0_43, %c0_44] : memref<4x9x48x128xbf16, #tpu.memory_space<vmem>>, vector<1x1x48x128xbf16>
    %64 = vector.shape_cast %63 : vector<1x1x48x128xbf16> to vector<48x128xbf16>
    %cst_45 = arith.constant dense<0.000000e+00> : vector<128x128xf32>
    %65 = tpu.matmul %62, %64, %cst_45 {dimension_numbers = #tpu.dot_dimension_numbers<[1], [0], [0], [1], [0, 0, 1, 1], [], []>} : vector<128x48xbf16>, vector<48x128xbf16>, vector<128x128xf32> -> vector<128x128xf32>
    %66 = arith.addf %59, %65 : vector<128x128xf32>
    %c0_46 = arith.constant 0 : index
    %c0_47 = arith.constant 0 : index
    %67 = vector.load %arg3[%c0_46, %c0_47] : memref<1x128xf32, #tpu.memory_space<vmem>>, vector<1x128xf32>
    %68 = vector.broadcast %67 : vector<1x128xf32> to vector<128x128xf32>
    %69 = arith.addf %66, %68 : vector<128x128xf32>
    %cst_48 = arith.constant 0.000000e+00 : f32
    %70 = vector.broadcast %cst_48 : f32 to vector<128x128xf32>
    %71 = arith.maximumf %69, %70 : vector<128x128xf32>
    %72 = vector.shape_cast %71 : vector<128x128xf32> to vector<2x8x8x128xf32>
    %c0_49 = arith.constant 0 : index
    %c0_50 = arith.constant 0 : index
    %c1_51 = arith.constant 1 : index
    %c1_52 = arith.constant 1 : index
    %c0_53 = arith.constant 0 : index
    %73 = vector.load %arg17[%c0_49, %c0_50, %c1_51, %c1_52, %c0_53] : memref<4x2x9x9x128xf32, #tpu.memory_space<vmem>>, vector<1x2x8x8x128xf32>
    %74 = vector.shape_cast %73 : vector<1x2x8x8x128xf32> to vector<2x8x8x128xf32>
    %75 = vector.shape_cast %72 : vector<2x8x8x128xf32> to vector<1x2x8x8x128xf32>
    tpu.vector_store %arg17[%c0_49, %c0_50, %c1_51, %c1_52, %c0_53], %75 {strides = array<i32>} : memref<4x2x9x9x128xf32, #tpu.memory_space<vmem>>, vector<1x2x8x8x128xf32>,
    %cst_54 = arith.constant 0.000000e+00 : f32
    %76 = vector.broadcast %cst_54 : f32 to vector<128x128xf32>
    %77 = vector.extract_strided_slice %0 {offsets = [0, 0, 0, 0], sizes = [2, 8, 8, 48], strides = [1, 1, 1, 1]} : vector<2x10x10x48xf32> to vector<2x8x8x48xf32>
    %78 = vector.shape_cast %77 : vector<2x8x8x48xf32> to vector<128x48xf32>
    %79 = arith.truncf %78 : vector<128x48xf32> to vector<128x48xbf16>
    %c1_55 = arith.constant 1 : index
    %c0_56 = arith.constant 0 : index
    %c0_57 = arith.constant 0 : index
    %c0_58 = arith.constant 0 : index
    %80 = vector.load %arg2[%c1_55, %c0_56, %c0_57, %c0_58] : memref<4x9x48x128xbf16, #tpu.memory_space<vmem>>, vector<1x1x48x128xbf16>
    %81 = vector.shape_cast %80 : vector<1x1x48x128xbf16> to vector<48x128xbf16>
    %cst_59 = arith.constant dense<0.000000e+00> : vector<128x128xf32>
    %82 = tpu.matmul %79, %81, %cst_59 {dimension_numbers = #tpu.dot_dimension_numbers<[1], [0], [0], [1], [0, 0, 1, 1], [], []>} : vector<128x48xbf16>, vector<48x128xbf16>, vector<128x128xf32> -> vector<128x128xf32>
    %83 = arith.addf %76, %82 : vector<128x128xf32>
    %84 = vector.extract_strided_slice %0 {offsets = [0, 0, 1, 0], sizes = [2, 8, 8, 48], strides = [1, 1, 1, 1]} : vector<2x10x10x48xf32> to vector<2x8x8x48xf32>
    %85 = vector.shape_cast %84 : vector<2x8x8x48xf32> to vector<128x48xf32>
    %86 = arith.truncf %85 : vector<128x48xf32> to vector<128x48xbf16>
    %c1_60 = arith.constant 1 : index
    %c1_61 = arith.constant 1 : index
    %c0_62 = arith.constant 0 : index
    %c0_63 = arith.constant 0 : index
    %87 = vector.load %arg2[%c1_60, %c1_61, %c0_62, %c0_63] : memref<4x9x48x128xbf16, #tpu.memory_space<vmem>>, vector<1x1x48x128xbf16>
    %88 = vector.shape_cast %87 : vector<1x1x48x128xbf16> to vector<48x128xbf16>
    %cst_64 = arith.constant dense<0.000000e+00> : vector<128x128xf32>
    %89 = tpu.matmul %86, %88, %cst_64 {dimension_numbers = #tpu.dot_dimension_numbers<[1], [0], [0], [1], [0, 0, 1, 1], [], []>} : vector<128x48xbf16>, vector<48x128xbf16>, vector<128x128xf32> -> vector<128x128xf32>
    %90 = arith.addf %83, %89 : vector<128x128xf32>
    %91 = vector.extract_strided_slice %0 {offsets = [0, 0, 2, 0], sizes = [2, 8, 8, 48], strides = [1, 1, 1, 1]} : vector<2x10x10x48xf32> to vector<2x8x8x48xf32>
    %92 = vector.shape_cast %91 : vector<2x8x8x48xf32> to vector<128x48xf32>
    %93 = arith.truncf %92 : vector<128x48xf32> to vector<128x48xbf16>
    %c1_65 = arith.constant 1 : index
    %c2_66 = arith.constant 2 : index
    %c0_67 = arith.constant 0 : index
    %c0_68 = arith.constant 0 : index
    %94 = vector.load %arg2[%c1_65, %c2_66, %c0_67, %c0_68] : memref<4x9x48x128xbf16, #tpu.memory_space<vmem>>, vector<1x1x48x128xbf16>
    %95 = vector.shape_cast %94 : vector<1x1x48x128xbf16> to vector<48x128xbf16>
    %cst_69 = arith.constant dense<0.000000e+00> : vector<128x128xf32>
    %96 = tpu.matmul %93, %95, %cst_69 {dimension_numbers = #tpu.dot_dimension_numbers<[1], [0], [0], [1], [0, 0, 1, 1], [], []>} : vector<128x48xbf16>, vector<48x128xbf16>, vector<128x128xf32> -> vector<128x128xf32>
    %97 = arith.addf %90, %96 : vector<128x128xf32>
    %98 = vector.extract_strided_slice %0 {offsets = [0, 1, 0, 0], sizes = [2, 8, 8, 48], strides = [1, 1, 1, 1]} : vector<2x10x10x48xf32> to vector<2x8x8x48xf32>
    %99 = vector.shape_cast %98 : vector<2x8x8x48xf32> to vector<128x48xf32>
    %100 = arith.truncf %99 : vector<128x48xf32> to vector<128x48xbf16>
    %c1_70 = arith.constant 1 : index
    %c3_71 = arith.constant 3 : index
    %c0_72 = arith.constant 0 : index
    %c0_73 = arith.constant 0 : index
    %101 = vector.load %arg2[%c1_70, %c3_71, %c0_72, %c0_73] : memref<4x9x48x128xbf16, #tpu.memory_space<vmem>>, vector<1x1x48x128xbf16>
    %102 = vector.shape_cast %101 : vector<1x1x48x128xbf16> to vector<48x128xbf16>
    %cst_74 = arith.constant dense<0.000000e+00> : vector<128x128xf32>
    %103 = tpu.matmul %100, %102, %cst_74 {dimension_numbers = #tpu.dot_dimension_numbers<[1], [0], [0], [1], [0, 0, 1, 1], [], []>} : vector<128x48xbf16>, vector<48x128xbf16>, vector<128x128xf32> -> vector<128x128xf32>
    %104 = arith.addf %97, %103 : vector<128x128xf32>
    %105 = vector.extract_strided_slice %0 {offsets = [0, 1, 1, 0], sizes = [2, 8, 8, 48], strides = [1, 1, 1, 1]} : vector<2x10x10x48xf32> to vector<2x8x8x48xf32>
    %106 = vector.shape_cast %105 : vector<2x8x8x48xf32> to vector<128x48xf32>
    %107 = arith.truncf %106 : vector<128x48xf32> to vector<128x48xbf16>
    %c1_75 = arith.constant 1 : index
    %c4_76 = arith.constant 4 : index
    %c0_77 = arith.constant 0 : index
    %c0_78 = arith.constant 0 : index
    %108 = vector.load %arg2[%c1_75, %c4_76, %c0_77, %c0_78] : memref<4x9x48x128xbf16, #tpu.memory_space<vmem>>, vector<1x1x48x128xbf16>
    %109 = vector.shape_cast %108 : vector<1x1x48x128xbf16> to vector<48x128xbf16>
    %cst_79 = arith.constant dense<0.000000e+00> : vector<128x128xf32>
    %110 = tpu.matmul %107, %109, %cst_79 {dimension_numbers = #tpu.dot_dimension_numbers<[1], [0], [0], [1], [0, 0, 1, 1], [], []>} : vector<128x48xbf16>, vector<48x128xbf16>, vector<128x128xf32> -> vector<128x128xf32>
    %111 = arith.addf %104, %110 : vector<128x128xf32>
    %112 = vector.extract_strided_slice %0 {offsets = [0, 1, 2, 0], sizes = [2, 8, 8, 48], strides = [1, 1, 1, 1]} : vector<2x10x10x48xf32> to vector<2x8x8x48xf32>
    %113 = vector.shape_cast %112 : vector<2x8x8x48xf32> to vector<128x48xf32>
    %114 = arith.truncf %113 : vector<128x48xf32> to vector<128x48xbf16>
    %c1_80 = arith.constant 1 : index
    %c5_81 = arith.constant 5 : index
    %c0_82 = arith.constant 0 : index
    %c0_83 = arith.constant 0 : index
    %115 = vector.load %arg2[%c1_80, %c5_81, %c0_82, %c0_83] : memref<4x9x48x128xbf16, #tpu.memory_space<vmem>>, vector<1x1x48x128xbf16>
    %116 = vector.shape_cast %115 : vector<1x1x48x128xbf16> to vector<48x128xbf16>
    %cst_84 = arith.constant dense<0.000000e+00> : vector<128x128xf32>
    %117 = tpu.matmul %114, %116, %cst_84 {dimension_numbers = #tpu.dot_dimension_numbers<[1], [0], [0], [1], [0, 0, 1, 1], [], []>} : vector<128x48xbf16>, vector<48x128xbf16>, vector<128x128xf32> -> vector<128x128xf32>
    %118 = arith.addf %111, %117 : vector<128x128xf32>
    %119 = vector.extract_strided_slice %0 {offsets = [0, 2, 0, 0], sizes = [2, 8, 8, 48], strides = [1, 1, 1, 1]} : vector<2x10x10x48xf32> to vector<2x8x8x48xf32>
    %120 = vector.shape_cast %119 : vector<2x8x8x48xf32> to vector<128x48xf32>
    %121 = arith.truncf %120 : vector<128x48xf32> to vector<128x48xbf16>
    %c1_85 = arith.constant 1 : index
    %c6_86 = arith.constant 6 : index
    %c0_87 = arith.constant 0 : index
    %c0_88 = arith.constant 0 : index
    %122 = vector.load %arg2[%c1_85, %c6_86, %c0_87, %c0_88] : memref<4x9x48x128xbf16, #tpu.memory_space<vmem>>, vector<1x1x48x128xbf16>
    %123 = vector.shape_cast %122 : vector<1x1x48x128xbf16> to vector<48x128xbf16>
    %cst_89 = arith.constant dense<0.000000e+00> : vector<128x128xf32>
    %124 = tpu.matmul %121, %123, %cst_89 {dimension_numbers = #tpu.dot_dimension_numbers<[1], [0], [0], [1], [0, 0, 1, 1], [], []>} : vector<128x48xbf16>, vector<48x128xbf16>, vector<128x128xf32> -> vector<128x128xf32>
    %125 = arith.addf %118, %124 : vector<128x128xf32>
    %126 = vector.extract_strided_slice %0 {offsets = [0, 2, 1, 0], sizes = [2, 8, 8, 48], strides = [1, 1, 1, 1]} : vector<2x10x10x48xf32> to vector<2x8x8x48xf32>
    %127 = vector.shape_cast %126 : vector<2x8x8x48xf32> to vector<128x48xf32>
    %128 = arith.truncf %127 : vector<128x48xf32> to vector<128x48xbf16>
    %c1_90 = arith.constant 1 : index
    %c7_91 = arith.constant 7 : index
    %c0_92 = arith.constant 0 : index
    %c0_93 = arith.constant 0 : index
    %129 = vector.load %arg2[%c1_90, %c7_91, %c0_92, %c0_93] : memref<4x9x48x128xbf16, #tpu.memory_space<vmem>>, vector<1x1x48x128xbf16>
    %130 = vector.shape_cast %129 : vector<1x1x48x128xbf16> to vector<48x128xbf16>
    %cst_94 = arith.constant dense<0.000000e+00> : vector<128x128xf32>
    %131 = tpu.matmul %128, %130, %cst_94 {dimension_numbers = #tpu.dot_dimension_numbers<[1], [0], [0], [1], [0, 0, 1, 1], [], []>} : vector<128x48xbf16>, vector<48x128xbf16>, vector<128x128xf32> -> vector<128x128xf32>
    %132 = arith.addf %125, %131 : vector<128x128xf32>
    %133 = vector.extract_strided_slice %0 {offsets = [0, 2, 2, 0], sizes = [2, 8, 8, 48], strides = [1, 1, 1, 1]} : vector<2x10x10x48xf32> to vector<2x8x8x48xf32>
    %134 = vector.shape_cast %133 : vector<2x8x8x48xf32> to vector<128x48xf32>
    %135 = arith.truncf %134 : vector<128x48xf32> to vector<128x48xbf16>
    %c1_95 = arith.constant 1 : index
    %c8_96 = arith.constant 8 : index
    %c0_97 = arith.constant 0 : index
    %c0_98 = arith.constant 0 : index
    %136 = vector.load %arg2[%c1_95, %c8_96, %c0_97, %c0_98] : memref<4x9x48x128xbf16, #tpu.memory_space<vmem>>, vector<1x1x48x128xbf16>
    %137 = vector.shape_cast %136 : vector<1x1x48x128xbf16> to vector<48x128xbf16>
    %cst_99 = arith.constant dense<0.000000e+00> : vector<128x128xf32>
    %138 = tpu.matmul %135, %137, %cst_99 {dimension_numbers = #tpu.dot_dimension_numbers<[1], [0], [0], [1], [0, 0, 1, 1], [], []>} : vector<128x48xbf16>, vector<48x128xbf16>, vector<128x128xf32> -> vector<128x128xf32>
    %139 = arith.addf %132, %138 : vector<128x128xf32>
    %c0_100 = arith.constant 0 : index
    %c0_101 = arith.constant 0 : index
    %140 = vector.load %arg3[%c0_100, %c0_101] : memref<1x128xf32, #tpu.memory_space<vmem>>, vector<1x128xf32>
    %141 = vector.broadcast %140 : vector<1x128xf32> to vector<128x128xf32>
    %142 = arith.addf %139, %141 : vector<128x128xf32>
    %cst_102 = arith.constant 0.000000e+00 : f32
    %143 = vector.broadcast %cst_102 : f32 to vector<128x128xf32>
    %144 = arith.maximumf %142, %143 : vector<128x128xf32>
    %145 = vector.shape_cast %144 : vector<128x128xf32> to vector<2x8x8x128xf32>
    %c1_103 = arith.constant 1 : index
    %c0_104 = arith.constant 0 : index
    %c1_105 = arith.constant 1 : index
    %c1_106 = arith.constant 1 : index
    %c0_107 = arith.constant 0 : index
    %146 = vector.load %arg17[%c1_103, %c0_104, %c1_105, %c1_106, %c0_107] : memref<4x2x9x9x128xf32, #tpu.memory_space<vmem>>, vector<1x2x8x8x128xf32>
    %147 = vector.shape_cast %146 : vector<1x2x8x8x128xf32> to vector<2x8x8x128xf32>
    %148 = vector.shape_cast %145 : vector<2x8x8x128xf32> to vector<1x2x8x8x128xf32>
    tpu.vector_store %arg17[%c1_103, %c0_104, %c1_105, %c1_106, %c0_107], %148 {strides = array<i32>} : memref<4x2x9x9x128xf32, #tpu.memory_space<vmem>>, vector<1x2x8x8x128xf32>,
    %cst_108 = arith.constant 0.000000e+00 : f32
    %149 = vector.broadcast %cst_108 : f32 to vector<128x128xf32>
    %150 = vector.extract_strided_slice %0 {offsets = [0, 0, 0, 0], sizes = [2, 8, 8, 48], strides = [1, 1, 1, 1]} : vector<2x10x10x48xf32> to vector<2x8x8x48xf32>
    %151 = vector.shape_cast %150 : vector<2x8x8x48xf32> to vector<128x48xf32>
    %152 = arith.truncf %151 : vector<128x48xf32> to vector<128x48xbf16>
    %c2_109 = arith.constant 2 : index
    %c0_110 = arith.constant 0 : index
    %c0_111 = arith.constant 0 : index
    %c0_112 = arith.constant 0 : index
    %153 = vector.load %arg2[%c2_109, %c0_110, %c0_111, %c0_112] : memref<4x9x48x128xbf16, #tpu.memory_space<vmem>>, vector<1x1x48x128xbf16>
    %154 = vector.shape_cast %153 : vector<1x1x48x128xbf16> to vector<48x128xbf16>
    %cst_113 = arith.constant dense<0.000000e+00> : vector<128x128xf32>
    %155 = tpu.matmul %152, %154, %cst_113 {dimension_numbers = #tpu.dot_dimension_numbers<[1], [0], [0], [1], [0, 0, 1, 1], [], []>} : vector<128x48xbf16>, vector<48x128xbf16>, vector<128x128xf32> -> vector<128x128xf32>
    %156 = arith.addf %149, %155 : vector<128x128xf32>
    %157 = vector.extract_strided_slice %0 {offsets = [0, 0, 1, 0], sizes = [2, 8, 8, 48], strides = [1, 1, 1, 1]} : vector<2x10x10x48xf32> to vector<2x8x8x48xf32>
    %158 = vector.shape_cast %157 : vector<2x8x8x48xf32> to vector<128x48xf32>
    %159 = arith.truncf %158 : vector<128x48xf32> to vector<128x48xbf16>
    %c2_114 = arith.constant 2 : index
    %c1_115 = arith.constant 1 : index
    %c0_116 = arith.constant 0 : index
    %c0_117 = arith.constant 0 : index
    %160 = vector.load %arg2[%c2_114, %c1_115, %c0_116, %c0_117] : memref<4x9x48x128xbf16, #tpu.memory_space<vmem>>, vector<1x1x48x128xbf16>
    %161 = vector.shape_cast %160 : vector<1x1x48x128xbf16> to vector<48x128xbf16>
    %cst_118 = arith.constant dense<0.000000e+00> : vector<128x128xf32>
    %162 = tpu.matmul %159, %161, %cst_118 {dimension_numbers = #tpu.dot_dimension_numbers<[1], [0], [0], [1], [0, 0, 1, 1], [], []>} : vector<128x48xbf16>, vector<48x128xbf16>, vector<128x128xf32> -> vector<128x128xf32>
    %163 = arith.addf %156, %162 : vector<128x128xf32>
    %164 = vector.extract_strided_slice %0 {offsets = [0, 0, 2, 0], sizes = [2, 8, 8, 48], strides = [1, 1, 1, 1]} : vector<2x10x10x48xf32> to vector<2x8x8x48xf32>
    %165 = vector.shape_cast %164 : vector<2x8x8x48xf32> to vector<128x48xf32>
    %166 = arith.truncf %165 : vector<128x48xf32> to vector<128x48xbf16>
    %c2_119 = arith.constant 2 : index
    %c2_120 = arith.constant 2 : index
    %c0_121 = arith.constant 0 : index
    %c0_122 = arith.constant 0 : index
    %167 = vector.load %arg2[%c2_119, %c2_120, %c0_121, %c0_122] : memref<4x9x48x128xbf16, #tpu.memory_space<vmem>>, vector<1x1x48x128xbf16>
    %168 = vector.shape_cast %167 : vector<1x1x48x128xbf16> to vector<48x128xbf16>
    %cst_123 = arith.constant dense<0.000000e+00> : vector<128x128xf32>
    %169 = tpu.matmul %166, %168, %cst_123 {dimension_numbers = #tpu.dot_dimension_numbers<[1], [0], [0], [1], [0, 0, 1, 1], [], []>} : vector<128x48xbf16>, vector<48x128xbf16>, vector<128x128xf32> -> vector<128x128xf32>
    %170 = arith.addf %163, %169 : vector<128x128xf32>
    %171 = vector.extract_strided_slice %0 {offsets = [0, 1, 0, 0], sizes = [2, 8, 8, 48], strides = [1, 1, 1, 1]} : vector<2x10x10x48xf32> to vector<2x8x8x48xf32>
    %172 = vector.shape_cast %171 : vector<2x8x8x48xf32> to vector<128x48xf32>
    %173 = arith.truncf %172 : vector<128x48xf32> to vector<128x48xbf16>
    %c2_124 = arith.constant 2 : index
    %c3_125 = arith.constant 3 : index
    %c0_126 = arith.constant 0 : index
    %c0_127 = arith.constant 0 : index
    %174 = vector.load %arg2[%c2_124, %c3_125, %c0_126, %c0_127] : memref<4x9x48x128xbf16, #tpu.memory_space<vmem>>, vector<1x1x48x128xbf16>
    %175 = vector.shape_cast %174 : vector<1x1x48x128xbf16> to vector<48x128xbf16>
    %cst_128 = arith.constant dense<0.000000e+00> : vector<128x128xf32>
    %176 = tpu.matmul %173, %175, %cst_128 {dimension_numbers = #tpu.dot_dimension_numbers<[1], [0], [0], [1], [0, 0, 1, 1], [], []>} : vector<128x48xbf16>, vector<48x128xbf16>, vector<128x128xf32> -> vector<128x128xf32>
    %177 = arith.addf %170, %176 : vector<128x128xf32>
    %178 = vector.extract_strided_slice %0 {offsets = [0, 1, 1, 0], sizes = [2, 8, 8, 48], strides = [1, 1, 1, 1]} : vector<2x10x10x48xf32> to vector<2x8x8x48xf32>
    %179 = vector.shape_cast %178 : vector<2x8x8x48xf32> to vector<128x48xf32>
    %180 = arith.truncf %179 : vector<128x48xf32> to vector<128x48xbf16>
    %c2_129 = arith.constant 2 : index
    %c4_130 = arith.constant 4 : index
    %c0_131 = arith.constant 0 : index
    %c0_132 = arith.constant 0 : index
    %181 = vector.load %arg2[%c2_129, %c4_130, %c0_131, %c0_132] : memref<4x9x48x128xbf16, #tpu.memory_space<vmem>>, vector<1x1x48x128xbf16>
    %182 = vector.shape_cast %181 : vector<1x1x48x128xbf16> to vector<48x128xbf16>
    %cst_133 = arith.constant dense<0.000000e+00> : vector<128x128xf32>
    %183 = tpu.matmul %180, %182, %cst_133 {dimension_numbers = #tpu.dot_dimension_numbers<[1], [0], [0], [1], [0, 0, 1, 1], [], []>} : vector<128x48xbf16>, vector<48x128xbf16>, vector<128x128xf32> -> vector<128x128xf32>
    %184 = arith.addf %177, %183 : vector<128x128xf32>
    %185 = vector.extract_strided_slice %0 {offsets = [0, 1, 2, 0], sizes = [2, 8, 8, 48], strides = [1, 1, 1, 1]} : vector<2x10x10x48xf32> to vector<2x8x8x48xf32>
    %186 = vector.shape_cast %185 : vector<2x8x8x48xf32> to vector<128x48xf32>
    %187 = arith.truncf %186 : vector<128x48xf32> to vector<128x48xbf16>
    %c2_134 = arith.constant 2 : index
    %c5_135 = arith.constant 5 : index
    %c0_136 = arith.constant 0 : index
    %c0_137 = arith.constant 0 : index
    %188 = vector.load %arg2[%c2_134, %c5_135, %c0_136, %c0_137] : memref<4x9x48x128xbf16, #tpu.memory_space<vmem>>, vector<1x1x48x128xbf16>
    %189 = vector.shape_cast %188 : vector<1x1x48x128xbf16> to vector<48x128xbf16>
    %cst_138 = arith.constant dense<0.000000e+00> : vector<128x128xf32>
    %190 = tpu.matmul %187, %189, %cst_138 {dimension_numbers = #tpu.dot_dimension_numbers<[1], [0], [0], [1], [0, 0, 1, 1], [], []>} : vector<128x48xbf16>, vector<48x128xbf16>, vector<128x128xf32> -> vector<128x128xf32>
    %191 = arith.addf %184, %190 : vector<128x128xf32>
    %192 = vector.extract_strided_slice %0 {offsets = [0, 2, 0, 0], sizes = [2, 8, 8, 48], strides = [1, 1, 1, 1]} : vector<2x10x10x48xf32> to vector<2x8x8x48xf32>
    %193 = vector.shape_cast %192 : vector<2x8x8x48xf32> to vector<128x48xf32>
    %194 = arith.truncf %193 : vector<128x48xf32> to vector<128x48xbf16>
    %c2_139 = arith.constant 2 : index
    %c6_140 = arith.constant 6 : index
    %c0_141 = arith.constant 0 : index
    %c0_142 = arith.constant 0 : index
    %195 = vector.load %arg2[%c2_139, %c6_140, %c0_141, %c0_142] : memref<4x9x48x128xbf16, #tpu.memory_space<vmem>>, vector<1x1x48x128xbf16>
    %196 = vector.shape_cast %195 : vector<1x1x48x128xbf16> to vector<48x128xbf16>
    %cst_143 = arith.constant dense<0.000000e+00> : vector<128x128xf32>
    %197 = tpu.matmul %194, %196, %cst_143 {dimension_numbers = #tpu.dot_dimension_numbers<[1], [0], [0], [1], [0, 0, 1, 1], [], []>} : vector<128x48xbf16>, vector<48x128xbf16>, vector<128x128xf32> -> vector<128x128xf32>
    %198 = arith.addf %191, %197 : vector<128x128xf32>
    %199 = vector.extract_strided_slice %0 {offsets = [0, 2, 1, 0], sizes = [2, 8, 8, 48], strides = [1, 1, 1, 1]} : vector<2x10x10x48xf32> to vector<2x8x8x48xf32>
    %200 = vector.shape_cast %199 : vector<2x8x8x48xf32> to vector<128x48xf32>
    %201 = arith.truncf %200 : vector<128x48xf32> to vector<128x48xbf16>
    %c2_144 = arith.constant 2 : index
    %c7_145 = arith.constant 7 : index
    %c0_146 = arith.constant 0 : index
    %c0_147 = arith.constant 0 : index
    %202 = vector.load %arg2[%c2_144, %c7_145, %c0_146, %c0_147] : memref<4x9x48x128xbf16, #tpu.memory_space<vmem>>, vector<1x1x48x128xbf16>
    %203 = vector.shape_cast %202 : vector<1x1x48x128xbf16> to vector<48x128xbf16>
    %cst_148 = arith.constant dense<0.000000e+00> : vector<128x128xf32>
    %204 = tpu.matmul %201, %203, %cst_148 {dimension_numbers = #tpu.dot_dimension_numbers<[1], [0], [0], [1], [0, 0, 1, 1], [], []>} : vector<128x48xbf16>, vector<48x128xbf16>, vector<128x128xf32> -> vector<128x128xf32>
    %205 = arith.addf %198, %204 : vector<128x128xf32>
    %206 = vector.extract_strided_slice %0 {offsets = [0, 2, 2, 0], sizes = [2, 8, 8, 48], strides = [1, 1, 1, 1]} : vector<2x10x10x48xf32> to vector<2x8x8x48xf32>
    %207 = vector.shape_cast %206 : vector<2x8x8x48xf32> to vector<128x48xf32>
    %208 = arith.truncf %207 : vector<128x48xf32> to vector<128x48xbf16>
    %c2_149 = arith.constant 2 : index
    %c8_150 = arith.constant 8 : index
    %c0_151 = arith.constant 0 : index
    %c0_152 = arith.constant 0 : index
    %209 = vector.load %arg2[%c2_149, %c8_150, %c0_151, %c0_152] : memref<4x9x48x128xbf16, #tpu.memory_space<vmem>>, vector<1x1x48x128xbf16>
    %210 = vector.shape_cast %209 : vector<1x1x48x128xbf16> to vector<48x128xbf16>
    %cst_153 = arith.constant dense<0.000000e+00> : vector<128x128xf32>
    %211 = tpu.matmul %208, %210, %cst_153 {dimension_numbers = #tpu.dot_dimension_numbers<[1], [0], [0], [1], [0, 0, 1, 1], [], []>} : vector<128x48xbf16>, vector<48x128xbf16>, vector<128x128xf32> -> vector<128x128xf32>
    %212 = arith.addf %205, %211 : vector<128x128xf32>
    %c0_154 = arith.constant 0 : index
    %c0_155 = arith.constant 0 : index
    %213 = vector.load %arg3[%c0_154, %c0_155] : memref<1x128xf32, #tpu.memory_space<vmem>>, vector<1x128xf32>
    %214 = vector.broadcast %213 : vector<1x128xf32> to vector<128x128xf32>
    %215 = arith.addf %212, %214 : vector<128x128xf32>
    %cst_156 = arith.constant 0.000000e+00 : f32
    %216 = vector.broadcast %cst_156 : f32 to vector<128x128xf32>
    %217 = arith.maximumf %215, %216 : vector<128x128xf32>
    %218 = vector.shape_cast %217 : vector<128x128xf32> to vector<2x8x8x128xf32>
    %c2_157 = arith.constant 2 : index
    %c0_158 = arith.constant 0 : index
    %c1_159 = arith.constant 1 : index
    %c1_160 = arith.constant 1 : index
    %c0_161 = arith.constant 0 : index
    %219 = vector.load %arg17[%c2_157, %c0_158, %c1_159, %c1_160, %c0_161] : memref<4x2x9x9x128xf32, #tpu.memory_space<vmem>>, vector<1x2x8x8x128xf32>
    %220 = vector.shape_cast %219 : vector<1x2x8x8x128xf32> to vector<2x8x8x128xf32>
    %221 = vector.shape_cast %218 : vector<2x8x8x128xf32> to vector<1x2x8x8x128xf32>
    tpu.vector_store %arg17[%c2_157, %c0_158, %c1_159, %c1_160, %c0_161], %221 {strides = array<i32>} : memref<4x2x9x9x128xf32, #tpu.memory_space<vmem>>, vector<1x2x8x8x128xf32>,
    %cst_162 = arith.constant 0.000000e+00 : f32
    %222 = vector.broadcast %cst_162 : f32 to vector<128x128xf32>
    %223 = vector.extract_strided_slice %0 {offsets = [0, 0, 0, 0], sizes = [2, 8, 8, 48], strides = [1, 1, 1, 1]} : vector<2x10x10x48xf32> to vector<2x8x8x48xf32>
    %224 = vector.shape_cast %223 : vector<2x8x8x48xf32> to vector<128x48xf32>
    %225 = arith.truncf %224 : vector<128x48xf32> to vector<128x48xbf16>
    %c3_163 = arith.constant 3 : index
    %c0_164 = arith.constant 0 : index
    %c0_165 = arith.constant 0 : index
    %c0_166 = arith.constant 0 : index
    %226 = vector.load %arg2[%c3_163, %c0_164, %c0_165, %c0_166] : memref<4x9x48x128xbf16, #tpu.memory_space<vmem>>, vector<1x1x48x128xbf16>
    %227 = vector.shape_cast %226 : vector<1x1x48x128xbf16> to vector<48x128xbf16>
    %cst_167 = arith.constant dense<0.000000e+00> : vector<128x128xf32>
    %228 = tpu.matmul %225, %227, %cst_167 {dimension_numbers = #tpu.dot_dimension_numbers<[1], [0], [0], [1], [0, 0, 1, 1], [], []>} : vector<128x48xbf16>, vector<48x128xbf16>, vector<128x128xf32> -> vector<128x128xf32>
    %229 = arith.addf %222, %228 : vector<128x128xf32>
    %230 = vector.extract_strided_slice %0 {offsets = [0, 0, 1, 0], sizes = [2, 8, 8, 48], strides = [1, 1, 1, 1]} : vector<2x10x10x48xf32> to vector<2x8x8x48xf32>
    %231 = vector.shape_cast %230 : vector<2x8x8x48xf32> to vector<128x48xf32>
    %232 = arith.truncf %231 : vector<128x48xf32> to vector<128x48xbf16>
    %c3_168 = arith.constant 3 : index
    %c1_169 = arith.constant 1 : index
    %c0_170 = arith.constant 0 : index
    %c0_171 = arith.constant 0 : index
    %233 = vector.load %arg2[%c3_168, %c1_169, %c0_170, %c0_171] : memref<4x9x48x128xbf16, #tpu.memory_space<vmem>>, vector<1x1x48x128xbf16>
    %234 = vector.shape_cast %233 : vector<1x1x48x128xbf16> to vector<48x128xbf16>
    %cst_172 = arith.constant dense<0.000000e+00> : vector<128x128xf32>
    %235 = tpu.matmul %232, %234, %cst_172 {dimension_numbers = #tpu.dot_dimension_numbers<[1], [0], [0], [1], [0, 0, 1, 1], [], []>} : vector<128x48xbf16>, vector<48x128xbf16>, vector<128x128xf32> -> vector<128x128xf32>
    %236 = arith.addf %229, %235 : vector<128x128xf32>
    %237 = vector.extract_strided_slice %0 {offsets = [0, 0, 2, 0], sizes = [2, 8, 8, 48], strides = [1, 1, 1, 1]} : vector<2x10x10x48xf32> to vector<2x8x8x48xf32>
    %238 = vector.shape_cast %237 : vector<2x8x8x48xf32> to vector<128x48xf32>
    %239 = arith.truncf %238 : vector<128x48xf32> to vector<128x48xbf16>
    %c3_173 = arith.constant 3 : index
    %c2_174 = arith.constant 2 : index
    %c0_175 = arith.constant 0 : index
    %c0_176 = arith.constant 0 : index
    %240 = vector.load %arg2[%c3_173, %c2_174, %c0_175, %c0_176] : memref<4x9x48x128xbf16, #tpu.memory_space<vmem>>, vector<1x1x48x128xbf16>
    %241 = vector.shape_cast %240 : vector<1x1x48x128xbf16> to vector<48x128xbf16>
    %cst_177 = arith.constant dense<0.000000e+00> : vector<128x128xf32>
    %242 = tpu.matmul %239, %241, %cst_177 {dimension_numbers = #tpu.dot_dimension_numbers<[1], [0], [0], [1], [0, 0, 1, 1], [], []>} : vector<128x48xbf16>, vector<48x128xbf16>, vector<128x128xf32> -> vector<128x128xf32>
    %243 = arith.addf %236, %242 : vector<128x128xf32>
    %244 = vector.extract_strided_slice %0 {offsets = [0, 1, 0, 0], sizes = [2, 8, 8, 48], strides = [1, 1, 1, 1]} : vector<2x10x10x48xf32> to vector<2x8x8x48xf32>
    %245 = vector.shape_cast %244 : vector<2x8x8x48xf32> to vector<128x48xf32>
    %246 = arith.truncf %245 : vector<128x48xf32> to vector<128x48xbf16>
    %c3_178 = arith.constant 3 : index
    %c3_179 = arith.constant 3 : index
    %c0_180 = arith.constant 0 : index
    %c0_181 = arith.constant 0 : index
    %247 = vector.load %arg2[%c3_178, %c3_179, %c0_180, %c0_181] : memref<4x9x48x128xbf16, #tpu.memory_space<vmem>>, vector<1x1x48x128xbf16>
    %248 = vector.shape_cast %247 : vector<1x1x48x128xbf16> to vector<48x128xbf16>
    %cst_182 = arith.constant dense<0.000000e+00> : vector<128x128xf32>
    %249 = tpu.matmul %246, %248, %cst_182 {dimension_numbers = #tpu.dot_dimension_numbers<[1], [0], [0], [1], [0, 0, 1, 1], [], []>} : vector<128x48xbf16>, vector<48x128xbf16>, vector<128x128xf32> -> vector<128x128xf32>
    %250 = arith.addf %243, %249 : vector<128x128xf32>
    %251 = vector.extract_strided_slice %0 {offsets = [0, 1, 1, 0], sizes = [2, 8, 8, 48], strides = [1, 1, 1, 1]} : vector<2x10x10x48xf32> to vector<2x8x8x48xf32>
    %252 = vector.shape_cast %251 : vector<2x8x8x48xf32> to vector<128x48xf32>
    %253 = arith.truncf %252 : vector<128x48xf32> to vector<128x48xbf16>
    %c3_183 = arith.constant 3 : index
    %c4_184 = arith.constant 4 : index
    %c0_185 = arith.constant 0 : index
    %c0_186 = arith.constant 0 : index
    %254 = vector.load %arg2[%c3_183, %c4_184, %c0_185, %c0_186] : memref<4x9x48x128xbf16, #tpu.memory_space<vmem>>, vector<1x1x48x128xbf16>
    %255 = vector.shape_cast %254 : vector<1x1x48x128xbf16> to vector<48x128xbf16>
    %cst_187 = arith.constant dense<0.000000e+00> : vector<128x128xf32>
    %256 = tpu.matmul %253, %255, %cst_187 {dimension_numbers = #tpu.dot_dimension_numbers<[1], [0], [0], [1], [0, 0, 1, 1], [], []>} : vector<128x48xbf16>, vector<48x128xbf16>, vector<128x128xf32> -> vector<128x128xf32>
    %257 = arith.addf %250, %256 : vector<128x128xf32>
    %258 = vector.extract_strided_slice %0 {offsets = [0, 1, 2, 0], sizes = [2, 8, 8, 48], strides = [1, 1, 1, 1]} : vector<2x10x10x48xf32> to vector<2x8x8x48xf32>
    %259 = vector.shape_cast %258 : vector<2x8x8x48xf32> to vector<128x48xf32>
    %260 = arith.truncf %259 : vector<128x48xf32> to vector<128x48xbf16>
    %c3_188 = arith.constant 3 : index
    %c5_189 = arith.constant 5 : index
    %c0_190 = arith.constant 0 : index
    %c0_191 = arith.constant 0 : index
    %261 = vector.load %arg2[%c3_188, %c5_189, %c0_190, %c0_191] : memref<4x9x48x128xbf16, #tpu.memory_space<vmem>>, vector<1x1x48x128xbf16>
    %262 = vector.shape_cast %261 : vector<1x1x48x128xbf16> to vector<48x128xbf16>
    %cst_192 = arith.constant dense<0.000000e+00> : vector<128x128xf32>
    %263 = tpu.matmul %260, %262, %cst_192 {dimension_numbers = #tpu.dot_dimension_numbers<[1], [0], [0], [1], [0, 0, 1, 1], [], []>} : vector<128x48xbf16>, vector<48x128xbf16>, vector<128x128xf32> -> vector<128x128xf32>
    %264 = arith.addf %257, %263 : vector<128x128xf32>
    %265 = vector.extract_strided_slice %0 {offsets = [0, 2, 0, 0], sizes = [2, 8, 8, 48], strides = [1, 1, 1, 1]} : vector<2x10x10x48xf32> to vector<2x8x8x48xf32>
    %266 = vector.shape_cast %265 : vector<2x8x8x48xf32> to vector<128x48xf32>
    %267 = arith.truncf %266 : vector<128x48xf32> to vector<128x48xbf16>
    %c3_193 = arith.constant 3 : index
    %c6_194 = arith.constant 6 : index
    %c0_195 = arith.constant 0 : index
    %c0_196 = arith.constant 0 : index
    %268 = vector.load %arg2[%c3_193, %c6_194, %c0_195, %c0_196] : memref<4x9x48x128xbf16, #tpu.memory_space<vmem>>, vector<1x1x48x128xbf16>
    %269 = vector.shape_cast %268 : vector<1x1x48x128xbf16> to vector<48x128xbf16>
    %cst_197 = arith.constant dense<0.000000e+00> : vector<128x128xf32>
    %270 = tpu.matmul %267, %269, %cst_197 {dimension_numbers = #tpu.dot_dimension_numbers<[1], [0], [0], [1], [0, 0, 1, 1], [], []>} : vector<128x48xbf16>, vector<48x128xbf16>, vector<128x128xf32> -> vector<128x128xf32>
    %271 = arith.addf %264, %270 : vector<128x128xf32>
    %272 = vector.extract_strided_slice %0 {offsets = [0, 2, 1, 0], sizes = [2, 8, 8, 48], strides = [1, 1, 1, 1]} : vector<2x10x10x48xf32> to vector<2x8x8x48xf32>
    %273 = vector.shape_cast %272 : vector<2x8x8x48xf32> to vector<128x48xf32>
    %274 = arith.truncf %273 : vector<128x48xf32> to vector<128x48xbf16>
    %c3_198 = arith.constant 3 : index
    %c7_199 = arith.constant 7 : index
    %c0_200 = arith.constant 0 : index
    %c0_201 = arith.constant 0 : index
    %275 = vector.load %arg2[%c3_198, %c7_199, %c0_200, %c0_201] : memref<4x9x48x128xbf16, #tpu.memory_space<vmem>>, vector<1x1x48x128xbf16>
    %276 = vector.shape_cast %275 : vector<1x1x48x128xbf16> to vector<48x128xbf16>
    %cst_202 = arith.constant dense<0.000000e+00> : vector<128x128xf32>
    %277 = tpu.matmul %274, %276, %cst_202 {dimension_numbers = #tpu.dot_dimension_numbers<[1], [0], [0], [1], [0, 0, 1, 1], [], []>} : vector<128x48xbf16>, vector<48x128xbf16>, vector<128x128xf32> -> vector<128x128xf32>
    %278 = arith.addf %271, %277 : vector<128x128xf32>
    %279 = vector.extract_strided_slice %0 {offsets = [0, 2, 2, 0], sizes = [2, 8, 8, 48], strides = [1, 1, 1, 1]} : vector<2x10x10x48xf32> to vector<2x8x8x48xf32>
    %280 = vector.shape_cast %279 : vector<2x8x8x48xf32> to vector<128x48xf32>
    %281 = arith.truncf %280 : vector<128x48xf32> to vector<128x48xbf16>
    %c3_203 = arith.constant 3 : index
    %c8_204 = arith.constant 8 : index
    %c0_205 = arith.constant 0 : index
    %c0_206 = arith.constant 0 : index
    %282 = vector.load %arg2[%c3_203, %c8_204, %c0_205, %c0_206] : memref<4x9x48x128xbf16, #tpu.memory_space<vmem>>, vector<1x1x48x128xbf16>
    %283 = vector.shape_cast %282 : vector<1x1x48x128xbf16> to vector<48x128xbf16>
    %cst_207 = arith.constant dense<0.000000e+00> : vector<128x128xf32>
    %284 = tpu.matmul %281, %283, %cst_207 {dimension_numbers = #tpu.dot_dimension_numbers<[1], [0], [0], [1], [0, 0, 1, 1], [], []>} : vector<128x48xbf16>, vector<48x128xbf16>, vector<128x128xf32> -> vector<128x128xf32>
    %285 = arith.addf %278, %284 : vector<128x128xf32>
    %c0_208 = arith.constant 0 : index
    %c0_209 = arith.constant 0 : index
    %286 = vector.load %arg3[%c0_208, %c0_209] : memref<1x128xf32, #tpu.memory_space<vmem>>, vector<1x128xf32>
    %287 = vector.broadcast %286 : vector<1x128xf32> to vector<128x128xf32>
    %288 = arith.addf %285, %287 : vector<128x128xf32>
    %cst_210 = arith.constant 0.000000e+00 : f32
    %289 = vector.broadcast %cst_210 : f32 to vector<128x128xf32>
    %290 = arith.maximumf %288, %289 : vector<128x128xf32>
    %291 = vector.shape_cast %290 : vector<128x128xf32> to vector<2x8x8x128xf32>
    %c3_211 = arith.constant 3 : index
    %c0_212 = arith.constant 0 : index
    %c1_213 = arith.constant 1 : index
    %c1_214 = arith.constant 1 : index
    %c0_215 = arith.constant 0 : index
    %292 = vector.load %arg17[%c3_211, %c0_212, %c1_213, %c1_214, %c0_215] : memref<4x2x9x9x128xf32, #tpu.memory_space<vmem>>, vector<1x2x8x8x128xf32>
    %293 = vector.shape_cast %292 : vector<1x2x8x8x128xf32> to vector<2x8x8x128xf32>
    %294 = vector.shape_cast %291 : vector<2x8x8x128xf32> to vector<1x2x8x8x128xf32>
    tpu.vector_store %arg17[%c3_211, %c0_212, %c1_213, %c1_214, %c0_215], %294 {strides = array<i32>} : memref<4x2x9x9x128xf32, #tpu.memory_space<vmem>>, vector<1x2x8x8x128xf32>,
    %c0_216 = arith.constant 0 : index
    %c0_217 = arith.constant 0 : index
    %c1_218 = arith.constant 1 : index
    %c1_219 = arith.constant 1 : index
    %c0_220 = arith.constant 0 : index
    %295 = vector.load %arg17[%c0_216, %c0_217, %c1_218, %c1_219, %c0_220] : memref<4x2x9x9x128xf32, #tpu.memory_space<vmem>>, vector<1x2x8x8x128xf32>
    %296 = vector.shape_cast %295 : vector<1x2x8x8x128xf32> to vector<2x8x8x128xf32>
    %c1_221 = arith.constant 1 : index
    %c0_222 = arith.constant 0 : index
    %c1_223 = arith.constant 1 : index
    %c1_224 = arith.constant 1 : index
    %c0_225 = arith.constant 0 : index
    %297 = vector.load %arg17[%c1_221, %c0_222, %c1_223, %c1_224, %c0_225] : memref<4x2x9x9x128xf32, #tpu.memory_space<vmem>>, vector<1x2x8x8x128xf32>
    %298 = vector.shape_cast %297 : vector<1x2x8x8x128xf32> to vector<2x8x8x128xf32>
    %299 = arith.maximumf %296, %298 : vector<2x8x8x128xf32>
    %c1_226 = arith.constant 1 : index
    %c0_227 = arith.constant 0 : index
    %c1_228 = arith.constant 1 : index
    %c0_229 = arith.constant 0 : index
    %c0_230 = arith.constant 0 : index
    %300 = vector.load %arg17[%c1_226, %c0_227, %c1_228, %c0_229, %c0_230] : memref<4x2x9x9x128xf32, #tpu.memory_space<vmem>>, vector<1x2x8x8x128xf32>
    %301 = vector.shape_cast %300 : vector<1x2x8x8x128xf32> to vector<2x8x8x128xf32>
    %302 = arith.maximumf %299, %301 : vector<2x8x8x128xf32>
    %c2_231 = arith.constant 2 : index
    %c0_232 = arith.constant 0 : index
    %c1_233 = arith.constant 1 : index
    %c1_234 = arith.constant 1 : index
    %c0_235 = arith.constant 0 : index
    %303 = vector.load %arg17[%c2_231, %c0_232, %c1_233, %c1_234, %c0_235] : memref<4x2x9x9x128xf32, #tpu.memory_space<vmem>>, vector<1x2x8x8x128xf32>
    %304 = vector.shape_cast %303 : vector<1x2x8x8x128xf32> to vector<2x8x8x128xf32>
    %305 = arith.maximumf %302, %304 : vector<2x8x8x128xf32>
    %c2_236 = arith.constant 2 : index
    %c0_237 = arith.constant 0 : index
    %c0_238 = arith.constant 0 : index
    %c1_239 = arith.constant 1 : index
    %c0_240 = arith.constant 0 : index
    %306 = vector.load %arg17[%c2_236, %c0_237, %c0_238, %c1_239, %c0_240] : memref<4x2x9x9x128xf32, #tpu.memory_space<vmem>>, vector<1x2x8x8x128xf32>
    %307 = vector.shape_cast %306 : vector<1x2x8x8x128xf32> to vector<2x8x8x128xf32>
    %308 = arith.maximumf %305, %307 : vector<2x8x8x128xf32>
    %c3_241 = arith.constant 3 : index
    %c0_242 = arith.constant 0 : index
    %c1_243 = arith.constant 1 : index
    %c1_244 = arith.constant 1 : index
    %c0_245 = arith.constant 0 : index
    %309 = vector.load %arg17[%c3_241, %c0_242, %c1_243, %c1_244, %c0_245] : memref<4x2x9x9x128xf32, #tpu.memory_space<vmem>>, vector<1x2x8x8x128xf32>
    %310 = vector.shape_cast %309 : vector<1x2x8x8x128xf32> to vector<2x8x8x128xf32>
    %311 = arith.maximumf %308, %310 : vector<2x8x8x128xf32>
    %c3_246 = arith.constant 3 : index
    %c0_247 = arith.constant 0 : index
    %c1_248 = arith.constant 1 : index
    %c0_249 = arith.constant 0 : index
    %c0_250 = arith.constant 0 : index
    %312 = vector.load %arg17[%c3_246, %c0_247, %c1_248, %c0_249, %c0_250] : memref<4x2x9x9x128xf32, #tpu.memory_space<vmem>>, vector<1x2x8x8x128xf32>
    %313 = vector.shape_cast %312 : vector<1x2x8x8x128xf32> to vector<2x8x8x128xf32>
    %314 = arith.maximumf %311, %313 : vector<2x8x8x128xf32>
    %c3_251 = arith.constant 3 : index
    %c0_252 = arith.constant 0 : index
    %c0_253 = arith.constant 0 : index
    %c1_254 = arith.constant 1 : index
    %c0_255 = arith.constant 0 : index
    %315 = vector.load %arg17[%c3_251, %c0_252, %c0_253, %c1_254, %c0_255] : memref<4x2x9x9x128xf32, #tpu.memory_space<vmem>>, vector<1x2x8x8x128xf32>
    %316 = vector.shape_cast %315 : vector<1x2x8x8x128xf32> to vector<2x8x8x128xf32>
    %317 = arith.maximumf %314, %316 : vector<2x8x8x128xf32>
    %c3_256 = arith.constant 3 : index
    %c0_257 = arith.constant 0 : index
    %c0_258 = arith.constant 0 : index
    %c0_259 = arith.constant 0 : index
    %c0_260 = arith.constant 0 : index
    %318 = vector.load %arg17[%c3_256, %c0_257, %c0_258, %c0_259, %c0_260] : memref<4x2x9x9x128xf32, #tpu.memory_space<vmem>>, vector<1x2x8x8x128xf32>
    %319 = vector.shape_cast %318 : vector<1x2x8x8x128xf32> to vector<2x8x8x128xf32>
    %320 = arith.maximumf %317, %319 : vector<2x8x8x128xf32>
    %321 = vector.shape_cast %320 : vector<2x8x8x128xf32> to vector<128x128xf32>
    %322 = arith.truncf %321 : vector<128x128xf32> to vector<128x128xbf16>
    %c0_261 = arith.constant 0 : index
    %c0_262 = arith.constant 0 : index
    %323 = vector.load %arg4[%c0_261, %c0_262] : memref<128x128xbf16, #tpu.memory_space<vmem>>, vector<128x128xbf16>
    %cst_263 = arith.constant dense<0.000000e+00> : vector<128x128xf32>
    %324 = tpu.matmul %322, %323, %cst_263 {dimension_numbers = #tpu.dot_dimension_numbers<[1], [0], [0], [1], [0, 0, 1, 1], [], []>} : vector<128x128xbf16>, vector<128x128xbf16>, vector<128x128xf32> -> vector<128x128xf32>
    %c0_264 = arith.constant 0 : index
    %c0_265 = arith.constant 0 : index
    %325 = vector.load %arg5[%c0_264, %c0_265] : memref<1x128xf32, #tpu.memory_space<vmem>>, vector<1x128xf32>
    %326 = vector.broadcast %325 : vector<1x128xf32> to vector<128x128xf32>
    %327 = arith.addf %324, %326 : vector<128x128xf32>
    %cst_266 = arith.constant 0.000000e+00 : f32
    %328 = vector.broadcast %cst_266 : f32 to vector<128x128xf32>
    %329 = arith.maximumf %327, %328 : vector<128x128xf32>
    %cst_267 = arith.constant 0.000000e+00 : f32
    %330 = vector.broadcast %cst_267 : f32 to vector<2x10x10x128xf32>
    %c0_268 = arith.constant 0 : index
    %c0_269 = arith.constant 0 : index
    %c0_270 = arith.constant 0 : index
    %c0_271 = arith.constant 0 : index
    %331 = vector.load %arg18[%c0_268, %c0_269, %c0_270, %c0_271] : memref<2x10x10x128xf32, #tpu.memory_space<vmem>>, vector<2x10x10x128xf32>
    tpu.vector_store %arg18[%c0_268, %c0_269, %c0_270, %c0_271], %330 {strides = array<i32>} : memref<2x10x10x128xf32, #tpu.memory_space<vmem>>, vector<2x10x10x128xf32>,
    %332 = vector.shape_cast %329 : vector<128x128xf32> to vector<2x8x8x128xf32>
    %c0_272 = arith.constant 0 : index
    %c1_273 = arith.constant 1 : index
    %c1_274 = arith.constant 1 : index
    %c0_275 = arith.constant 0 : index
    %333 = vector.load %arg18[%c0_272, %c1_273, %c1_274, %c0_275] : memref<2x10x10x128xf32, #tpu.memory_space<vmem>>, vector<2x8x8x128xf32>
    tpu.vector_store %arg18[%c0_272, %c1_273, %c1_274, %c0_275], %332 {strides = array<i32>} : memref<2x10x10x128xf32, #tpu.memory_space<vmem>>, vector<2x8x8x128xf32>,
    %cst_276 = arith.constant 0.000000e+00 : f32
    %334 = vector.broadcast %cst_276 : f32 to vector<128x128xf32>
    %c0_277 = arith.constant 0 : index
    %c0_278 = arith.constant 0 : index
    %c0_279 = arith.constant 0 : index
    %c0_280 = arith.constant 0 : index
    %335 = vector.load %arg18[%c0_277, %c0_278, %c0_279, %c0_280] : memref<2x10x10x128xf32, #tpu.memory_space<vmem>>, vector<2x8x8x128xf32>
    %336 = vector.shape_cast %335 : vector<2x8x8x128xf32> to vector<128x128xf32>
    %337 = arith.truncf %336 : vector<128x128xf32> to vector<128x128xbf16>
    %c0_281 = arith.constant 0 : index
    %c0_282 = arith.constant 0 : index
    %c0_283 = arith.constant 0 : index
    %338 = vector.load %arg6[%c0_281, %c0_282, %c0_283] : memref<9x128x128xbf16, #tpu.memory_space<vmem>>, vector<1x128x128xbf16>
    %339 = vector.shape_cast %338 : vector<1x128x128xbf16> to vector<128x128xbf16>
    %cst_284 = arith.constant dense<0.000000e+00> : vector<128x128xf32>
    %340 = tpu.matmul %337, %339, %cst_284 {dimension_numbers = #tpu.dot_dimension_numbers<[1], [0], [0], [1], [0, 0, 1, 1], [], []>} : vector<128x128xbf16>, vector<128x128xbf16>, vector<128x128xf32> -> vector<128x128xf32>
    %341 = arith.addf %334, %340 : vector<128x128xf32>
    %c0_285 = arith.constant 0 : index
    %c0_286 = arith.constant 0 : index
    %c1_287 = arith.constant 1 : index
    %c0_288 = arith.constant 0 : index
    %342 = vector.load %arg18[%c0_285, %c0_286, %c1_287, %c0_288] : memref<2x10x10x128xf32, #tpu.memory_space<vmem>>, vector<2x8x8x128xf32>
    %343 = vector.shape_cast %342 : vector<2x8x8x128xf32> to vector<128x128xf32>
    %344 = arith.truncf %343 : vector<128x128xf32> to vector<128x128xbf16>
    %c1_289 = arith.constant 1 : index
    %c0_290 = arith.constant 0 : index
    %c0_291 = arith.constant 0 : index
    %345 = vector.load %arg6[%c1_289, %c0_290, %c0_291] : memref<9x128x128xbf16, #tpu.memory_space<vmem>>, vector<1x128x128xbf16>
    %346 = vector.shape_cast %345 : vector<1x128x128xbf16> to vector<128x128xbf16>
    %cst_292 = arith.constant dense<0.000000e+00> : vector<128x128xf32>
    %347 = tpu.matmul %344, %346, %cst_292 {dimension_numbers = #tpu.dot_dimension_numbers<[1], [0], [0], [1], [0, 0, 1, 1], [], []>} : vector<128x128xbf16>, vector<128x128xbf16>, vector<128x128xf32> -> vector<128x128xf32>
    %348 = arith.addf %341, %347 : vector<128x128xf32>
    %c0_293 = arith.constant 0 : index
    %c0_294 = arith.constant 0 : index
    %c2_295 = arith.constant 2 : index
    %c0_296 = arith.constant 0 : index
    %349 = vector.load %arg18[%c0_293, %c0_294, %c2_295, %c0_296] : memref<2x10x10x128xf32, #tpu.memory_space<vmem>>, vector<2x8x8x128xf32>
    %350 = vector.shape_cast %349 : vector<2x8x8x128xf32> to vector<128x128xf32>
    %351 = arith.truncf %350 : vector<128x128xf32> to vector<128x128xbf16>
    %c2_297 = arith.constant 2 : index
    %c0_298 = arith.constant 0 : index
    %c0_299 = arith.constant 0 : index
    %352 = vector.load %arg6[%c2_297, %c0_298, %c0_299] : memref<9x128x128xbf16, #tpu.memory_space<vmem>>, vector<1x128x128xbf16>
    %353 = vector.shape_cast %352 : vector<1x128x128xbf16> to vector<128x128xbf16>
    %cst_300 = arith.constant dense<0.000000e+00> : vector<128x128xf32>
    %354 = tpu.matmul %351, %353, %cst_300 {dimension_numbers = #tpu.dot_dimension_numbers<[1], [0], [0], [1], [0, 0, 1, 1], [], []>} : vector<128x128xbf16>, vector<128x128xbf16>, vector<128x128xf32> -> vector<128x128xf32>
    %355 = arith.addf %348, %354 : vector<128x128xf32>
    %c0_301 = arith.constant 0 : index
    %c1_302 = arith.constant 1 : index
    %c0_303 = arith.constant 0 : index
    %c0_304 = arith.constant 0 : index
    %356 = vector.load %arg18[%c0_301, %c1_302, %c0_303, %c0_304] : memref<2x10x10x128xf32, #tpu.memory_space<vmem>>, vector<2x8x8x128xf32>
    %357 = vector.shape_cast %356 : vector<2x8x8x128xf32> to vector<128x128xf32>
    %358 = arith.truncf %357 : vector<128x128xf32> to vector<128x128xbf16>
    %c3_305 = arith.constant 3 : index
    %c0_306 = arith.constant 0 : index
    %c0_307 = arith.constant 0 : index
    %359 = vector.load %arg6[%c3_305, %c0_306, %c0_307] : memref<9x128x128xbf16, #tpu.memory_space<vmem>>, vector<1x128x128xbf16>
    %360 = vector.shape_cast %359 : vector<1x128x128xbf16> to vector<128x128xbf16>
    %cst_308 = arith.constant dense<0.000000e+00> : vector<128x128xf32>
    %361 = tpu.matmul %358, %360, %cst_308 {dimension_numbers = #tpu.dot_dimension_numbers<[1], [0], [0], [1], [0, 0, 1, 1], [], []>} : vector<128x128xbf16>, vector<128x128xbf16>, vector<128x128xf32> -> vector<128x128xf32>
    %362 = arith.addf %355, %361 : vector<128x128xf32>
    %c0_309 = arith.constant 0 : index
    %c1_310 = arith.constant 1 : index
    %c1_311 = arith.constant 1 : index
    %c0_312 = arith.constant 0 : index
    %363 = vector.load %arg18[%c0_309, %c1_310, %c1_311, %c0_312] : memref<2x10x10x128xf32, #tpu.memory_space<vmem>>, vector<2x8x8x128xf32>
    %364 = vector.shape_cast %363 : vector<2x8x8x128xf32> to vector<128x128xf32>
    %365 = arith.truncf %364 : vector<128x128xf32> to vector<128x128xbf16>
    %c4_313 = arith.constant 4 : index
    %c0_314 = arith.constant 0 : index
    %c0_315 = arith.constant 0 : index
    %366 = vector.load %arg6[%c4_313, %c0_314, %c0_315] : memref<9x128x128xbf16, #tpu.memory_space<vmem>>, vector<1x128x128xbf16>
    %367 = vector.shape_cast %366 : vector<1x128x128xbf16> to vector<128x128xbf16>
    %cst_316 = arith.constant dense<0.000000e+00> : vector<128x128xf32>
    %368 = tpu.matmul %365, %367, %cst_316 {dimension_numbers = #tpu.dot_dimension_numbers<[1], [0], [0], [1], [0, 0, 1, 1], [], []>} : vector<128x128xbf16>, vector<128x128xbf16>, vector<128x128xf32> -> vector<128x128xf32>
    %369 = arith.addf %362, %368 : vector<128x128xf32>
    %c0_317 = arith.constant 0 : index
    %c1_318 = arith.constant 1 : index
    %c2_319 = arith.constant 2 : index
    %c0_320 = arith.constant 0 : index
    %370 = vector.load %arg18[%c0_317, %c1_318, %c2_319, %c0_320] : memref<2x10x10x128xf32, #tpu.memory_space<vmem>>, vector<2x8x8x128xf32>
    %371 = vector.shape_cast %370 : vector<2x8x8x128xf32> to vector<128x128xf32>
    %372 = arith.truncf %371 : vector<128x128xf32> to vector<128x128xbf16>
    %c5_321 = arith.constant 5 : index
    %c0_322 = arith.constant 0 : index
    %c0_323 = arith.constant 0 : index
    %373 = vector.load %arg6[%c5_321, %c0_322, %c0_323] : memref<9x128x128xbf16, #tpu.memory_space<vmem>>, vector<1x128x128xbf16>
    %374 = vector.shape_cast %373 : vector<1x128x128xbf16> to vector<128x128xbf16>
    %cst_324 = arith.constant dense<0.000000e+00> : vector<128x128xf32>
    %375 = tpu.matmul %372, %374, %cst_324 {dimension_numbers = #tpu.dot_dimension_numbers<[1], [0], [0], [1], [0, 0, 1, 1], [], []>} : vector<128x128xbf16>, vector<128x128xbf16>, vector<128x128xf32> -> vector<128x128xf32>
    %376 = arith.addf %369, %375 : vector<128x128xf32>
    %c0_325 = arith.constant 0 : index
    %c2_326 = arith.constant 2 : index
    %c0_327 = arith.constant 0 : index
    %c0_328 = arith.constant 0 : index
    %377 = vector.load %arg18[%c0_325, %c2_326, %c0_327, %c0_328] : memref<2x10x10x128xf32, #tpu.memory_space<vmem>>, vector<2x8x8x128xf32>
    %378 = vector.shape_cast %377 : vector<2x8x8x128xf32> to vector<128x128xf32>
    %379 = arith.truncf %378 : vector<128x128xf32> to vector<128x128xbf16>
    %c6_329 = arith.constant 6 : index
    %c0_330 = arith.constant 0 : index
    %c0_331 = arith.constant 0 : index
    %380 = vector.load %arg6[%c6_329, %c0_330, %c0_331] : memref<9x128x128xbf16, #tpu.memory_space<vmem>>, vector<1x128x128xbf16>
    %381 = vector.shape_cast %380 : vector<1x128x128xbf16> to vector<128x128xbf16>
    %cst_332 = arith.constant dense<0.000000e+00> : vector<128x128xf32>
    %382 = tpu.matmul %379, %381, %cst_332 {dimension_numbers = #tpu.dot_dimension_numbers<[1], [0], [0], [1], [0, 0, 1, 1], [], []>} : vector<128x128xbf16>, vector<128x128xbf16>, vector<128x128xf32> -> vector<128x128xf32>
    %383 = arith.addf %376, %382 : vector<128x128xf32>
    %c0_333 = arith.constant 0 : index
    %c2_334 = arith.constant 2 : index
    %c1_335 = arith.constant 1 : index
    %c0_336 = arith.constant 0 : index
    %384 = vector.load %arg18[%c0_333, %c2_334, %c1_335, %c0_336] : memref<2x10x10x128xf32, #tpu.memory_space<vmem>>, vector<2x8x8x128xf32>
    %385 = vector.shape_cast %384 : vector<2x8x8x128xf32> to vector<128x128xf32>
    %386 = arith.truncf %385 : vector<128x128xf32> to vector<128x128xbf16>
    %c7_337 = arith.constant 7 : index
    %c0_338 = arith.constant 0 : index
    %c0_339 = arith.constant 0 : index
    %387 = vector.load %arg6[%c7_337, %c0_338, %c0_339] : memref<9x128x128xbf16, #tpu.memory_space<vmem>>, vector<1x128x128xbf16>
    %388 = vector.shape_cast %387 : vector<1x128x128xbf16> to vector<128x128xbf16>
    %cst_340 = arith.constant dense<0.000000e+00> : vector<128x128xf32>
    %389 = tpu.matmul %386, %388, %cst_340 {dimension_numbers = #tpu.dot_dimension_numbers<[1], [0], [0], [1], [0, 0, 1, 1], [], []>} : vector<128x128xbf16>, vector<128x128xbf16>, vector<128x128xf32> -> vector<128x128xf32>
    %390 = arith.addf %383, %389 : vector<128x128xf32>
    %c0_341 = arith.constant 0 : index
    %c2_342 = arith.constant 2 : index
    %c2_343 = arith.constant 2 : index
    %c0_344 = arith.constant 0 : index
    %391 = vector.load %arg18[%c0_341, %c2_342, %c2_343, %c0_344] : memref<2x10x10x128xf32, #tpu.memory_space<vmem>>, vector<2x8x8x128xf32>
    %392 = vector.shape_cast %391 : vector<2x8x8x128xf32> to vector<128x128xf32>
    %393 = arith.truncf %392 : vector<128x128xf32> to vector<128x128xbf16>
    %c8_345 = arith.constant 8 : index
    %c0_346 = arith.constant 0 : index
    %c0_347 = arith.constant 0 : index
    %394 = vector.load %arg6[%c8_345, %c0_346, %c0_347] : memref<9x128x128xbf16, #tpu.memory_space<vmem>>, vector<1x128x128xbf16>
    %395 = vector.shape_cast %394 : vector<1x128x128xbf16> to vector<128x128xbf16>
    %cst_348 = arith.constant dense<0.000000e+00> : vector<128x128xf32>
    %396 = tpu.matmul %393, %395, %cst_348 {dimension_numbers = #tpu.dot_dimension_numbers<[1], [0], [0], [1], [0, 0, 1, 1], [], []>} : vector<128x128xbf16>, vector<128x128xbf16>, vector<128x128xf32> -> vector<128x128xf32>
    %397 = arith.addf %390, %396 : vector<128x128xf32>
    %c0_349 = arith.constant 0 : index
    %c0_350 = arith.constant 0 : index
    %398 = vector.load %arg7[%c0_349, %c0_350] : memref<1x128xf32, #tpu.memory_space<vmem>>, vector<1x128xf32>
    %399 = vector.broadcast %398 : vector<1x128xf32> to vector<128x128xf32>
    %400 = arith.addf %397, %399 : vector<128x128xf32>
    %cst_351 = arith.constant 0.000000e+00 : f32
    %401 = vector.broadcast %cst_351 : f32 to vector<128x128xf32>
    %402 = arith.maximumf %400, %401 : vector<128x128xf32>
    %403 = arith.truncf %402 : vector<128x128xf32> to vector<128x128xbf16>
    %c0_352 = arith.constant 0 : index
    %c0_353 = arith.constant 0 : index
    %404 = vector.load %arg8[%c0_352, %c0_353] : memref<128x256xbf16, #tpu.memory_space<vmem>>, vector<128x256xbf16>
    %cst_354 = arith.constant dense<0.000000e+00> : vector<128x256xf32>
    %405 = tpu.matmul %403, %404, %cst_354 {dimension_numbers = #tpu.dot_dimension_numbers<[1], [0], [0], [1], [0, 0, 1, 1], [], []>} : vector<128x128xbf16>, vector<128x256xbf16>, vector<128x256xf32> -> vector<128x256xf32>
    %c0_355 = arith.constant 0 : index
    %c0_356 = arith.constant 0 : index
    %406 = vector.load %arg9[%c0_355, %c0_356] : memref<1x256xf32, #tpu.memory_space<vmem>>, vector<1x256xf32>
    %407 = vector.broadcast %406 : vector<1x256xf32> to vector<128x256xf32>
    %408 = arith.addf %405, %407 : vector<128x256xf32>
    %409 = arith.truncf %321 : vector<128x128xf32> to vector<128x128xbf16>
    %c0_357 = arith.constant 0 : index
    %c0_358 = arith.constant 0 : index
    %410 = vector.load %arg10[%c0_357, %c0_358] : memref<128x256xbf16, #tpu.memory_space<vmem>>, vector<128x256xbf16>
    %cst_359 = arith.constant dense<0.000000e+00> : vector<128x256xf32>
    %411 = tpu.matmul %409, %410, %cst_359 {dimension_numbers = #tpu.dot_dimension_numbers<[1], [0], [0], [1], [0, 0, 1, 1], [], []>} : vector<128x128xbf16>, vector<128x256xbf16>, vector<128x256xf32> -> vector<128x256xf32>
    %c0_360 = arith.constant 0 : index
    %c0_361 = arith.constant 0 : index
    %412 = vector.load %arg11[%c0_360, %c0_361] : memref<1x256xf32, #tpu.memory_space<vmem>>, vector<1x256xf32>
    %413 = vector.broadcast %412 : vector<1x256xf32> to vector<128x256xf32>
    %414 = arith.addf %411, %413 : vector<128x256xf32>
    %415 = arith.addf %408, %414 : vector<128x256xf32>
    %cst_362 = arith.constant 0.000000e+00 : f32
    %416 = vector.broadcast %cst_362 : f32 to vector<128x256xf32>
    %417 = arith.maximumf %415, %416 : vector<128x256xf32>
    %418 = arith.truncf %417 : vector<128x256xf32> to vector<128x256xbf16>
    %c0_363 = arith.constant 0 : index
    %c0_364 = arith.constant 0 : index
    %419 = vector.load %arg12[%c0_363, %c0_364] : memref<256x128xbf16, #tpu.memory_space<vmem>>, vector<256x128xbf16>
    %cst_365 = arith.constant dense<0.000000e+00> : vector<128x128xf32>
    %420 = tpu.matmul %418, %419, %cst_365 {dimension_numbers = #tpu.dot_dimension_numbers<[1], [0], [0], [1], [0, 0, 1, 1], [], []>} : vector<128x256xbf16>, vector<256x128xbf16>, vector<128x128xf32> -> vector<128x128xf32>
    %c0_366 = arith.constant 0 : index
    %c0_367 = arith.constant 0 : index
    %421 = vector.load %arg13[%c0_366, %c0_367] : memref<1x128xf32, #tpu.memory_space<vmem>>, vector<1x128xf32>
    %422 = vector.broadcast %421 : vector<1x128xf32> to vector<128x128xf32>
    %423 = arith.addf %420, %422 : vector<128x128xf32>
    %cst_368 = arith.constant 0.000000e+00 : f32
    %424 = vector.broadcast %cst_368 : f32 to vector<128x128xf32>
    %425 = arith.maximumf %423, %424 : vector<128x128xf32>
    %426 = vector.shape_cast %425 : vector<128x128xf32> to vector<2x64x128xf32>
    %427 = tpu.iota {dimensions = array<i32: 1>} : vector<2x128xi32>
    %cst_369 = arith.constant 0.000000e+00 : f32
    %428 = vector.broadcast %cst_369 : f32 to vector<2x128xf32>
    %c0_370 = arith.constant 0 : index
    %c0_371 = arith.constant 0 : index
    %429 = vector.load %arg15[%c0_370, %c0_371] : memref<1x128xf32, #tpu.memory_space<vmem>>, vector<1x128xf32>
    %430 = vector.broadcast %429 : vector<1x128xf32> to vector<2x128xf32>
    %431 = arith.addf %428, %430 : vector<2x128xf32>
    %c0_372 = arith.constant 0 : index
    %c0_373 = arith.constant 0 : index
    %c0_374 = arith.constant 0 : index
    %432 = vector.load %arg14[%c0_372, %c0_373, %c0_374] : memref<2x64x128xf32, #tpu.memory_space<vmem>>, vector<1x64x128xf32>
    %433 = vector.shape_cast %432 : vector<1x64x128xf32> to vector<64x128xf32>
    %434 = vector.shape_cast %433 : vector<64x128xf32> to vector<1x64x128xf32>
    %435 = vector.broadcast %434 : vector<1x64x128xf32> to vector<2x64x128xf32>
    %436 = arith.mulf %426, %435 : vector<2x64x128xf32>
    %cst_375 = arith.constant dense<0.000000e+00> : vector<2x128xf32>
    %437 = vector.multi_reduction <add>, %436, %cst_375 [1] : vector<2x64x128xf32> to vector<2x128xf32>
    %438 = vector.shape_cast %437 : vector<2x128xf32> to vector<2x1x128xf32>
    %cst_376 = arith.constant dense<0.000000e+00> : vector<2x1xf32>
    %439 = vector.multi_reduction <add>, %438, %cst_376 [2] : vector<2x1x128xf32> to vector<2x1xf32>
    %440 = vector.shape_cast %439 : vector<2x1xf32> to vector<2x1x1xf32>
    %c0_i32 = arith.constant 0 : i32
    %441 = vector.broadcast %c0_i32 : i32 to vector<2x128xi32>
    %442 = arith.cmpi eq, %427, %441 : vector<2x128xi32>
    %cst_377 = arith.constant 1.000000e+00 : f32
    %cst_378 = arith.constant 0.000000e+00 : f32
    %443 = vector.broadcast %cst_377 : f32 to vector<2x128xf32>
    %444 = vector.broadcast %cst_378 : f32 to vector<2x128xf32>
    %445 = arith.select %442, %443, %444 : vector<2x128xi1>, vector<2x128xf32>
    %446 = vector.shape_cast %440 : vector<2x1x1xf32> to vector<2x1xf32>
    %447 = vector.broadcast %446 : vector<2x1xf32> to vector<2x128xf32>
    %448 = arith.mulf %445, %447 : vector<2x128xf32>
    %449 = arith.addf %431, %448 : vector<2x128xf32>
    %c1_379 = arith.constant 1 : index
    %c0_380 = arith.constant 0 : index
    %c0_381 = arith.constant 0 : index
    %450 = vector.load %arg14[%c1_379, %c0_380, %c0_381] : memref<2x64x128xf32, #tpu.memory_space<vmem>>, vector<1x64x128xf32>
    %451 = vector.shape_cast %450 : vector<1x64x128xf32> to vector<64x128xf32>
    %452 = vector.shape_cast %451 : vector<64x128xf32> to vector<1x64x128xf32>
    %453 = vector.broadcast %452 : vector<1x64x128xf32> to vector<2x64x128xf32>
    %454 = arith.mulf %426, %453 : vector<2x64x128xf32>
    %cst_382 = arith.constant dense<0.000000e+00> : vector<2x128xf32>
    %455 = vector.multi_reduction <add>, %454, %cst_382 [1] : vector<2x64x128xf32> to vector<2x128xf32>
    %456 = vector.shape_cast %455 : vector<2x128xf32> to vector<2x1x128xf32>
    %cst_383 = arith.constant dense<0.000000e+00> : vector<2x1xf32>
    %457 = vector.multi_reduction <add>, %456, %cst_383 [2] : vector<2x1x128xf32> to vector<2x1xf32>
    %458 = vector.shape_cast %457 : vector<2x1xf32> to vector<2x1x1xf32>
    %c1_i32 = arith.constant 1 : i32
    %459 = vector.broadcast %c1_i32 : i32 to vector<2x128xi32>
    %460 = arith.cmpi eq, %427, %459 : vector<2x128xi32>
    %cst_384 = arith.constant 1.000000e+00 : f32
    %cst_385 = arith.constant 0.000000e+00 : f32
    %461 = vector.broadcast %cst_384 : f32 to vector<2x128xf32>
    %462 = vector.broadcast %cst_385 : f32 to vector<2x128xf32>
    %463 = arith.select %460, %461, %462 : vector<2x128xi1>, vector<2x128xf32>
    %464 = vector.shape_cast %458 : vector<2x1x1xf32> to vector<2x1xf32>
    %465 = vector.broadcast %464 : vector<2x1xf32> to vector<2x128xf32>
    %466 = arith.mulf %463, %465 : vector<2x128xf32>
    %467 = arith.addf %449, %466 : vector<2x128xf32>
    %c0_386 = arith.constant 0 : index
    %c0_387 = arith.constant 0 : index
    %468 = vector.load %arg16[%c0_386, %c0_387] : memref<2x128xf32, #tpu.memory_space<vmem>>, vector<2x128xf32>
    tpu.vector_store %arg16[%c0_386, %c0_387], %467 {strides = array<i32>} : memref<2x128xf32, #tpu.memory_space<vmem>>, vector<2x128xf32>,
    return
  }
  func.func @transform_0(%arg0: i32) -> (i32, i32, i32, i32) {
    %c0_i32 = arith.constant 0 : i32
    %c0_i32_0 = arith.constant 0 : i32
    %c0_i32_1 = arith.constant 0 : i32
    %c0_i32_2 = arith.constant 0 : i32
    %c0_i32_3 = arith.constant 0 : i32
    return %c0_i32, %c0_i32_0, %c0_i32_1, %c0_i32_2 : i32, i32, i32, i32
  }
  func.func @transform_1(%arg0: i32) -> (i32, i32, i32, i32) {
    %c0_i32 = arith.constant 0 : i32
    %c0_i32_0 = arith.constant 0 : i32
    %c0_i32_1 = arith.constant 0 : i32
    %c0_i32_2 = arith.constant 0 : i32
    %c0_i32_3 = arith.constant 0 : i32
    return %c0_i32, %c0_i32_0, %c0_i32_1, %c0_i32_2 : i32, i32, i32, i32
  }
  func.func @transform_2(%arg0: i32) -> (i32, i32) {
    %c0_i32 = arith.constant 0 : i32
    %c0_i32_0 = arith.constant 0 : i32
    %c0_i32_1 = arith.constant 0 : i32
    return %c0_i32, %c0_i32_0 : i32, i32
  }
  func.func @transform_3(%arg0: i32) -> (i32, i32) {
    %c0_i32 = arith.constant 0 : i32
    %c0_i32_0 = arith.constant 0 : i32
    %c0_i32_1 = arith.constant 0 : i32
    return %c0_i32, %c0_i32_0 : i32, i32
  }
  func.func @transform_4(%arg0: i32) -> (i32, i32) {
    %c0_i32 = arith.constant 0 : i32
    %c0_i32_0 = arith.constant 0 : i32
    %c0_i32_1 = arith.constant 0 : i32
    return %c0_i32, %c0_i32_0 : i32, i32
  }
  func.func @transform_5(%arg0: i32) -> (i32, i32, i32) {
    %c0_i32 = arith.constant 0 : i32
    %c0_i32_0 = arith.constant 0 : i32
    %c0_i32_1 = arith.constant 0 : i32
    %c0_i32_2 = arith.constant 0 : i32
    return %c0_i32, %c0_i32_0, %c0_i32_1 : i32, i32, i32
  }
  func.func @transform_6(%arg0: i32) -> (i32, i32) {
    %c0_i32 = arith.constant 0 : i32
    %c0_i32_0 = arith.constant 0 : i32
    %c0_i32_1 = arith.constant 0 : i32
    return %c0_i32, %c0_i32_0 : i32, i32
  }
  func.func @transform_7(%arg0: i32) -> (i32, i32) {
    %c0_i32 = arith.constant 0 : i32
    %c0_i32_0 = arith.constant 0 : i32
    %c0_i32_1 = arith.constant 0 : i32
    return %c0_i32, %c0_i32_0 : i32, i32
  }
  func.func @transform_8(%arg0: i32) -> (i32, i32) {
    %c0_i32 = arith.constant 0 : i32
    %c0_i32_0 = arith.constant 0 : i32
    %c0_i32_1 = arith.constant 0 : i32
    return %c0_i32, %c0_i32_0 : i32, i32
  }
  func.func @transform_9(%arg0: i32) -> (i32, i32) {
    %c0_i32 = arith.constant 0 : i32
    %c0_i32_0 = arith.constant 0 : i32
    %c0_i32_1 = arith.constant 0 : i32
    return %c0_i32, %c0_i32_0 : i32, i32
  }
  func.func @transform_10(%arg0: i32) -> (i32, i32) {
    %c0_i32 = arith.constant 0 : i32
    %c0_i32_0 = arith.constant 0 : i32
    %c0_i32_1 = arith.constant 0 : i32
    return %c0_i32, %c0_i32_0 : i32, i32
  }
  func.func @transform_11(%arg0: i32) -> (i32, i32) {
    %c0_i32 = arith.constant 0 : i32
    %c0_i32_0 = arith.constant 0 : i32
    %c0_i32_1 = arith.constant 0 : i32
    return %c0_i32, %c0_i32_0 : i32, i32
  }
  func.func @transform_12(%arg0: i32) -> (i32, i32) {
    %c0_i32 = arith.constant 0 : i32
    %c0_i32_0 = arith.constant 0 : i32
    %c0_i32_1 = arith.constant 0 : i32
    return %c0_i32, %c0_i32_0 : i32, i32
  }
  func.func @transform_13(%arg0: i32) -> (i32, i32, i32) {
    %c0_i32 = arith.constant 0 : i32
    %c0_i32_0 = arith.constant 0 : i32
    %c0_i32_1 = arith.constant 0 : i32
    %c0_i32_2 = arith.constant 0 : i32
    return %c0_i32, %c0_i32_0, %c0_i32_1 : i32, i32, i32
  }
  func.func @transform_14(%arg0: i32) -> (i32, i32) {
    %c0_i32 = arith.constant 0 : i32
    %c0_i32_0 = arith.constant 0 : i32
    %c0_i32_1 = arith.constant 0 : i32
    return %c0_i32, %c0_i32_0 : i32, i32
  }
  func.func @transform_15(%arg0: i32) -> (i32, i32) {
    %c0_i32 = arith.constant 0 : i32
    %c0_i32_0 = arith.constant 0 : i32
    %c0_i32_1 = arith.constant 0 : i32
    return %c0_i32, %c0_i32_0 : i32, i32
  }
}

</mosaic_0001>

<llo_original>
// kernel: res_sf_forward.1
$region0: #{res_sf_forward.1}
  #allocation0 [shape = 'u32[]', space=smem, size = 0x4, offset = 0x4, fixed_abs, tag = 'smem constant byte address 0x4 - core index']
  #allocation1 [shape = 'u32[144,128]{1,0:T(1,128)}', space=vmem, size = 0x12000, scoped, tag = 'internal scratch']
  #allocation2 [shape = 'f32[4,2,9,9,128]{4,3,2,1,0:T(8,128)}', space=vmem, size = 0x90000, scoped, tag = 'scratch operand']
  #allocation3 [shape = 'f32[2,10,10,128]{3,2,1,0:T(8,128)}', space=vmem, size = 0x28000, scoped, tag = 'scratch operand']
  %s0 = inlined_call_operand.vmem [shape: f32[2,10,10,48], index: 0, kind: input, shape index: {}]
  %s1 = inlined_call_operand.vmem [shape: bf16[4,9,48,128], index: 1, kind: input, shape index: {}]
  %s2 = inlined_call_operand.vmem [shape: f32[1,128], index: 2, kind: input, shape index: {}]
  %s3 = inlined_call_operand.vmem [shape: bf16[128,128], index: 3, kind: input, shape index: {}]
  %s4 = inlined_call_operand.vmem [shape: f32[1,128], index: 4, kind: input, shape index: {}]
  %s5 = inlined_call_operand.vmem [shape: bf16[9,128,128], index: 5, kind: input, shape index: {}]
  %s6 = inlined_call_operand.vmem [shape: f32[1,128], index: 6, kind: input, shape index: {}]
  %s7 = inlined_call_operand.vmem [shape: bf16[128,256], index: 7, kind: input, shape index: {}]
  %s8 = inlined_call_operand.vmem [shape: f32[1,256], index: 8, kind: input, shape index: {}]
  %s9 = inlined_call_operand.vmem [shape: bf16[128,256], index: 9, kind: input, shape index: {}]
  %s10 = inlined_call_operand.vmem [shape: f32[1,256], index: 10, kind: input, shape index: {}]
  %s11 = inlined_call_operand.vmem [shape: bf16[256,128], index: 11, kind: input, shape index: {}]
  %s12 = inlined_call_operand.vmem [shape: f32[1,128], index: 12, kind: input, shape index: {}]
  %s13 = inlined_call_operand.vmem [shape: f32[2,64,128], index: 13, kind: input, shape index: {}]
  %s14 = inlined_call_operand.vmem [shape: f32[1,128], index: 14, kind: input, shape index: {}]
  %s15 = inlined_call_operand.hbm [shape: f32[2,128], index: 15, kind: output, shape index: {}]
  %s16 = sld [smem:[#allocation0]]
  $region70: #{res_sf_forward.1} parent=0
    _
  %s18 = ssub.s32 1, %s16
  %s19 = scalar_select 0, %s18, %s16
  $region1: #{res_sf_forward.1} parent=0
    #allocation4 [shape = 'u8[1024]{0}', space=vmem, size = 0x400, scoped, tag = 'output window, operand 0, single buffered']
    #allocation5 [shape = 's32[1]{0}', space=sflag, size = 0x4, scoped, tag = 'scoped memory for res_sf_forward.1']
    %20 = vsyncpa [#allocation5], 0
    // Predicated region
    $region2: #{res_sf_forward.1} parent=1 // pred_check
      _
    $region3: #{res_sf_forward.1} parent=1 // pred_check_branch
      %22 = sbr.rel (0) target = $region5
    $region4: #{res_sf_forward.1} parent=1 // pred_region
      _
    $region5: #{res_sf_forward.1} parent=1 // pred_fallthru
      _
    // Predicated region
    $region6: #{res_sf_forward.1} parent=1 // pred_check
      _
    $region7: #{res_sf_forward.1} parent=1 // pred_check_branch
      %24 = sbr.rel (0) target = $region9
    $region8: #{res_sf_forward.1} parent=1 // pred_region
      _
    $region9: #{res_sf_forward.1} parent=1 // pred_fallthru
      _
    // Predicated region
    $region10: #{res_sf_forward.1} parent=1 // pred_check
      _
    $region11: #{res_sf_forward.1} parent=1 // pred_check_branch
      %26 = sbr.rel (0) target = $region13
    $region12: #{res_sf_forward.1} parent=1 // pred_region
      _
    $region13: #{res_sf_forward.1} parent=1 // pred_fallthru
      _
    // Predicated region
    $region14: #{res_sf_forward.1} parent=1 // pred_check
      _
    $region15: #{res_sf_forward.1} parent=1 // pred_check_branch
      %28 = sbr.rel (0) target = $region17
    $region16: #{res_sf_forward.1} parent=1 // pred_region
      _
    $region17: #{res_sf_forward.1} parent=1 // pred_fallthru
      _
    // Predicated region
    $region18: #{res_sf_forward.1} parent=1 // pred_check
      _
    $region19: #{res_sf_forward.1} parent=1 // pred_check_branch
      %30 = sbr.rel (0) target = $region21
    $region20: #{res_sf_forward.1} parent=1 // pred_region
      _
    $region21: #{res_sf_forward.1} parent=1 // pred_fallthru
      _
    // Predicated region
    $region22: #{res_sf_forward.1} parent=1 // pred_check
      _
    $region23: #{res_sf_forward.1} parent=1 // pred_check_branch
      %32 = sbr.rel (0) target = $region25
    $region24: #{res_sf_forward.1} parent=1 // pred_region
      _
    $region25: #{res_sf_forward.1} parent=1 // pred_fallthru
      _
    // Predicated region
    $region26: #{res_sf_forward.1} parent=1 // pred_check
      _
    $region27: #{res_sf_forward.1} parent=1 // pred_check_branch
      %34 = sbr.rel (0) target = $region29
    $region28: #{res_sf_forward.1} parent=1 // pred_region
      _
    $region29: #{res_sf_forward.1} parent=1 // pred_fallthru
      _
    // Predicated region
    $region30: #{res_sf_forward.1} parent=1 // pred_check
      _
    $region31: #{res_sf_forward.1} parent=1 // pred_check_branch
      %36 = sbr.rel (0) target = $region33
    $region32: #{res_sf_forward.1} parent=1 // pred_region
      _
    $region33: #{res_sf_forward.1} parent=1 // pred_fallthru
      _
    // Predicated region
    $region34: #{res_sf_forward.1} parent=1 // pred_check
      _
    $region35: #{res_sf_forward.1} parent=1 // pred_check_branch
      %38 = sbr.rel (0) target = $region37
    $region36: #{res_sf_forward.1} parent=1 // pred_region
      _
    $region37: #{res_sf_forward.1} parent=1 // pred_fallthru
      _
    // Predicated region
    $region38: #{res_sf_forward.1} parent=1 // pred_check
      _
    $region39: #{res_sf_forward.1} parent=1 // pred_check_branch
      %40 = sbr.rel (0) target = $region41
    $region40: #{res_sf_forward.1} parent=1 // pred_region
      _
    $region41: #{res_sf_forward.1} parent=1 // pred_fallthru
      _
    // Predicated region
    $region42: #{res_sf_forward.1} parent=1 // pred_check
      _
    $region43: #{res_sf_forward.1} parent=1 // pred_check_branch
      %42 = sbr.rel (0) target = $region45
    $region44: #{res_sf_forward.1} parent=1 // pred_region
      _
    $region45: #{res_sf_forward.1} parent=1 // pred_fallthru
      _
    // Predicated region
    $region46: #{res_sf_forward.1} parent=1 // pred_check
      _
    $region47: #{res_sf_forward.1} parent=1 // pred_check_branch
      %44 = sbr.rel (0) target = $region49
    $region48: #{res_sf_forward.1} parent=1 // pred_region
      _
    $region49: #{res_sf_forward.1} parent=1 // pred_fallthru
      _
    // Predicated region
    $region50: #{res_sf_forward.1} parent=1 // pred_check
      _
    $region51: #{res_sf_forward.1} parent=1 // pred_check_branch
      %46 = sbr.rel (0) target = $region53
    $region52: #{res_sf_forward.1} parent=1 // pred_region
      _
    $region53: #{res_sf_forward.1} parent=1 // pred_fallthru
      _
    // Predicated region
    $region54: #{res_sf_forward.1} parent=1 // pred_check
      _
    $region55: #{res_sf_forward.1} parent=1 // pred_check_branch
      %48 = sbr.rel (0) target = $region57
    $region56: #{res_sf_forward.1} parent=1 // pred_region
      _
    $region57: #{res_sf_forward.1} parent=1 // pred_fallthru
      _
    // Predicated region
    $region58: #{res_sf_forward.1} parent=1 // pred_check
      _
    $region59: #{res_sf_forward.1} parent=1 // pred_check_branch
      %50 = sbr.rel (0) target = $region61
    $region60: #{res_sf_forward.1} parent=1 // pred_region
      _
    $region61: #{res_sf_forward.1} parent=1 // pred_fallthru
      _
    %v52 = vld [vmem:[%s0] sm:$0xff]
    %v53 = vld [vmem:[%s0 + $0x8] sm:$0x3]
    %v54 = vld [vmem:[%s0 + $0x10] sm:$0xff]
    %v55 = vld [vmem:[%s0 + $0x18] sm:$0x3]
    %v56 = vld [vmem:[%s0 + $0x20] sm:$0xff]
    %v57 = vld [vmem:[%s0 + $0x28] sm:$0x3]
    %v58 = vld [vmem:[%s0 + $0x30] sm:$0xff]
    %v59 = vld [vmem:[%s0 + $0x38] sm:$0x3]
    %v60 = vld [vmem:[%s0 + $0x40] sm:$0xff]
    %v61 = vld [vmem:[%s0 + $0x48] sm:$0x3]
    %v62 = vld [vmem:[%s0 + $0x50] sm:$0xff]
    %v63 = vld [vmem:[%s0 + $0x58] sm:$0x3]
    %v64 = vld [vmem:[%s0 + $0x60] sm:$0xff]
    %v65 = vld [vmem:[%s0 + $0x68] sm:$0x3]
    %v66 = vld [vmem:[%s0 + $0x70] sm:$0xff]
    %v67 = vld [vmem:[%s0 + $0x78] sm:$0x3]
    %v68 = vld [vmem:[%s0 + $0x80] sm:$0xff]
    %v69 = vld [vmem:[%s0 + $0x88] sm:$0x3]
    %v70 = vld [vmem:[%s0 + $0x90] sm:$0xff]
    %v71 = vld [vmem:[%s0 + $0x98] sm:$0x3]
    %v72 = vld [vmem:[%s0 + $0xa0] sm:$0xff]
    %v73 = vld [vmem:[%s0 + $0xa8] sm:$0x3]
    %v74 = vld [vmem:[%s0 + $0xb0] sm:$0xff]
    %v75 = vld [vmem:[%s0 + $0xb8] sm:$0x3]
    %v76 = vld [vmem:[%s0 + $0xc0] sm:$0xff]
    %v77 = vld [vmem:[%s0 + $0xc8] sm:$0x3]
    %v78 = vld [vmem:[%s0 + $0xd0] sm:$0xff]
    %v79 = vld [vmem:[%s0 + $0xd8] sm:$0x3]
    %v80 = vld [vmem:[%s0 + $0xe0] sm:$0xff]
    %v81 = vld [vmem:[%s0 + $0xe8] sm:$0x3]
    %v82 = vld [vmem:[%s0 + $0xf0] sm:$0xff]
    %v83 = vld [vmem:[%s0 + $0xf8] sm:$0x3]
    %v84 = vld [vmem:[%s0 + $0x100] sm:$0xff]
    %v85 = vld [vmem:[%s0 + $0x108] sm:$0x3]
    %v86 = vld [vmem:[%s0 + $0x110] sm:$0xff]
    %v87 = vld [vmem:[%s0 + $0x118] sm:$0x3]
    %v88 = vld [vmem:[%s0 + $0x120] sm:$0xff]
    %v89 = vld [vmem:[%s0 + $0x128] sm:$0x3]
    %v90 = vld [vmem:[%s0 + $0x130] sm:$0xff]
    %v91 = vld [vmem:[%s0 + $0x138] sm:$0x3]
    %92 = vst [vmem:[#allocation2] sm:$0xff] 0.0
    %93 = vst [vmem:[#allocation2 + $0x8] sm:$0x1] 0.0
    %94 = vst [vmem:[#allocation2 + $0x10] sm:$0xff] 0.0
    %95 = vst [vmem:[#allocation2 + $0x18] sm:$0x1] 0.0
    %96 = vst [vmem:[#allocation2 + $0x20] sm:$0xff] 0.0
    %97 = vst [vmem:[#allocation2 + $0x28] sm:$0x1] 0.0
    %98 = vst [vmem:[#allocation2 + $0x30] sm:$0xff] 0.0
    %99 = vst [vmem:[#allocation2 + $0x38] sm:$0x1] 0.0
    %100 = vst [vmem:[#allocation2 + $0x40] sm:$0xff] 0.0
    %101 = vst [vmem:[#allocation2 + $0x48] sm:$0x1] 0.0
    %102 = vst [vmem:[#allocation2 + $0x50] sm:$0xff] 0.0
    %103 = vst [vmem:[#allocation2 + $0x58] sm:$0x1] 0.0
    %104 = vst [vmem:[#allocation2 + $0x60] sm:$0xff] 0.0
    %105 = vst [vmem:[#allocation2 + $0x68] sm:$0x1] 0.0
    %106 = vst [vmem:[#allocation2 + $0x70] sm:$0xff] 0.0
    %107 = vst [vmem:[#allocation2 + $0x78] sm:$0x1] 0.0
    %108 = vst [vmem:[#allocation2 + $0x80] sm:$0xff] 0.0
    %109 = vst [vmem:[#allocation2 + $0x88] sm:$0x1] 0.0
    %110 = vst [vmem:[#allocation2 + $0x90] sm:$0xff] 0.0
    %111 = vst [vmem:[#allocation2 + $0x98] sm:$0x1] 0.0
    %112 = vst [vmem:[#allocation2 + $0xa0] sm:$0xff] 0.0
    %113 = vst [vmem:[#allocation2 + $0xa8] sm:$0x1] 0.0
    %114 = vst [vmem:[#allocation2 + $0xb0] sm:$0xff] 0.0
    %115 = vst [vmem:[#allocation2 + $0xb8] sm:$0x1] 0.0
    %116 = vst [vmem:[#allocation2 + $0xc0] sm:$0xff] 0.0
    %117 = vst [vmem:[#allocation2 + $0xc8] sm:$0x1] 0.0
    %118 = vst [vmem:[#allocation2 + $0xd0] sm:$0xff] 0.0
    %119 = vst [vmem:[#allocation2 + $0xd8] sm:$0x1] 0.0
    %120 = vst [vmem:[#allocation2 + $0xe0] sm:$0xff] 0.0
    %121 = vst [vmem:[#allocation2 + $0xe8] sm:$0x1] 0.0
    %122 = vst [vmem:[#allocation2 + $0xf0] sm:$0xff] 0.0
    %123 = vst [vmem:[#allocation2 + $0xf8] sm:$0x1] 0.0
    %124 = vst [vmem:[#allocation2 + $0x100] sm:$0xff] 0.0
    %125 = vst [vmem:[#allocation2 + $0x108] sm:$0x1] 0.0
    %126 = vst [vmem:[#allocation2 + $0x110] sm:$0xff] 0.0
    %127 = vst [vmem:[#allocation2 + $0x118] sm:$0x1] 0.0
    %128 = vst [vmem:[#allocation2 + $0x120] sm:$0xff] 0.0
    %129 = vst [vmem:[#allocation2 + $0x128] sm:$0x1] 0.0
    %130 = vst [vmem:[#allocation2 + $0x130] sm:$0xff] 0.0
    %131 = vst [vmem:[#allocation2 + $0x138] sm:$0x1] 0.0
    %132 = vst [vmem:[#allocation2 + $0x140] sm:$0xff] 0.0
    %133 = vst [vmem:[#allocation2 + $0x148] sm:$0x1] 0.0
    %134 = vst [vmem:[#allocation2 + $0x150] sm:$0xff] 0.0
    %135 = vst [vmem:[#allocation2 + $0x158] sm:$0x1] 0.0
    %136 = vst [vmem:[#allocation2 + $0x160] sm:$0xff] 0.0
    %137 = vst [vmem:[#allocation2 + $0x168] sm:$0x1] 0.0
    %138 = vst [vmem:[#allocation2 + $0x170] sm:$0xff] 0.0
    %139 = vst [vmem:[#allocation2 + $0x178] sm:$0x1] 0.0
    %140 = vst [vmem:[#allocation2 + $0x180] sm:$0xff] 0.0
    %141 = vst [vmem:[#allocation2 + $0x188] sm:$0x1] 0.0
    %142 = vst [vmem:[#allocation2 + $0x190] sm:$0xff] 0.0
    %143 = vst [vmem:[#allocation2 + $0x198] sm:$0x1] 0.0
    %144 = vst [vmem:[#allocation2 + $0x1a0] sm:$0xff] 0.0
    %145 = vst [vmem:[#allocation2 + $0x1a8] sm:$0x1] 0.0
    %146 = vst [vmem:[#allocation2 + $0x1b0] sm:$0xff] 0.0
    %147 = vst [vmem:[#allocation2 + $0x1b8] sm:$0x1] 0.0
    %148 = vst [vmem:[#allocation2 + $0x1c0] sm:$0xff] 0.0
    %149 = vst [vmem:[#allocation2 + $0x1c8] sm:$0x1] 0.0
    %150 = vst [vmem:[#allocation2 + $0x1d0] sm:$0xff] 0.0
    %151 = vst [vmem:[#allocation2 + $0x1d8] sm:$0x1] 0.0
    %152 = vst [vmem:[#allocation2 + $0x1e0] sm:$0xff] 0.0
    %153 = vst [vmem:[#allocation2 + $0x1e8] sm:$0x1] 0.0
    %154 = vst [vmem:[#allocation2 + $0x1f0] sm:$0xff] 0.0
    %155 = vst [vmem:[#allocation2 + $0x1f8] sm:$0x1] 0.0
    %156 = vst [vmem:[#allocation2 + $0x200] sm:$0xff] 0.0
    %157 = vst [vmem:[#allocation2 + $0x208] sm:$0x1] 0.0
    %158 = vst [vmem:[#allocation2 + $0x210] sm:$0xff] 0.0
    %159 = vst [vmem:[#allocation2 + $0x218] sm:$0x1] 0.0
    %160 = vst [vmem:[#allocation2 + $0x220] sm:$0xff] 0.0
    %161 = vst [vmem:[#allocation2 + $0x228] sm:$0x1] 0.0
    %162 = vst [vmem:[#allocation2 + $0x230] sm:$0xff] 0.0
    %163 = vst [vmem:[#allocation2 + $0x238] sm:$0x1] 0.0
    %164 = vst [vmem:[#allocation2 + $0x240] sm:$0xff] 0.0
    %165 = vst [vmem:[#allocation2 + $0x248] sm:$0x1] 0.0
    %166 = vst [vmem:[#allocation2 + $0x250] sm:$0xff] 0.0
    %167 = vst [vmem:[#allocation2 + $0x258] sm:$0x1] 0.0
    %168 = vst [vmem:[#allocation2 + $0x260] sm:$0xff] 0.0
    %169 = vst [vmem:[#allocation2 + $0x268] sm:$0x1] 0.0
    %170 = vst [vmem:[#allocation2 + $0x270] sm:$0xff] 0.0
    %171 = vst [vmem:[#allocation2 + $0x278] sm:$0x1] 0.0
    %172 = vst [vmem:[#allocation2 + $0x280] sm:$0xff] 0.0
    %173 = vst [vmem:[#allocation2 + $0x288] sm:$0x1] 0.0
    %174 = vst [vmem:[#allocation2 + $0x290] sm:$0xff] 0.0
    %175 = vst [vmem:[#allocation2 + $0x298] sm:$0x1] 0.0
    %176 = vst [vmem:[#allocation2 + $0x2a0] sm:$0xff] 0.0
    %177 = vst [vmem:[#allocation2 + $0x2a8] sm:$0x1] 0.0
    %178 = vst [vmem:[#allocation2 + $0x2b0] sm:$0xff] 0.0
    %179 = vst [vmem:[#allocation2 + $0x2b8] sm:$0x1] 0.0
    %180 = vst [vmem:[#allocation2 + $0x2c0] sm:$0xff] 0.0
    %181 = vst [vmem:[#allocation2 + $0x2c8] sm:$0x1] 0.0
    %182 = vst [vmem:[#allocation2 + $0x2d0] sm:$0xff] 0.0
    %183 = vst [vmem:[#allocation2 + $0x2d8] sm:$0x1] 0.0
    %184 = vst [vmem:[#allocation2 + $0x2e0] sm:$0xff] 0.0
    %185 = vst [vmem:[#allocation2 + $0x2e8] sm:$0x1] 0.0
    %186 = vst [vmem:[#allocation2 + $0x2f0] sm:$0xff] 0.0
    %187 = vst [vmem:[#allocation2 + $0x2f8] sm:$0x1] 0.0
    %188 = vst [vmem:[#allocation2 + $0x300] sm:$0xff] 0.0
    %189 = vst [vmem:[#allocation2 + $0x308] sm:$0x1] 0.0
    %190 = vst [vmem:[#allocation2 + $0x310] sm:$0xff] 0.0
    %191 = vst [vmem:[#allocation2 + $0x318] sm:$0x1] 0.0
    %192 = vst [vmem:[#allocation2 + $0x320] sm:$0xff] 0.0
    %193 = vst [vmem:[#allocation2 + $0x328] sm:$0x1] 0.0
    %194 = vst [vmem:[#allocation2 + $0x330] sm:$0xff] 0.0
    %195 = vst [vmem:[#allocation2 + $0x338] sm:$0x1] 0.0
    %196 = vst [vmem:[#allocation2 + $0x340] sm:$0xff] 0.0
    %197 = vst [vmem:[#allocation2 + $0x348] sm:$0x1] 0.0
    %198 = vst [vmem:[#allocation2 + $0x350] sm:$0xff] 0.0
    %199 = vst [vmem:[#allocation2 + $0x358] sm:$0x1] 0.0
    %200 = vst [vmem:[#allocation2 + $0x360] sm:$0xff] 0.0
    %201 = vst [vmem:[#allocation2 + $0x368] sm:$0x1] 0.0
    %202 = vst [vmem:[#allocation2 + $0x370] sm:$0xff] 0.0
    %203 = vst [vmem:[#allocation2 + $0x378] sm:$0x1] 0.0
    %204 = vst [vmem:[#allocation2 + $0x380] sm:$0xff] 0.0
    %205 = vst [vmem:[#allocation2 + $0x388] sm:$0x1] 0.0
    %206 = vst [vmem:[#allocation2 + $0x390] sm:$0xff] 0.0
    %207 = vst [vmem:[#allocation2 + $0x398] sm:$0x1] 0.0
    %208 = vst [vmem:[#allocation2 + $0x3a0] sm:$0xff] 0.0
    %209 = vst [vmem:[#allocation2 + $0x3a8] sm:$0x1] 0.0
    %210 = vst [vmem:[#allocation2 + $0x3b0] sm:$0xff] 0.0
    %211 = vst [vmem:[#allocation2 + $0x3b8] sm:$0x1] 0.0
    %212 = vst [vmem:[#allocation2 + $0x3c0] sm:$0xff] 0.0
    %213 = vst [vmem:[#allocation2 + $0x3c8] sm:$0x1] 0.0
    %214 = vst [vmem:[#allocation2 + $0x3d0] sm:$0xff] 0.0
    %215 = vst [vmem:[#allocation2 + $0x3d8] sm:$0x1] 0.0
    %216 = vst [vmem:[#allocation2 + $0x3e0] sm:$0xff] 0.0
    %217 = vst [vmem:[#allocation2 + $0x3e8] sm:$0x1] 0.0
    %218 = vst [vmem:[#allocation2 + $0x3f0] sm:$0xff] 0.0
    %219 = vst [vmem:[#allocation2 + $0x3f8] sm:$0x1] 0.0
    %220 = vst [vmem:[#allocation2 + $0x400] sm:$0xff] 0.0
    %221 = vst [vmem:[#allocation2 + $0x408] sm:$0x1] 0.0
    %222 = vst [vmem:[#allocation2 + $0x410] sm:$0xff] 0.0
    %223 = vst [vmem:[#allocation2 + $0x418] sm:$0x1] 0.0
    %224 = vst [vmem:[#allocation2 + $0x420] sm:$0xff] 0.0
    %225 = vst [vmem:[#allocation2 + $0x428] sm:$0x1] 0.0
    %226 = vst [vmem:[#allocation2 + $0x430] sm:$0xff] 0.0
    %227 = vst [vmem:[#allocation2 + $0x438] sm:$0x1] 0.0
    %228 = vst [vmem:[#allocation2 + $0x440] sm:$0xff] 0.0
    %229 = vst [vmem:[#allocation2 + $0x448] sm:$0x1] 0.0
    %230 = vst [vmem:[#allocation2 + $0x450] sm:$0xff] 0.0
    %231 = vst [vmem:[#allocation2 + $0x458] sm:$0x1] 0.0
    %232 = vst [vmem:[#allocation2 + $0x460] sm:$0xff] 0.0
    %233 = vst [vmem:[#allocation2 + $0x468] sm:$0x1] 0.0
    %234 = vst [vmem:[#allocation2 + $0x470] sm:$0xff] 0.0
    %235 = vst [vmem:[#allocation2 + $0x478] sm:$0x1] 0.0
    %v236 = vpack.c.bf16 %v54, %v52
    %v237 = vpack.c.bf16 %v58, %v56
    %v238 = vpack.c.bf16 %v62, %v60
    %v239 = vpack.c.bf16 %v66, %v64
    %v240 = vpack.c.bf16 %v74, %v72
    %v241 = vpack.c.bf16 %v78, %v76
    %v242 = vpack.c.bf16 %v82, %v80
    %v243 = vpack.c.bf16 %v86, %v84
    %v244 = vld [vmem:[%s1] sm:$0xf]
    %v245 = vld [vmem:[%s1 + $0x4] sm:$0xf]
    %v246 = vld [vmem:[%s1 + $0x8] sm:$0xf]
    %v247 = vld [vmem:[%s1 + $0xc] sm:$0xf]
    %v248 = vld [vmem:[%s1 + $0x10] sm:$0xf]
    %v249 = vld [vmem:[%s1 + $0x14] sm:$0xf]
    %vm282 = vcmask 1046528
    %v283 = vrot.slane %v52, 1
    %v284 = vrot.slane %v53, 1
    %v285 = vsel %vm282, %v283, %v284
    %v286 = vrot.slane %v54, 1
    %v287 = vrot.slane %v55, 1
    %v288 = vsel %vm282, %v286, %v287
    %v289 = vrot.slane %v56, 1
    %v290 = vrot.slane %v57, 1
    %v291 = vsel %vm282, %v289, %v290
    %v292 = vrot.slane %v58, 1
    %v293 = vrot.slane %v59, 1
    %v294 = vsel %vm282, %v292, %v293
    %v295 = vrot.slane %v60, 1
    %v296 = vrot.slane %v61, 1
    %v297 = vsel %vm282, %v295, %v296
    %v298 = vrot.slane %v62, 1
    %v299 = vrot.slane %v63, 1
    %v300 = vsel %vm282, %v298, %v299
    %v301 = vrot.slane %v64, 1
    %v302 = vrot.slane %v65, 1
    %v303 = vsel %vm282, %v301, %v302
    %v304 = vrot.slane %v66, 1
    %v305 = vrot.slane %v67, 1
    %v306 = vsel %vm282, %v304, %v305
    %v307 = vrot.slane %v72, 1
    %v308 = vrot.slane %v73, 1
    %v309 = vsel %vm282, %v307, %v308
    %v310 = vrot.slane %v74, 1
    %v311 = vrot.slane %v75, 1
    %v312 = vsel %vm282, %v310, %v311
    %v313 = vrot.slane %v76, 1
    %v314 = vrot.slane %v77, 1
    %v315 = vsel %vm282, %v313, %v314
    %v316 = vrot.slane %v78, 1
    %v317 = vrot.slane %v79, 1
    %v318 = vsel %vm282, %v316, %v317
    %v319 = vrot.slane %v80, 1
    %v320 = vrot.slane %v81, 1
    %v321 = vsel %vm282, %v319, %v320
    %v322 = vrot.slane %v82, 1
    %v323 = vrot.slane %v83, 1
    %v324 = vsel %vm282, %v322, %v323
    %v325 = vrot.slane %v84, 1
    %v326 = vrot.slane %v85, 1
    %v327 = vsel %vm282, %v325, %v326
    %v328 = vrot.slane %v86, 1
    %v329 = vrot.slane %v87, 1
    %v330 = vsel %vm282, %v328, %v329
    %v347 = vpack.c.bf16 %v288, %v285
    %v348 = vpack.c.bf16 %v294, %v291
    %v349 = vpack.c.bf16 %v300, %v297
    %v350 = vpack.c.bf16 %v306, %v303
    %v351 = vpack.c.bf16 %v312, %v309
    %v352 = vpack.c.bf16 %v318, %v315
    %v353 = vpack.c.bf16 %v324, %v321
    %v354 = vpack.c.bf16 %v330, %v327
    %s355 = scalar_lea.vmem %s1, 24
    %v356 = vld [vmem:[%s355] sm:$0xf]
    %v357 = vld [vmem:[%s355 + $0x4] sm:$0xf]
    %v358 = vld [vmem:[%s355 + $0x8] sm:$0xf]
    %v359 = vld [vmem:[%s355 + $0xc] sm:$0xf]
    %v360 = vld [vmem:[%s355 + $0x10] sm:$0xf]
    %v361 = vld [vmem:[%s355 + $0x14] sm:$0xf]
    %v368 = vunpack.c.l.b16 %v356
    %v369 = vunpack.c.l.b16 %v357
    %v370 = vunpack.c.l.b16 %v358
    %v371 = vunpack.c.l.b16 %v359
    %v372 = vunpack.c.l.b16 %v360
    %v373 = vunpack.c.l.b16 %v361
    %v374 = vpack.c.b16 %v369, %v368
    %v375 = vpack.c.b16 %v371, %v370
    %v376 = vpack.c.b16 %v373, %v372
    %vm380 = vcmask 392192
    %v382 = vsel %vm380, %v347, 0
    %v385 = vsel %vm380, %v348, 0
    %v388 = vsel %vm380, %v349, 0
    %v391 = vsel %vm380, %v350, 0
    %v394 = vsel %vm380, %v351, 0
    %v397 = vsel %vm380, %v352, 0
    %v400 = vsel %vm380, %v353, 0
    %v403 = vsel %vm380, %v354, 0
    %405 = vmatprep.subr.bf16.mxu0 0
    %406 = vmatpush1.bf16.msra.mxu0 %v374
    %407 = vmatprep.subr.bf16.mxu0 0
    %408 = vmatpush1.bf16.msra.mxu0 %v375
    %409 = vmatprep.subr.bf16.mxu0 0
    %410 = vmatpush1.bf16.msra.mxu0 %v376
    %411 = vmatprep.subr.bf16.mxu0 0
    %412 = vmatpush1.bf16.msra.mxu0 0
    %413 = vmatprep.subr.bf16.mxu0 0
    %414 = vmatpush1.bf16.msra.mxu0 0
    %415 = vmatprep.subr.bf16.mxu0 0
    %416 = vmatpush1.bf16.msra.mxu0 0
    %417 = vmatprep.subr.bf16.mxu0 0
    %418 = vmatpush1.bf16.msra.mxu0 0
    %419 = vmatprep.subr.bf16.mxu0 0
    %420 = vmatpush1.bf16.msra.mxu0 0
    %421 = vmatprep.subr.bf16.mxu0 0
    %422 = vmatpush1.bf16.msra.mxu0 0
    %423 = vmatprep.subr.bf16.mxu0 0
    %424 = vmatpush1.bf16.msra.mxu0 0
    %425 = vmatprep.subr.bf16.mxu0 0
    %426 = vmatpush1.bf16.msra.mxu0 0
    %427 = vmatprep.subr.bf16.mxu0 0
    %428 = vmatpush1.bf16.msra.mxu0 0
    %429 = vmatprep.subr.bf16.mxu0 0
    %430 = vmatpush1.bf16.msra.mxu0 0
    %431 = vmatprep.subr.bf16.mxu0 0
    %432 = vmatpush1.bf16.msra.mxu0 0
    %433 = vmatprep.subr.bf16.mxu0 0
    %434 = vmatpush1.bf16.msra.mxu0 0
    %435 = vmatprep.subr.bf16.mxu0 0
    %436 = vmatpush1.bf16.msra.mxu0 0
    %437 = vmatprep.mubr.bf16.mxu0 0
    %438 = vmatmul.mubr.bf16.gmra.mrb[0].mxu0 %v382
    %v439 = vpop.f32.mrb[0].mxu0
    %v440 = vadd.f32 0.0, %v439
    %v441 = vpop.f32.mrb[0].mxu0
    %v442 = vpop.f32.mrb[0].mxu0
    %v443 = vadd.f32 0.0, %v442
    %v444 = vpop.f32.mrb[0].mxu0
    %445 = vmatprep.mubr.bf16.mxu0 0
    %446 = vmatmul.mubr.bf16.gmra.mrb[0].mxu0 %v385
    %v447 = vpop.f32.mrb[0].mxu0
    %v448 = vadd.f32 0.0, %v447
    %v449 = vpop.f32.mrb[0].mxu0
    %v450 = vpop.f32.mrb[0].mxu0
    %v451 = vadd.f32 0.0, %v450
    %v452 = vpop.f32.mrb[0].mxu0
    %453 = vmatprep.mubr.bf16.mxu0 0
    %454 = vmatmul.mubr.bf16.gmra.mrb[0].mxu0 %v388
    %v455 = vpop.f32.mrb[0].mxu0
    %v456 = vadd.f32 0.0, %v455
    %v457 = vpop.f32.mrb[0].mxu0
    %v458 = vpop.f32.mrb[0].mxu0
    %v459 = vadd.f32 0.0, %v458
    %v460 = vpop.f32.mrb[0].mxu0
    %461 = vmatprep.mubr.bf16.mxu0 0
    %462 = vmatmul.mubr.bf16.gmra.mrb[0].mxu0 %v391
    %v463 = vpop.f32.mrb[0].mxu0
    %v464 = vadd.f32 0.0, %v463
    %v465 = vpop.f32.mrb[0].mxu0
    %v466 = vpop.f32.mrb[0].mxu0
    %v467 = vadd.f32 0.0, %v466
    %v468 = vpop.f32.mrb[0].mxu0
    %469 = vmatprep.mubr.bf16.mxu0 0
    %470 = vmatmul.mubr.bf16.gmra.mrb[0].mxu0 %v394
    %v471 = vpop.f32.mrb[0].mxu0
    %v472 = vadd.f32 0.0, %v471
    %v473 = vpop.f32.mrb[0].mxu0
    %v474 = vpop.f32.mrb[0].mxu0
    %v475 = vadd.f32 0.0, %v474
    %v476 = vpop.f32.mrb[0].mxu0
    %477 = vmatprep.mubr.bf16.mxu0 0
    %478 = vmatmul.mubr.bf16.gmra.mrb[0].mxu0 %v397
    %v479 = vpop.f32.mrb[0].mxu0
    %v480 = vadd.f32 0.0, %v479
    %v481 = vpop.f32.mrb[0].mxu0
    %v482 = vpop.f32.mrb[0].mxu0
    %v483 = vadd.f32 0.0, %v482
    %v484 = vpop.f32.mrb[0].mxu0
    %485 = vmatprep.mubr.bf16.mxu0 0
    %486 = vmatmul.mubr.bf16.gmra.mrb[0].mxu0 %v400
    %v487 = vpop.f32.mrb[0].mxu0
    %v488 = vadd.f32 0.0, %v487
    %v489 = vpop.f32.mrb[0].mxu0
    %v490 = vpop.f32.mrb[0].mxu0
    %v491 = vadd.f32 0.0, %v490
    %v492 = vpop.f32.mrb[0].mxu0
    %493 = vmatprep.mubr.bf16.mxu0 0
    %494 = vmatmul.mubr.bf16.gmra.mrb[0].mxu0 %v403
    %v495 = vpop.f32.mrb[0].mxu0
    %v496 = vadd.f32 0.0, %v495
    %v497 = vpop.f32.mrb[0].mxu0
    %v498 = vpop.f32.mrb[0].mxu0
    %v499 = vadd.f32 0.0, %v498
    %v500 = vpop.f32.mrb[0].mxu0
    %501 = vdwg.mxu0
    %v508 = vunpack.c.l.b16 %v244
    %v509 = vunpack.c.l.b16 %v245
    %v510 = vunpack.c.l.b16 %v246
    %v511 = vunpack.c.l.b16 %v247
    %v512 = vunpack.c.l.b16 %v248
    %v513 = vunpack.c.l.b16 %v249
    %v514 = vpack.c.b16 %v509, %v508
    %v515 = vpack.c.b16 %v511, %v510
    %v516 = vpack.c.b16 %v513, %v512
    %v521 = vsel %vm380, %v236, 0
    %v524 = vsel %vm380, %v237, 0
    %v527 = vsel %vm380, %v238, 0
    %v530 = vsel %vm380, %v239, 0
    %v533 = vsel %vm380, %v240, 0
    %v536 = vsel %vm380, %v241, 0
    %v539 = vsel %vm380, %v242, 0
    %v542 = vsel %vm380, %v243, 0
    %544 = vmatprep.subr.bf16.mxu0 0
    %545 = vmatpush1.bf16.msra.mxu0 %v514
    %546 = vmatprep.subr.bf16.mxu0 0
    %547 = vmatpush1.bf16.msra.mxu0 %v515
    %548 = vmatprep.subr.bf16.mxu0 0
    %549 = vmatpush1.bf16.msra.mxu0 %v516
    %550 = vmatprep.subr.bf16.mxu0 0
    %551 = vmatpush1.bf16.msra.mxu0 0
    %552 = vmatprep.subr.bf16.mxu0 0
    %553 = vmatpush1.bf16.msra.mxu0 0
    %554 = vmatprep.subr.bf16.mxu0 0
    %555 = vmatpush1.bf16.msra.mxu0 0
    %556 = vmatprep.subr.bf16.mxu0 0
    %557 = vmatpush1.bf16.msra.mxu0 0
    %558 = vmatprep.subr.bf16.mxu0 0
    %559 = vmatpush1.bf16.msra.mxu0 0
    %560 = vmatprep.subr.bf16.mxu0 0
    %561 = vmatpush1.bf16.msra.mxu0 0
    %562 = vmatprep.subr.bf16.mxu0 0
    %563 = vmatpush1.bf16.msra.mxu0 0
    %564 = vmatprep.subr.bf16.mxu0 0
    %565 = vmatpush1.bf16.msra.mxu0 0
    %566 = vmatprep.subr.bf16.mxu0 0
    %567 = vmatpush1.bf16.msra.mxu0 0
    %568 = vmatprep.subr.bf16.mxu0 0
    %569 = vmatpush1.bf16.msra.mxu0 0
    %570 = vmatprep.subr.bf16.mxu0 0
    %571 = vmatpush1.bf16.msra.mxu0 0
    %572 = vmatprep.subr.bf16.mxu0 0
    %573 = vmatpush1.bf16.msra.mxu0 0
    %574 = vmatprep.subr.bf16.mxu0 0
    %575 = vmatpush1.bf16.msra.mxu0 0
    %576 = vmatprep.mubr.bf16.mxu0 0
    %577 = vmatmul.mubr.bf16.gmra.mrb[0].mxu0 %v521
    %v578 = vpop.f32.mrb[0].mxu0
    %v579 = vadd.f32 %v440, %v578
    %v580 = vpop.f32.mrb[0].mxu0
    %v581 = vpop.f32.mrb[0].mxu0
    %v582 = vadd.f32 %v443, %v581
    %v583 = vpop.f32.mrb[0].mxu0
    %584 = vmatprep.mubr.bf16.mxu0 0
    %585 = vmatmul.mubr.bf16.gmra.mrb[0].mxu0 %v524
    %v586 = vpop.f32.mrb[0].mxu0
    %v587 = vadd.f32 %v448, %v586
    %v588 = vpop.f32.mrb[0].mxu0
    %v589 = vpop.f32.mrb[0].mxu0
    %v590 = vadd.f32 %v451, %v589
    %v591 = vpop.f32.mrb[0].mxu0
    %592 = vmatprep.mubr.bf16.mxu0 0
    %593 = vmatmul.mubr.bf16.gmra.mrb[0].mxu0 %v527
    %v594 = vpop.f32.mrb[0].mxu0
    %v595 = vadd.f32 %v456, %v594
    %v596 = vpop.f32.mrb[0].mxu0
    %v597 = vpop.f32.mrb[0].mxu0
    %v598 = vadd.f32 %v459, %v597
    %v599 = vpop.f32.mrb[0].mxu0
    %600 = vmatprep.mubr.bf16.mxu0 0
    %601 = vmatmul.mubr.bf16.gmra.mrb[0].mxu0 %v530
    %v602 = vpop.f32.mrb[0].mxu0
    %v603 = vadd.f32 %v464, %v602
    %v604 = vpop.f32.mrb[0].mxu0
    %v605 = vpop.f32.mrb[0].mxu0
    %v606 = vadd.f32 %v467, %v605
    %v607 = vpop.f32.mrb[0].mxu0
    %608 = vmatprep.mubr.bf16.mxu0 0
    %609 = vmatmul.mubr.bf16.gmra.mrb[0].mxu0 %v533
    %v610 = vpop.f32.mrb[0].mxu0
    %v611 = vadd.f32 %v472, %v610
    %v612 = vpop.f32.mrb[0].mxu0
    %v613 = vpop.f32.mrb[0].mxu0
    %v614 = vadd.f32 %v475, %v613
    %v615 = vpop.f32.mrb[0].mxu0
    %616 = vmatprep.mubr.bf16.mxu0 0
    %617 = vmatmul.mubr.bf16.gmra.mrb[0].mxu0 %v536
    %v618 = vpop.f32.mrb[0].mxu0
    %v619 = vadd.f32 %v480, %v618
    %v620 = vpop.f32.mrb[0].mxu0
    %v621 = vpop.f32.mrb[0].mxu0
    %v622 = vadd.f32 %v483, %v621
    %v623 = vpop.f32.mrb[0].mxu0
    %624 = vmatprep.mubr.bf16.mxu0 0
    %625 = vmatmul.mubr.bf16.gmra.mrb[0].mxu0 %v539
    %v626 = vpop.f32.mrb[0].mxu0
    %v627 = vadd.f32 %v488, %v626
    %v628 = vpop.f32.mrb[0].mxu0
    %v629 = vpop.f32.mrb[0].mxu0
    %v630 = vadd.f32 %v491, %v629
    %v631 = vpop.f32.mrb[0].mxu0
    %632 = vmatprep.mubr.bf16.mxu0 0
    %633 = vmatmul.mubr.bf16.gmra.mrb[0].mxu0 %v542
    %v634 = vpop.f32.mrb[0].mxu0
    %v635 = vadd.f32 %v496, %v634
    %v636 = vpop.f32.mrb[0].mxu0
    %v637 = vpop.f32.mrb[0].mxu0
    %v638 = vadd.f32 %v499, %v637
    %v639 = vpop.f32.mrb[0].mxu0
    %640 = vdwg.mxu0
    %vm641 = vcmask 1045504
    %v642 = vrot.slane %v52, 2
    %v643 = vrot.slane %v53, 2
    %v644 = vsel %vm641, %v642, %v643
    %v645 = vrot.slane %v54, 2
    %v646 = vrot.slane %v55, 2
    %v647 = vsel %vm641, %v645, %v646
    %v648 = vrot.slane %v56, 2
    %v649 = vrot.slane %v57, 2
    %v650 = vsel %vm641, %v648, %v649
    %v651 = vrot.slane %v58, 2
    %v652 = vrot.slane %v59, 2
    %v653 = vsel %vm641, %v651, %v652
    %v654 = vrot.slane %v60, 2
    %v655 = vrot.slane %v61, 2
    %v656 = vsel %vm641, %v654, %v655
    %v657 = vrot.slane %v62, 2
    %v658 = vrot.slane %v63, 2
    %v659 = vsel %vm641, %v657, %v658
    %v660 = vrot.slane %v64, 2
    %v661 = vrot.slane %v65, 2
    %v662 = vsel %vm641, %v660, %v661
    %v663 = vrot.slane %v66, 2
    %v664 = vrot.slane %v67, 2
    %v665 = vsel %vm641, %v663, %v664
    %v666 = vrot.slane %v72, 2
    %v667 = vrot.slane %v73, 2
    %v668 = vsel %vm641, %v666, %v667
    %v669 = vrot.slane %v74, 2
    %v670 = vrot.slane %v75, 2
    %v671 = vsel %vm641, %v669, %v670
    %v672 = vrot.slane %v76, 2
    %v673 = vrot.slane %v77, 2
    %v674 = vsel %vm641, %v672, %v673
    %v675 = vrot.slane %v78, 2
    %v676 = vrot.slane %v79, 2
    %v677 = vsel %vm641, %v675, %v676
    %v678 = vrot.slane %v80, 2
    %v679 = vrot.slane %v81, 2
    %v680 = vsel %vm641, %v678, %v679
    %v681 = vrot.slane %v82, 2
    %v682 = vrot.slane %v83, 2
    %v683 = vsel %vm641, %v681, %v682
    %v684 = vrot.slane %v84, 2
    %v685 = vrot.slane %v85, 2
    %v686 = vsel %vm641, %v684, %v685
    %v687 = vrot.slane %v86, 2
    %v688 = vrot.slane %v87, 2
    %v689 = vsel %vm641, %v687, %v688
    %v706 = vpack.c.bf16 %v647, %v644
    %v707 = vpack.c.bf16 %v653, %v650
    %v708 = vpack.c.bf16 %v659, %v656
    %v709 = vpack.c.bf16 %v665, %v662
    %v710 = vpack.c.bf16 %v671, %v668
    %v711 = vpack.c.bf16 %v677, %v674
    %v712 = vpack.c.bf16 %v683, %v680
    %v713 = vpack.c.bf16 %v689, %v686
    %s714 = scalar_lea.vmem %s1, 48
    %v715 = vld [vmem:[%s714] sm:$0xf]
    %v716 = vld [vmem:[%s714 + $0x4] sm:$0xf]
    %v717 = vld [vmem:[%s714 + $0x8] sm:$0xf]
    %v718 = vld [vmem:[%s714 + $0xc] sm:$0xf]
    %v719 = vld [vmem:[%s714 + $0x10] sm:$0xf]
    %v720 = vld [vmem:[%s714 + $0x14] sm:$0xf]
    %v727 = vunpack.c.l.b16 %v715
    %v728 = vunpack.c.l.b16 %v716
    %v729 = vunpack.c.l.b16 %v717
    %v730 = vunpack.c.l.b16 %v718
    %v731 = vunpack.c.l.b16 %v719
    %v732 = vunpack.c.l.b16 %v720
    %v733 = vpack.c.b16 %v728, %v727
    %v734 = vpack.c.b16 %v730, %v729
    %v735 = vpack.c.b16 %v732, %v731
    %v740 = vsel %vm380, %v706, 0
    %v743 = vsel %vm380, %v707, 0
    %v746 = vsel %vm380, %v708, 0
    %v749 = vsel %vm380, %v709, 0
    %v752 = vsel %vm380, %v710, 0
    %v755 = vsel %vm380, %v711, 0
    %v758 = vsel %vm380, %v712, 0
    %v761 = vsel %vm380, %v713, 0
    %763 = vmatprep.subr.bf16.mxu0 0
    %764 = vmatpush1.bf16.msra.mxu0 %v733
    %765 = vmatprep.subr.bf16.mxu0 0
    %766 = vmatpush1.bf16.msra.mxu0 %v734
    %767 = vmatprep.subr.bf16.mxu0 0
    %768 = vmatpush1.bf16.msra.mxu0 %v735
    %769 = vmatprep.subr.bf16.mxu0 0
    %770 = vmatpush1.bf16.msra.mxu0 0
    %771 = vmatprep.subr.bf16.mxu0 0
    %772 = vmatpush1.bf16.msra.mxu0 0
    %773 = vmatprep.subr.bf16.mxu0 0
    %774 = vmatpush1.bf16.msra.mxu0 0
    %775 = vmatprep.subr.bf16.mxu0 0
    %776 = vmatpush1.bf16.msra.mxu0 0
    %777 = vmatprep.subr.bf16.mxu0 0
    %778 = vmatpush1.bf16.msra.mxu0 0
    %779 = vmatprep.subr.bf16.mxu0 0
    %780 = vmatpush1.bf16.msra.mxu0 0
    %781 = vmatprep.subr.bf16.mxu0 0
    %782 = vmatpush1.bf16.msra.mxu0 0
    %783 = vmatprep.subr.bf16.mxu0 0
    %784 = vmatpush1.bf16.msra.mxu0 0
    %785 = vmatprep.subr.bf16.mxu0 0
    %786 = vmatpush1.bf16.msra.mxu0 0
    %787 = vmatprep.subr.bf16.mxu0 0
    %788 = vmatpush1.bf16.msra.mxu0 0
    %789 = vmatprep.subr.bf16.mxu0 0
    %790 = vmatpush1.bf16.msra.mxu0 0
    %791 = vmatprep.subr.bf16.mxu0 0
    %792 = vmatpush1.bf16.msra.mxu0 0
    %793 = vmatprep.subr.bf16.mxu0 0
    %794 = vmatpush1.bf16.msra.mxu0 0
    %795 = vmatprep.mubr.bf16.mxu0 0
    %796 = vmatmul.mubr.bf16.gmra.mrb[0].mxu0 %v740
    %v797 = vpop.f32.mrb[0].mxu0
    %v798 = vadd.f32 0.0, %v797
    %v799 = vpop.f32.mrb[0].mxu0
    %v800 = vpop.f32.mrb[0].mxu0
    %v801 = vadd.f32 0.0, %v800
    %v802 = vpop.f32.mrb[0].mxu0
    %803 = vmatprep.mubr.bf16.mxu0 0
    %804 = vmatmul.mubr.bf16.gmra.mrb[0].mxu0 %v743
    %v805 = vpop.f32.mrb[0].mxu0
    %v806 = vadd.f32 0.0, %v805
    %v807 = vpop.f32.mrb[0].mxu0
    %v808 = vpop.f32.mrb[0].mxu0
    %v809 = vadd.f32 0.0, %v808
    %v810 = vpop.f32.mrb[0].mxu0
    %811 = vmatprep.mubr.bf16.mxu0 0
    %812 = vmatmul.mubr.bf16.gmra.mrb[0].mxu0 %v746
    %v813 = vpop.f32.mrb[0].mxu0
    %v814 = vadd.f32 0.0, %v813
    %v815 = vpop.f32.mrb[0].mxu0
    %v816 = vpop.f32.mrb[0].mxu0
    %v817 = vadd.f32 0.0, %v816
    %v818 = vpop.f32.mrb[0].mxu0
    %819 = vmatprep.mubr.bf16.mxu0 0
    %820 = vmatmul.mubr.bf16.gmra.mrb[0].mxu0 %v749
    %v821 = vpop.f32.mrb[0].mxu0
    %v822 = vadd.f32 0.0, %v821
    %v823 = vpop.f32.mrb[0].mxu0
    %v824 = vpop.f32.mrb[0].mxu0
    %v825 = vadd.f32 0.0, %v824
    %v826 = vpop.f32.mrb[0].mxu0
    %827 = vmatprep.mubr.bf16.mxu0 0
    %828 = vmatmul.mubr.bf16.gmra.mrb[0].mxu0 %v752
    %v829 = vpop.f32.mrb[0].mxu0
    %v830 = vadd.f32 0.0, %v829
    %v831 = vpop.f32.mrb[0].mxu0
    %v832 = vpop.f32.mrb[0].mxu0
    %v833 = vadd.f32 0.0, %v832
    %v834 = vpop.f32.mrb[0].mxu0
    %835 = vmatprep.mubr.bf16.mxu0 0
    %836 = vmatmul.mubr.bf16.gmra.mrb[0].mxu0 %v755
    %v837 = vpop.f32.mrb[0].mxu0
    %v838 = vadd.f32 0.0, %v837
    %v839 = vpop.f32.mrb[0].mxu0
    %v840 = vpop.f32.mrb[0].mxu0
    %v841 = vadd.f32 0.0, %v840
    %v842 = vpop.f32.mrb[0].mxu0
    %843 = vmatprep.mubr.bf16.mxu0 0
    %844 = vmatmul.mubr.bf16.gmra.mrb[0].mxu0 %v758
    %v845 = vpop.f32.mrb[0].mxu0
    %v846 = vadd.f32 0.0, %v845
    %v847 = vpop.f32.mrb[0].mxu0
    %v848 = vpop.f32.mrb[0].mxu0
    %v849 = vadd.f32 0.0, %v848
    %v850 = vpop.f32.mrb[0].mxu0
    %851 = vmatprep.mubr.bf16.mxu0 0
    %852 = vmatmul.mubr.bf16.gmra.mrb[0].mxu0 %v761
    %v853 = vpop.f32.mrb[0].mxu0
    %v854 = vadd.f32 0.0, %v853
    %v855 = vpop.f32.mrb[0].mxu0
    %v856 = vpop.f32.mrb[0].mxu0
    %v857 = vadd.f32 0.0, %v856
    %v858 = vpop.f32.mrb[0].mxu0
    %859 = vdwg.mxu0
    %v860 = vadd.f32 %v579, %v798
    %v861 = vadd.f32 %v582, %v801
    %v862 = vadd.f32 %v587, %v806
    %v863 = vadd.f32 %v590, %v809
    %v864 = vadd.f32 %v595, %v814
    %v865 = vadd.f32 %v598, %v817
    %v866 = vadd.f32 %v603, %v822
    %v867 = vadd.f32 %v606, %v825
    %v868 = vadd.f32 %v611, %v830
    %v869 = vadd.f32 %v614, %v833
    %v870 = vadd.f32 %v619, %v838
    %v871 = vadd.f32 %v622, %v841
    %v872 = vadd.f32 %v627, %v846
    %v873 = vadd.f32 %v630, %v849
    %v874 = vadd.f32 %v635, %v854
    %v875 = vadd.f32 %v638, %v857
    %v876 = vpack.c.bf16 %v56, %v54
    %v877 = vpack.c.bf16 %v60, %v58
    %v878 = vpack.c.bf16 %v64, %v62
    %v879 = vpack.c.bf16 %v68, %v66
    %v880 = vpack.c.bf16 %v76, %v74
    %v881 = vpack.c.bf16 %v80, %v78
    %v882 = vpack.c.bf16 %v84, %v82
    %v883 = vpack.c.bf16 %v88, %v86
    %s884 = scalar_lea.vmem %s1, 72
    %v885 = vld [vmem:[%s884] sm:$0xf]
    %v886 = vld [vmem:[%s884 + $0x4] sm:$0xf]
    %v887 = vld [vmem:[%s884 + $0x8] sm:$0xf]
    %v888 = vld [vmem:[%s884 + $0xc] sm:$0xf]
    %v889 = vld [vmem:[%s884 + $0x10] sm:$0xf]
    %v890 = vld [vmem:[%s884 + $0x14] sm:$0xf]
    %v897 = vunpack.c.l.b16 %v885
    %v898 = vunpack.c.l.b16 %v886
    %v899 = vunpack.c.l.b16 %v887
    %v900 = vunpack.c.l.b16 %v888
    %v901 = vunpack.c.l.b16 %v889
    %v902 = vunpack.c.l.b16 %v890
    %v903 = vpack.c.b16 %v898, %v897
    %v904 = vpack.c.b16 %v900, %v899
    %v905 = vpack.c.b16 %v902, %v901
    %v910 = vsel %vm380, %v876, 0
    %v913 = vsel %vm380, %v877, 0
    %v916 = vsel %vm380, %v878, 0
    %v919 = vsel %vm380, %v879, 0
    %v922 = vsel %vm380, %v880, 0
    %v925 = vsel %vm380, %v881, 0
    %v928 = vsel %vm380, %v882, 0
    %v931 = vsel %vm380, %v883, 0
    %933 = vmatprep.subr.bf16.mxu0 0
    %934 = vmatpush1.bf16.msra.mxu0 %v903
    %935 = vmatprep.subr.bf16.mxu0 0
    %936 = vmatpush1.bf16.msra.mxu0 %v904
    %937 = vmatprep.subr.bf16.mxu0 0
    %938 = vmatpush1.bf16.msra.mxu0 %v905
    %939 = vmatprep.subr.bf16.mxu0 0
    %940 = vmatpush1.bf16.msra.mxu0 0
    %941 = vmatprep.subr.bf16.mxu0 0
    %942 = vmatpush1.bf16.msra.mxu0 0
    %943 = vmatprep.subr.bf16.mxu0 0
    %944 = vmatpush1.bf16.msra.mxu0 0
    %945 = vmatprep.subr.bf16.mxu0 0
    %946 = vmatpush1.bf16.msra.mxu0 0
    %947 = vmatprep.subr.bf16.mxu0 0
    %948 = vmatpush1.bf16.msra.mxu0 0
    %949 = vmatprep.subr.bf16.mxu0 0
    %950 = vmatpush1.bf16.msra.mxu0 0
    %951 = vmatprep.subr.bf16.mxu0 0
    %952 = vmatpush1.bf16.msra.mxu0 0
    %953 = vmatprep.subr.bf16.mxu0 0
    %954 = vmatpush1.bf16.msra.mxu0 0
    %955 = vmatprep.subr.bf16.mxu0 0
    %956 = vmatpush1.bf16.msra.mxu0 0
    %957 = vmatprep.subr.bf16.mxu0 0
    %958 = vmatpush1.bf16.msra.mxu0 0
    %959 = vmatprep.subr.bf16.mxu0 0
    %960 = vmatpush1.bf16.msra.mxu0 0
    %961 = vmatprep.subr.bf16.mxu0 0
    %962 = vmatpush1.bf16.msra.mxu0 0
    %963 = vmatprep.subr.bf16.mxu0 0
    %964 = vmatpush1.bf16.msra.mxu0 0
    %965 = vmatprep.mubr.bf16.mxu0 0
    %966 = vmatmul.mubr.bf16.gmra.mrb[0].mxu0 %v910
    %v967 = vpop.f32.mrb[0].mxu0
    %v968 = vadd.f32 0.0, %v967
    %v969 = vpop.f32.mrb[0].mxu0
    %v970 = vpop.f32.mrb[0].mxu0
    %v971 = vadd.f32 0.0, %v970
    %v972 = vpop.f32.mrb[0].mxu0
    %973 = vmatprep.mubr.bf16.mxu0 0
    %974 = vmatmul.mubr.bf16.gmra.mrb[0].mxu0 %v913
    %v975 = vpop.f32.mrb[0].mxu0
    %v976 = vadd.f32 0.0, %v975
    %v977 = vpop.f32.mrb[0].mxu0
    %v978 = vpop.f32.mrb[0].mxu0
    %v979 = vadd.f32 0.0, %v978
    %v980 = vpop.f32.mrb[0].mxu0
    %981 = vmatprep.mubr.bf16.mxu0 0
    %982 = vmatmul.mubr.bf16.gmra.mrb[0].mxu0 %v916
    %v983 = vpop.f32.mrb[0].mxu0
    %v984 = vadd.f32 0.0, %v983
    %v985 = vpop.f32.mrb[0].mxu0
    %v986 = vpop.f32.mrb[0].mxu0
    %v987 = vadd.f32 0.0, %v986
    %v988 = vpop.f32.mrb[0].mxu0
    %989 = vmatprep.mubr.bf16.mxu0 0
    %990 = vmatmul.mubr.bf16.gmra.mrb[0].mxu0 %v919
    %v991 = vpop.f32.mrb[0].mxu0
    %v992 = vadd.f32 0.0, %v991
    %v993 = vpop.f32.mrb[0].mxu0
    %v994 = vpop.f32.mrb[0].mxu0
    %v995 = vadd.f32 0.0, %v994
    %v996 = vpop.f32.mrb[0].mxu0
    %997 = vmatprep.mubr.bf16.mxu0 0
    %998 = vmatmul.mubr.bf16.gmra.mrb[0].mxu0 %v922
    %v999 = vpop.f32.mrb[0].mxu0
    %v1000 = vadd.f32 0.0, %v999
    %v1001 = vpop.f32.mrb[0].mxu0
    %v1002 = vpop.f32.mrb[0].mxu0
    %v1003 = vadd.f32 0.0, %v1002
    %v1004 = vpop.f32.mrb[0].mxu0
    %1005 = vmatprep.mubr.bf16.mxu0 0
    %1006 = vmatmul.mubr.bf16.gmra.mrb[0].mxu0 %v925
    %v1007 = vpop.f32.mrb[0].mxu0
    %v1008 = vadd.f32 0.0, %v1007
    %v1009 = vpop.f32.mrb[0].mxu0
    %v1010 = vpop.f32.mrb[0].mxu0
    %v1011 = vadd.f32 0.0, %v1010
    %v1012 = vpop.f32.mrb[0].mxu0
    %1013 = vmatprep.mubr.bf16.mxu0 0
    %1014 = vmatmul.mubr.bf16.gmra.mrb[0].mxu0 %v928
    %v1015 = vpop.f32.mrb[0].mxu0
    %v1016 = vadd.f32 0.0, %v1015
    %v1017 = vpop.f32.mrb[0].mxu0
    %v1018 = vpop.f32.mrb[0].mxu0
    %v1019 = vadd.f32 0.0, %v1018
    %v1020 = vpop.f32.mrb[0].mxu0
    %1021 = vmatprep.mubr.bf16.mxu0 0
    %1022 = vmatmul.mubr.bf16.gmra.mrb[0].mxu0 %v931
    %v1023 = vpop.f32.mrb[0].mxu0
    %v1024 = vadd.f32 0.0, %v1023
    %v1025 = vpop.f32.mrb[0].mxu0
    %v1026 = vpop.f32.mrb[0].mxu0
    %v1027 = vadd.f32 0.0, %v1026
    %v1028 = vpop.f32.mrb[0].mxu0
    %1029 = vdwg.mxu0
    %v1030 = vadd.f32 %v860, %v968
    %v1031 = vadd.f32 %v861, %v971
    %v1032 = vadd.f32 %v862, %v976
    %v1033 = vadd.f32 %v863, %v979
    %v1034 = vadd.f32 %v864, %v984
    %v1035 = vadd.f32 %v865, %v987
    %v1036 = vadd.f32 %v866, %v992
    %v1037 = vadd.f32 %v867, %v995
    %v1038 = vadd.f32 %v868, %v1000
    %v1039 = vadd.f32 %v869, %v1003
    %v1040 = vadd.f32 %v870, %v1008
    %v1041 = vadd.f32 %v871, %v1011
    %v1042 = vadd.f32 %v872, %v1016
    %v1043 = vadd.f32 %v873, %v1019
    %v1044 = vadd.f32 %v874, %v1024
    %v1045 = vadd.f32 %v875, %v1027
    %v1050 = vrot.slane %v68, 1
    %v1051 = vrot.slane %v69, 1
    %v1052 = vsel %vm282, %v1050, %v1051
    %v1053 = vrot.slane %v88, 1
    %v1054 = vrot.slane %v89, 1
    %v1055 = vsel %vm282, %v1053, %v1054
    %v1058 = vpack.c.bf16 %v291, %v288
    %v1059 = vpack.c.bf16 %v297, %v294
    %v1060 = vpack.c.bf16 %v303, %v300
    %v1061 = vpack.c.bf16 %v1052, %v306
    %v1062 = vpack.c.bf16 %v315, %v312
    %v1063 = vpack.c.bf16 %v321, %v318
    %v1064 = vpack.c.bf16 %v327, %v324
    %v1065 = vpack.c.bf16 %v1055, %v330
    %s1066 = scalar_lea.vmem %s1, 96
    %v1067 = vld [vmem:[%s1066] sm:$0xf]
    %v1068 = vld [vmem:[%s1066 + $0x4] sm:$0xf]
    %v1069 = vld [vmem:[%s1066 + $0x8] sm:$0xf]
    %v1070 = vld [vmem:[%s1066 + $0xc] sm:$0xf]
    %v1071 = vld [vmem:[%s1066 + $0x10] sm:$0xf]
    %v1072 = vld [vmem:[%s1066 + $0x14] sm:$0xf]
    %v1079 = vunpack.c.l.b16 %v1067
    %v1080 = vunpack.c.l.b16 %v1068
    %v1081 = vunpack.c.l.b16 %v1069
    %v1082 = vunpack.c.l.b16 %v1070
    %v1083 = vunpack.c.l.b16 %v1071
    %v1084 = vunpack.c.l.b16 %v1072
    %v1085 = vpack.c.b16 %v1080, %v1079
    %v1086 = vpack.c.b16 %v1082, %v1081
    %v1087 = vpack.c.b16 %v1084, %v1083
    %v1092 = vsel %vm380, %v1058, 0
    %v1095 = vsel %vm380, %v1059, 0
    %v1098 = vsel %vm380, %v1060, 0
    %v1101 = vsel %vm380, %v1061, 0
    %v1104 = vsel %vm380, %v1062, 0
    %v1107 = vsel %vm380, %v1063, 0
    %v1110 = vsel %vm380, %v1064, 0
    %v1113 = vsel %vm380, %v1065, 0
    %1115 = vmatprep.subr.bf16.mxu0 0
    %1116 = vmatpush1.bf16.msra.mxu0 %v1085
    %1117 = vmatprep.subr.bf16.mxu0 0
    %1118 = vmatpush1.bf16.msra.mxu0 %v1086
    %1119 = vmatprep.subr.bf16.mxu0 0
    %1120 = vmatpush1.bf16.msra.mxu0 %v1087
    %1121 = vmatprep.subr.bf16.mxu0 0
    %1122 = vmatpush1.bf16.msra.mxu0 0
    %1123 = vmatprep.subr.bf16.mxu0 0
    %1124 = vmatpush1.bf16.msra.mxu0 0
    %1125 = vmatprep.subr.bf16.mxu0 0
    %1126 = vmatpush1.bf16.msra.mxu0 0
    %1127 = vmatprep.subr.bf16.mxu0 0
    %1128 = vmatpush1.bf16.msra.mxu0 0
    %1129 = vmatprep.subr.bf16.mxu0 0
    %1130 = vmatpush1.bf16.msra.mxu0 0
    %1131 = vmatprep.subr.bf16.mxu0 0
    %1132 = vmatpush1.bf16.msra.mxu0 0
    %1133 = vmatprep.subr.bf16.mxu0 0
    %1134 = vmatpush1.bf16.msra.mxu0 0
    %1135 = vmatprep.subr.bf16.mxu0 0
    %1136 = vmatpush1.bf16.msra.mxu0 0
    %1137 = vmatprep.subr.bf16.mxu0 0
    %1138 = vmatpush1.bf16.msra.mxu0 0
    %1139 = vmatprep.subr.bf16.mxu0 0
    %1140 = vmatpush1.bf16.msra.mxu0 0
    %1141 = vmatprep.subr.bf16.mxu0 0
    %1142 = vmatpush1.bf16.msra.mxu0 0
    %1143 = vmatprep.subr.bf16.mxu0 0
    %1144 = vmatpush1.bf16.msra.mxu0 0
    %1145 = vmatprep.subr.bf16.mxu0 0
    %1146 = vmatpush1.bf16.msra.mxu0 0
    %1147 = vmatprep.mubr.bf16.mxu0 0
    %1148 = vmatmul.mubr.bf16.gmra.mrb[0].mxu0 %v1092
    %v1149 = vpop.f32.mrb[0].mxu0
    %v1150 = vadd.f32 0.0, %v1149
    %v1151 = vpop.f32.mrb[0].mxu0
    %v1152 = vpop.f32.mrb[0].mxu0
    %v1153 = vadd.f32 0.0, %v1152
    %v1154 = vpop.f32.mrb[0].mxu0
    %1155 = vmatprep.mubr.bf16.mxu0 0
    %1156 = vmatmul.mubr.bf16.gmra.mrb[0].mxu0 %v1095
    %v1157 = vpop.f32.mrb[0].mxu0
    %v1158 = vadd.f32 0.0, %v1157
    %v1159 = vpop.f32.mrb[0].mxu0
    %v1160 = vpop.f32.mrb[0].mxu0
    %v1161 = vadd.f32 0.0, %v1160
    %v1162 = vpop.f32.mrb[0].mxu0
    %1163 = vmatprep.mubr.bf16.mxu0 0
    %1164 = vmatmul.mubr.bf16.gmra.mrb[0].mxu0 %v1098
    %v1165 = vpop.f32.mrb[0].mxu0
    %v1166 = vadd.f32 0.0, %v1165
    %v1167 = vpop.f32.mrb[0].mxu0
    %v1168 = vpop.f32.mrb[0].mxu0
    %v1169 = vadd.f32 0.0, %v1168
    %v1170 = vpop.f32.mrb[0].mxu0
    %1171 = vmatprep.mubr.bf16.mxu0 0
    %1172 = vmatmul.mubr.bf16.gmra.mrb[0].mxu0 %v1101
    %v1173 = vpop.f32.mrb[0].mxu0
    %v1174 = vadd.f32 0.0, %v1173
    %v1175 = vpop.f32.mrb[0].mxu0
    %v1176 = vpop.f32.mrb[0].mxu0
    %v1177 = vadd.f32 0.0, %v1176
    %v1178 = vpop.f32.mrb[0].mxu0
    %1179 = vmatprep.mubr.bf16.mxu0 0
    %1180 = vmatmul.mubr.bf16.gmra.mrb[0].mxu0 %v1104
    %v1181 = vpop.f32.mrb[0].mxu0
    %v1182 = vadd.f32 0.0, %v1181
    %v1183 = vpop.f32.mrb[0].mxu0
    %v1184 = vpop.f32.mrb[0].mxu0
    %v1185 = vadd.f32 0.0, %v1184
    %v1186 = vpop.f32.mrb[0].mxu0
    %1187 = vmatprep.mubr.bf16.mxu0 0
    %1188 = vmatmul.mubr.bf16.gmra.mrb[0].mxu0 %v1107
    %v1189 = vpop.f32.mrb[0].mxu0
    %v1190 = vadd.f32 0.0, %v1189
    %v1191 = vpop.f32.mrb[0].mxu0
    %v1192 = vpop.f32.mrb[0].mxu0
    %v1193 = vadd.f32 0.0, %v1192
    %v1194 = vpop.f32.mrb[0].mxu0
    %1195 = vmatprep.mubr.bf16.mxu0 0
    %1196 = vmatmul.mubr.bf16.gmra.mrb[0].mxu0 %v1110
    %v1197 = vpop.f32.mrb[0].mxu0
    %v1198 = vadd.f32 0.0, %v1197
    %v1199 = vpop.f32.mrb[0].mxu0
    %v1200 = vpop.f32.mrb[0].mxu0
    %v1201 = vadd.f32 0.0, %v1200
    %v1202 = vpop.f32.mrb[0].mxu0
    %1203 = vmatprep.mubr.bf16.mxu0 0
    %1204 = vmatmul.mubr.bf16.gmra.mrb[0].mxu0 %v1113
    %v1205 = vpop.f32.mrb[0].mxu0
    %v1206 = vadd.f32 0.0, %v1205
    %v1207 = vpop.f32.mrb[0].mxu0
    %v1208 = vpop.f32.mrb[0].mxu0
    %v1209 = vadd.f32 0.0, %v1208
    %v1210 = vpop.f32.mrb[0].mxu0
    %1211 = vdwg.mxu0
    %v1212 = vadd.f32 %v1030, %v1150
    %v1213 = vadd.f32 %v1031, %v1153
    %v1214 = vadd.f32 %v1032, %v1158
    %v1215 = vadd.f32 %v1033, %v1161
    %v1216 = vadd.f32 %v1034, %v1166
    %v1217 = vadd.f32 %v1035, %v1169
    %v1218 = vadd.f32 %v1036, %v1174
    %v1219 = vadd.f32 %v1037, %v1177
    %v1220 = vadd.f32 %v1038, %v1182
    %v1221 = vadd.f32 %v1039, %v1185
    %v1222 = vadd.f32 %v1040, %v1190
    %v1223 = vadd.f32 %v1041, %v1193
    %v1224 = vadd.f32 %v1042, %v1198
    %v1225 = vadd.f32 %v1043, %v1201
    %v1226 = vadd.f32 %v1044, %v1206
    %v1227 = vadd.f32 %v1045, %v1209
    %v1228 = vrot.slane %v68, 2
    %v1229 = vrot.slane %v69, 2
    %v1230 = vsel %vm641, %v1228, %v1229
    %v1231 = vrot.slane %v88, 2
    %v1232 = vrot.slane %v89, 2
    %v1233 = vsel %vm641, %v1231, %v1232
    %v1236 = vpack.c.bf16 %v650, %v647
    %v1237 = vpack.c.bf16 %v656, %v653
    %v1238 = vpack.c.bf16 %v662, %v659
    %v1239 = vpack.c.bf16 %v1230, %v665
    %v1240 = vpack.c.bf16 %v674, %v671
    %v1241 = vpack.c.bf16 %v680, %v677
    %v1242 = vpack.c.bf16 %v686, %v683
    %v1243 = vpack.c.bf16 %v1233, %v689
    %s1244 = scalar_lea.vmem %s1, 120
    %v1245 = vld [vmem:[%s1244] sm:$0xf]
    %v1246 = vld [vmem:[%s1244 + $0x4] sm:$0xf]
    %v1247 = vld [vmem:[%s1244 + $0x8] sm:$0xf]
    %v1248 = vld [vmem:[%s1244 + $0xc] sm:$0xf]
    %v1249 = vld [vmem:[%s1244 + $0x10] sm:$0xf]
    %v1250 = vld [vmem:[%s1244 + $0x14] sm:$0xf]
    %v1257 = vunpack.c.l.b16 %v1245
    %v1258 = vunpack.c.l.b16 %v1246
    %v1259 = vunpack.c.l.b16 %v1247
    %v1260 = vunpack.c.l.b16 %v1248
    %v1261 = vunpack.c.l.b16 %v1249
    %v1262 = vunpack.c.l.b16 %v1250
    %v1263 = vpack.c.b16 %v1258, %v1257
    %v1264 = vpack.c.b16 %v1260, %v1259
    %v1265 = vpack.c.b16 %v1262, %v1261
    %v1270 = vsel %vm380, %v1236, 0
    %v1273 = vsel %vm380, %v1237, 0
    %v1276 = vsel %vm380, %v1238, 0
    %v1279 = vsel %vm380, %v1239, 0
    %v1282 = vsel %vm380, %v1240, 0
    %v1285 = vsel %vm380, %v1241, 0
    %v1288 = vsel %vm380, %v1242, 0
    %v1291 = vsel %vm380, %v1243, 0
    %1293 = vmatprep.subr.bf16.mxu0 0
    %1294 = vmatpush1.bf16.msra.mxu0 %v1263
    %1295 = vmatprep.subr.bf16.mxu0 0
    %1296 = vmatpush1.bf16.msra.mxu0 %v1264
    %1297 = vmatprep.subr.bf16.mxu0 0
    %1298 = vmatpush1.bf16.msra.mxu0 %v1265
    %1299 = vmatprep.subr.bf16.mxu0 0
    %1300 = vmatpush1.bf16.msra.mxu0 0
    %1301 = vmatprep.subr.bf16.mxu0 0
    %1302 = vmatpush1.bf16.msra.mxu0 0
    %1303 = vmatprep.subr.bf16.mxu0 0
    %1304 = vmatpush1.bf16.msra.mxu0 0
    %1305 = vmatprep.subr.bf16.mxu0 0
    %1306 = vmatpush1.bf16.msra.mxu0 0
    %1307 = vmatprep.subr.bf16.mxu0 0
    %1308 = vmatpush1.bf16.msra.mxu0 0
    %1309 = vmatprep.subr.bf16.mxu0 0
    %1310 = vmatpush1.bf16.msra.mxu0 0
    %1311 = vmatprep.subr.bf16.mxu0 0
    %1312 = vmatpush1.bf16.msra.mxu0 0
    %1313 = vmatprep.subr.bf16.mxu0 0
    %1314 = vmatpush1.bf16.msra.mxu0 0
    %1315 = vmatprep.subr.bf16.mxu0 0
    %1316 = vmatpush1.bf16.msra.mxu0 0
    %1317 = vmatprep.subr.bf16.mxu0 0
    %1318 = vmatpush1.bf16.msra.mxu0 0
    %1319 = vmatprep.subr.bf16.mxu0 0
    %1320 = vmatpush1.bf16.msra.mxu0 0
    %1321 = vmatprep.subr.bf16.mxu0 0
    %1322 = vmatpush1.bf16.msra.mxu0 0
    %1323 = vmatprep.subr.bf16.mxu0 0
    %1324 = vmatpush1.bf16.msra.mxu0 0
    %1325 = vmatprep.mubr.bf16.mxu0 0
    %1326 = vmatmul.mubr.bf16.gmra.mrb[0].mxu0 %v1270
    %v1327 = vpop.f32.mrb[0].mxu0
    %v1328 = vadd.f32 0.0, %v1327
    %v1329 = vpop.f32.mrb[0].mxu0
    %v1330 = vpop.f32.mrb[0].mxu0
    %v1331 = vadd.f32 0.0, %v1330
    %v1332 = vpop.f32.mrb[0].mxu0
    %1333 = vmatprep.mubr.bf16.mxu0 0
    %1334 = vmatmul.mubr.bf16.gmra.mrb[0].mxu0 %v1273
    %v1335 = vpop.f32.mrb[0].mxu0
    %v1336 = vadd.f32 0.0, %v1335
    %v1337 = vpop.f32.mrb[0].mxu0
    %v1338 = vpop.f32.mrb[0].mxu0
    %v1339 = vadd.f32 0.0, %v1338
    %v1340 = vpop.f32.mrb[0].mxu0
    %1341 = vmatprep.mubr.bf16.mxu0 0
    %1342 = vmatmul.mubr.bf16.gmra.mrb[0].mxu0 %v1276
    %v1343 = vpop.f32.mrb[0].mxu0
    %v1344 = vadd.f32 0.0, %v1343
    %v1345 = vpop.f32.mrb[0].mxu0
    %v1346 = vpop.f32.mrb[0].mxu0
    %v1347 = vadd.f32 0.0, %v1346
    %v1348 = vpop.f32.mrb[0].mxu0
    %1349 = vmatprep.mubr.bf16.mxu0 0
    %1350 = vmatmul.mubr.bf16.gmra.mrb[0].mxu0 %v1279
    %v1351 = vpop.f32.mrb[0].mxu0
    %v1352 = vadd.f32 0.0, %v1351
    %v1353 = vpop.f32.mrb[0].mxu0
    %v1354 = vpop.f32.mrb[0].mxu0
    %v1355 = vadd.f32 0.0, %v1354
    %v1356 = vpop.f32.mrb[0].mxu0
    %1357 = vmatprep.mubr.bf16.mxu0 0
    %1358 = vmatmul.mubr.bf16.gmra.mrb[0].mxu0 %v1282
    %v1359 = vpop.f32.mrb[0].mxu0
    %v1360 = vadd.f32 0.0, %v1359
    %v1361 = vpop.f32.mrb[0].mxu0
    %v1362 = vpop.f32.mrb[0].mxu0
    %v1363 = vadd.f32 0.0, %v1362
    %v1364 = vpop.f32.mrb[0].mxu0
    %1365 = vmatprep.mubr.bf16.mxu0 0
    %1366 = vmatmul.mubr.bf16.gmra.mrb[0].mxu0 %v1285
    %v1367 = vpop.f32.mrb[0].mxu0
    %v1368 = vadd.f32 0.0, %v1367
    %v1369 = vpop.f32.mrb[0].mxu0
    %v1370 = vpop.f32.mrb[0].mxu0
    %v1371 = vadd.f32 0.0, %v1370
    %v1372 = vpop.f32.mrb[0].mxu0
    %1373 = vmatprep.mubr.bf16.mxu0 0
    %1374 = vmatmul.mubr.bf16.gmra.mrb[0].mxu0 %v1288
    %v1375 = vpop.f32.mrb[0].mxu0
    %v1376 = vadd.f32 0.0, %v1375
    %v1377 = vpop.f32.mrb[0].mxu0
    %v1378 = vpop.f32.mrb[0].mxu0
    %v1379 = vadd.f32 0.0, %v1378
    %v1380 = vpop.f32.mrb[0].mxu0
    %1381 = vmatprep.mubr.bf16.mxu0 0
    %1382 = vmatmul.mubr.bf16.gmra.mrb[0].mxu0 %v1291
    %v1383 = vpop.f32.mrb[0].mxu0
    %v1384 = vadd.f32 0.0, %v1383
    %v1385 = vpop.f32.mrb[0].mxu0
    %v1386 = vpop.f32.mrb[0].mxu0
    %v1387 = vadd.f32 0.0, %v1386
    %v1388 = vpop.f32.mrb[0].mxu0
    %1389 = vdwg.mxu0
    %v1390 = vadd.f32 %v1212, %v1328
    %v1391 = vadd.f32 %v1213, %v1331
    %v1392 = vadd.f32 %v1214, %v1336
    %v1393 = vadd.f32 %v1215, %v1339
    %v1394 = vadd.f32 %v1216, %v1344
    %v1395 = vadd.f32 %v1217, %v1347
    %v1396 = vadd.f32 %v1218, %v1352
    %v1397 = vadd.f32 %v1219, %v1355
    %v1398 = vadd.f32 %v1220, %v1360
    %v1399 = vadd.f32 %v1221, %v1363
    %v1400 = vadd.f32 %v1222, %v1368
    %v1401 = vadd.f32 %v1223, %v1371
    %v1402 = vadd.f32 %v1224, %v1376
    %v1403 = vadd.f32 %v1225, %v1379
    %v1404 = vadd.f32 %v1226, %v1384
    %v1405 = vadd.f32 %v1227, %v1387
    %v1406 = vpack.c.bf16 %v70, %v68
    %v1407 = vpack.c.bf16 %v90, %v88
    %s1408 = scalar_lea.vmem %s1, 144
    %v1409 = vld [vmem:[%s1408] sm:$0xf]
    %v1410 = vld [vmem:[%s1408 + $0x4] sm:$0xf]
    %v1411 = vld [vmem:[%s1408 + $0x8] sm:$0xf]
    %v1412 = vld [vmem:[%s1408 + $0xc] sm:$0xf]
    %v1413 = vld [vmem:[%s1408 + $0x10] sm:$0xf]
    %v1414 = vld [vmem:[%s1408 + $0x14] sm:$0xf]
    %v1421 = vunpack.c.l.b16 %v1409
    %v1422 = vunpack.c.l.b16 %v1410
    %v1423 = vunpack.c.l.b16 %v1411
    %v1424 = vunpack.c.l.b16 %v1412
    %v1425 = vunpack.c.l.b16 %v1413
    %v1426 = vunpack.c.l.b16 %v1414
    %v1427 = vpack.c.b16 %v1422, %v1421
    %v1428 = vpack.c.b16 %v1424, %v1423
    %v1429 = vpack.c.b16 %v1426, %v1425
    %v1434 = vsel %vm380, %v1406, 0
    %v1437 = vsel %vm380, %v1407, 0
    %1439 = vmatprep.subr.bf16.mxu0 0
    %1440 = vmatpush1.bf16.msra.mxu0 %v1427
    %1441 = vmatprep.subr.bf16.mxu0 0
    %1442 = vmatpush1.bf16.msra.mxu0 %v1428
    %1443 = vmatprep.subr.bf16.mxu0 0
    %1444 = vmatpush1.bf16.msra.mxu0 %v1429
    %1445 = vmatprep.subr.bf16.mxu0 0
    %1446 = vmatpush1.bf16.msra.mxu0 0
    %1447 = vmatprep.subr.bf16.mxu0 0
    %1448 = vmatpush1.bf16.msra.mxu0 0
    %1449 = vmatprep.subr.bf16.mxu0 0
    %1450 = vmatpush1.bf16.msra.mxu0 0
    %1451 = vmatprep.subr.bf16.mxu0 0
    %1452 = vmatpush1.bf16.msra.mxu0 0
    %1453 = vmatprep.subr.bf16.mxu0 0
    %1454 = vmatpush1.bf16.msra.mxu0 0
    %1455 = vmatprep.subr.bf16.mxu0 0
    %1456 = vmatpush1.bf16.msra.mxu0 0
    %1457 = vmatprep.subr.bf16.mxu0 0
    %1458 = vmatpush1.bf16.msra.mxu0 0
    %1459 = vmatprep.subr.bf16.mxu0 0
    %1460 = vmatpush1.bf16.msra.mxu0 0
    %1461 = vmatprep.subr.bf16.mxu0 0
    %1462 = vmatpush1.bf16.msra.mxu0 0
    %1463 = vmatprep.subr.bf16.mxu0 0
    %1464 = vmatpush1.bf16.msra.mxu0 0
    %1465 = vmatprep.subr.bf16.mxu0 0
    %1466 = vmatpush1.bf16.msra.mxu0 0
    %1467 = vmatprep.subr.bf16.mxu0 0
    %1468 = vmatpush1.bf16.msra.mxu0 0
    %1469 = vmatprep.subr.bf16.mxu0 0
    %1470 = vmatpush1.bf16.msra.mxu0 0
    %1471 = vmatprep.mubr.bf16.mxu0 0
    %1472 = vmatmul.mubr.bf16.gmra.mrb[0].mxu0 %v524
    %v1473 = vpop.f32.mrb[0].mxu0
    %v1474 = vadd.f32 0.0, %v1473
    %v1475 = vpop.f32.mrb[0].mxu0
    %v1476 = vpop.f32.mrb[0].mxu0
    %v1477 = vadd.f32 0.0, %v1476
    %v1478 = vpop.f32.mrb[0].mxu0
    %1479 = vmatprep.mubr.bf16.mxu0 0
    %1480 = vmatmul.mubr.bf16.gmra.mrb[0].mxu0 %v527
    %v1481 = vpop.f32.mrb[0].mxu0
    %v1482 = vadd.f32 0.0, %v1481
    %v1483 = vpop.f32.mrb[0].mxu0
    %v1484 = vpop.f32.mrb[0].mxu0
    %v1485 = vadd.f32 0.0, %v1484
    %v1486 = vpop.f32.mrb[0].mxu0
    %1487 = vmatprep.mubr.bf16.mxu0 0
    %1488 = vmatmul.mubr.bf16.gmra.mrb[0].mxu0 %v530
    %v1489 = vpop.f32.mrb[0].mxu0
    %v1490 = vadd.f32 0.0, %v1489
    %v1491 = vpop.f32.mrb[0].mxu0
    %v1492 = vpop.f32.mrb[0].mxu0
    %v1493 = vadd.f32 0.0, %v1492
    %v1494 = vpop.f32.mrb[0].mxu0
    %1495 = vmatprep.mubr.bf16.mxu0 0
    %1496 = vmatmul.mubr.bf16.gmra.mrb[0].mxu0 %v1434
    %v1497 = vpop.f32.mrb[0].mxu0
    %v1498 = vadd.f32 0.0, %v1497
    %v1499 = vpop.f32.mrb[0].mxu0
    %v1500 = vpop.f32.mrb[0].mxu0
    %v1501 = vadd.f32 0.0, %v1500
    %v1502 = vpop.f32.mrb[0].mxu0
    %1503 = vmatprep.mubr.bf16.mxu0 0
    %1504 = vmatmul.mubr.bf16.gmra.mrb[0].mxu0 %v536
    %v1505 = vpop.f32.mrb[0].mxu0
    %v1506 = vadd.f32 0.0, %v1505
    %v1507 = vpop.f32.mrb[0].mxu0
    %v1508 = vpop.f32.mrb[0].mxu0
    %v1509 = vadd.f32 0.0, %v1508
    %v1510 = vpop.f32.mrb[0].mxu0
    %1511 = vmatprep.mubr.bf16.mxu0 0
    %1512 = vmatmul.mubr.bf16.gmra.mrb[0].mxu0 %v539
    %v1513 = vpop.f32.mrb[0].mxu0
    %v1514 = vadd.f32 0.0, %v1513
    %v1515 = vpop.f32.mrb[0].mxu0
    %v1516 = vpop.f32.mrb[0].mxu0
    %v1517 = vadd.f32 0.0, %v1516
    %v1518 = vpop.f32.mrb[0].mxu0
    %1519 = vmatprep.mubr.bf16.mxu0 0
    %1520 = vmatmul.mubr.bf16.gmra.mrb[0].mxu0 %v542
    %v1521 = vpop.f32.mrb[0].mxu0
    %v1522 = vadd.f32 0.0, %v1521
    %v1523 = vpop.f32.mrb[0].mxu0
    %v1524 = vpop.f32.mrb[0].mxu0
    %v1525 = vadd.f32 0.0, %v1524
    %v1526 = vpop.f32.mrb[0].mxu0
    %1527 = vmatprep.mubr.bf16.mxu0 0
    %1528 = vmatmul.mubr.bf16.gmra.mrb[0].mxu0 %v1437
    %v1529 = vpop.f32.mrb[0].mxu0
    %v1530 = vadd.f32 0.0, %v1529
    %v1531 = vpop.f32.mrb[0].mxu0
    %v1532 = vpop.f32.mrb[0].mxu0
    %v1533 = vadd.f32 0.0, %v1532
    %v1534 = vpop.f32.mrb[0].mxu0
    %1535 = vdwg.mxu0
    %v1536 = vadd.f32 %v1390, %v1474
    %v1537 = vadd.f32 %v1391, %v1477
    %v1538 = vadd.f32 %v1392, %v1482
    %v1539 = vadd.f32 %v1393, %v1485
    %v1540 = vadd.f32 %v1394, %v1490
    %v1541 = vadd.f32 %v1395, %v1493
    %v1542 = vadd.f32 %v1396, %v1498
    %v1543 = vadd.f32 %v1397, %v1501
    %v1544 = vadd.f32 %v1398, %v1506
    %v1545 = vadd.f32 %v1399, %v1509
    %v1546 = vadd.f32 %v1400, %v1514
    %v1547 = vadd.f32 %v1401, %v1517
    %v1548 = vadd.f32 %v1402, %v1522
    %v1549 = vadd.f32 %v1403, %v1525
    %v1550 = vadd.f32 %v1404, %v1530
    %v1551 = vadd.f32 %v1405, %v1533
    %v1556 = vrot.slane %v70, 1
    %v1557 = vrot.slane %v71, 1
    %v1558 = vsel %vm282, %v1556, %v1557
    %v1559 = vrot.slane %v90, 1
    %v1560 = vrot.slane %v91, 1
    %v1561 = vsel %vm282, %v1559, %v1560
    %v1564 = vpack.c.bf16 %v1558, %v1052
    %v1565 = vpack.c.bf16 %v1561, %v1055
    %s1566 = scalar_lea.vmem %s1, 168
    %v1567 = vld [vmem:[%s1566] sm:$0xf]
    %v1568 = vld [vmem:[%s1566 + $0x4] sm:$0xf]
    %v1569 = vld [vmem:[%s1566 + $0x8] sm:$0xf]
    %v1570 = vld [vmem:[%s1566 + $0xc] sm:$0xf]
    %v1571 = vld [vmem:[%s1566 + $0x10] sm:$0xf]
    %v1572 = vld [vmem:[%s1566 + $0x14] sm:$0xf]
    %v1579 = vunpack.c.l.b16 %v1567
    %v1580 = vunpack.c.l.b16 %v1568
    %v1581 = vunpack.c.l.b16 %v1569
    %v1582 = vunpack.c.l.b16 %v1570
    %v1583 = vunpack.c.l.b16 %v1571
    %v1584 = vunpack.c.l.b16 %v1572
    %v1585 = vpack.c.b16 %v1580, %v1579
    %v1586 = vpack.c.b16 %v1582, %v1581
    %v1587 = vpack.c.b16 %v1584, %v1583
    %v1592 = vsel %vm380, %v1564, 0
    %v1595 = vsel %vm380, %v1565, 0
    %1597 = vmatprep.subr.bf16.mxu0 0
    %1598 = vmatpush1.bf16.msra.mxu0 %v1585
    %1599 = vmatprep.subr.bf16.mxu0 0
    %1600 = vmatpush1.bf16.msra.mxu0 %v1586
    %1601 = vmatprep.subr.bf16.mxu0 0
    %1602 = vmatpush1.bf16.msra.mxu0 %v1587
    %1603 = vmatprep.subr.bf16.mxu0 0
    %1604 = vmatpush1.bf16.msra.mxu0 0
    %1605 = vmatprep.subr.bf16.mxu0 0
    %1606 = vmatpush1.bf16.msra.mxu0 0
    %1607 = vmatprep.subr.bf16.mxu0 0
    %1608 = vmatpush1.bf16.msra.mxu0 0
    %1609 = vmatprep.subr.bf16.mxu0 0
    %1610 = vmatpush1.bf16.msra.mxu0 0
    %1611 = vmatprep.subr.bf16.mxu0 0
    %1612 = vmatpush1.bf16.msra.mxu0 0
    %1613 = vmatprep.subr.bf16.mxu0 0
    %1614 = vmatpush1.bf16.msra.mxu0 0
    %1615 = vmatprep.subr.bf16.mxu0 0
    %1616 = vmatpush1.bf16.msra.mxu0 0
    %1617 = vmatprep.subr.bf16.mxu0 0
    %1618 = vmatpush1.bf16.msra.mxu0 0
    %1619 = vmatprep.subr.bf16.mxu0 0
    %1620 = vmatpush1.bf16.msra.mxu0 0
    %1621 = vmatprep.subr.bf16.mxu0 0
    %1622 = vmatpush1.bf16.msra.mxu0 0
    %1623 = vmatprep.subr.bf16.mxu0 0
    %1624 = vmatpush1.bf16.msra.mxu0 0
    %1625 = vmatprep.subr.bf16.mxu0 0
    %1626 = vmatpush1.bf16.msra.mxu0 0
    %1627 = vmatprep.subr.bf16.mxu0 0
    %1628 = vmatpush1.bf16.msra.mxu0 0
    %1629 = vmatprep.mubr.bf16.mxu0 0
    %1630 = vmatmul.mubr.bf16.gmra.mrb[0].mxu0 %v385
    %v1631 = vpop.f32.mrb[0].mxu0
    %v1632 = vadd.f32 0.0, %v1631
    %v1633 = vpop.f32.mrb[0].mxu0
    %v1634 = vpop.f32.mrb[0].mxu0
    %v1635 = vadd.f32 0.0, %v1634
    %v1636 = vpop.f32.mrb[0].mxu0
    %1637 = vmatprep.mubr.bf16.mxu0 0
    %1638 = vmatmul.mubr.bf16.gmra.mrb[0].mxu0 %v388
    %v1639 = vpop.f32.mrb[0].mxu0
    %v1640 = vadd.f32 0.0, %v1639
    %v1641 = vpop.f32.mrb[0].mxu0
    %v1642 = vpop.f32.mrb[0].mxu0
    %v1643 = vadd.f32 0.0, %v1642
    %v1644 = vpop.f32.mrb[0].mxu0
    %1645 = vmatprep.mubr.bf16.mxu0 0
    %1646 = vmatmul.mubr.bf16.gmra.mrb[0].mxu0 %v391
    %v1647 = vpop.f32.mrb[0].mxu0
    %v1648 = vadd.f32 0.0, %v1647
    %v1649 = vpop.f32.mrb[0].mxu0
    %v1650 = vpop.f32.mrb[0].mxu0
    %v1651 = vadd.f32 0.0, %v1650
    %v1652 = vpop.f32.mrb[0].mxu0
    %1653 = vmatprep.mubr.bf16.mxu0 0
    %1654 = vmatmul.mubr.bf16.gmra.mrb[0].mxu0 %v1592
    %v1655 = vpop.f32.mrb[0].mxu0
    %v1656 = vadd.f32 0.0, %v1655
    %v1657 = vpop.f32.mrb[0].mxu0
    %v1658 = vpop.f32.mrb[0].mxu0
    %v1659 = vadd.f32 0.0, %v1658
    %v1660 = vpop.f32.mrb[0].mxu0
    %1661 = vmatprep.mubr.bf16.mxu0 0
    %1662 = vmatmul.mubr.bf16.gmra.mrb[0].mxu0 %v397
    %v1663 = vpop.f32.mrb[0].mxu0
    %v1664 = vadd.f32 0.0, %v1663
    %v1665 = vpop.f32.mrb[0].mxu0
    %v1666 = vpop.f32.mrb[0].mxu0
    %v1667 = vadd.f32 0.0, %v1666
    %v1668 = vpop.f32.mrb[0].mxu0
    %1669 = vmatprep.mubr.bf16.mxu0 0
    %1670 = vmatmul.mubr.bf16.gmra.mrb[0].mxu0 %v400
    %v1671 = vpop.f32.mrb[0].mxu0
    %v1672 = vadd.f32 0.0, %v1671
    %v1673 = vpop.f32.mrb[0].mxu0
    %v1674 = vpop.f32.mrb[0].mxu0
    %v1675 = vadd.f32 0.0, %v1674
    %v1676 = vpop.f32.mrb[0].mxu0
    %1677 = vmatprep.mubr.bf16.mxu0 0
    %1678 = vmatmul.mubr.bf16.gmra.mrb[0].mxu0 %v403
    %v1679 = vpop.f32.mrb[0].mxu0
    %v1680 = vadd.f32 0.0, %v1679
    %v1681 = vpop.f32.mrb[0].mxu0
    %v1682 = vpop.f32.mrb[0].mxu0
    %v1683 = vadd.f32 0.0, %v1682
    %v1684 = vpop.f32.mrb[0].mxu0
    %1685 = vmatprep.mubr.bf16.mxu0 0
    %1686 = vmatmul.mubr.bf16.gmra.mrb[0].mxu0 %v1595
    %v1687 = vpop.f32.mrb[0].mxu0
    %v1688 = vadd.f32 0.0, %v1687
    %v1689 = vpop.f32.mrb[0].mxu0
    %v1690 = vpop.f32.mrb[0].mxu0
    %v1691 = vadd.f32 0.0, %v1690
    %v1692 = vpop.f32.mrb[0].mxu0
    %1693 = vdwg.mxu0
    %v1694 = vadd.f32 %v1536, %v1632
    %v1695 = vadd.f32 %v1537, %v1635
    %v1696 = vadd.f32 %v1538, %v1640
    %v1697 = vadd.f32 %v1539, %v1643
    %v1698 = vadd.f32 %v1540, %v1648
    %v1699 = vadd.f32 %v1541, %v1651
    %v1700 = vadd.f32 %v1542, %v1656
    %v1701 = vadd.f32 %v1543, %v1659
    %v1702 = vadd.f32 %v1544, %v1664
    %v1703 = vadd.f32 %v1545, %v1667
    %v1704 = vadd.f32 %v1546, %v1672
    %v1705 = vadd.f32 %v1547, %v1675
    %v1706 = vadd.f32 %v1548, %v1680
    %v1707 = vadd.f32 %v1549, %v1683
    %v1708 = vadd.f32 %v1550, %v1688
    %v1709 = vadd.f32 %v1551, %v1691
    %v1710 = vrot.slane %v70, 2
    %v1711 = vrot.slane %v71, 2
    %v1712 = vsel %vm641, %v1710, %v1711
    %v1713 = vrot.slane %v90, 2
    %v1714 = vrot.slane %v91, 2
    %v1715 = vsel %vm641, %v1713, %v1714
    %v1718 = vpack.c.bf16 %v1712, %v1230
    %v1719 = vpack.c.bf16 %v1715, %v1233
    %s1720 = scalar_lea.vmem %s1, 192
    %v1721 = vld [vmem:[%s1720] sm:$0xf]
    %v1722 = vld [vmem:[%s1720 + $0x4] sm:$0xf]
    %v1723 = vld [vmem:[%s1720 + $0x8] sm:$0xf]
    %v1724 = vld [vmem:[%s1720 + $0xc] sm:$0xf]
    %v1725 = vld [vmem:[%s1720 + $0x10] sm:$0xf]
    %v1726 = vld [vmem:[%s1720 + $0x14] sm:$0xf]
    %v1733 = vunpack.c.l.b16 %v1721
    %v1734 = vunpack.c.l.b16 %v1722
    %v1735 = vunpack.c.l.b16 %v1723
    %v1736 = vunpack.c.l.b16 %v1724
    %v1737 = vunpack.c.l.b16 %v1725
    %v1738 = vunpack.c.l.b16 %v1726
    %v1739 = vpack.c.b16 %v1734, %v1733
    %v1740 = vpack.c.b16 %v1736, %v1735
    %v1741 = vpack.c.b16 %v1738, %v1737
    %v1746 = vsel %vm380, %v1718, 0
    %v1749 = vsel %vm380, %v1719, 0
    %1751 = vmatprep.subr.bf16.mxu0 0
    %1752 = vmatpush1.bf16.msra.mxu0 %v1739
    %1753 = vmatprep.subr.bf16.mxu0 0
    %1754 = vmatpush1.bf16.msra.mxu0 %v1740
    %1755 = vmatprep.subr.bf16.mxu0 0
    %1756 = vmatpush1.bf16.msra.mxu0 %v1741
    %1757 = vmatprep.subr.bf16.mxu0 0
    %1758 = vmatpush1.bf16.msra.mxu0 0
    %1759 = vmatprep.subr.bf16.mxu0 0
    %1760 = vmatpush1.bf16.msra.mxu0 0
    %1761 = vmatprep.subr.bf16.mxu0 0
    %1762 = vmatpush1.bf16.msra.mxu0 0
    %1763 = vmatprep.subr.bf16.mxu0 0
    %1764 = vmatpush1.bf16.msra.mxu0 0
    %1765 = vmatprep.subr.bf16.mxu0 0
    %1766 = vmatpush1.bf16.msra.mxu0 0
    %1767 = vmatprep.subr.bf16.mxu0 0
    %1768 = vmatpush1.bf16.msra.mxu0 0
    %1769 = vmatprep.subr.bf16.mxu0 0
    %1770 = vmatpush1.bf16.msra.mxu0 0
    %1771 = vmatprep.subr.bf16.mxu0 0
    %1772 = vmatpush1.bf16.msra.mxu0 0
    %1773 = vmatprep.subr.bf16.mxu0 0
    %1774 = vmatpush1.bf16.msra.mxu0 0
    %1775 = vmatprep.subr.bf16.mxu0 0
    %1776 = vmatpush1.bf16.msra.mxu0 0
    %1777 = vmatprep.subr.bf16.mxu0 0
    %1778 = vmatpush1.bf16.msra.mxu0 0
    %1779 = vmatprep.subr.bf16.mxu0 0
    %1780 = vmatpush1.bf16.msra.mxu0 0
    %1781 = vmatprep.subr.bf16.mxu0 0
    %1782 = vmatpush1.bf16.msra.mxu0 0
    %1783 = vmatprep.mubr.bf16.mxu0 0
    %1784 = vmatmul.mubr.bf16.gmra.mrb[0].mxu0 %v743
    %v1785 = vpop.f32.mrb[0].mxu0
    %v1786 = vadd.f32 0.0, %v1785
    %v1787 = vpop.f32.mrb[0].mxu0
    %v1788 = vpop.f32.mrb[0].mxu0
    %v1789 = vadd.f32 0.0, %v1788
    %v1790 = vpop.f32.mrb[0].mxu0
    %1791 = vmatprep.mubr.bf16.mxu0 0
    %1792 = vmatmul.mubr.bf16.gmra.mrb[0].mxu0 %v746
    %v1793 = vpop.f32.mrb[0].mxu0
    %v1794 = vadd.f32 0.0, %v1793
    %v1795 = vpop.f32.mrb[0].mxu0
    %v1796 = vpop.f32.mrb[0].mxu0
    %v1797 = vadd.f32 0.0, %v1796
    %v1798 = vpop.f32.mrb[0].mxu0
    %1799 = vmatprep.mubr.bf16.mxu0 0
    %1800 = vmatmul.mubr.bf16.gmra.mrb[0].mxu0 %v749
    %v1801 = vpop.f32.mrb[0].mxu0
    %v1802 = vadd.f32 0.0, %v1801
    %v1803 = vpop.f32.mrb[0].mxu0
    %v1804 = vpop.f32.mrb[0].mxu0
    %v1805 = vadd.f32 0.0, %v1804
    %v1806 = vpop.f32.mrb[0].mxu0
    %1807 = vmatprep.mubr.bf16.mxu0 0
    %1808 = vmatmul.mubr.bf16.gmra.mrb[0].mxu0 %v1746
    %v1809 = vpop.f32.mrb[0].mxu0
    %v1810 = vadd.f32 0.0, %v1809
    %v1811 = vpop.f32.mrb[0].mxu0
    %v1812 = vpop.f32.mrb[0].mxu0
    %v1813 = vadd.f32 0.0, %v1812
    %v1814 = vpop.f32.mrb[0].mxu0
    %1815 = vmatprep.mubr.bf16.mxu0 0
    %1816 = vmatmul.mubr.bf16.gmra.mrb[0].mxu0 %v755
    %v1817 = vpop.f32.mrb[0].mxu0
    %v1818 = vadd.f32 0.0, %v1817
    %v1819 = vpop.f32.mrb[0].mxu0
    %v1820 = vpop.f32.mrb[0].mxu0
    %v1821 = vadd.f32 0.0, %v1820
    %v1822 = vpop.f32.mrb[0].mxu0
    %1823 = vmatprep.mubr.bf16.mxu0 0
    %1824 = vmatmul.mubr.bf16.gmra.mrb[0].mxu0 %v758
    %v1825 = vpop.f32.mrb[0].mxu0
    %v1826 = vadd.f32 0.0, %v1825
    %v1827 = vpop.f32.mrb[0].mxu0
    %v1828 = vpop.f32.mrb[0].mxu0
    %v1829 = vadd.f32 0.0, %v1828
    %v1830 = vpop.f32.mrb[0].mxu0
    %1831 = vmatprep.mubr.bf16.mxu0 0
    %1832 = vmatmul.mubr.bf16.gmra.mrb[0].mxu0 %v761
    %v1833 = vpop.f32.mrb[0].mxu0
    %v1834 = vadd.f32 0.0, %v1833
    %v1835 = vpop.f32.mrb[0].mxu0
    %v1836 = vpop.f32.mrb[0].mxu0
    %v1837 = vadd.f32 0.0, %v1836
    %v1838 = vpop.f32.mrb[0].mxu0
    %1839 = vmatprep.mubr.bf16.mxu0 0
    %1840 = vmatmul.mubr.bf16.gmra.mrb[0].mxu0 %v1749
    %v1841 = vpop.f32.mrb[0].mxu0
    %v1842 = vadd.f32 0.0, %v1841
    %v1843 = vpop.f32.mrb[0].mxu0
    %v1844 = vpop.f32.mrb[0].mxu0
    %v1845 = vadd.f32 0.0, %v1844
    %v1846 = vpop.f32.mrb[0].mxu0
    %1847 = vdwg.mxu0
    %v1848 = vadd.f32 %v1694, %v1786
    %v1849 = vadd.f32 %v1695, %v1789
    %v1850 = vadd.f32 %v1696, %v1794
    %v1851 = vadd.f32 %v1697, %v1797
    %v1852 = vadd.f32 %v1698, %v1802
    %v1853 = vadd.f32 %v1699, %v1805
    %v1854 = vadd.f32 %v1700, %v1810
    %v1855 = vadd.f32 %v1701, %v1813
    %v1856 = vadd.f32 %v1702, %v1818
    %v1857 = vadd.f32 %v1703, %v1821
    %v1858 = vadd.f32 %v1704, %v1826
    %v1859 = vadd.f32 %v1705, %v1829
    %v1860 = vadd.f32 %v1706, %v1834
    %v1861 = vadd.f32 %v1707, %v1837
    %v1862 = vadd.f32 %v1708, %v1842
    %v1863 = vadd.f32 %v1709, %v1845
    %v1864 = vld [vmem:[%s2] sm:$0x1]
    %v1866 = vlaneseq
    %v1867 = vshrl.u32 %v1866, 7
    %v1868 = vsub.s32 0, %v1867
    %v1869 = vrot.slane %v1864, %v1868
    %v1871 = vadd.f32 %v1848, %v1869
    %v1872 = vadd.f32 %v1849, %v1869
    %v1873 = vadd.f32 %v1850, %v1869
    %v1874 = vadd.f32 %v1851, %v1869
    %v1875 = vadd.f32 %v1852, %v1869
    %v1876 = vadd.f32 %v1853, %v1869
    %v1877 = vadd.f32 %v1854, %v1869
    %v1878 = vadd.f32 %v1855, %v1869
    %v1879 = vadd.f32 %v1856, %v1869
    %v1880 = vadd.f32 %v1857, %v1869
    %v1881 = vadd.f32 %v1858, %v1869
    %v1882 = vadd.f32 %v1859, %v1869
    %v1883 = vadd.f32 %v1860, %v1869
    %v1884 = vadd.f32 %v1861, %v1869
    %v1885 = vadd.f32 %v1862, %v1869
    %v1886 = vadd.f32 %v1863, %v1869
    %v1887 = vmax.f32 %v1871, 0.0
    %v1888 = vmax.f32 %v1872, 0.0
    %v1889 = vmax.f32 %v1873, 0.0
    %v1890 = vmax.f32 %v1874, 0.0
    %v1891 = vmax.f32 %v1875, 0.0
    %v1892 = vmax.f32 %v1876, 0.0
    %v1893 = vmax.f32 %v1877, 0.0
    %v1894 = vmax.f32 %v1878, 0.0
    %v1895 = vmax.f32 %v1879, 0.0
    %v1896 = vmax.f32 %v1880, 0.0
    %v1897 = vmax.f32 %v1881, 0.0
    %v1898 = vmax.f32 %v1882, 0.0
    %v1899 = vmax.f32 %v1883, 0.0
    %v1900 = vmax.f32 %v1884, 0.0
    %v1901 = vmax.f32 %v1885, 0.0
    %v1902 = vmax.f32 %v1886, 0.0
    %s1903 = scalar_lea.vmem [#allocation2], 16
    %1904 = vst [vmem:[%s1903 + $0x1] sm:$0xff] %v1887
    %1905 = vst [vmem:[%s1903 + $0x11] sm:$0xff] %v1888
    %1906 = vst [vmem:[%s1903 + $0x21] sm:$0xff] %v1889
    %1907 = vst [vmem:[%s1903 + $0x31] sm:$0xff] %v1890
    %1908 = vst [vmem:[%s1903 + $0x41] sm:$0xff] %v1891
    %1909 = vst [vmem:[%s1903 + $0x51] sm:$0xff] %v1892
    %1910 = vst [vmem:[%s1903 + $0x61] sm:$0xff] %v1893
    %1911 = vst [vmem:[%s1903 + $0x71] sm:$0xff] %v1894
    %1912 = vst [vmem:[%s1903 + $0x91] sm:$0xff] %v1895
    %1913 = vst [vmem:[%s1903 + $0xa1] sm:$0xff] %v1896
    %1914 = vst [vmem:[%s1903 + $0xb1] sm:$0xff] %v1897
    %1915 = vst [vmem:[%s1903 + $0xc1] sm:$0xff] %v1898
    %1916 = vst [vmem:[%s1903 + $0xd1] sm:$0xff] %v1899
    %1917 = vst [vmem:[%s1903 + $0xe1] sm:$0xff] %v1900
    %1918 = vst [vmem:[%s1903 + $0xf1] sm:$0xff] %v1901
    %1919 = vst [vmem:[%s1903 + $0x101] sm:$0xff] %v1902
    %s1920 = scalar_lea.vmem %s1, 216
    %v1921 = vld [vmem:[%s1920] sm:$0xf]
    %v1922 = vld [vmem:[%s1920 + $0x4] sm:$0xf]
    %v1923 = vld [vmem:[%s1920 + $0x8] sm:$0xf]
    %v1924 = vld [vmem:[%s1920 + $0xc] sm:$0xf]
    %v1925 = vld [vmem:[%s1920 + $0x10] sm:$0xf]
    %v1926 = vld [vmem:[%s1920 + $0x14] sm:$0xf]
    %s1927 = scalar_lea.vmem %s1, 240
    %v1928 = vld [vmem:[%s1927] sm:$0xf]
    %v1929 = vld [vmem:[%s1927 + $0x4] sm:$0xf]
    %v1930 = vld [vmem:[%s1927 + $0x8] sm:$0xf]
    %v1931 = vld [vmem:[%s1927 + $0xc] sm:$0xf]
    %v1932 = vld [vmem:[%s1927 + $0x10] sm:$0xf]
    %v1933 = vld [vmem:[%s1927 + $0x14] sm:$0xf]
    %v1940 = vunpack.c.l.b16 %v1928
    %v1941 = vunpack.c.l.b16 %v1929
    %v1942 = vunpack.c.l.b16 %v1930
    %v1943 = vunpack.c.l.b16 %v1931
    %v1944 = vunpack.c.l.b16 %v1932
    %v1945 = vunpack.c.l.b16 %v1933
    %v1946 = vpack.c.b16 %v1941, %v1940
    %v1947 = vpack.c.b16 %v1943, %v1942
    %v1948 = vpack.c.b16 %v1945, %v1944
    %1952 = vmatprep.subr.bf16.mxu0 0
    %1953 = vmatpush1.bf16.msra.mxu0 %v1946
    %1954 = vmatprep.subr.bf16.mxu0 0
    %1955 = vmatpush1.bf16.msra.mxu0 %v1947
    %1956 = vmatprep.subr.bf16.mxu0 0
    %1957 = vmatpush1.bf16.msra.mxu0 %v1948
    %1958 = vmatprep.subr.bf16.mxu0 0
    %1959 = vmatpush1.bf16.msra.mxu0 0
    %1960 = vmatprep.subr.bf16.mxu0 0
    %1961 = vmatpush1.bf16.msra.mxu0 0
    %1962 = vmatprep.subr.bf16.mxu0 0
    %1963 = vmatpush1.bf16.msra.mxu0 0
    %1964 = vmatprep.subr.bf16.mxu0 0
    %1965 = vmatpush1.bf16.msra.mxu0 0
    %1966 = vmatprep.subr.bf16.mxu0 0
    %1967 = vmatpush1.bf16.msra.mxu0 0
    %1968 = vmatprep.subr.bf16.mxu0 0
    %1969 = vmatpush1.bf16.msra.mxu0 0
    %1970 = vmatprep.subr.bf16.mxu0 0
    %1971 = vmatpush1.bf16.msra.mxu0 0
    %1972 = vmatprep.subr.bf16.mxu0 0
    %1973 = vmatpush1.bf16.msra.mxu0 0
    %1974 = vmatprep.subr.bf16.mxu0 0
    %1975 = vmatpush1.bf16.msra.mxu0 0
    %1976 = vmatprep.subr.bf16.mxu0 0
    %1977 = vmatpush1.bf16.msra.mxu0 0
    %1978 = vmatprep.subr.bf16.mxu0 0
    %1979 = vmatpush1.bf16.msra.mxu0 0
    %1980 = vmatprep.subr.bf16.mxu0 0
    %1981 = vmatpush1.bf16.msra.mxu0 0
    %1982 = vmatprep.subr.bf16.mxu0 0
    %1983 = vmatpush1.bf16.msra.mxu0 0
    %1984 = vmatprep.mubr.bf16.mxu0 0
    %1985 = vmatmul.mubr.bf16.gmra.mrb[0].mxu0 %v382
    %v1986 = vpop.f32.mrb[0].mxu0
    %v1987 = vadd.f32 0.0, %v1986
    %v1988 = vpop.f32.mrb[0].mxu0
    %v1989 = vpop.f32.mrb[0].mxu0
    %v1990 = vadd.f32 0.0, %v1989
    %v1991 = vpop.f32.mrb[0].mxu0
    %1992 = vmatprep.mubr.bf16.mxu0 0
    %1993 = vmatmul.mubr.bf16.gmra.mrb[0].mxu0 %v385
    %v1994 = vpop.f32.mrb[0].mxu0
    %v1995 = vadd.f32 0.0, %v1994
    %v1996 = vpop.f32.mrb[0].mxu0
    %v1997 = vpop.f32.mrb[0].mxu0
    %v1998 = vadd.f32 0.0, %v1997
    %v1999 = vpop.f32.mrb[0].mxu0
    %2000 = vmatprep.mubr.bf16.mxu0 0
    %2001 = vmatmul.mubr.bf16.gmra.mrb[0].mxu0 %v388
    %v2002 = vpop.f32.mrb[0].mxu0
    %v2003 = vadd.f32 0.0, %v2002
    %v2004 = vpop.f32.mrb[0].mxu0
    %v2005 = vpop.f32.mrb[0].mxu0
    %v2006 = vadd.f32 0.0, %v2005
    %v2007 = vpop.f32.mrb[0].mxu0
    %2008 = vmatprep.mubr.bf16.mxu0 0
    %2009 = vmatmul.mubr.bf16.gmra.mrb[0].mxu0 %v391
    %v2010 = vpop.f32.mrb[0].mxu0
    %v2011 = vadd.f32 0.0, %v2010
    %v2012 = vpop.f32.mrb[0].mxu0
    %v2013 = vpop.f32.mrb[0].mxu0
    %v2014 = vadd.f32 0.0, %v2013
    %v2015 = vpop.f32.mrb[0].mxu0
    %2016 = vmatprep.mubr.bf16.mxu0 0
    %2017 = vmatmul.mubr.bf16.gmra.mrb[0].mxu0 %v394
    %v2018 = vpop.f32.mrb[0].mxu0
    %v2019 = vadd.f32 0.0, %v2018
    %v2020 = vpop.f32.mrb[0].mxu0
    %v2021 = vpop.f32.mrb[0].mxu0
    %v2022 = vadd.f32 0.0, %v2021
    %v2023 = vpop.f32.mrb[0].mxu0
    %2024 = vmatprep.mubr.bf16.mxu0 0
    %2025 = vmatmul.mubr.bf16.gmra.mrb[0].mxu0 %v397
    %v2026 = vpop.f32.mrb[0].mxu0
    %v2027 = vadd.f32 0.0, %v2026
    %v2028 = vpop.f32.mrb[0].mxu0
    %v2029 = vpop.f32.mrb[0].mxu0
    %v2030 = vadd.f32 0.0, %v2029
    %v2031 = vpop.f32.mrb[0].mxu0
    %2032 = vmatprep.mubr.bf16.mxu0 0
    %2033 = vmatmul.mubr.bf16.gmra.mrb[0].mxu0 %v400
    %v2034 = vpop.f32.mrb[0].mxu0
    %v2035 = vadd.f32 0.0, %v2034
    %v2036 = vpop.f32.mrb[0].mxu0
    %v2037 = vpop.f32.mrb[0].mxu0
    %v2038 = vadd.f32 0.0, %v2037
    %v2039 = vpop.f32.mrb[0].mxu0
    %2040 = vmatprep.mubr.bf16.mxu0 0
    %2041 = vmatmul.mubr.bf16.gmra.mrb[0].mxu0 %v403
    %v2042 = vpop.f32.mrb[0].mxu0
    %v2043 = vadd.f32 0.0, %v2042
    %v2044 = vpop.f32.mrb[0].mxu0
    %v2045 = vpop.f32.mrb[0].mxu0
    %v2046 = vadd.f32 0.0, %v2045
    %v2047 = vpop.f32.mrb[0].mxu0
    %2048 = vdwg.mxu0
    %v2055 = vunpack.c.l.b16 %v1921
    %v2056 = vunpack.c.l.b16 %v1922
    %v2057 = vunpack.c.l.b16 %v1923
    %v2058 = vunpack.c.l.b16 %v1924
    %v2059 = vunpack.c.l.b16 %v1925
    %v2060 = vunpack.c.l.b16 %v1926
    %v2061 = vpack.c.b16 %v2056, %v2055
    %v2062 = vpack.c.b16 %v2058, %v2057
    %v2063 = vpack.c.b16 %v2060, %v2059
    %2067 = vmatprep.subr.bf16.mxu0 0
    %2068 = vmatpush1.bf16.msra.mxu0 %v2061
    %2069 = vmatprep.subr.bf16.mxu0 0
    %2070 = vmatpush1.bf16.msra.mxu0 %v2062
    %2071 = vmatprep.subr.bf16.mxu0 0
    %2072 = vmatpush1.bf16.msra.mxu0 %v2063
    %2073 = vmatprep.subr.bf16.mxu0 0
    %2074 = vmatpush1.bf16.msra.mxu0 0
    %2075 = vmatprep.subr.bf16.mxu0 0
    %2076 = vmatpush1.bf16.msra.mxu0 0
    %2077 = vmatprep.subr.bf16.mxu0 0
    %2078 = vmatpush1.bf16.msra.mxu0 0
    %2079 = vmatprep.subr.bf16.mxu0 0
    %2080 = vmatpush1.bf16.msra.mxu0 0
    %2081 = vmatprep.subr.bf16.mxu0 0
    %2082 = vmatpush1.bf16.msra.mxu0 0
    %2083 = vmatprep.subr.bf16.mxu0 0
    %2084 = vmatpush1.bf16.msra.mxu0 0
    %2085 = vmatprep.subr.bf16.mxu0 0
    %2086 = vmatpush1.bf16.msra.mxu0 0
    %2087 = vmatprep.subr.bf16.mxu0 0
    %2088 = vmatpush1.bf16.msra.mxu0 0
    %2089 = vmatprep.subr.bf16.mxu0 0
    %2090 = vmatpush1.bf16.msra.mxu0 0
    %2091 = vmatprep.subr.bf16.mxu0 0
    %2092 = vmatpush1.bf16.msra.mxu0 0
    %2093 = vmatprep.subr.bf16.mxu0 0
    %2094 = vmatpush1.bf16.msra.mxu0 0
    %2095 = vmatprep.subr.bf16.mxu0 0
    %2096 = vmatpush1.bf16.msra.mxu0 0
    %2097 = vmatprep.subr.bf16.mxu0 0
    %2098 = vmatpush1.bf16.msra.mxu0 0
    %2099 = vmatprep.mubr.bf16.mxu0 0
    %2100 = vmatmul.mubr.bf16.gmra.mrb[0].mxu0 %v521
    %v2101 = vpop.f32.mrb[0].mxu0
    %v2102 = vadd.f32 %v1987, %v2101
    %v2103 = vpop.f32.mrb[0].mxu0
    %v2104 = vpop.f32.mrb[0].mxu0
    %v2105 = vadd.f32 %v1990, %v2104
    %v2106 = vpop.f32.mrb[0].mxu0
    %2107 = vmatprep.mubr.bf16.mxu0 0
    %2108 = vmatmul.mubr.bf16.gmra.mrb[0].mxu0 %v524
    %v2109 = vpop.f32.mrb[0].mxu0
    %v2110 = vadd.f32 %v1995, %v2109
    %v2111 = vpop.f32.mrb[0].mxu0
    %v2112 = vpop.f32.mrb[0].mxu0
    %v2113 = vadd.f32 %v1998, %v2112
    %v2114 = vpop.f32.mrb[0].mxu0
    %2115 = vmatprep.mubr.bf16.mxu0 0
    %2116 = vmatmul.mubr.bf16.gmra.mrb[0].mxu0 %v527
    %v2117 = vpop.f32.mrb[0].mxu0
    %v2118 = vadd.f32 %v2003, %v2117
    %v2119 = vpop.f32.mrb[0].mxu0
    %v2120 = vpop.f32.mrb[0].mxu0
    %v2121 = vadd.f32 %v2006, %v2120
    %v2122 = vpop.f32.mrb[0].mxu0
    %2123 = vmatprep.mubr.bf16.mxu0 0
    %2124 = vmatmul.mubr.bf16.gmra.mrb[0].mxu0 %v530
    %v2125 = vpop.f32.mrb[0].mxu0
    %v2126 = vadd.f32 %v2011, %v2125
    %v2127 = vpop.f32.mrb[0].mxu0
    %v2128 = vpop.f32.mrb[0].mxu0
    %v2129 = vadd.f32 %v2014, %v2128
    %v2130 = vpop.f32.mrb[0].mxu0
    %2131 = vmatprep.mubr.bf16.mxu0 0
    %2132 = vmatmul.mubr.bf16.gmra.mrb[0].mxu0 %v533
    %v2133 = vpop.f32.mrb[0].mxu0
    %v2134 = vadd.f32 %v2019, %v2133
    %v2135 = vpop.f32.mrb[0].mxu0
    %v2136 = vpop.f32.mrb[0].mxu0
    %v2137 = vadd.f32 %v2022, %v2136
    %v2138 = vpop.f32.mrb[0].mxu0
    %2139 = vmatprep.mubr.bf16.mxu0 0
    %2140 = vmatmul.mubr.bf16.gmra.mrb[0].mxu0 %v536
    %v2141 = vpop.f32.mrb[0].mxu0
    %v2142 = vadd.f32 %v2027, %v2141
    %v2143 = vpop.f32.mrb[0].mxu0
    %v2144 = vpop.f32.mrb[0].mxu0
    %v2145 = vadd.f32 %v2030, %v2144
    %v2146 = vpop.f32.mrb[0].mxu0
    %2147 = vmatprep.mubr.bf16.mxu0 0
    %2148 = vmatmul.mubr.bf16.gmra.mrb[0].mxu0 %v539
    %v2149 = vpop.f32.mrb[0].mxu0
    %v2150 = vadd.f32 %v2035, %v2149
    %v2151 = vpop.f32.mrb[0].mxu0
    %v2152 = vpop.f32.mrb[0].mxu0
    %v2153 = vadd.f32 %v2038, %v2152
    %v2154 = vpop.f32.mrb[0].mxu0
    %2155 = vmatprep.mubr.bf16.mxu0 0
    %2156 = vmatmul.mubr.bf16.gmra.mrb[0].mxu0 %v542
    %v2157 = vpop.f32.mrb[0].mxu0
    %v2158 = vadd.f32 %v2043, %v2157
    %v2159 = vpop.f32.mrb[0].mxu0
    %v2160 = vpop.f32.mrb[0].mxu0
    %v2161 = vadd.f32 %v2046, %v2160
    %v2162 = vpop.f32.mrb[0].mxu0
    %2163 = vdwg.mxu0
    %s2164 = scalar_lea.vmem %s1, 264
    %v2165 = vld [vmem:[%s2164] sm:$0xf]
    %v2166 = vld [vmem:[%s2164 + $0x4] sm:$0xf]
    %v2167 = vld [vmem:[%s2164 + $0x8] sm:$0xf]
    %v2168 = vld [vmem:[%s2164 + $0xc] sm:$0xf]
    %v2169 = vld [vmem:[%s2164 + $0x10] sm:$0xf]
    %v2170 = vld [vmem:[%s2164 + $0x14] sm:$0xf]
    %v2177 = vunpack.c.l.b16 %v2165
    %v2178 = vunpack.c.l.b16 %v2166
    %v2179 = vunpack.c.l.b16 %v2167
    %v2180 = vunpack.c.l.b16 %v2168
    %v2181 = vunpack.c.l.b16 %v2169
    %v2182 = vunpack.c.l.b16 %v2170
    %v2183 = vpack.c.b16 %v2178, %v2177
    %v2184 = vpack.c.b16 %v2180, %v2179
    %v2185 = vpack.c.b16 %v2182, %v2181
    %2189 = vmatprep.subr.bf16.mxu0 0
    %2190 = vmatpush1.bf16.msra.mxu0 %v2183
    %2191 = vmatprep.subr.bf16.mxu0 0
    %2192 = vmatpush1.bf16.msra.mxu0 %v2184
    %2193 = vmatprep.subr.bf16.mxu0 0
    %2194 = vmatpush1.bf16.msra.mxu0 %v2185
    %2195 = vmatprep.subr.bf16.mxu0 0
    %2196 = vmatpush1.bf16.msra.mxu0 0
    %2197 = vmatprep.subr.bf16.mxu0 0
    %2198 = vmatpush1.bf16.msra.mxu0 0
    %2199 = vmatprep.subr.bf16.mxu0 0
    %2200 = vmatpush1.bf16.msra.mxu0 0
    %2201 = vmatprep.subr.bf16.mxu0 0
    %2202 = vmatpush1.bf16.msra.mxu0 0
    %2203 = vmatprep.subr.bf16.mxu0 0
    %2204 = vmatpush1.bf16.msra.mxu0 0
    %2205 = vmatprep.subr.bf16.mxu0 0
    %2206 = vmatpush1.bf16.msra.mxu0 0
    %2207 = vmatprep.subr.bf16.mxu0 0
    %2208 = vmatpush1.bf16.msra.mxu0 0
    %2209 = vmatprep.subr.bf16.mxu0 0
    %2210 = vmatpush1.bf16.msra.mxu0 0
    %2211 = vmatprep.subr.bf16.mxu0 0
    %2212 = vmatpush1.bf16.msra.mxu0 0
    %2213 = vmatprep.subr.bf16.mxu0 0
    %2214 = vmatpush1.bf16.msra.mxu0 0
    %2215 = vmatprep.subr.bf16.mxu0 0
    %2216 = vmatpush1.bf16.msra.mxu0 0
    %2217 = vmatprep.subr.bf16.mxu0 0
    %2218 = vmatpush1.bf16.msra.mxu0 0
    %2219 = vmatprep.subr.bf16.mxu0 0
    %2220 = vmatpush1.bf16.msra.mxu0 0
    %2221 = vmatprep.mubr.bf16.mxu0 0
    %2222 = vmatmul.mubr.bf16.gmra.mrb[0].mxu0 %v740
    %v2223 = vpop.f32.mrb[0].mxu0
    %v2224 = vadd.f32 0.0, %v2223
    %v2225 = vpop.f32.mrb[0].mxu0
    %v2226 = vpop.f32.mrb[0].mxu0
    %v2227 = vadd.f32 0.0, %v2226
    %v2228 = vpop.f32.mrb[0].mxu0
    %2229 = vmatprep.mubr.bf16.mxu0 0
    %2230 = vmatmul.mubr.bf16.gmra.mrb[0].mxu0 %v743
    %v2231 = vpop.f32.mrb[0].mxu0
    %v2232 = vadd.f32 0.0, %v2231
    %v2233 = vpop.f32.mrb[0].mxu0
    %v2234 = vpop.f32.mrb[0].mxu0
    %v2235 = vadd.f32 0.0, %v2234
    %v2236 = vpop.f32.mrb[0].mxu0
    %2237 = vmatprep.mubr.bf16.mxu0 0
    %2238 = vmatmul.mubr.bf16.gmra.mrb[0].mxu0 %v746
    %v2239 = vpop.f32.mrb[0].mxu0
    %v2240 = vadd.f32 0.0, %v2239
    %v2241 = vpop.f32.mrb[0].mxu0
    %v2242 = vpop.f32.mrb[0].mxu0
    %v2243 = vadd.f32 0.0, %v2242
    %v2244 = vpop.f32.mrb[0].mxu0
    %2245 = vmatprep.mubr.bf16.mxu0 0
    %2246 = vmatmul.mubr.bf16.gmra.mrb[0].mxu0 %v749
    %v2247 = vpop.f32.mrb[0].mxu0
    %v2248 = vadd.f32 0.0, %v2247
    %v2249 = vpop.f32.mrb[0].mxu0
    %v2250 = vpop.f32.mrb[0].mxu0
    %v2251 = vadd.f32 0.0, %v2250
    %v2252 = vpop.f32.mrb[0].mxu0
    %2253 = vmatprep.mubr.bf16.mxu0 0
    %2254 = vmatmul.mubr.bf16.gmra.mrb[0].mxu0 %v752
    %v2255 = vpop.f32.mrb[0].mxu0
    %v2256 = vadd.f32 0.0, %v2255
    %v2257 = vpop.f32.mrb[0].mxu0
    %v2258 = vpop.f32.mrb[0].mxu0
    %v2259 = vadd.f32 0.0, %v2258
    %v2260 = vpop.f32.mrb[0].mxu0
    %2261 = vmatprep.mubr.bf16.mxu0 0
    %2262 = vmatmul.mubr.bf16.gmra.mrb[0].mxu0 %v755
    %v2263 = vpop.f32.mrb[0].mxu0
    %v2264 = vadd.f32 0.0, %v2263
    %v2265 = vpop.f32.mrb[0].mxu0
    %v2266 = vpop.f32.mrb[0].mxu0
    %v2267 = vadd.f32 0.0, %v2266
    %v2268 = vpop.f32.mrb[0].mxu0
    %2269 = vmatprep.mubr.bf16.mxu0 0
    %2270 = vmatmul.mubr.bf16.gmra.mrb[0].mxu0 %v758
    %v2271 = vpop.f32.mrb[0].mxu0
    %v2272 = vadd.f32 0.0, %v2271
    %v2273 = vpop.f32.mrb[0].mxu0
    %v2274 = vpop.f32.mrb[0].mxu0
    %v2275 = vadd.f32 0.0, %v2274
    %v2276 = vpop.f32.mrb[0].mxu0
    %2277 = vmatprep.mubr.bf16.mxu0 0
    %2278 = vmatmul.mubr.bf16.gmra.mrb[0].mxu0 %v761
    %v2279 = vpop.f32.mrb[0].mxu0
    %v2280 = vadd.f32 0.0, %v2279
    %v2281 = vpop.f32.mrb[0].mxu0
    %v2282 = vpop.f32.mrb[0].mxu0
    %v2283 = vadd.f32 0.0, %v2282
    %v2284 = vpop.f32.mrb[0].mxu0
    %2285 = vdwg.mxu0
    %v2286 = vadd.f32 %v2102, %v2224
    %v2287 = vadd.f32 %v2105, %v2227
    %v2288 = vadd.f32 %v2110, %v2232
    %v2289 = vadd.f32 %v2113, %v2235
    %v2290 = vadd.f32 %v2118, %v2240
    %v2291 = vadd.f32 %v2121, %v2243
    %v2292 = vadd.f32 %v2126, %v2248
    %v2293 = vadd.f32 %v2129, %v2251
    %v2294 = vadd.f32 %v2134, %v2256
    %v2295 = vadd.f32 %v2137, %v2259
    %v2296 = vadd.f32 %v2142, %v2264
    %v2297 = vadd.f32 %v2145, %v2267
    %v2298 = vadd.f32 %v2150, %v2272
    %v2299 = vadd.f32 %v2153, %v2275
    %v2300 = vadd.f32 %v2158, %v2280
    %v2301 = vadd.f32 %v2161, %v2283
    %s2302 = scalar_lea.vmem %s1, 288
    %v2303 = vld [vmem:[%s2302] sm:$0xf]
    %v2304 = vld [vmem:[%s2302 + $0x4] sm:$0xf]
    %v2305 = vld [vmem:[%s2302 + $0x8] sm:$0xf]
    %v2306 = vld [vmem:[%s2302 + $0xc] sm:$0xf]
    %v2307 = vld [vmem:[%s2302 + $0x10] sm:$0xf]
    %v2308 = vld [vmem:[%s2302 + $0x14] sm:$0xf]
    %v2315 = vunpack.c.l.b16 %v2303
    %v2316 = vunpack.c.l.b16 %v2304
    %v2317 = vunpack.c.l.b16 %v2305
    %v2318 = vunpack.c.l.b16 %v2306
    %v2319 = vunpack.c.l.b16 %v2307
    %v2320 = vunpack.c.l.b16 %v2308
    %v2321 = vpack.c.b16 %v2316, %v2315
    %v2322 = vpack.c.b16 %v2318, %v2317
    %v2323 = vpack.c.b16 %v2320, %v2319
    %2327 = vmatprep.subr.bf16.mxu0 0
    %2328 = vmatpush1.bf16.msra.mxu0 %v2321
    %2329 = vmatprep.subr.bf16.mxu0 0
    %2330 = vmatpush1.bf16.msra.mxu0 %v2322
    %2331 = vmatprep.subr.bf16.mxu0 0
    %2332 = vmatpush1.bf16.msra.mxu0 %v2323
    %2333 = vmatprep.subr.bf16.mxu0 0
    %2334 = vmatpush1.bf16.msra.mxu0 0
    %2335 = vmatprep.subr.bf16.mxu0 0
    %2336 = vmatpush1.bf16.msra.mxu0 0
    %2337 = vmatprep.subr.bf16.mxu0 0
    %2338 = vmatpush1.bf16.msra.mxu0 0
    %2339 = vmatprep.subr.bf16.mxu0 0
    %2340 = vmatpush1.bf16.msra.mxu0 0
    %2341 = vmatprep.subr.bf16.mxu0 0
    %2342 = vmatpush1.bf16.msra.mxu0 0
    %2343 = vmatprep.subr.bf16.mxu0 0
    %2344 = vmatpush1.bf16.msra.mxu0 0
    %2345 = vmatprep.subr.bf16.mxu0 0
    %2346 = vmatpush1.bf16.msra.mxu0 0
    %2347 = vmatprep.subr.bf16.mxu0 0
    %2348 = vmatpush1.bf16.msra.mxu0 0
    %2349 = vmatprep.subr.bf16.mxu0 0
    %2350 = vmatpush1.bf16.msra.mxu0 0
    %2351 = vmatprep.subr.bf16.mxu0 0
    %2352 = vmatpush1.bf16.msra.mxu0 0
    %2353 = vmatprep.subr.bf16.mxu0 0
    %2354 = vmatpush1.bf16.msra.mxu0 0
    %2355 = vmatprep.subr.bf16.mxu0 0
    %2356 = vmatpush1.bf16.msra.mxu0 0
    %2357 = vmatprep.subr.bf16.mxu0 0
    %2358 = vmatpush1.bf16.msra.mxu0 0
    %2359 = vmatprep.mubr.bf16.mxu0 0
    %2360 = vmatmul.mubr.bf16.gmra.mrb[0].mxu0 %v910
    %v2361 = vpop.f32.mrb[0].mxu0
    %v2362 = vadd.f32 0.0, %v2361
    %v2363 = vpop.f32.mrb[0].mxu0
    %v2364 = vpop.f32.mrb[0].mxu0
    %v2365 = vadd.f32 0.0, %v2364
    %v2366 = vpop.f32.mrb[0].mxu0
    %2367 = vmatprep.mubr.bf16.mxu0 0
    %2368 = vmatmul.mubr.bf16.gmra.mrb[0].mxu0 %v913
    %v2369 = vpop.f32.mrb[0].mxu0
    %v2370 = vadd.f32 0.0, %v2369
    %v2371 = vpop.f32.mrb[0].mxu0
    %v2372 = vpop.f32.mrb[0].mxu0
    %v2373 = vadd.f32 0.0, %v2372
    %v2374 = vpop.f32.mrb[0].mxu0
    %2375 = vmatprep.mubr.bf16.mxu0 0
    %2376 = vmatmul.mubr.bf16.gmra.mrb[0].mxu0 %v916
    %v2377 = vpop.f32.mrb[0].mxu0
    %v2378 = vadd.f32 0.0, %v2377
    %v2379 = vpop.f32.mrb[0].mxu0
    %v2380 = vpop.f32.mrb[0].mxu0
    %v2381 = vadd.f32 0.0, %v2380
    %v2382 = vpop.f32.mrb[0].mxu0
    %2383 = vmatprep.mubr.bf16.mxu0 0
    %2384 = vmatmul.mubr.bf16.gmra.mrb[0].mxu0 %v919
    %v2385 = vpop.f32.mrb[0].mxu0
    %v2386 = vadd.f32 0.0, %v2385
    %v2387 = vpop.f32.mrb[0].mxu0
    %v2388 = vpop.f32.mrb[0].mxu0
    %v2389 = vadd.f32 0.0, %v2388
    %v2390 = vpop.f32.mrb[0].mxu0
    %2391 = vmatprep.mubr.bf16.mxu0 0
    %2392 = vmatmul.mubr.bf16.gmra.mrb[0].mxu0 %v922
    %v2393 = vpop.f32.mrb[0].mxu0
    %v2394 = vadd.f32 0.0, %v2393
    %v2395 = vpop.f32.mrb[0].mxu0
    %v2396 = vpop.f32.mrb[0].mxu0
    %v2397 = vadd.f32 0.0, %v2396
    %v2398 = vpop.f32.mrb[0].mxu0
    %2399 = vmatprep.mubr.bf16.mxu0 0
    %2400 = vmatmul.mubr.bf16.gmra.mrb[0].mxu0 %v925
    %v2401 = vpop.f32.mrb[0].mxu0
    %v2402 = vadd.f32 0.0, %v2401
    %v2403 = vpop.f32.mrb[0].mxu0
    %v2404 = vpop.f32.mrb[0].mxu0
    %v2405 = vadd.f32 0.0, %v2404
    %v2406 = vpop.f32.mrb[0].mxu0
    %2407 = vmatprep.mubr.bf16.mxu0 0
    %2408 = vmatmul.mubr.bf16.gmra.mrb[0].mxu0 %v928
    %v2409 = vpop.f32.mrb[0].mxu0
    %v2410 = vadd.f32 0.0, %v2409
    %v2411 = vpop.f32.mrb[0].mxu0
    %v2412 = vpop.f32.mrb[0].mxu0
    %v2413 = vadd.f32 0.0, %v2412
    %v2414 = vpop.f32.mrb[0].mxu0
    %2415 = vmatprep.mubr.bf16.mxu0 0
    %2416 = vmatmul.mubr.bf16.gmra.mrb[0].mxu0 %v931
    %v2417 = vpop.f32.mrb[0].mxu0
    %v2418 = vadd.f32 0.0, %v2417
    %v2419 = vpop.f32.mrb[0].mxu0
    %v2420 = vpop.f32.mrb[0].mxu0
    %v2421 = vadd.f32 0.0, %v2420
    %v2422 = vpop.f32.mrb[0].mxu0
    %2423 = vdwg.mxu0
    %v2424 = vadd.f32 %v2286, %v2362
    %v2425 = vadd.f32 %v2287, %v2365
    %v2426 = vadd.f32 %v2288, %v2370
    %v2427 = vadd.f32 %v2289, %v2373
    %v2428 = vadd.f32 %v2290, %v2378
    %v2429 = vadd.f32 %v2291, %v2381
    %v2430 = vadd.f32 %v2292, %v2386
    %v2431 = vadd.f32 %v2293, %v2389
    %v2432 = vadd.f32 %v2294, %v2394
    %v2433 = vadd.f32 %v2295, %v2397
    %v2434 = vadd.f32 %v2296, %v2402
    %v2435 = vadd.f32 %v2297, %v2405
    %v2436 = vadd.f32 %v2298, %v2410
    %v2437 = vadd.f32 %v2299, %v2413
    %v2438 = vadd.f32 %v2300, %v2418
    %v2439 = vadd.f32 %v2301, %v2421
    %s2440 = scalar_lea.vmem %s1, 312
    %v2441 = vld [vmem:[%s2440] sm:$0xf]
    %v2442 = vld [vmem:[%s2440 + $0x4] sm:$0xf]
    %v2443 = vld [vmem:[%s2440 + $0x8] sm:$0xf]
    %v2444 = vld [vmem:[%s2440 + $0xc] sm:$0xf]
    %v2445 = vld [vmem:[%s2440 + $0x10] sm:$0xf]
    %v2446 = vld [vmem:[%s2440 + $0x14] sm:$0xf]
    %v2453 = vunpack.c.l.b16 %v2441
    %v2454 = vunpack.c.l.b16 %v2442
    %v2455 = vunpack.c.l.b16 %v2443
    %v2456 = vunpack.c.l.b16 %v2444
    %v2457 = vunpack.c.l.b16 %v2445
    %v2458 = vunpack.c.l.b16 %v2446
    %v2459 = vpack.c.b16 %v2454, %v2453
    %v2460 = vpack.c.b16 %v2456, %v2455
    %v2461 = vpack.c.b16 %v2458, %v2457
    %2465 = vmatprep.subr.bf16.mxu0 0
    %2466 = vmatpush1.bf16.msra.mxu0 %v2459
    %2467 = vmatprep.subr.bf16.mxu0 0
    %2468 = vmatpush1.bf16.msra.mxu0 %v2460
    %2469 = vmatprep.subr.bf16.mxu0 0
    %2470 = vmatpush1.bf16.msra.mxu0 %v2461
    %2471 = vmatprep.subr.bf16.mxu0 0
    %2472 = vmatpush1.bf16.msra.mxu0 0
    %2473 = vmatprep.subr.bf16.mxu0 0
    %2474 = vmatpush1.bf16.msra.mxu0 0
    %2475 = vmatprep.subr.bf16.mxu0 0
    %2476 = vmatpush1.bf16.msra.mxu0 0
    %2477 = vmatprep.subr.bf16.mxu0 0
    %2478 = vmatpush1.bf16.msra.mxu0 0
    %2479 = vmatprep.subr.bf16.mxu0 0
    %2480 = vmatpush1.bf16.msra.mxu0 0
    %2481 = vmatprep.subr.bf16.mxu0 0
    %2482 = vmatpush1.bf16.msra.mxu0 0
    %2483 = vmatprep.subr.bf16.mxu0 0
    %2484 = vmatpush1.bf16.msra.mxu0 0
    %2485 = vmatprep.subr.bf16.mxu0 0
    %2486 = vmatpush1.bf16.msra.mxu0 0
    %2487 = vmatprep.subr.bf16.mxu0 0
    %2488 = vmatpush1.bf16.msra.mxu0 0
    %2489 = vmatprep.subr.bf16.mxu0 0
    %2490 = vmatpush1.bf16.msra.mxu0 0
    %2491 = vmatprep.subr.bf16.mxu0 0
    %2492 = vmatpush1.bf16.msra.mxu0 0
    %2493 = vmatprep.subr.bf16.mxu0 0
    %2494 = vmatpush1.bf16.msra.mxu0 0
    %2495 = vmatprep.subr.bf16.mxu0 0
    %2496 = vmatpush1.bf16.msra.mxu0 0
    %2497 = vmatprep.mubr.bf16.mxu0 0
    %2498 = vmatmul.mubr.bf16.gmra.mrb[0].mxu0 %v1092
    %v2499 = vpop.f32.mrb[0].mxu0
    %v2500 = vadd.f32 0.0, %v2499
    %v2501 = vpop.f32.mrb[0].mxu0
    %v2502 = vpop.f32.mrb[0].mxu0
    %v2503 = vadd.f32 0.0, %v2502
    %v2504 = vpop.f32.mrb[0].mxu0
    %2505 = vmatprep.mubr.bf16.mxu0 0
    %2506 = vmatmul.mubr.bf16.gmra.mrb[0].mxu0 %v1095
    %v2507 = vpop.f32.mrb[0].mxu0
    %v2508 = vadd.f32 0.0, %v2507
    %v2509 = vpop.f32.mrb[0].mxu0
    %v2510 = vpop.f32.mrb[0].mxu0
    %v2511 = vadd.f32 0.0, %v2510
    %v2512 = vpop.f32.mrb[0].mxu0
    %2513 = vmatprep.mubr.bf16.mxu0 0
    %2514 = vmatmul.mubr.bf16.gmra.mrb[0].mxu0 %v1098
    %v2515 = vpop.f32.mrb[0].mxu0
    %v2516 = vadd.f32 0.0, %v2515
    %v2517 = vpop.f32.mrb[0].mxu0
    %v2518 = vpop.f32.mrb[0].mxu0
    %v2519 = vadd.f32 0.0, %v2518
    %v2520 = vpop.f32.mrb[0].mxu0
    %2521 = vmatprep.mubr.bf16.mxu0 0
    %2522 = vmatmul.mubr.bf16.gmra.mrb[0].mxu0 %v1101
    %v2523 = vpop.f32.mrb[0].mxu0
    %v2524 = vadd.f32 0.0, %v2523
    %v2525 = vpop.f32.mrb[0].mxu0
    %v2526 = vpop.f32.mrb[0].mxu0
    %v2527 = vadd.f32 0.0, %v2526
    %v2528 = vpop.f32.mrb[0].mxu0
    %2529 = vmatprep.mubr.bf16.mxu0 0
    %2530 = vmatmul.mubr.bf16.gmra.mrb[0].mxu0 %v1104
    %v2531 = vpop.f32.mrb[0].mxu0
    %v2532 = vadd.f32 0.0, %v2531
    %v2533 = vpop.f32.mrb[0].mxu0
    %v2534 = vpop.f32.mrb[0].mxu0
    %v2535 = vadd.f32 0.0, %v2534
    %v2536 = vpop.f32.mrb[0].mxu0
    %2537 = vmatprep.mubr.bf16.mxu0 0
    %2538 = vmatmul.mubr.bf16.gmra.mrb[0].mxu0 %v1107
    %v2539 = vpop.f32.mrb[0].mxu0
    %v2540 = vadd.f32 0.0, %v2539
    %v2541 = vpop.f32.mrb[0].mxu0
    %v2542 = vpop.f32.mrb[0].mxu0
    %v2543 = vadd.f32 0.0, %v2542
    %v2544 = vpop.f32.mrb[0].mxu0
    %2545 = vmatprep.mubr.bf16.mxu0 0
    %2546 = vmatmul.mubr.bf16.gmra.mrb[0].mxu0 %v1110
    %v2547 = vpop.f32.mrb[0].mxu0
    %v2548 = vadd.f32 0.0, %v2547
    %v2549 = vpop.f32.mrb[0].mxu0
    %v2550 = vpop.f32.mrb[0].mxu0
    %v2551 = vadd.f32 0.0, %v2550
    %v2552 = vpop.f32.mrb[0].mxu0
    %2553 = vmatprep.mubr.bf16.mxu0 0
    %2554 = vmatmul.mubr.bf16.gmra.mrb[0].mxu0 %v1113
    %v2555 = vpop.f32.mrb[0].mxu0
    %v2556 = vadd.f32 0.0, %v2555
    %v2557 = vpop.f32.mrb[0].mxu0
    %v2558 = vpop.f32.mrb[0].mxu0
    %v2559 = vadd.f32 0.0, %v2558
    %v2560 = vpop.f32.mrb[0].mxu0
    %2561 = vdwg.mxu0
    %v2562 = vadd.f32 %v2424, %v2500
    %v2563 = vadd.f32 %v2425, %v2503
    %v2564 = vadd.f32 %v2426, %v2508
    %v2565 = vadd.f32 %v2427, %v2511
    %v2566 = vadd.f32 %v2428, %v2516
    %v2567 = vadd.f32 %v2429, %v2519
    %v2568 = vadd.f32 %v2430, %v2524
    %v2569 = vadd.f32 %v2431, %v2527
    %v2570 = vadd.f32 %v2432, %v2532
    %v2571 = vadd.f32 %v2433, %v2535
    %v2572 = vadd.f32 %v2434, %v2540
    %v2573 = vadd.f32 %v2435, %v2543
    %v2574 = vadd.f32 %v2436, %v2548
    %v2575 = vadd.f32 %v2437, %v2551
    %v2576 = vadd.f32 %v2438, %v2556
    %v2577 = vadd.f32 %v2439, %v2559
    %s2578 = scalar_lea.vmem %s1, 336
    %v2579 = vld [vmem:[%s2578] sm:$0xf]
    %v2580 = vld [vmem:[%s2578 + $0x4] sm:$0xf]
    %v2581 = vld [vmem:[%s2578 + $0x8] sm:$0xf]
    %v2582 = vld [vmem:[%s2578 + $0xc] sm:$0xf]
    %v2583 = vld [vmem:[%s2578 + $0x10] sm:$0xf]
    %v2584 = vld [vmem:[%s2578 + $0x14] sm:$0xf]
    %v2591 = vunpack.c.l.b16 %v2579
    %v2592 = vunpack.c.l.b16 %v2580
    %v2593 = vunpack.c.l.b16 %v2581
    %v2594 = vunpack.c.l.b16 %v2582
    %v2595 = vunpack.c.l.b16 %v2583
    %v2596 = vunpack.c.l.b16 %v2584
    %v2597 = vpack.c.b16 %v2592, %v2591
    %v2598 = vpack.c.b16 %v2594, %v2593
    %v2599 = vpack.c.b16 %v2596, %v2595
    %2603 = vmatprep.subr.bf16.mxu0 0
    %2604 = vmatpush1.bf16.msra.mxu0 %v2597
    %2605 = vmatprep.subr.bf16.mxu0 0
    %2606 = vmatpush1.bf16.msra.mxu0 %v2598
    %2607 = vmatprep.subr.bf16.mxu0 0
    %2608 = vmatpush1.bf16.msra.mxu0 %v2599
    %2609 = vmatprep.subr.bf16.mxu0 0
    %2610 = vmatpush1.bf16.msra.mxu0 0
    %2611 = vmatprep.subr.bf16.mxu0 0
    %2612 = vmatpush1.bf16.msra.mxu0 0
    %2613 = vmatprep.subr.bf16.mxu0 0
    %2614 = vmatpush1.bf16.msra.mxu0 0
    %2615 = vmatprep.subr.bf16.mxu0 0
    %2616 = vmatpush1.bf16.msra.mxu0 0
    %2617 = vmatprep.subr.bf16.mxu0 0
    %2618 = vmatpush1.bf16.msra.mxu0 0
    %2619 = vmatprep.subr.bf16.mxu0 0
    %2620 = vmatpush1.bf16.msra.mxu0 0
    %2621 = vmatprep.subr.bf16.mxu0 0
    %2622 = vmatpush1.bf16.msra.mxu0 0
    %2623 = vmatprep.subr.bf16.mxu0 0
    %2624 = vmatpush1.bf16.msra.mxu0 0
    %2625 = vmatprep.subr.bf16.mxu0 0
    %2626 = vmatpush1.bf16.msra.mxu0 0
    %2627 = vmatprep.subr.bf16.mxu0 0
    %2628 = vmatpush1.bf16.msra.mxu0 0
    %2629 = vmatprep.subr.bf16.mxu0 0
    %2630 = vmatpush1.bf16.msra.mxu0 0
    %2631 = vmatprep.subr.bf16.mxu0 0
    %2632 = vmatpush1.bf16.msra.mxu0 0
    %2633 = vmatprep.subr.bf16.mxu0 0
    %2634 = vmatpush1.bf16.msra.mxu0 0
    %2635 = vmatprep.mubr.bf16.mxu0 0
    %2636 = vmatmul.mubr.bf16.gmra.mrb[0].mxu0 %v1270
    %v2637 = vpop.f32.mrb[0].mxu0
    %v2638 = vadd.f32 0.0, %v2637
    %v2639 = vpop.f32.mrb[0].mxu0
    %v2640 = vpop.f32.mrb[0].mxu0
    %v2641 = vadd.f32 0.0, %v2640
    %v2642 = vpop.f32.mrb[0].mxu0
    %2643 = vmatprep.mubr.bf16.mxu0 0
    %2644 = vmatmul.mubr.bf16.gmra.mrb[0].mxu0 %v1273
    %v2645 = vpop.f32.mrb[0].mxu0
    %v2646 = vadd.f32 0.0, %v2645
    %v2647 = vpop.f32.mrb[0].mxu0
    %v2648 = vpop.f32.mrb[0].mxu0
    %v2649 = vadd.f32 0.0, %v2648
    %v2650 = vpop.f32.mrb[0].mxu0
    %2651 = vmatprep.mubr.bf16.mxu0 0
    %2652 = vmatmul.mubr.bf16.gmra.mrb[0].mxu0 %v1276
    %v2653 = vpop.f32.mrb[0].mxu0
    %v2654 = vadd.f32 0.0, %v2653
    %v2655 = vpop.f32.mrb[0].mxu0
    %v2656 = vpop.f32.mrb[0].mxu0
    %v2657 = vadd.f32 0.0, %v2656
    %v2658 = vpop.f32.mrb[0].mxu0
    %2659 = vmatprep.mubr.bf16.mxu0 0
    %2660 = vmatmul.mubr.bf16.gmra.mrb[0].mxu0 %v1279
    %v2661 = vpop.f32.mrb[0].mxu0
    %v2662 = vadd.f32 0.0, %v2661
    %v2663 = vpop.f32.mrb[0].mxu0
    %v2664 = vpop.f32.mrb[0].mxu0
    %v2665 = vadd.f32 0.0, %v2664
    %v2666 = vpop.f32.mrb[0].mxu0
    %2667 = vmatprep.mubr.bf16.mxu0 0
    %2668 = vmatmul.mubr.bf16.gmra.mrb[0].mxu0 %v1282
    %v2669 = vpop.f32.mrb[0].mxu0
    %v2670 = vadd.f32 0.0, %v2669
    %v2671 = vpop.f32.mrb[0].mxu0
    %v2672 = vpop.f32.mrb[0].mxu0
    %v2673 = vadd.f32 0.0, %v2672
    %v2674 = vpop.f32.mrb[0].mxu0
    %2675 = vmatprep.mubr.bf16.mxu0 0
    %2676 = vmatmul.mubr.bf16.gmra.mrb[0].mxu0 %v1285
    %v2677 = vpop.f32.mrb[0].mxu0
    %v2678 = vadd.f32 0.0, %v2677
    %v2679 = vpop.f32.mrb[0].mxu0
    %v2680 = vpop.f32.mrb[0].mxu0
    %v2681 = vadd.f32 0.0, %v2680
    %v2682 = vpop.f32.mrb[0].mxu0
    %2683 = vmatprep.mubr.bf16.mxu0 0
    %2684 = vmatmul.mubr.bf16.gmra.mrb[0].mxu0 %v1288
    %v2685 = vpop.f32.mrb[0].mxu0
    %v2686 = vadd.f32 0.0, %v2685
    %v2687 = vpop.f32.mrb[0].mxu0
    %v2688 = vpop.f32.mrb[0].mxu0
    %v2689 = vadd.f32 0.0, %v2688
    %v2690 = vpop.f32.mrb[0].mxu0
    %2691 = vmatprep.mubr.bf16.mxu0 0
    %2692 = vmatmul.mubr.bf16.gmra.mrb[0].mxu0 %v1291
    %v2693 = vpop.f32.mrb[0].mxu0
    %v2694 = vadd.f32 0.0, %v2693
    %v2695 = vpop.f32.mrb[0].mxu0
    %v2696 = vpop.f32.mrb[0].mxu0
    %v2697 = vadd.f32 0.0, %v2696
    %v2698 = vpop.f32.mrb[0].mxu0
    %2699 = vdwg.mxu0
    %v2700 = vadd.f32 %v2562, %v2638
    %v2701 = vadd.f32 %v2563, %v2641
    %v2702 = vadd.f32 %v2564, %v2646
    %v2703 = vadd.f32 %v2565, %v2649
    %v2704 = vadd.f32 %v2566, %v2654
    %v2705 = vadd.f32 %v2567, %v2657
    %v2706 = vadd.f32 %v2568, %v2662
    %v2707 = vadd.f32 %v2569, %v2665
    %v2708 = vadd.f32 %v2570, %v2670
    %v2709 = vadd.f32 %v2571, %v2673
    %v2710 = vadd.f32 %v2572, %v2678
    %v2711 = vadd.f32 %v2573, %v2681
    %v2712 = vadd.f32 %v2574, %v2686
    %v2713 = vadd.f32 %v2575, %v2689
    %v2714 = vadd.f32 %v2576, %v2694
    %v2715 = vadd.f32 %v2577, %v2697
    %s2716 = scalar_lea.vmem %s1, 360
    %v2717 = vld [vmem:[%s2716] sm:$0xf]
    %v2718 = vld [vmem:[%s2716 + $0x4] sm:$0xf]
    %v2719 = vld [vmem:[%s2716 + $0x8] sm:$0xf]
    %v2720 = vld [vmem:[%s2716 + $0xc] sm:$0xf]
    %v2721 = vld [vmem:[%s2716 + $0x10] sm:$0xf]
    %v2722 = vld [vmem:[%s2716 + $0x14] sm:$0xf]
    %v2729 = vunpack.c.l.b16 %v2717
    %v2730 = vunpack.c.l.b16 %v2718
    %v2731 = vunpack.c.l.b16 %v2719
    %v2732 = vunpack.c.l.b16 %v2720
    %v2733 = vunpack.c.l.b16 %v2721
    %v2734 = vunpack.c.l.b16 %v2722
    %v2735 = vpack.c.b16 %v2730, %v2729
    %v2736 = vpack.c.b16 %v2732, %v2731
    %v2737 = vpack.c.b16 %v2734, %v2733
    %2741 = vmatprep.subr.bf16.mxu0 0
    %2742 = vmatpush1.bf16.msra.mxu0 %v2735
    %2743 = vmatprep.subr.bf16.mxu0 0
    %2744 = vmatpush1.bf16.msra.mxu0 %v2736
    %2745 = vmatprep.subr.bf16.mxu0 0
    %2746 = vmatpush1.bf16.msra.mxu0 %v2737
    %2747 = vmatprep.subr.bf16.mxu0 0
    %2748 = vmatpush1.bf16.msra.mxu0 0
    %2749 = vmatprep.subr.bf16.mxu0 0
    %2750 = vmatpush1.bf16.msra.mxu0 0
    %2751 = vmatprep.subr.bf16.mxu0 0
    %2752 = vmatpush1.bf16.msra.mxu0 0
    %2753 = vmatprep.subr.bf16.mxu0 0
    %2754 = vmatpush1.bf16.msra.mxu0 0
    %2755 = vmatprep.subr.bf16.mxu0 0
    %2756 = vmatpush1.bf16.msra.mxu0 0
    %2757 = vmatprep.subr.bf16.mxu0 0
    %2758 = vmatpush1.bf16.msra.mxu0 0
    %2759 = vmatprep.subr.bf16.mxu0 0
    %2760 = vmatpush1.bf16.msra.mxu0 0
    %2761 = vmatprep.subr.bf16.mxu0 0
    %2762 = vmatpush1.bf16.msra.mxu0 0
    %2763 = vmatprep.subr.bf16.mxu0 0
    %2764 = vmatpush1.bf16.msra.mxu0 0
    %2765 = vmatprep.subr.bf16.mxu0 0
    %2766 = vmatpush1.bf16.msra.mxu0 0
    %2767 = vmatprep.subr.bf16.mxu0 0
    %2768 = vmatpush1.bf16.msra.mxu0 0
    %2769 = vmatprep.subr.bf16.mxu0 0
    %2770 = vmatpush1.bf16.msra.mxu0 0
    %2771 = vmatprep.subr.bf16.mxu0 0
    %2772 = vmatpush1.bf16.msra.mxu0 0
    %2773 = vmatprep.mubr.bf16.mxu0 0
    %2774 = vmatmul.mubr.bf16.gmra.mrb[0].mxu0 %v524
    %v2775 = vpop.f32.mrb[0].mxu0
    %v2776 = vadd.f32 0.0, %v2775
    %v2777 = vpop.f32.mrb[0].mxu0
    %v2778 = vpop.f32.mrb[0].mxu0
    %v2779 = vadd.f32 0.0, %v2778
    %v2780 = vpop.f32.mrb[0].mxu0
    %2781 = vmatprep.mubr.bf16.mxu0 0
    %2782 = vmatmul.mubr.bf16.gmra.mrb[0].mxu0 %v527
    %v2783 = vpop.f32.mrb[0].mxu0
    %v2784 = vadd.f32 0.0, %v2783
    %v2785 = vpop.f32.mrb[0].mxu0
    %v2786 = vpop.f32.mrb[0].mxu0
    %v2787 = vadd.f32 0.0, %v2786
    %v2788 = vpop.f32.mrb[0].mxu0
    %2789 = vmatprep.mubr.bf16.mxu0 0
    %2790 = vmatmul.mubr.bf16.gmra.mrb[0].mxu0 %v530
    %v2791 = vpop.f32.mrb[0].mxu0
    %v2792 = vadd.f32 0.0, %v2791
    %v2793 = vpop.f32.mrb[0].mxu0
    %v2794 = vpop.f32.mrb[0].mxu0
    %v2795 = vadd.f32 0.0, %v2794
    %v2796 = vpop.f32.mrb[0].mxu0
    %2797 = vmatprep.mubr.bf16.mxu0 0
    %2798 = vmatmul.mubr.bf16.gmra.mrb[0].mxu0 %v1434
    %v2799 = vpop.f32.mrb[0].mxu0
    %v2800 = vadd.f32 0.0, %v2799
    %v2801 = vpop.f32.mrb[0].mxu0
    %v2802 = vpop.f32.mrb[0].mxu0
    %v2803 = vadd.f32 0.0, %v2802
    %v2804 = vpop.f32.mrb[0].mxu0
    %2805 = vmatprep.mubr.bf16.mxu0 0
    %2806 = vmatmul.mubr.bf16.gmra.mrb[0].mxu0 %v536
    %v2807 = vpop.f32.mrb[0].mxu0
    %v2808 = vadd.f32 0.0, %v2807
    %v2809 = vpop.f32.mrb[0].mxu0
    %v2810 = vpop.f32.mrb[0].mxu0
    %v2811 = vadd.f32 0.0, %v2810
    %v2812 = vpop.f32.mrb[0].mxu0
    %2813 = vmatprep.mubr.bf16.mxu0 0
    %2814 = vmatmul.mubr.bf16.gmra.mrb[0].mxu0 %v539
    %v2815 = vpop.f32.mrb[0].mxu0
    %v2816 = vadd.f32 0.0, %v2815
    %v2817 = vpop.f32.mrb[0].mxu0
    %v2818 = vpop.f32.mrb[0].mxu0
    %v2819 = vadd.f32 0.0, %v2818
    %v2820 = vpop.f32.mrb[0].mxu0
    %2821 = vmatprep.mubr.bf16.mxu0 0
    %2822 = vmatmul.mubr.bf16.gmra.mrb[0].mxu0 %v542
    %v2823 = vpop.f32.mrb[0].mxu0
    %v2824 = vadd.f32 0.0, %v2823
    %v2825 = vpop.f32.mrb[0].mxu0
    %v2826 = vpop.f32.mrb[0].mxu0
    %v2827 = vadd.f32 0.0, %v2826
    %v2828 = vpop.f32.mrb[0].mxu0
    %2829 = vmatprep.mubr.bf16.mxu0 0
    %2830 = vmatmul.mubr.bf16.gmra.mrb[0].mxu0 %v1437
    %v2831 = vpop.f32.mrb[0].mxu0
    %v2832 = vadd.f32 0.0, %v2831
    %v2833 = vpop.f32.mrb[0].mxu0
    %v2834 = vpop.f32.mrb[0].mxu0
    %v2835 = vadd.f32 0.0, %v2834
    %v2836 = vpop.f32.mrb[0].mxu0
    %2837 = vdwg.mxu0
    %v2838 = vadd.f32 %v2700, %v2776
    %v2839 = vadd.f32 %v2701, %v2779
    %v2840 = vadd.f32 %v2702, %v2784
    %v2841 = vadd.f32 %v2703, %v2787
    %v2842 = vadd.f32 %v2704, %v2792
    %v2843 = vadd.f32 %v2705, %v2795
    %v2844 = vadd.f32 %v2706, %v2800
    %v2845 = vadd.f32 %v2707, %v2803
    %v2846 = vadd.f32 %v2708, %v2808
    %v2847 = vadd.f32 %v2709, %v2811
    %v2848 = vadd.f32 %v2710, %v2816
    %v2849 = vadd.f32 %v2711, %v2819
    %v2850 = vadd.f32 %v2712, %v2824
    %v2851 = vadd.f32 %v2713, %v2827
    %v2852 = vadd.f32 %v2714, %v2832
    %v2853 = vadd.f32 %v2715, %v2835
    %s2854 = scalar_lea.vmem %s1, 384
    %v2855 = vld [vmem:[%s2854] sm:$0xf]
    %v2856 = vld [vmem:[%s2854 + $0x4] sm:$0xf]
    %v2857 = vld [vmem:[%s2854 + $0x8] sm:$0xf]
    %v2858 = vld [vmem:[%s2854 + $0xc] sm:$0xf]
    %v2859 = vld [vmem:[%s2854 + $0x10] sm:$0xf]
    %v2860 = vld [vmem:[%s2854 + $0x14] sm:$0xf]
    %v2867 = vunpack.c.l.b16 %v2855
    %v2868 = vunpack.c.l.b16 %v2856
    %v2869 = vunpack.c.l.b16 %v2857
    %v2870 = vunpack.c.l.b16 %v2858
    %v2871 = vunpack.c.l.b16 %v2859
    %v2872 = vunpack.c.l.b16 %v2860
    %v2873 = vpack.c.b16 %v2868, %v2867
    %v2874 = vpack.c.b16 %v2870, %v2869
    %v2875 = vpack.c.b16 %v2872, %v2871
    %2879 = vmatprep.subr.bf16.mxu0 0
    %2880 = vmatpush1.bf16.msra.mxu0 %v2873
    %2881 = vmatprep.subr.bf16.mxu0 0
    %2882 = vmatpush1.bf16.msra.mxu0 %v2874
    %2883 = vmatprep.subr.bf16.mxu0 0
    %2884 = vmatpush1.bf16.msra.mxu0 %v2875
    %2885 = vmatprep.subr.bf16.mxu0 0
    %2886 = vmatpush1.bf16.msra.mxu0 0
    %2887 = vmatprep.subr.bf16.mxu0 0
    %2888 = vmatpush1.bf16.msra.mxu0 0
    %2889 = vmatprep.subr.bf16.mxu0 0
    %2890 = vmatpush1.bf16.msra.mxu0 0
    %2891 = vmatprep.subr.bf16.mxu0 0
    %2892 = vmatpush1.bf16.msra.mxu0 0
    %2893 = vmatprep.subr.bf16.mxu0 0
    %2894 = vmatpush1.bf16.msra.mxu0 0
    %2895 = vmatprep.subr.bf16.mxu0 0
    %2896 = vmatpush1.bf16.msra.mxu0 0
    %2897 = vmatprep.subr.bf16.mxu0 0
    %2898 = vmatpush1.bf16.msra.mxu0 0
    %2899 = vmatprep.subr.bf16.mxu0 0
    %2900 = vmatpush1.bf16.msra.mxu0 0
    %2901 = vmatprep.subr.bf16.mxu0 0
    %2902 = vmatpush1.bf16.msra.mxu0 0
    %2903 = vmatprep.subr.bf16.mxu0 0
    %2904 = vmatpush1.bf16.msra.mxu0 0
    %2905 = vmatprep.subr.bf16.mxu0 0
    %2906 = vmatpush1.bf16.msra.mxu0 0
    %2907 = vmatprep.subr.bf16.mxu0 0
    %2908 = vmatpush1.bf16.msra.mxu0 0
    %2909 = vmatprep.subr.bf16.mxu0 0
    %2910 = vmatpush1.bf16.msra.mxu0 0
    %2911 = vmatprep.mubr.bf16.mxu0 0
    %2912 = vmatmul.mubr.bf16.gmra.mrb[0].mxu0 %v385
    %v2913 = vpop.f32.mrb[0].mxu0
    %v2914 = vadd.f32 0.0, %v2913
    %v2915 = vpop.f32.mrb[0].mxu0
    %v2916 = vpop.f32.mrb[0].mxu0
    %v2917 = vadd.f32 0.0, %v2916
    %v2918 = vpop.f32.mrb[0].mxu0
    %2919 = vmatprep.mubr.bf16.mxu0 0
    %2920 = vmatmul.mubr.bf16.gmra.mrb[0].mxu0 %v388
    %v2921 = vpop.f32.mrb[0].mxu0
    %v2922 = vadd.f32 0.0, %v2921
    %v2923 = vpop.f32.mrb[0].mxu0
    %v2924 = vpop.f32.mrb[0].mxu0
    %v2925 = vadd.f32 0.0, %v2924
    %v2926 = vpop.f32.mrb[0].mxu0
    %2927 = vmatprep.mubr.bf16.mxu0 0
    %2928 = vmatmul.mubr.bf16.gmra.mrb[0].mxu0 %v391
    %v2929 = vpop.f32.mrb[0].mxu0
    %v2930 = vadd.f32 0.0, %v2929
    %v2931 = vpop.f32.mrb[0].mxu0
    %v2932 = vpop.f32.mrb[0].mxu0
    %v2933 = vadd.f32 0.0, %v2932
    %v2934 = vpop.f32.mrb[0].mxu0
    %2935 = vmatprep.mubr.bf16.mxu0 0
    %2936 = vmatmul.mubr.bf16.gmra.mrb[0].mxu0 %v1592
    %v2937 = vpop.f32.mrb[0].mxu0
    %v2938 = vadd.f32 0.0, %v2937
    %v2939 = vpop.f32.mrb[0].mxu0
    %v2940 = vpop.f32.mrb[0].mxu0
    %v2941 = vadd.f32 0.0, %v2940
    %v2942 = vpop.f32.mrb[0].mxu0
    %2943 = vmatprep.mubr.bf16.mxu0 0
    %2944 = vmatmul.mubr.bf16.gmra.mrb[0].mxu0 %v397
    %v2945 = vpop.f32.mrb[0].mxu0
    %v2946 = vadd.f32 0.0, %v2945
    %v2947 = vpop.f32.mrb[0].mxu0
    %v2948 = vpop.f32.mrb[0].mxu0
    %v2949 = vadd.f32 0.0, %v2948
    %v2950 = vpop.f32.mrb[0].mxu0
    %2951 = vmatprep.mubr.bf16.mxu0 0
    %2952 = vmatmul.mubr.bf16.gmra.mrb[0].mxu0 %v400
    %v2953 = vpop.f32.mrb[0].mxu0
    %v2954 = vadd.f32 0.0, %v2953
    %v2955 = vpop.f32.mrb[0].mxu0
    %v2956 = vpop.f32.mrb[0].mxu0
    %v2957 = vadd.f32 0.0, %v2956
    %v2958 = vpop.f32.mrb[0].mxu0
    %2959 = vmatprep.mubr.bf16.mxu0 0
    %2960 = vmatmul.mubr.bf16.gmra.mrb[0].mxu0 %v403
    %v2961 = vpop.f32.mrb[0].mxu0
    %v2962 = vadd.f32 0.0, %v2961
    %v2963 = vpop.f32.mrb[0].mxu0
    %v2964 = vpop.f32.mrb[0].mxu0
    %v2965 = vadd.f32 0.0, %v2964
    %v2966 = vpop.f32.mrb[0].mxu0
    %2967 = vmatprep.mubr.bf16.mxu0 0
    %2968 = vmatmul.mubr.bf16.gmra.mrb[0].mxu0 %v1595
    %v2969 = vpop.f32.mrb[0].mxu0
    %v2970 = vadd.f32 0.0, %v2969
    %v2971 = vpop.f32.mrb[0].mxu0
    %v2972 = vpop.f32.mrb[0].mxu0
    %v2973 = vadd.f32 0.0, %v2972
    %v2974 = vpop.f32.mrb[0].mxu0
    %2975 = vdwg.mxu0
    %v2976 = vadd.f32 %v2838, %v2914
    %v2977 = vadd.f32 %v2839, %v2917
    %v2978 = vadd.f32 %v2840, %v2922
    %v2979 = vadd.f32 %v2841, %v2925
    %v2980 = vadd.f32 %v2842, %v2930
    %v2981 = vadd.f32 %v2843, %v2933
    %v2982 = vadd.f32 %v2844, %v2938
    %v2983 = vadd.f32 %v2845, %v2941
    %v2984 = vadd.f32 %v2846, %v2946
    %v2985 = vadd.f32 %v2847, %v2949
    %v2986 = vadd.f32 %v2848, %v2954
    %v2987 = vadd.f32 %v2849, %v2957
    %v2988 = vadd.f32 %v2850, %v2962
    %v2989 = vadd.f32 %v2851, %v2965
    %v2990 = vadd.f32 %v2852, %v2970
    %v2991 = vadd.f32 %v2853, %v2973
    %s2992 = scalar_lea.vmem %s1, 408
    %v2993 = vld [vmem:[%s2992] sm:$0xf]
    %v2994 = vld [vmem:[%s2992 + $0x4] sm:$0xf]
    %v2995 = vld [vmem:[%s2992 + $0x8] sm:$0xf]
    %v2996 = vld [vmem:[%s2992 + $0xc] sm:$0xf]
    %v2997 = vld [vmem:[%s2992 + $0x10] sm:$0xf]
    %v2998 = vld [vmem:[%s2992 + $0x14] sm:$0xf]
    %v3005 = vunpack.c.l.b16 %v2993
    %v3006 = vunpack.c.l.b16 %v2994
    %v3007 = vunpack.c.l.b16 %v2995
    %v3008 = vunpack.c.l.b16 %v2996
    %v3009 = vunpack.c.l.b16 %v2997
    %v3010 = vunpack.c.l.b16 %v2998
    %v3011 = vpack.c.b16 %v3006, %v3005
    %v3012 = vpack.c.b16 %v3008, %v3007
    %v3013 = vpack.c.b16 %v3010, %v3009
    %3017 = vmatprep.subr.bf16.mxu0 0
    %3018 = vmatpush1.bf16.msra.mxu0 %v3011
    %3019 = vmatprep.subr.bf16.mxu0 0
    %3020 = vmatpush1.bf16.msra.mxu0 %v3012
    %3021 = vmatprep.subr.bf16.mxu0 0
    %3022 = vmatpush1.bf16.msra.mxu0 %v3013
    %3023 = vmatprep.subr.bf16.mxu0 0
    %3024 = vmatpush1.bf16.msra.mxu0 0
    %3025 = vmatprep.subr.bf16.mxu0 0
    %3026 = vmatpush1.bf16.msra.mxu0 0
    %3027 = vmatprep.subr.bf16.mxu0 0
    %3028 = vmatpush1.bf16.msra.mxu0 0
    %3029 = vmatprep.subr.bf16.mxu0 0
    %3030 = vmatpush1.bf16.msra.mxu0 0
    %3031 = vmatprep.subr.bf16.mxu0 0
    %3032 = vmatpush1.bf16.msra.mxu0 0
    %3033 = vmatprep.subr.bf16.mxu0 0
    %3034 = vmatpush1.bf16.msra.mxu0 0
    %3035 = vmatprep.subr.bf16.mxu0 0
    %3036 = vmatpush1.bf16.msra.mxu0 0
    %3037 = vmatprep.subr.bf16.mxu0 0
    %3038 = vmatpush1.bf16.msra.mxu0 0
    %3039 = vmatprep.subr.bf16.mxu0 0
    %3040 = vmatpush1.bf16.msra.mxu0 0
    %3041 = vmatprep.subr.bf16.mxu0 0
    %3042 = vmatpush1.bf16.msra.mxu0 0
    %3043 = vmatprep.subr.bf16.mxu0 0
    %3044 = vmatpush1.bf16.msra.mxu0 0
    %3045 = vmatprep.subr.bf16.mxu0 0
    %3046 = vmatpush1.bf16.msra.mxu0 0
    %3047 = vmatprep.subr.bf16.mxu0 0
    %3048 = vmatpush1.bf16.msra.mxu0 0
    %3049 = vmatprep.mubr.bf16.mxu0 0
    %3050 = vmatmul.mubr.bf16.gmra.mrb[0].mxu0 %v743
    %v3051 = vpop.f32.mrb[0].mxu0
    %v3052 = vadd.f32 0.0, %v3051
    %v3053 = vpop.f32.mrb[0].mxu0
    %v3054 = vpop.f32.mrb[0].mxu0
    %v3055 = vadd.f32 0.0, %v3054
    %v3056 = vpop.f32.mrb[0].mxu0
    %3057 = vmatprep.mubr.bf16.mxu0 0
    %3058 = vmatmul.mubr.bf16.gmra.mrb[0].mxu0 %v746
    %v3059 = vpop.f32.mrb[0].mxu0
    %v3060 = vadd.f32 0.0, %v3059
    %v3061 = vpop.f32.mrb[0].mxu0
    %v3062 = vpop.f32.mrb[0].mxu0
    %v3063 = vadd.f32 0.0, %v3062
    %v3064 = vpop.f32.mrb[0].mxu0
    %3065 = vmatprep.mubr.bf16.mxu0 0
    %3066 = vmatmul.mubr.bf16.gmra.mrb[0].mxu0 %v749
    %v3067 = vpop.f32.mrb[0].mxu0
    %v3068 = vadd.f32 0.0, %v3067
    %v3069 = vpop.f32.mrb[0].mxu0
    %v3070 = vpop.f32.mrb[0].mxu0
    %v3071 = vadd.f32 0.0, %v3070
    %v3072 = vpop.f32.mrb[0].mxu0
    %3073 = vmatprep.mubr.bf16.mxu0 0
    %3074 = vmatmul.mubr.bf16.gmra.mrb[0].mxu0 %v1746
    %v3075 = vpop.f32.mrb[0].mxu0
    %v3076 = vadd.f32 0.0, %v3075
    %v3077 = vpop.f32.mrb[0].mxu0
    %v3078 = vpop.f32.mrb[0].mxu0
    %v3079 = vadd.f32 0.0, %v3078
    %v3080 = vpop.f32.mrb[0].mxu0
    %3081 = vmatprep.mubr.bf16.mxu0 0
    %3082 = vmatmul.mubr.bf16.gmra.mrb[0].mxu0 %v755
    %v3083 = vpop.f32.mrb[0].mxu0
    %v3084 = vadd.f32 0.0, %v3083
    %v3085 = vpop.f32.mrb[0].mxu0
    %v3086 = vpop.f32.mrb[0].mxu0
    %v3087 = vadd.f32 0.0, %v3086
    %v3088 = vpop.f32.mrb[0].mxu0
    %3089 = vmatprep.mubr.bf16.mxu0 0
    %3090 = vmatmul.mubr.bf16.gmra.mrb[0].mxu0 %v758
    %v3091 = vpop.f32.mrb[0].mxu0
    %v3092 = vadd.f32 0.0, %v3091
    %v3093 = vpop.f32.mrb[0].mxu0
    %v3094 = vpop.f32.mrb[0].mxu0
    %v3095 = vadd.f32 0.0, %v3094
    %v3096 = vpop.f32.mrb[0].mxu0
    %3097 = vmatprep.mubr.bf16.mxu0 0
    %3098 = vmatmul.mubr.bf16.gmra.mrb[0].mxu0 %v761
    %v3099 = vpop.f32.mrb[0].mxu0
    %v3100 = vadd.f32 0.0, %v3099
    %v3101 = vpop.f32.mrb[0].mxu0
    %v3102 = vpop.f32.mrb[0].mxu0
    %v3103 = vadd.f32 0.0, %v3102
    %v3104 = vpop.f32.mrb[0].mxu0
    %3105 = vmatprep.mubr.bf16.mxu0 0
    %3106 = vmatmul.mubr.bf16.gmra.mrb[0].mxu0 %v1749
    %v3107 = vpop.f32.mrb[0].mxu0
    %v3108 = vadd.f32 0.0, %v3107
    %v3109 = vpop.f32.mrb[0].mxu0
    %v3110 = vpop.f32.mrb[0].mxu0
    %v3111 = vadd.f32 0.0, %v3110
    %v3112 = vpop.f32.mrb[0].mxu0
    %3113 = vdwg.mxu0
    %v3114 = vadd.f32 %v2976, %v3052
    %v3115 = vadd.f32 %v2977, %v3055
    %v3116 = vadd.f32 %v2978, %v3060
    %v3117 = vadd.f32 %v2979, %v3063
    %v3118 = vadd.f32 %v2980, %v3068
    %v3119 = vadd.f32 %v2981, %v3071
    %v3120 = vadd.f32 %v2982, %v3076
    %v3121 = vadd.f32 %v2983, %v3079
    %v3122 = vadd.f32 %v2984, %v3084
    %v3123 = vadd.f32 %v2985, %v3087
    %v3124 = vadd.f32 %v2986, %v3092
    %v3125 = vadd.f32 %v2987, %v3095
    %v3126 = vadd.f32 %v2988, %v3100
    %v3127 = vadd.f32 %v2989, %v3103
    %v3128 = vadd.f32 %v2990, %v3108
    %v3129 = vadd.f32 %v2991, %v3111
    %v3130 = vld [vmem:[%s2] sm:$0x1]
    %v3132 = vlaneseq
    %v3133 = vshrl.u32 %v3132, 7
    %v3134 = vsub.s32 0, %v3133
    %v3135 = vrot.slane %v3130, %v3134
    %v3137 = vadd.f32 %v3114, %v3135
    %v3138 = vadd.f32 %v3115, %v3135
    %v3139 = vadd.f32 %v3116, %v3135
    %v3140 = vadd.f32 %v3117, %v3135
    %v3141 = vadd.f32 %v3118, %v3135
    %v3142 = vadd.f32 %v3119, %v3135
    %v3143 = vadd.f32 %v3120, %v3135
    %v3144 = vadd.f32 %v3121, %v3135
    %v3145 = vadd.f32 %v3122, %v3135
    %v3146 = vadd.f32 %v3123, %v3135
    %v3147 = vadd.f32 %v3124, %v3135
    %v3148 = vadd.f32 %v3125, %v3135
    %v3149 = vadd.f32 %v3126, %v3135
    %v3150 = vadd.f32 %v3127, %v3135
    %v3151 = vadd.f32 %v3128, %v3135
    %v3152 = vadd.f32 %v3129, %v3135
    %v3153 = vmax.f32 %v3137, 0.0
    %v3154 = vmax.f32 %v3138, 0.0
    %v3155 = vmax.f32 %v3139, 0.0
    %v3156 = vmax.f32 %v3140, 0.0
    %v3157 = vmax.f32 %v3141, 0.0
    %v3158 = vmax.f32 %v3142, 0.0
    %v3159 = vmax.f32 %v3143, 0.0
    %v3160 = vmax.f32 %v3144, 0.0
    %v3161 = vmax.f32 %v3145, 0.0
    %v3162 = vmax.f32 %v3146, 0.0
    %v3163 = vmax.f32 %v3147, 0.0
    %v3164 = vmax.f32 %v3148, 0.0
    %v3165 = vmax.f32 %v3149, 0.0
    %v3166 = vmax.f32 %v3150, 0.0
    %v3167 = vmax.f32 %v3151, 0.0
    %v3168 = vmax.f32 %v3152, 0.0
    %s3169 = scalar_lea.vmem [#allocation2], 304
    %3170 = vst [vmem:[%s3169 + $0x1] sm:$0xff] %v3153
    %3171 = vst [vmem:[%s3169 + $0x11] sm:$0xff] %v3154
    %3172 = vst [vmem:[%s3169 + $0x21] sm:$0xff] %v3155
    %3173 = vst [vmem:[%s3169 + $0x31] sm:$0xff] %v3156
    %3174 = vst [vmem:[%s3169 + $0x41] sm:$0xff] %v3157
    %3175 = vst [vmem:[%s3169 + $0x51] sm:$0xff] %v3158
    %3176 = vst [vmem:[%s3169 + $0x61] sm:$0xff] %v3159
    %3177 = vst [vmem:[%s3169 + $0x71] sm:$0xff] %v3160
    %3178 = vst [vmem:[%s3169 + $0x91] sm:$0xff] %v3161
    %3179 = vst [vmem:[%s3169 + $0xa1] sm:$0xff] %v3162
    %3180 = vst [vmem:[%s3169 + $0xb1] sm:$0xff] %v3163
    %3181 = vst [vmem:[%s3169 + $0xc1] sm:$0xff] %v3164
    %3182 = vst [vmem:[%s3169 + $0xd1] sm:$0xff] %v3165
    %3183 = vst [vmem:[%s3169 + $0xe1] sm:$0xff] %v3166
    %3184 = vst [vmem:[%s3169 + $0xf1] sm:$0xff] %v3167
    %3185 = vst [vmem:[%s3169 + $0x101] sm:$0xff] %v3168
    %s3186 = scalar_lea.vmem %s1, 432
    %v3187 = vld [vmem:[%s3186] sm:$0xf]
    %v3188 = vld [vmem:[%s3186 + $0x4] sm:$0xf]
    %v3189 = vld [vmem:[%s3186 + $0x8] sm:$0xf]
    %v3190 = vld [vmem:[%s3186 + $0xc] sm:$0xf]
    %v3191 = vld [vmem:[%s3186 + $0x10] sm:$0xf]
    %v3192 = vld [vmem:[%s3186 + $0x14] sm:$0xf]
    %s3193 = scalar_lea.vmem %s1, 456
    %v3194 = vld [vmem:[%s3193] sm:$0xf]
    %v3195 = vld [vmem:[%s3193 + $0x4] sm:$0xf]
    %v3196 = vld [vmem:[%s3193 + $0x8] sm:$0xf]
    %v3197 = vld [vmem:[%s3193 + $0xc] sm:$0xf]
    %v3198 = vld [vmem:[%s3193 + $0x10] sm:$0xf]
    %v3199 = vld [vmem:[%s3193 + $0x14] sm:$0xf]
    %v3206 = vunpack.c.l.b16 %v3194
    %v3207 = vunpack.c.l.b16 %v3195
    %v3208 = vunpack.c.l.b16 %v3196
    %v3209 = vunpack.c.l.b16 %v3197
    %v3210 = vunpack.c.l.b16 %v3198
    %v3211 = vunpack.c.l.b16 %v3199
    %v3212 = vpack.c.b16 %v3207, %v3206
    %v3213 = vpack.c.b16 %v3209, %v3208
    %v3214 = vpack.c.b16 %v3211, %v3210
    %3218 = vmatprep.subr.bf16.mxu0 0
    %3219 = vmatpush1.bf16.msra.mxu0 %v3212
    %3220 = vmatprep.subr.bf16.mxu0 0
    %3221 = vmatpush1.bf16.msra.mxu0 %v3213
    %3222 = vmatprep.subr.bf16.mxu0 0
    %3223 = vmatpush1.bf16.msra.mxu0 %v3214
    %3224 = vmatprep.subr.bf16.mxu0 0
    %3225 = vmatpush1.bf16.msra.mxu0 0
    %3226 = vmatprep.subr.bf16.mxu0 0
    %3227 = vmatpush1.bf16.msra.mxu0 0
    %3228 = vmatprep.subr.bf16.mxu0 0
    %3229 = vmatpush1.bf16.msra.mxu0 0
    %3230 = vmatprep.subr.bf16.mxu0 0
    %3231 = vmatpush1.bf16.msra.mxu0 0
    %3232 = vmatprep.subr.bf16.mxu0 0
    %3233 = vmatpush1.bf16.msra.mxu0 0
    %3234 = vmatprep.subr.bf16.mxu0 0
    %3235 = vmatpush1.bf16.msra.mxu0 0
    %3236 = vmatprep.subr.bf16.mxu0 0
    %3237 = vmatpush1.bf16.msra.mxu0 0
    %3238 = vmatprep.subr.bf16.mxu0 0
    %3239 = vmatpush1.bf16.msra.mxu0 0
    %3240 = vmatprep.subr.bf16.mxu0 0
    %3241 = vmatpush1.bf16.msra.mxu0 0
    %3242 = vmatprep.subr.bf16.mxu0 0
    %3243 = vmatpush1.bf16.msra.mxu0 0
    %3244 = vmatprep.subr.bf16.mxu0 0
    %3245 = vmatpush1.bf16.msra.mxu0 0
    %3246 = vmatprep.subr.bf16.mxu0 0
    %3247 = vmatpush1.bf16.msra.mxu0 0
    %3248 = vmatprep.subr.bf16.mxu0 0
    %3249 = vmatpush1.bf16.msra.mxu0 0
    %3250 = vmatprep.mubr.bf16.mxu0 0
    %3251 = vmatmul.mubr.bf16.gmra.mrb[0].mxu0 %v382
    %v3252 = vpop.f32.mrb[0].mxu0
    %v3253 = vadd.f32 0.0, %v3252
    %v3254 = vpop.f32.mrb[0].mxu0
    %v3255 = vpop.f32.mrb[0].mxu0
    %v3256 = vadd.f32 0.0, %v3255
    %v3257 = vpop.f32.mrb[0].mxu0
    %3258 = vmatprep.mubr.bf16.mxu0 0
    %3259 = vmatmul.mubr.bf16.gmra.mrb[0].mxu0 %v385
    %v3260 = vpop.f32.mrb[0].mxu0
    %v3261 = vadd.f32 0.0, %v3260
    %v3262 = vpop.f32.mrb[0].mxu0
    %v3263 = vpop.f32.mrb[0].mxu0
    %v3264 = vadd.f32 0.0, %v3263
    %v3265 = vpop.f32.mrb[0].mxu0
    %3266 = vmatprep.mubr.bf16.mxu0 0
    %3267 = vmatmul.mubr.bf16.gmra.mrb[0].mxu0 %v388
    %v3268 = vpop.f32.mrb[0].mxu0
    %v3269 = vadd.f32 0.0, %v3268
    %v3270 = vpop.f32.mrb[0].mxu0
    %v3271 = vpop.f32.mrb[0].mxu0
    %v3272 = vadd.f32 0.0, %v3271
    %v3273 = vpop.f32.mrb[0].mxu0
    %3274 = vmatprep.mubr.bf16.mxu0 0
    %3275 = vmatmul.mubr.bf16.gmra.mrb[0].mxu0 %v391
    %v3276 = vpop.f32.mrb[0].mxu0
    %v3277 = vadd.f32 0.0, %v3276
    %v3278 = vpop.f32.mrb[0].mxu0
    %v3279 = vpop.f32.mrb[0].mxu0
    %v3280 = vadd.f32 0.0, %v3279
    %v3281 = vpop.f32.mrb[0].mxu0
    %3282 = vmatprep.mubr.bf16.mxu0 0
    %3283 = vmatmul.mubr.bf16.gmra.mrb[0].mxu0 %v394
    %v3284 = vpop.f32.mrb[0].mxu0
    %v3285 = vadd.f32 0.0, %v3284
    %v3286 = vpop.f32.mrb[0].mxu0
    %v3287 = vpop.f32.mrb[0].mxu0
    %v3288 = vadd.f32 0.0, %v3287
    %v3289 = vpop.f32.mrb[0].mxu0
    %3290 = vmatprep.mubr.bf16.mxu0 0
    %3291 = vmatmul.mubr.bf16.gmra.mrb[0].mxu0 %v397
    %v3292 = vpop.f32.mrb[0].mxu0
    %v3293 = vadd.f32 0.0, %v3292
    %v3294 = vpop.f32.mrb[0].mxu0
    %v3295 = vpop.f32.mrb[0].mxu0
    %v3296 = vadd.f32 0.0, %v3295
    %v3297 = vpop.f32.mrb[0].mxu0
    %3298 = vmatprep.mubr.bf16.mxu0 0
    %3299 = vmatmul.mubr.bf16.gmra.mrb[0].mxu0 %v400
    %v3300 = vpop.f32.mrb[0].mxu0
    %v3301 = vadd.f32 0.0, %v3300
    %v3302 = vpop.f32.mrb[0].mxu0
    %v3303 = vpop.f32.mrb[0].mxu0
    %v3304 = vadd.f32 0.0, %v3303
    %v3305 = vpop.f32.mrb[0].mxu0
    %3306 = vmatprep.mubr.bf16.mxu0 0
    %3307 = vmatmul.mubr.bf16.gmra.mrb[0].mxu0 %v403
    %v3308 = vpop.f32.mrb[0].mxu0
    %v3309 = vadd.f32 0.0, %v3308
    %v3310 = vpop.f32.mrb[0].mxu0
    %v3311 = vpop.f32.mrb[0].mxu0
    %v3312 = vadd.f32 0.0, %v3311
    %v3313 = vpop.f32.mrb[0].mxu0
    %3314 = vdwg.mxu0
    %v3321 = vunpack.c.l.b16 %v3187
    %v3322 = vunpack.c.l.b16 %v3188
    %v3323 = vunpack.c.l.b16 %v3189
    %v3324 = vunpack.c.l.b16 %v3190
    %v3325 = vunpack.c.l.b16 %v3191
    %v3326 = vunpack.c.l.b16 %v3192
    %v3327 = vpack.c.b16 %v3322, %v3321
    %v3328 = vpack.c.b16 %v3324, %v3323
    %v3329 = vpack.c.b16 %v3326, %v3325
    %3333 = vmatprep.subr.bf16.mxu0 0
    %3334 = vmatpush1.bf16.msra.mxu0 %v3327
    %3335 = vmatprep.subr.bf16.mxu0 0
    %3336 = vmatpush1.bf16.msra.mxu0 %v3328
    %3337 = vmatprep.subr.bf16.mxu0 0
    %3338 = vmatpush1.bf16.msra.mxu0 %v3329
    %3339 = vmatprep.subr.bf16.mxu0 0
    %3340 = vmatpush1.bf16.msra.mxu0 0
    %3341 = vmatprep.subr.bf16.mxu0 0
    %3342 = vmatpush1.bf16.msra.mxu0 0
    %3343 = vmatprep.subr.bf16.mxu0 0
    %3344 = vmatpush1.bf16.msra.mxu0 0
    %3345 = vmatprep.subr.bf16.mxu0 0
    %3346 = vmatpush1.bf16.msra.mxu0 0
    %3347 = vmatprep.subr.bf16.mxu0 0
    %3348 = vmatpush1.bf16.msra.mxu0 0
    %3349 = vmatprep.subr.bf16.mxu0 0
    %3350 = vmatpush1.bf16.msra.mxu0 0
    %3351 = vmatprep.subr.bf16.mxu0 0
    %3352 = vmatpush1.bf16.msra.mxu0 0
    %3353 = vmatprep.subr.bf16.mxu0 0
    %3354 = vmatpush1.bf16.msra.mxu0 0
    %3355 = vmatprep.subr.bf16.mxu0 0
    %3356 = vmatpush1.bf16.msra.mxu0 0
    %3357 = vmatprep.subr.bf16.mxu0 0
    %3358 = vmatpush1.bf16.msra.mxu0 0
    %3359 = vmatprep.subr.bf16.mxu0 0
    %3360 = vmatpush1.bf16.msra.mxu0 0
    %3361 = vmatprep.subr.bf16.mxu0 0
    %3362 = vmatpush1.bf16.msra.mxu0 0
    %3363 = vmatprep.subr.bf16.mxu0 0
    %3364 = vmatpush1.bf16.msra.mxu0 0
    %3365 = vmatprep.mubr.bf16.mxu0 0
    %3366 = vmatmul.mubr.bf16.gmra.mrb[0].mxu0 %v521
    %v3367 = vpop.f32.mrb[0].mxu0
    %v3368 = vadd.f32 %v3253, %v3367
    %v3369 = vpop.f32.mrb[0].mxu0
    %v3370 = vpop.f32.mrb[0].mxu0
    %v3371 = vadd.f32 %v3256, %v3370
    %v3372 = vpop.f32.mrb[0].mxu0
    %3373 = vmatprep.mubr.bf16.mxu0 0
    %3374 = vmatmul.mubr.bf16.gmra.mrb[0].mxu0 %v524
    %v3375 = vpop.f32.mrb[0].mxu0
    %v3376 = vadd.f32 %v3261, %v3375
    %v3377 = vpop.f32.mrb[0].mxu0
    %v3378 = vpop.f32.mrb[0].mxu0
    %v3379 = vadd.f32 %v3264, %v3378
    %v3380 = vpop.f32.mrb[0].mxu0
    %3381 = vmatprep.mubr.bf16.mxu0 0
    %3382 = vmatmul.mubr.bf16.gmra.mrb[0].mxu0 %v527
    %v3383 = vpop.f32.mrb[0].mxu0
    %v3384 = vadd.f32 %v3269, %v3383
    %v3385 = vpop.f32.mrb[0].mxu0
    %v3386 = vpop.f32.mrb[0].mxu0
    %v3387 = vadd.f32 %v3272, %v3386
    %v3388 = vpop.f32.mrb[0].mxu0
    %3389 = vmatprep.mubr.bf16.mxu0 0
    %3390 = vmatmul.mubr.bf16.gmra.mrb[0].mxu0 %v530
    %v3391 = vpop.f32.mrb[0].mxu0
    %v3392 = vadd.f32 %v3277, %v3391
    %v3393 = vpop.f32.mrb[0].mxu0
    %v3394 = vpop.f32.mrb[0].mxu0
    %v3395 = vadd.f32 %v3280, %v3394
    %v3396 = vpop.f32.mrb[0].mxu0
    %3397 = vmatprep.mubr.bf16.mxu0 0
    %3398 = vmatmul.mubr.bf16.gmra.mrb[0].mxu0 %v533
    %v3399 = vpop.f32.mrb[0].mxu0
    %v3400 = vadd.f32 %v3285, %v3399
    %v3401 = vpop.f32.mrb[0].mxu0
    %v3402 = vpop.f32.mrb[0].mxu0
    %v3403 = vadd.f32 %v3288, %v3402
    %v3404 = vpop.f32.mrb[0].mxu0
    %3405 = vmatprep.mubr.bf16.mxu0 0
    %3406 = vmatmul.mubr.bf16.gmra.mrb[0].mxu0 %v536
    %v3407 = vpop.f32.mrb[0].mxu0
    %v3408 = vadd.f32 %v3293, %v3407
    %v3409 = vpop.f32.mrb[0].mxu0
    %v3410 = vpop.f32.mrb[0].mxu0
    %v3411 = vadd.f32 %v3296, %v3410
    %v3412 = vpop.f32.mrb[0].mxu0
    %3413 = vmatprep.mubr.bf16.mxu0 0
    %3414 = vmatmul.mubr.bf16.gmra.mrb[0].mxu0 %v539
    %v3415 = vpop.f32.mrb[0].mxu0
    %v3416 = vadd.f32 %v3301, %v3415
    %v3417 = vpop.f32.mrb[0].mxu0
    %v3418 = vpop.f32.mrb[0].mxu0
    %v3419 = vadd.f32 %v3304, %v3418
    %v3420 = vpop.f32.mrb[0].mxu0
    %3421 = vmatprep.mubr.bf16.mxu0 0
    %3422 = vmatmul.mubr.bf16.gmra.mrb[0].mxu0 %v542
    %v3423 = vpop.f32.mrb[0].mxu0
    %v3424 = vadd.f32 %v3309, %v3423
    %v3425 = vpop.f32.mrb[0].mxu0
    %v3426 = vpop.f32.mrb[0].mxu0
    %v3427 = vadd.f32 %v3312, %v3426
    %v3428 = vpop.f32.mrb[0].mxu0
    %3429 = vdwg.mxu0
    %s3430 = scalar_lea.vmem %s1, 480
    %v3431 = vld [vmem:[%s3430] sm:$0xf]
    %v3432 = vld [vmem:[%s3430 + $0x4] sm:$0xf]
    %v3433 = vld [vmem:[%s3430 + $0x8] sm:$0xf]
    %v3434 = vld [vmem:[%s3430 + $0xc] sm:$0xf]
    %v3435 = vld [vmem:[%s3430 + $0x10] sm:$0xf]
    %v3436 = vld [vmem:[%s3430 + $0x14] sm:$0xf]
    %v3443 = vunpack.c.l.b16 %v3431
    %v3444 = vunpack.c.l.b16 %v3432
    %v3445 = vunpack.c.l.b16 %v3433
    %v3446 = vunpack.c.l.b16 %v3434
    %v3447 = vunpack.c.l.b16 %v3435
    %v3448 = vunpack.c.l.b16 %v3436
    %v3449 = vpack.c.b16 %v3444, %v3443
    %v3450 = vpack.c.b16 %v3446, %v3445
    %v3451 = vpack.c.b16 %v3448, %v3447
    %3455 = vmatprep.subr.bf16.mxu0 0
    %3456 = vmatpush1.bf16.msra.mxu0 %v3449
    %3457 = vmatprep.subr.bf16.mxu0 0
    %3458 = vmatpush1.bf16.msra.mxu0 %v3450
    %3459 = vmatprep.subr.bf16.mxu0 0
    %3460 = vmatpush1.bf16.msra.mxu0 %v3451
    %3461 = vmatprep.subr.bf16.mxu0 0
    %3462 = vmatpush1.bf16.msra.mxu0 0
    %3463 = vmatprep.subr.bf16.mxu0 0
    %3464 = vmatpush1.bf16.msra.mxu0 0
    %3465 = vmatprep.subr.bf16.mxu0 0
    %3466 = vmatpush1.bf16.msra.mxu0 0
    %3467 = vmatprep.subr.bf16.mxu0 0
    %3468 = vmatpush1.bf16.msra.mxu0 0
    %3469 = vmatprep.subr.bf16.mxu0 0
    %3470 = vmatpush1.bf16.msra.mxu0 0
    %3471 = vmatprep.subr.bf16.mxu0 0
    %3472 = vmatpush1.bf16.msra.mxu0 0
    %3473 = vmatprep.subr.bf16.mxu0 0
    %3474 = vmatpush1.bf16.msra.mxu0 0
    %3475 = vmatprep.subr.bf16.mxu0 0
    %3476 = vmatpush1.bf16.msra.mxu0 0
    %3477 = vmatprep.subr.bf16.mxu0 0
    %3478 = vmatpush1.bf16.msra.mxu0 0
    %3479 = vmatprep.subr.bf16.mxu0 0
    %3480 = vmatpush1.bf16.msra.mxu0 0
    %3481 = vmatprep.subr.bf16.mxu0 0
    %3482 = vmatpush1.bf16.msra.mxu0 0
    %3483 = vmatprep.subr.bf16.mxu0 0
    %3484 = vmatpush1.bf16.msra.mxu0 0
    %3485 = vmatprep.subr.bf16.mxu0 0
    %3486 = vmatpush1.bf16.msra.mxu0 0
    %3487 = vmatprep.mubr.bf16.mxu0 0
    %3488 = vmatmul.mubr.bf16.gmra.mrb[0].mxu0 %v740
    %v3489 = vpop.f32.mrb[0].mxu0
    %v3490 = vadd.f32 0.0, %v3489
    %v3491 = vpop.f32.mrb[0].mxu0
    %v3492 = vpop.f32.mrb[0].mxu0
    %v3493 = vadd.f32 0.0, %v3492
    %v3494 = vpop.f32.mrb[0].mxu0
    %3495 = vmatprep.mubr.bf16.mxu0 0
    %3496 = vmatmul.mubr.bf16.gmra.mrb[0].mxu0 %v743
    %v3497 = vpop.f32.mrb[0].mxu0
    %v3498 = vadd.f32 0.0, %v3497
    %v3499 = vpop.f32.mrb[0].mxu0
    %v3500 = vpop.f32.mrb[0].mxu0
    %v3501 = vadd.f32 0.0, %v3500
    %v3502 = vpop.f32.mrb[0].mxu0
    %3503 = vmatprep.mubr.bf16.mxu0 0
    %3504 = vmatmul.mubr.bf16.gmra.mrb[0].mxu0 %v746
    %v3505 = vpop.f32.mrb[0].mxu0
    %v3506 = vadd.f32 0.0, %v3505
    %v3507 = vpop.f32.mrb[0].mxu0
    %v3508 = vpop.f32.mrb[0].mxu0
    %v3509 = vadd.f32 0.0, %v3508
    %v3510 = vpop.f32.mrb[0].mxu0
    %3511 = vmatprep.mubr.bf16.mxu0 0
    %3512 = vmatmul.mubr.bf16.gmra.mrb[0].mxu0 %v749
    %v3513 = vpop.f32.mrb[0].mxu0
    %v3514 = vadd.f32 0.0, %v3513
    %v3515 = vpop.f32.mrb[0].mxu0
    %v3516 = vpop.f32.mrb[0].mxu0
    %v3517 = vadd.f32 0.0, %v3516
    %v3518 = vpop.f32.mrb[0].mxu0
    %3519 = vmatprep.mubr.bf16.mxu0 0
    %3520 = vmatmul.mubr.bf16.gmra.mrb[0].mxu0 %v752
    %v3521 = vpop.f32.mrb[0].mxu0
    %v3522 = vadd.f32 0.0, %v3521
    %v3523 = vpop.f32.mrb[0].mxu0
    %v3524 = vpop.f32.mrb[0].mxu0
    %v3525 = vadd.f32 0.0, %v3524
    %v3526 = vpop.f32.mrb[0].mxu0
    %3527 = vmatprep.mubr.bf16.mxu0 0
    %3528 = vmatmul.mubr.bf16.gmra.mrb[0].mxu0 %v755
    %v3529 = vpop.f32.mrb[0].mxu0
    %v3530 = vadd.f32 0.0, %v3529
    %v3531 = vpop.f32.mrb[0].mxu0
    %v3532 = vpop.f32.mrb[0].mxu0
    %v3533 = vadd.f32 0.0, %v3532
    %v3534 = vpop.f32.mrb[0].mxu0
    %3535 = vmatprep.mubr.bf16.mxu0 0
    %3536 = vmatmul.mubr.bf16.gmra.mrb[0].mxu0 %v758
    %v3537 = vpop.f32.mrb[0].mxu0
    %v3538 = vadd.f32 0.0, %v3537
    %v3539 = vpop.f32.mrb[0].mxu0
    %v3540 = vpop.f32.mrb[0].mxu0
    %v3541 = vadd.f32 0.0, %v3540
    %v3542 = vpop.f32.mrb[0].mxu0
    %3543 = vmatprep.mubr.bf16.mxu0 0
    %3544 = vmatmul.mubr.bf16.gmra.mrb[0].mxu0 %v761
    %v3545 = vpop.f32.mrb[0].mxu0
    %v3546 = vadd.f32 0.0, %v3545
    %v3547 = vpop.f32.mrb[0].mxu0
    %v3548 = vpop.f32.mrb[0].mxu0
    %v3549 = vadd.f32 0.0, %v3548
    %v3550 = vpop.f32.mrb[0].mxu0
    %3551 = vdwg.mxu0
    %v3552 = vadd.f32 %v3368, %v3490
    %v3553 = vadd.f32 %v3371, %v3493
    %v3554 = vadd.f32 %v3376, %v3498
    %v3555 = vadd.f32 %v3379, %v3501
    %v3556 = vadd.f32 %v3384, %v3506
    %v3557 = vadd.f32 %v3387, %v3509
    %v3558 = vadd.f32 %v3392, %v3514
    %v3559 = vadd.f32 %v3395, %v3517
    %v3560 = vadd.f32 %v3400, %v3522
    %v3561 = vadd.f32 %v3403, %v3525
    %v3562 = vadd.f32 %v3408, %v3530
    %v3563 = vadd.f32 %v3411, %v3533
    %v3564 = vadd.f32 %v3416, %v3538
    %v3565 = vadd.f32 %v3419, %v3541
    %v3566 = vadd.f32 %v3424, %v3546
    %v3567 = vadd.f32 %v3427, %v3549
    %s3568 = scalar_lea.vmem %s1, 504
    %v3569 = vld [vmem:[%s3568] sm:$0xf]
    %v3570 = vld [vmem:[%s3568 + $0x4] sm:$0xf]
    %v3571 = vld [vmem:[%s3568 + $0x8] sm:$0xf]
    %v3572 = vld [vmem:[%s3568 + $0xc] sm:$0xf]
    %v3573 = vld [vmem:[%s3568 + $0x10] sm:$0xf]
    %v3574 = vld [vmem:[%s3568 + $0x14] sm:$0xf]
    %v3581 = vunpack.c.l.b16 %v3569
    %v3582 = vunpack.c.l.b16 %v3570
    %v3583 = vunpack.c.l.b16 %v3571
    %v3584 = vunpack.c.l.b16 %v3572
    %v3585 = vunpack.c.l.b16 %v3573
    %v3586 = vunpack.c.l.b16 %v3574
    %v3587 = vpack.c.b16 %v3582, %v3581
    %v3588 = vpack.c.b16 %v3584, %v3583
    %v3589 = vpack.c.b16 %v3586, %v3585
    %3593 = vmatprep.subr.bf16.mxu0 0
    %3594 = vmatpush1.bf16.msra.mxu0 %v3587
    %3595 = vmatprep.subr.bf16.mxu0 0
    %3596 = vmatpush1.bf16.msra.mxu0 %v3588
    %3597 = vmatprep.subr.bf16.mxu0 0
    %3598 = vmatpush1.bf16.msra.mxu0 %v3589
    %3599 = vmatprep.subr.bf16.mxu0 0
    %3600 = vmatpush1.bf16.msra.mxu0 0
    %3601 = vmatprep.subr.bf16.mxu0 0
    %3602 = vmatpush1.bf16.msra.mxu0 0
    %3603 = vmatprep.subr.bf16.mxu0 0
    %3604 = vmatpush1.bf16.msra.mxu0 0
    %3605 = vmatprep.subr.bf16.mxu0 0
    %3606 = vmatpush1.bf16.msra.mxu0 0
    %3607 = vmatprep.subr.bf16.mxu0 0
    %3608 = vmatpush1.bf16.msra.mxu0 0
    %3609 = vmatprep.subr.bf16.mxu0 0
    %3610 = vmatpush1.bf16.msra.mxu0 0
    %3611 = vmatprep.subr.bf16.mxu0 0
    %3612 = vmatpush1.bf16.msra.mxu0 0
    %3613 = vmatprep.subr.bf16.mxu0 0
    %3614 = vmatpush1.bf16.msra.mxu0 0
    %3615 = vmatprep.subr.bf16.mxu0 0
    %3616 = vmatpush1.bf16.msra.mxu0 0
    %3617 = vmatprep.subr.bf16.mxu0 0
    %3618 = vmatpush1.bf16.msra.mxu0 0
    %3619 = vmatprep.subr.bf16.mxu0 0
    %3620 = vmatpush1.bf16.msra.mxu0 0
    %3621 = vmatprep.subr.bf16.mxu0 0
    %3622 = vmatpush1.bf16.msra.mxu0 0
    %3623 = vmatprep.subr.bf16.mxu0 0
    %3624 = vmatpush1.bf16.msra.mxu0 0
    %3625 = vmatprep.mubr.bf16.mxu0 0
    %3626 = vmatmul.mubr.bf16.gmra.mrb[0].mxu0 %v910
    %v3627 = vpop.f32.mrb[0].mxu0
    %v3628 = vadd.f32 0.0, %v3627
    %v3629 = vpop.f32.mrb[0].mxu0
    %v3630 = vpop.f32.mrb[0].mxu0
    %v3631 = vadd.f32 0.0, %v3630
    %v3632 = vpop.f32.mrb[0].mxu0
    %3633 = vmatprep.mubr.bf16.mxu0 0
    %3634 = vmatmul.mubr.bf16.gmra.mrb[0].mxu0 %v913
    %v3635 = vpop.f32.mrb[0].mxu0
    %v3636 = vadd.f32 0.0, %v3635
    %v3637 = vpop.f32.mrb[0].mxu0
    %v3638 = vpop.f32.mrb[0].mxu0
    %v3639 = vadd.f32 0.0, %v3638
    %v3640 = vpop.f32.mrb[0].mxu0
    %3641 = vmatprep.mubr.bf16.mxu0 0
    %3642 = vmatmul.mubr.bf16.gmra.mrb[0].mxu0 %v916
    %v3643 = vpop.f32.mrb[0].mxu0
    %v3644 = vadd.f32 0.0, %v3643
    %v3645 = vpop.f32.mrb[0].mxu0
    %v3646 = vpop.f32.mrb[0].mxu0
    %v3647 = vadd.f32 0.0, %v3646
    %v3648 = vpop.f32.mrb[0].mxu0
    %3649 = vmatprep.mubr.bf16.mxu0 0
    %3650 = vmatmul.mubr.bf16.gmra.mrb[0].mxu0 %v919
    %v3651 = vpop.f32.mrb[0].mxu0
    %v3652 = vadd.f32 0.0, %v3651
    %v3653 = vpop.f32.mrb[0].mxu0
    %v3654 = vpop.f32.mrb[0].mxu0
    %v3655 = vadd.f32 0.0, %v3654
    %v3656 = vpop.f32.mrb[0].mxu0
    %3657 = vmatprep.mubr.bf16.mxu0 0
    %3658 = vmatmul.mubr.bf16.gmra.mrb[0].mxu0 %v922
    %v3659 = vpop.f32.mrb[0].mxu0
    %v3660 = vadd.f32 0.0, %v3659
    %v3661 = vpop.f32.mrb[0].mxu0
    %v3662 = vpop.f32.mrb[0].mxu0
    %v3663 = vadd.f32 0.0, %v3662
    %v3664 = vpop.f32.mrb[0].mxu0
    %3665 = vmatprep.mubr.bf16.mxu0 0
    %3666 = vmatmul.mubr.bf16.gmra.mrb[0].mxu0 %v925
    %v3667 = vpop.f32.mrb[0].mxu0
    %v3668 = vadd.f32 0.0, %v3667
    %v3669 = vpop.f32.mrb[0].mxu0
    %v3670 = vpop.f32.mrb[0].mxu0
    %v3671 = vadd.f32 0.0, %v3670
    %v3672 = vpop.f32.mrb[0].mxu0
    %3673 = vmatprep.mubr.bf16.mxu0 0
    %3674 = vmatmul.mubr.bf16.gmra.mrb[0].mxu0 %v928
    %v3675 = vpop.f32.mrb[0].mxu0
    %v3676 = vadd.f32 0.0, %v3675
    %v3677 = vpop.f32.mrb[0].mxu0
    %v3678 = vpop.f32.mrb[0].mxu0
    %v3679 = vadd.f32 0.0, %v3678
    %v3680 = vpop.f32.mrb[0].mxu0
    %3681 = vmatprep.mubr.bf16.mxu0 0
    %3682 = vmatmul.mubr.bf16.gmra.mrb[0].mxu0 %v931
    %v3683 = vpop.f32.mrb[0].mxu0
    %v3684 = vadd.f32 0.0, %v3683
    %v3685 = vpop.f32.mrb[0].mxu0
    %v3686 = vpop.f32.mrb[0].mxu0
    %v3687 = vadd.f32 0.0, %v3686
    %v3688 = vpop.f32.mrb[0].mxu0
    %3689 = vdwg.mxu0
    %v3690 = vadd.f32 %v3552, %v3628
    %v3691 = vadd.f32 %v3553, %v3631
    %v3692 = vadd.f32 %v3554, %v3636
    %v3693 = vadd.f32 %v3555, %v3639
    %v3694 = vadd.f32 %v3556, %v3644
    %v3695 = vadd.f32 %v3557, %v3647
    %v3696 = vadd.f32 %v3558, %v3652
    %v3697 = vadd.f32 %v3559, %v3655
    %v3698 = vadd.f32 %v3560, %v3660
    %v3699 = vadd.f32 %v3561, %v3663
    %v3700 = vadd.f32 %v3562, %v3668
    %v3701 = vadd.f32 %v3563, %v3671
    %v3702 = vadd.f32 %v3564, %v3676
    %v3703 = vadd.f32 %v3565, %v3679
    %v3704 = vadd.f32 %v3566, %v3684
    %v3705 = vadd.f32 %v3567, %v3687
    %s3706 = scalar_lea.vmem %s1, 528
    %v3707 = vld [vmem:[%s3706] sm:$0xf]
    %v3708 = vld [vmem:[%s3706 + $0x4] sm:$0xf]
    %v3709 = vld [vmem:[%s3706 + $0x8] sm:$0xf]
    %v3710 = vld [vmem:[%s3706 + $0xc] sm:$0xf]
    %v3711 = vld [vmem:[%s3706 + $0x10] sm:$0xf]
    %v3712 = vld [vmem:[%s3706 + $0x14] sm:$0xf]
    %v3719 = vunpack.c.l.b16 %v3707
    %v3720 = vunpack.c.l.b16 %v3708
    %v3721 = vunpack.c.l.b16 %v3709
    %v3722 = vunpack.c.l.b16 %v3710
    %v3723 = vunpack.c.l.b16 %v3711
    %v3724 = vunpack.c.l.b16 %v3712
    %v3725 = vpack.c.b16 %v3720, %v3719
    %v3726 = vpack.c.b16 %v3722, %v3721
    %v3727 = vpack.c.b16 %v3724, %v3723
    %3731 = vmatprep.subr.bf16.mxu0 0
    %3732 = vmatpush1.bf16.msra.mxu0 %v3725
    %3733 = vmatprep.subr.bf16.mxu0 0
    %3734 = vmatpush1.bf16.msra.mxu0 %v3726
    %3735 = vmatprep.subr.bf16.mxu0 0
    %3736 = vmatpush1.bf16.msra.mxu0 %v3727
    %3737 = vmatprep.subr.bf16.mxu0 0
    %3738 = vmatpush1.bf16.msra.mxu0 0
    %3739 = vmatprep.subr.bf16.mxu0 0
    %3740 = vmatpush1.bf16.msra.mxu0 0
    %3741 = vmatprep.subr.bf16.mxu0 0
    %3742 = vmatpush1.bf16.msra.mxu0 0
    %3743 = vmatprep.subr.bf16.mxu0 0
    %3744 = vmatpush1.bf16.msra.mxu0 0
    %3745 = vmatprep.subr.bf16.mxu0 0
    %3746 = vmatpush1.bf16.msra.mxu0 0
    %3747 = vmatprep.subr.bf16.mxu0 0
    %3748 = vmatpush1.bf16.msra.mxu0 0
    %3749 = vmatprep.subr.bf16.mxu0 0
    %3750 = vmatpush1.bf16.msra.mxu0 0
    %3751 = vmatprep.subr.bf16.mxu0 0
    %3752 = vmatpush1.bf16.msra.mxu0 0
    %3753 = vmatprep.subr.bf16.mxu0 0
    %3754 = vmatpush1.bf16.msra.mxu0 0
    %3755 = vmatprep.subr.bf16.mxu0 0
    %3756 = vmatpush1.bf16.msra.mxu0 0
    %3757 = vmatprep.subr.bf16.mxu0 0
    %3758 = vmatpush1.bf16.msra.mxu0 0
    %3759 = vmatprep.subr.bf16.mxu0 0
    %3760 = vmatpush1.bf16.msra.mxu0 0
    %3761 = vmatprep.subr.bf16.mxu0 0
    %3762 = vmatpush1.bf16.msra.mxu0 0
    %3763 = vmatprep.mubr.bf16.mxu0 0
    %3764 = vmatmul.mubr.bf16.gmra.mrb[0].mxu0 %v1092
    %v3765 = vpop.f32.mrb[0].mxu0
    %v3766 = vadd.f32 0.0, %v3765
    %v3767 = vpop.f32.mrb[0].mxu0
    %v3768 = vpop.f32.mrb[0].mxu0
    %v3769 = vadd.f32 0.0, %v3768
    %v3770 = vpop.f32.mrb[0].mxu0
    %3771 = vmatprep.mubr.bf16.mxu0 0
    %3772 = vmatmul.mubr.bf16.gmra.mrb[0].mxu0 %v1095
    %v3773 = vpop.f32.mrb[0].mxu0
    %v3774 = vadd.f32 0.0, %v3773
    %v3775 = vpop.f32.mrb[0].mxu0
    %v3776 = vpop.f32.mrb[0].mxu0
    %v3777 = vadd.f32 0.0, %v3776
    %v3778 = vpop.f32.mrb[0].mxu0
    %3779 = vmatprep.mubr.bf16.mxu0 0
    %3780 = vmatmul.mubr.bf16.gmra.mrb[0].mxu0 %v1098
    %v3781 = vpop.f32.mrb[0].mxu0
    %v3782 = vadd.f32 0.0, %v3781
    %v3783 = vpop.f32.mrb[0].mxu0
    %v3784 = vpop.f32.mrb[0].mxu0
    %v3785 = vadd.f32 0.0, %v3784
    %v3786 = vpop.f32.mrb[0].mxu0
    %3787 = vmatprep.mubr.bf16.mxu0 0
    %3788 = vmatmul.mubr.bf16.gmra.mrb[0].mxu0 %v1101
    %v3789 = vpop.f32.mrb[0].mxu0
    %v3790 = vadd.f32 0.0, %v3789
    %v3791 = vpop.f32.mrb[0].mxu0
    %v3792 = vpop.f32.mrb[0].mxu0
    %v3793 = vadd.f32 0.0, %v3792
    %v3794 = vpop.f32.mrb[0].mxu0
    %3795 = vmatprep.mubr.bf16.mxu0 0
    %3796 = vmatmul.mubr.bf16.gmra.mrb[0].mxu0 %v1104
    %v3797 = vpop.f32.mrb[0].mxu0
    %v3798 = vadd.f32 0.0, %v3797
    %v3799 = vpop.f32.mrb[0].mxu0
    %v3800 = vpop.f32.mrb[0].mxu0
    %v3801 = vadd.f32 0.0, %v3800
    %v3802 = vpop.f32.mrb[0].mxu0
    %3803 = vmatprep.mubr.bf16.mxu0 0
    %3804 = vmatmul.mubr.bf16.gmra.mrb[0].mxu0 %v1107
    %v3805 = vpop.f32.mrb[0].mxu0
    %v3806 = vadd.f32 0.0, %v3805
    %v3807 = vpop.f32.mrb[0].mxu0
    %v3808 = vpop.f32.mrb[0].mxu0
    %v3809 = vadd.f32 0.0, %v3808
    %v3810 = vpop.f32.mrb[0].mxu0
    %3811 = vmatprep.mubr.bf16.mxu0 0
    %3812 = vmatmul.mubr.bf16.gmra.mrb[0].mxu0 %v1110
    %v3813 = vpop.f32.mrb[0].mxu0
    %v3814 = vadd.f32 0.0, %v3813
    %v3815 = vpop.f32.mrb[0].mxu0
    %v3816 = vpop.f32.mrb[0].mxu0
    %v3817 = vadd.f32 0.0, %v3816
    %v3818 = vpop.f32.mrb[0].mxu0
    %3819 = vmatprep.mubr.bf16.mxu0 0
    %3820 = vmatmul.mubr.bf16.gmra.mrb[0].mxu0 %v1113
    %v3821 = vpop.f32.mrb[0].mxu0
    %v3822 = vadd.f32 0.0, %v3821
    %v3823 = vpop.f32.mrb[0].mxu0
    %v3824 = vpop.f32.mrb[0].mxu0
    %v3825 = vadd.f32 0.0, %v3824
    %v3826 = vpop.f32.mrb[0].mxu0
    %3827 = vdwg.mxu0
    %v3828 = vadd.f32 %v3690, %v3766
    %v3829 = vadd.f32 %v3691, %v3769
    %v3830 = vadd.f32 %v3692, %v3774
    %v3831 = vadd.f32 %v3693, %v3777
    %v3832 = vadd.f32 %v3694, %v3782
    %v3833 = vadd.f32 %v3695, %v3785
    %v3834 = vadd.f32 %v3696, %v3790
    %v3835 = vadd.f32 %v3697, %v3793
    %v3836 = vadd.f32 %v3698, %v3798
    %v3837 = vadd.f32 %v3699, %v3801
    %v3838 = vadd.f32 %v3700, %v3806
    %v3839 = vadd.f32 %v3701, %v3809
    %v3840 = vadd.f32 %v3702, %v3814
    %v3841 = vadd.f32 %v3703, %v3817
    %v3842 = vadd.f32 %v3704, %v3822
    %v3843 = vadd.f32 %v3705, %v3825
    %s3844 = scalar_lea.vmem %s1, 552
    %v3845 = vld [vmem:[%s3844] sm:$0xf]
    %v3846 = vld [vmem:[%s3844 + $0x4] sm:$0xf]
    %v3847 = vld [vmem:[%s3844 + $0x8] sm:$0xf]
    %v3848 = vld [vmem:[%s3844 + $0xc] sm:$0xf]
    %v3849 = vld [vmem:[%s3844 + $0x10] sm:$0xf]
    %v3850 = vld [vmem:[%s3844 + $0x14] sm:$0xf]
    %v3857 = vunpack.c.l.b16 %v3845
    %v3858 = vunpack.c.l.b16 %v3846
    %v3859 = vunpack.c.l.b16 %v3847
    %v3860 = vunpack.c.l.b16 %v3848
    %v3861 = vunpack.c.l.b16 %v3849
    %v3862 = vunpack.c.l.b16 %v3850
    %v3863 = vpack.c.b16 %v3858, %v3857
    %v3864 = vpack.c.b16 %v3860, %v3859
    %v3865 = vpack.c.b16 %v3862, %v3861
    %3869 = vmatprep.subr.bf16.mxu0 0
    %3870 = vmatpush1.bf16.msra.mxu0 %v3863
    %3871 = vmatprep.subr.bf16.mxu0 0
    %3872 = vmatpush1.bf16.msra.mxu0 %v3864
    %3873 = vmatprep.subr.bf16.mxu0 0
    %3874 = vmatpush1.bf16.msra.mxu0 %v3865
    %3875 = vmatprep.subr.bf16.mxu0 0
    %3876 = vmatpush1.bf16.msra.mxu0 0
    %3877 = vmatprep.subr.bf16.mxu0 0
    %3878 = vmatpush1.bf16.msra.mxu0 0
    %3879 = vmatprep.subr.bf16.mxu0 0
    %3880 = vmatpush1.bf16.msra.mxu0 0
    %3881 = vmatprep.subr.bf16.mxu0 0
    %3882 = vmatpush1.bf16.msra.mxu0 0
    %3883 = vmatprep.subr.bf16.mxu0 0
    %3884 = vmatpush1.bf16.msra.mxu0 0
    %3885 = vmatprep.subr.bf16.mxu0 0
    %3886 = vmatpush1.bf16.msra.mxu0 0
    %3887 = vmatprep.subr.bf16.mxu0 0
    %3888 = vmatpush1.bf16.msra.mxu0 0
    %3889 = vmatprep.subr.bf16.mxu0 0
    %3890 = vmatpush1.bf16.msra.mxu0 0
    %3891 = vmatprep.subr.bf16.mxu0 0
    %3892 = vmatpush1.bf16.msra.mxu0 0
    %3893 = vmatprep.subr.bf16.mxu0 0
    %3894 = vmatpush1.bf16.msra.mxu0 0
    %3895 = vmatprep.subr.bf16.mxu0 0
    %3896 = vmatpush1.bf16.msra.mxu0 0
    %3897 = vmatprep.subr.bf16.mxu0 0
    %3898 = vmatpush1.bf16.msra.mxu0 0
    %3899 = vmatprep.subr.bf16.mxu0 0
    %3900 = vmatpush1.bf16.msra.mxu0 0
    %3901 = vmatprep.mubr.bf16.mxu0 0
    %3902 = vmatmul.mubr.bf16.gmra.mrb[0].mxu0 %v1270
    %v3903 = vpop.f32.mrb[0].mxu0
    %v3904 = vadd.f32 0.0, %v3903
    %v3905 = vpop.f32.mrb[0].mxu0
    %v3906 = vpop.f32.mrb[0].mxu0
    %v3907 = vadd.f32 0.0, %v3906
    %v3908 = vpop.f32.mrb[0].mxu0
    %3909 = vmatprep.mubr.bf16.mxu0 0
    %3910 = vmatmul.mubr.bf16.gmra.mrb[0].mxu0 %v1273
    %v3911 = vpop.f32.mrb[0].mxu0
    %v3912 = vadd.f32 0.0, %v3911
    %v3913 = vpop.f32.mrb[0].mxu0
    %v3914 = vpop.f32.mrb[0].mxu0
    %v3915 = vadd.f32 0.0, %v3914
    %v3916 = vpop.f32.mrb[0].mxu0
    %3917 = vmatprep.mubr.bf16.mxu0 0
    %3918 = vmatmul.mubr.bf16.gmra.mrb[0].mxu0 %v1276
    %v3919 = vpop.f32.mrb[0].mxu0
    %v3920 = vadd.f32 0.0, %v3919
    %v3921 = vpop.f32.mrb[0].mxu0
    %v3922 = vpop.f32.mrb[0].mxu0
    %v3923 = vadd.f32 0.0, %v3922
    %v3924 = vpop.f32.mrb[0].mxu0
    %3925 = vmatprep.mubr.bf16.mxu0 0
    %3926 = vmatmul.mubr.bf16.gmra.mrb[0].mxu0 %v1279
    %v3927 = vpop.f32.mrb[0].mxu0
    %v3928 = vadd.f32 0.0, %v3927
    %v3929 = vpop.f32.mrb[0].mxu0
    %v3930 = vpop.f32.mrb[0].mxu0
    %v3931 = vadd.f32 0.0, %v3930
    %v3932 = vpop.f32.mrb[0].mxu0
    %3933 = vmatprep.mubr.bf16.mxu0 0
    %3934 = vmatmul.mubr.bf16.gmra.mrb[0].mxu0 %v1282
    %v3935 = vpop.f32.mrb[0].mxu0
    %v3936 = vadd.f32 0.0, %v3935
    %v3937 = vpop.f32.mrb[0].mxu0
    %v3938 = vpop.f32.mrb[0].mxu0
    %v3939 = vadd.f32 0.0, %v3938
    %v3940 = vpop.f32.mrb[0].mxu0
    %3941 = vmatprep.mubr.bf16.mxu0 0
    %3942 = vmatmul.mubr.bf16.gmra.mrb[0].mxu0 %v1285
    %v3943 = vpop.f32.mrb[0].mxu0
    %v3944 = vadd.f32 0.0, %v3943
    %v3945 = vpop.f32.mrb[0].mxu0
    %v3946 = vpop.f32.mrb[0].mxu0
    %v3947 = vadd.f32 0.0, %v3946
    %v3948 = vpop.f32.mrb[0].mxu0
    %3949 = vmatprep.mubr.bf16.mxu0 0
    %3950 = vmatmul.mubr.bf16.gmra.mrb[0].mxu0 %v1288
    %v3951 = vpop.f32.mrb[0].mxu0
    %v3952 = vadd.f32 0.0, %v3951
    %v3953 = vpop.f32.mrb[0].mxu0
    %v3954 = vpop.f32.mrb[0].mxu0
    %v3955 = vadd.f32 0.0, %v3954
    %v3956 = vpop.f32.mrb[0].mxu0
    %3957 = vmatprep.mubr.bf16.mxu0 0
    %3958 = vmatmul.mubr.bf16.gmra.mrb[0].mxu0 %v1291
    %v3959 = vpop.f32.mrb[0].mxu0
    %v3960 = vadd.f32 0.0, %v3959
    %v3961 = vpop.f32.mrb[0].mxu0
    %v3962 = vpop.f32.mrb[0].mxu0
    %v3963 = vadd.f32 0.0, %v3962
    %v3964 = vpop.f32.mrb[0].mxu0
    %3965 = vdwg.mxu0
    %v3966 = vadd.f32 %v3828, %v3904
    %v3967 = vadd.f32 %v3829, %v3907
    %v3968 = vadd.f32 %v3830, %v3912
    %v3969 = vadd.f32 %v3831, %v3915
    %v3970 = vadd.f32 %v3832, %v3920
    %v3971 = vadd.f32 %v3833, %v3923
    %v3972 = vadd.f32 %v3834, %v3928
    %v3973 = vadd.f32 %v3835, %v3931
    %v3974 = vadd.f32 %v3836, %v3936
    %v3975 = vadd.f32 %v3837, %v3939
    %v3976 = vadd.f32 %v3838, %v3944
    %v3977 = vadd.f32 %v3839, %v3947
    %v3978 = vadd.f32 %v3840, %v3952
    %v3979 = vadd.f32 %v3841, %v3955
    %v3980 = vadd.f32 %v3842, %v3960
    %v3981 = vadd.f32 %v3843, %v3963
    %s3982 = scalar_lea.vmem %s1, 576
    %v3983 = vld [vmem:[%s3982] sm:$0xf]
    %v3984 = vld [vmem:[%s3982 + $0x4] sm:$0xf]
    %v3985 = vld [vmem:[%s3982 + $0x8] sm:$0xf]
    %v3986 = vld [vmem:[%s3982 + $0xc] sm:$0xf]
    %v3987 = vld [vmem:[%s3982 + $0x10] sm:$0xf]
    %v3988 = vld [vmem:[%s3982 + $0x14] sm:$0xf]
    %v3995 = vunpack.c.l.b16 %v3983
    %v3996 = vunpack.c.l.b16 %v3984
    %v3997 = vunpack.c.l.b16 %v3985
    %v3998 = vunpack.c.l.b16 %v3986
    %v3999 = vunpack.c.l.b16 %v3987
    %v4000 = vunpack.c.l.b16 %v3988
    %v4001 = vpack.c.b16 %v3996, %v3995
    %v4002 = vpack.c.b16 %v3998, %v3997
    %v4003 = vpack.c.b16 %v4000, %v3999
    %4007 = vmatprep.subr.bf16.mxu0 0
    %4008 = vmatpush1.bf16.msra.mxu0 %v4001
    %4009 = vmatprep.subr.bf16.mxu0 0
    %4010 = vmatpush1.bf16.msra.mxu0 %v4002
    %4011 = vmatprep.subr.bf16.mxu0 0
    %4012 = vmatpush1.bf16.msra.mxu0 %v4003
    %4013 = vmatprep.subr.bf16.mxu0 0
    %4014 = vmatpush1.bf16.msra.mxu0 0
    %4015 = vmatprep.subr.bf16.mxu0 0
    %4016 = vmatpush1.bf16.msra.mxu0 0
    %4017 = vmatprep.subr.bf16.mxu0 0
    %4018 = vmatpush1.bf16.msra.mxu0 0
    %4019 = vmatprep.subr.bf16.mxu0 0
    %4020 = vmatpush1.bf16.msra.mxu0 0
    %4021 = vmatprep.subr.bf16.mxu0 0
    %4022 = vmatpush1.bf16.msra.mxu0 0
    %4023 = vmatprep.subr.bf16.mxu0 0
    %4024 = vmatpush1.bf16.msra.mxu0 0
    %4025 = vmatprep.subr.bf16.mxu0 0
    %4026 = vmatpush1.bf16.msra.mxu0 0
    %4027 = vmatprep.subr.bf16.mxu0 0
    %4028 = vmatpush1.bf16.msra.mxu0 0
    %4029 = vmatprep.subr.bf16.mxu0 0
    %4030 = vmatpush1.bf16.msra.mxu0 0
    %4031 = vmatprep.subr.bf16.mxu0 0
    %4032 = vmatpush1.bf16.msra.mxu0 0
    %4033 = vmatprep.subr.bf16.mxu0 0
    %4034 = vmatpush1.bf16.msra.mxu0 0
    %4035 = vmatprep.subr.bf16.mxu0 0
    %4036 = vmatpush1.bf16.msra.mxu0 0
    %4037 = vmatprep.subr.bf16.mxu0 0
    %4038 = vmatpush1.bf16.msra.mxu0 0
    %4039 = vmatprep.mubr.bf16.mxu0 0
    %4040 = vmatmul.mubr.bf16.gmra.mrb[0].mxu0 %v524
    %v4041 = vpop.f32.mrb[0].mxu0
    %v4042 = vadd.f32 0.0, %v4041
    %v4043 = vpop.f32.mrb[0].mxu0
    %v4044 = vpop.f32.mrb[0].mxu0
    %v4045 = vadd.f32 0.0, %v4044
    %v4046 = vpop.f32.mrb[0].mxu0
    %4047 = vmatprep.mubr.bf16.mxu0 0
    %4048 = vmatmul.mubr.bf16.gmra.mrb[0].mxu0 %v527
    %v4049 = vpop.f32.mrb[0].mxu0
    %v4050 = vadd.f32 0.0, %v4049
    %v4051 = vpop.f32.mrb[0].mxu0
    %v4052 = vpop.f32.mrb[0].mxu0
    %v4053 = vadd.f32 0.0, %v4052
    %v4054 = vpop.f32.mrb[0].mxu0
    %4055 = vmatprep.mubr.bf16.mxu0 0
    %4056 = vmatmul.mubr.bf16.gmra.mrb[0].mxu0 %v530
    %v4057 = vpop.f32.mrb[0].mxu0
    %v4058 = vadd.f32 0.0, %v4057
    %v4059 = vpop.f32.mrb[0].mxu0
    %v4060 = vpop.f32.mrb[0].mxu0
    %v4061 = vadd.f32 0.0, %v4060
    %v4062 = vpop.f32.mrb[0].mxu0
    %4063 = vmatprep.mubr.bf16.mxu0 0
    %4064 = vmatmul.mubr.bf16.gmra.mrb[0].mxu0 %v1434
    %v4065 = vpop.f32.mrb[0].mxu0
    %v4066 = vadd.f32 0.0, %v4065
    %v4067 = vpop.f32.mrb[0].mxu0
    %v4068 = vpop.f32.mrb[0].mxu0
    %v4069 = vadd.f32 0.0, %v4068
    %v4070 = vpop.f32.mrb[0].mxu0
    %4071 = vmatprep.mubr.bf16.mxu0 0
    %4072 = vmatmul.mubr.bf16.gmra.mrb[0].mxu0 %v536
    %v4073 = vpop.f32.mrb[0].mxu0
    %v4074 = vadd.f32 0.0, %v4073
    %v4075 = vpop.f32.mrb[0].mxu0
    %v4076 = vpop.f32.mrb[0].mxu0
    %v4077 = vadd.f32 0.0, %v4076
    %v4078 = vpop.f32.mrb[0].mxu0
    %4079 = vmatprep.mubr.bf16.mxu0 0
    %4080 = vmatmul.mubr.bf16.gmra.mrb[0].mxu0 %v539
    %v4081 = vpop.f32.mrb[0].mxu0
    %v4082 = vadd.f32 0.0, %v4081
    %v4083 = vpop.f32.mrb[0].mxu0
    %v4084 = vpop.f32.mrb[0].mxu0
    %v4085 = vadd.f32 0.0, %v4084
    %v4086 = vpop.f32.mrb[0].mxu0
    %4087 = vmatprep.mubr.bf16.mxu0 0
    %4088 = vmatmul.mubr.bf16.gmra.mrb[0].mxu0 %v542
    %v4089 = vpop.f32.mrb[0].mxu0
    %v4090 = vadd.f32 0.0, %v4089
    %v4091 = vpop.f32.mrb[0].mxu0
    %v4092 = vpop.f32.mrb[0].mxu0
    %v4093 = vadd.f32 0.0, %v4092
    %v4094 = vpop.f32.mrb[0].mxu0
    %4095 = vmatprep.mubr.bf16.mxu0 0
    %4096 = vmatmul.mubr.bf16.gmra.mrb[0].mxu0 %v1437
    %v4097 = vpop.f32.mrb[0].mxu0
    %v4098 = vadd.f32 0.0, %v4097
    %v4099 = vpop.f32.mrb[0].mxu0
    %v4100 = vpop.f32.mrb[0].mxu0
    %v4101 = vadd.f32 0.0, %v4100
    %v4102 = vpop.f32.mrb[0].mxu0
    %4103 = vdwg.mxu0
    %v4104 = vadd.f32 %v3966, %v4042
    %v4105 = vadd.f32 %v3967, %v4045
    %v4106 = vadd.f32 %v3968, %v4050
    %v4107 = vadd.f32 %v3969, %v4053
    %v4108 = vadd.f32 %v3970, %v4058
    %v4109 = vadd.f32 %v3971, %v4061
    %v4110 = vadd.f32 %v3972, %v4066
    %v4111 = vadd.f32 %v3973, %v4069
    %v4112 = vadd.f32 %v3974, %v4074
    %v4113 = vadd.f32 %v3975, %v4077
    %v4114 = vadd.f32 %v3976, %v4082
    %v4115 = vadd.f32 %v3977, %v4085
    %v4116 = vadd.f32 %v3978, %v4090
    %v4117 = vadd.f32 %v3979, %v4093
    %v4118 = vadd.f32 %v3980, %v4098
    %v4119 = vadd.f32 %v3981, %v4101
    %s4120 = scalar_lea.vmem %s1, 600
    %v4121 = vld [vmem:[%s4120] sm:$0xf]
    %v4122 = vld [vmem:[%s4120 + $0x4] sm:$0xf]
    %v4123 = vld [vmem:[%s4120 + $0x8] sm:$0xf]
    %v4124 = vld [vmem:[%s4120 + $0xc] sm:$0xf]
    %v4125 = vld [vmem:[%s4120 + $0x10] sm:$0xf]
    %v4126 = vld [vmem:[%s4120 + $0x14] sm:$0xf]
    %v4133 = vunpack.c.l.b16 %v4121
    %v4134 = vunpack.c.l.b16 %v4122
    %v4135 = vunpack.c.l.b16 %v4123
    %v4136 = vunpack.c.l.b16 %v4124
    %v4137 = vunpack.c.l.b16 %v4125
    %v4138 = vunpack.c.l.b16 %v4126
    %v4139 = vpack.c.b16 %v4134, %v4133
    %v4140 = vpack.c.b16 %v4136, %v4135
    %v4141 = vpack.c.b16 %v4138, %v4137
    %4145 = vmatprep.subr.bf16.mxu0 0
    %4146 = vmatpush1.bf16.msra.mxu0 %v4139
    %4147 = vmatprep.subr.bf16.mxu0 0
    %4148 = vmatpush1.bf16.msra.mxu0 %v4140
    %4149 = vmatprep.subr.bf16.mxu0 0
    %4150 = vmatpush1.bf16.msra.mxu0 %v4141
    %4151 = vmatprep.subr.bf16.mxu0 0
    %4152 = vmatpush1.bf16.msra.mxu0 0
    %4153 = vmatprep.subr.bf16.mxu0 0
    %4154 = vmatpush1.bf16.msra.mxu0 0
    %4155 = vmatprep.subr.bf16.mxu0 0
    %4156 = vmatpush1.bf16.msra.mxu0 0
    %4157 = vmatprep.subr.bf16.mxu0 0
    %4158 = vmatpush1.bf16.msra.mxu0 0
    %4159 = vmatprep.subr.bf16.mxu0 0
    %4160 = vmatpush1.bf16.msra.mxu0 0
    %4161 = vmatprep.subr.bf16.mxu0 0
    %4162 = vmatpush1.bf16.msra.mxu0 0
    %4163 = vmatprep.subr.bf16.mxu0 0
    %4164 = vmatpush1.bf16.msra.mxu0 0
    %4165 = vmatprep.subr.bf16.mxu0 0
    %4166 = vmatpush1.bf16.msra.mxu0 0
    %4167 = vmatprep.subr.bf16.mxu0 0
    %4168 = vmatpush1.bf16.msra.mxu0 0
    %4169 = vmatprep.subr.bf16.mxu0 0
    %4170 = vmatpush1.bf16.msra.mxu0 0
    %4171 = vmatprep.subr.bf16.mxu0 0
    %4172 = vmatpush1.bf16.msra.mxu0 0
    %4173 = vmatprep.subr.bf16.mxu0 0
    %4174 = vmatpush1.bf16.msra.mxu0 0
    %4175 = vmatprep.subr.bf16.mxu0 0
    %4176 = vmatpush1.bf16.msra.mxu0 0
    %4177 = vmatprep.mubr.bf16.mxu0 0
    %4178 = vmatmul.mubr.bf16.gmra.mrb[0].mxu0 %v385
    %v4179 = vpop.f32.mrb[0].mxu0
    %v4180 = vadd.f32 0.0, %v4179
    %v4181 = vpop.f32.mrb[0].mxu0
    %v4182 = vpop.f32.mrb[0].mxu0
    %v4183 = vadd.f32 0.0, %v4182
    %v4184 = vpop.f32.mrb[0].mxu0
    %4185 = vmatprep.mubr.bf16.mxu0 0
    %4186 = vmatmul.mubr.bf16.gmra.mrb[0].mxu0 %v388
    %v4187 = vpop.f32.mrb[0].mxu0
    %v4188 = vadd.f32 0.0, %v4187
    %v4189 = vpop.f32.mrb[0].mxu0
    %v4190 = vpop.f32.mrb[0].mxu0
    %v4191 = vadd.f32 0.0, %v4190
    %v4192 = vpop.f32.mrb[0].mxu0
    %4193 = vmatprep.mubr.bf16.mxu0 0
    %4194 = vmatmul.mubr.bf16.gmra.mrb[0].mxu0 %v391
    %v4195 = vpop.f32.mrb[0].mxu0
    %v4196 = vadd.f32 0.0, %v4195
    %v4197 = vpop.f32.mrb[0].mxu0
    %v4198 = vpop.f32.mrb[0].mxu0
    %v4199 = vadd.f32 0.0, %v4198
    %v4200 = vpop.f32.mrb[0].mxu0
    %4201 = vmatprep.mubr.bf16.mxu0 0
    %4202 = vmatmul.mubr.bf16.gmra.mrb[0].mxu0 %v1592
    %v4203 = vpop.f32.mrb[0].mxu0
    %v4204 = vadd.f32 0.0, %v4203
    %v4205 = vpop.f32.mrb[0].mxu0
    %v4206 = vpop.f32.mrb[0].mxu0
    %v4207 = vadd.f32 0.0, %v4206
    %v4208 = vpop.f32.mrb[0].mxu0
    %4209 = vmatprep.mubr.bf16.mxu0 0
    %4210 = vmatmul.mubr.bf16.gmra.mrb[0].mxu0 %v397
    %v4211 = vpop.f32.mrb[0].mxu0
    %v4212 = vadd.f32 0.0, %v4211
    %v4213 = vpop.f32.mrb[0].mxu0
    %v4214 = vpop.f32.mrb[0].mxu0
    %v4215 = vadd.f32 0.0, %v4214
    %v4216 = vpop.f32.mrb[0].mxu0
    %4217 = vmatprep.mubr.bf16.mxu0 0
    %4218 = vmatmul.mubr.bf16.gmra.mrb[0].mxu0 %v400
    %v4219 = vpop.f32.mrb[0].mxu0
    %v4220 = vadd.f32 0.0, %v4219
    %v4221 = vpop.f32.mrb[0].mxu0
    %v4222 = vpop.f32.mrb[0].mxu0
    %v4223 = vadd.f32 0.0, %v4222
    %v4224 = vpop.f32.mrb[0].mxu0
    %4225 = vmatprep.mubr.bf16.mxu0 0
    %4226 = vmatmul.mubr.bf16.gmra.mrb[0].mxu0 %v403
    %v4227 = vpop.f32.mrb[0].mxu0
    %v4228 = vadd.f32 0.0, %v4227
    %v4229 = vpop.f32.mrb[0].mxu0
    %v4230 = vpop.f32.mrb[0].mxu0
    %v4231 = vadd.f32 0.0, %v4230
    %v4232 = vpop.f32.mrb[0].mxu0
    %4233 = vmatprep.mubr.bf16.mxu0 0
    %4234 = vmatmul.mubr.bf16.gmra.mrb[0].mxu0 %v1595
    %v4235 = vpop.f32.mrb[0].mxu0
    %v4236 = vadd.f32 0.0, %v4235
    %v4237 = vpop.f32.mrb[0].mxu0
    %v4238 = vpop.f32.mrb[0].mxu0
    %v4239 = vadd.f32 0.0, %v4238
    %v4240 = vpop.f32.mrb[0].mxu0
    %4241 = vdwg.mxu0
    %v4242 = vadd.f32 %v4104, %v4180
    %v4243 = vadd.f32 %v4105, %v4183
    %v4244 = vadd.f32 %v4106, %v4188
    %v4245 = vadd.f32 %v4107, %v4191
    %v4246 = vadd.f32 %v4108, %v4196
    %v4247 = vadd.f32 %v4109, %v4199
    %v4248 = vadd.f32 %v4110, %v4204
    %v4249 = vadd.f32 %v4111, %v4207
    %v4250 = vadd.f32 %v4112, %v4212
    %v4251 = vadd.f32 %v4113, %v4215
    %v4252 = vadd.f32 %v4114, %v4220
    %v4253 = vadd.f32 %v4115, %v4223
    %v4254 = vadd.f32 %v4116, %v4228
    %v4255 = vadd.f32 %v4117, %v4231
    %v4256 = vadd.f32 %v4118, %v4236
    %v4257 = vadd.f32 %v4119, %v4239
    %s4258 = scalar_lea.vmem %s1, 624
    %v4259 = vld [vmem:[%s4258] sm:$0xf]
    %v4260 = vld [vmem:[%s4258 + $0x4] sm:$0xf]
    %v4261 = vld [vmem:[%s4258 + $0x8] sm:$0xf]
    %v4262 = vld [vmem:[%s4258 + $0xc] sm:$0xf]
    %v4263 = vld [vmem:[%s4258 + $0x10] sm:$0xf]
    %v4264 = vld [vmem:[%s4258 + $0x14] sm:$0xf]
    %v4271 = vunpack.c.l.b16 %v4259
    %v4272 = vunpack.c.l.b16 %v4260
    %v4273 = vunpack.c.l.b16 %v4261
    %v4274 = vunpack.c.l.b16 %v4262
    %v4275 = vunpack.c.l.b16 %v4263
    %v4276 = vunpack.c.l.b16 %v4264
    %v4277 = vpack.c.b16 %v4272, %v4271
    %v4278 = vpack.c.b16 %v4274, %v4273
    %v4279 = vpack.c.b16 %v4276, %v4275
    %4283 = vmatprep.subr.bf16.mxu0 0
    %4284 = vmatpush1.bf16.msra.mxu0 %v4277
    %4285 = vmatprep.subr.bf16.mxu0 0
    %4286 = vmatpush1.bf16.msra.mxu0 %v4278
    %4287 = vmatprep.subr.bf16.mxu0 0
    %4288 = vmatpush1.bf16.msra.mxu0 %v4279
    %4289 = vmatprep.subr.bf16.mxu0 0
    %4290 = vmatpush1.bf16.msra.mxu0 0
    %4291 = vmatprep.subr.bf16.mxu0 0
    %4292 = vmatpush1.bf16.msra.mxu0 0
    %4293 = vmatprep.subr.bf16.mxu0 0
    %4294 = vmatpush1.bf16.msra.mxu0 0
    %4295 = vmatprep.subr.bf16.mxu0 0
    %4296 = vmatpush1.bf16.msra.mxu0 0
    %4297 = vmatprep.subr.bf16.mxu0 0
    %4298 = vmatpush1.bf16.msra.mxu0 0
    %4299 = vmatprep.subr.bf16.mxu0 0
    %4300 = vmatpush1.bf16.msra.mxu0 0
    %4301 = vmatprep.subr.bf16.mxu0 0
    %4302 = vmatpush1.bf16.msra.mxu0 0
    %4303 = vmatprep.subr.bf16.mxu0 0
    %4304 = vmatpush1.bf16.msra.mxu0 0
    %4305 = vmatprep.subr.bf16.mxu0 0
    %4306 = vmatpush1.bf16.msra.mxu0 0
    %4307 = vmatprep.subr.bf16.mxu0 0
    %4308 = vmatpush1.bf16.msra.mxu0 0
    %4309 = vmatprep.subr.bf16.mxu0 0
    %4310 = vmatpush1.bf16.msra.mxu0 0
    %4311 = vmatprep.subr.bf16.mxu0 0
    %4312 = vmatpush1.bf16.msra.mxu0 0
    %4313 = vmatprep.subr.bf16.mxu0 0
    %4314 = vmatpush1.bf16.msra.mxu0 0
    %4315 = vmatprep.mubr.bf16.mxu0 0
    %4316 = vmatmul.mubr.bf16.gmra.mrb[0].mxu0 %v743
    %v4317 = vpop.f32.mrb[0].mxu0
    %v4318 = vadd.f32 0.0, %v4317
    %v4319 = vpop.f32.mrb[0].mxu0
    %v4320 = vpop.f32.mrb[0].mxu0
    %v4321 = vadd.f32 0.0, %v4320
    %v4322 = vpop.f32.mrb[0].mxu0
    %4323 = vmatprep.mubr.bf16.mxu0 0
    %4324 = vmatmul.mubr.bf16.gmra.mrb[0].mxu0 %v746
    %v4325 = vpop.f32.mrb[0].mxu0
    %v4326 = vadd.f32 0.0, %v4325
    %v4327 = vpop.f32.mrb[0].mxu0
    %v4328 = vpop.f32.mrb[0].mxu0
    %v4329 = vadd.f32 0.0, %v4328
    %v4330 = vpop.f32.mrb[0].mxu0
    %4331 = vmatprep.mubr.bf16.mxu0 0
    %4332 = vmatmul.mubr.bf16.gmra.mrb[0].mxu0 %v749
    %v4333 = vpop.f32.mrb[0].mxu0
    %v4334 = vadd.f32 0.0, %v4333
    %v4335 = vpop.f32.mrb[0].mxu0
    %v4336 = vpop.f32.mrb[0].mxu0
    %v4337 = vadd.f32 0.0, %v4336
    %v4338 = vpop.f32.mrb[0].mxu0
    %4339 = vmatprep.mubr.bf16.mxu0 0
    %4340 = vmatmul.mubr.bf16.gmra.mrb[0].mxu0 %v1746
    %v4341 = vpop.f32.mrb[0].mxu0
    %v4342 = vadd.f32 0.0, %v4341
    %v4343 = vpop.f32.mrb[0].mxu0
    %v4344 = vpop.f32.mrb[0].mxu0
    %v4345 = vadd.f32 0.0, %v4344
    %v4346 = vpop.f32.mrb[0].mxu0
    %4347 = vmatprep.mubr.bf16.mxu0 0
    %4348 = vmatmul.mubr.bf16.gmra.mrb[0].mxu0 %v755
    %v4349 = vpop.f32.mrb[0].mxu0
    %v4350 = vadd.f32 0.0, %v4349
    %v4351 = vpop.f32.mrb[0].mxu0
    %v4352 = vpop.f32.mrb[0].mxu0
    %v4353 = vadd.f32 0.0, %v4352
    %v4354 = vpop.f32.mrb[0].mxu0
    %4355 = vmatprep.mubr.bf16.mxu0 0
    %4356 = vmatmul.mubr.bf16.gmra.mrb[0].mxu0 %v758
    %v4357 = vpop.f32.mrb[0].mxu0
    %v4358 = vadd.f32 0.0, %v4357
    %v4359 = vpop.f32.mrb[0].mxu0
    %v4360 = vpop.f32.mrb[0].mxu0
    %v4361 = vadd.f32 0.0, %v4360
    %v4362 = vpop.f32.mrb[0].mxu0
    %4363 = vmatprep.mubr.bf16.mxu0 0
    %4364 = vmatmul.mubr.bf16.gmra.mrb[0].mxu0 %v761
    %v4365 = vpop.f32.mrb[0].mxu0
    %v4366 = vadd.f32 0.0, %v4365
    %v4367 = vpop.f32.mrb[0].mxu0
    %v4368 = vpop.f32.mrb[0].mxu0
    %v4369 = vadd.f32 0.0, %v4368
    %v4370 = vpop.f32.mrb[0].mxu0
    %4371 = vmatprep.mubr.bf16.mxu0 0
    %4372 = vmatmul.mubr.bf16.gmra.mrb[0].mxu0 %v1749
    %v4373 = vpop.f32.mrb[0].mxu0
    %v4374 = vadd.f32 0.0, %v4373
    %v4375 = vpop.f32.mrb[0].mxu0
    %v4376 = vpop.f32.mrb[0].mxu0
    %v4377 = vadd.f32 0.0, %v4376
    %v4378 = vpop.f32.mrb[0].mxu0
    %4379 = vdwg.mxu0
    %v4380 = vadd.f32 %v4242, %v4318
    %v4381 = vadd.f32 %v4243, %v4321
    %v4382 = vadd.f32 %v4244, %v4326
    %v4383 = vadd.f32 %v4245, %v4329
    %v4384 = vadd.f32 %v4246, %v4334
    %v4385 = vadd.f32 %v4247, %v4337
    %v4386 = vadd.f32 %v4248, %v4342
    %v4387 = vadd.f32 %v4249, %v4345
    %v4388 = vadd.f32 %v4250, %v4350
    %v4389 = vadd.f32 %v4251, %v4353
    %v4390 = vadd.f32 %v4252, %v4358
    %v4391 = vadd.f32 %v4253, %v4361
    %v4392 = vadd.f32 %v4254, %v4366
    %v4393 = vadd.f32 %v4255, %v4369
    %v4394 = vadd.f32 %v4256, %v4374
    %v4395 = vadd.f32 %v4257, %v4377
    %v4396 = vld [vmem:[%s2] sm:$0x1]
    %v4398 = vlaneseq
    %v4399 = vshrl.u32 %v4398, 7
    %v4400 = vsub.s32 0, %v4399
    %v4401 = vrot.slane %v4396, %v4400
    %v4403 = vadd.f32 %v4380, %v4401
    %v4404 = vadd.f32 %v4381, %v4401
    %v4405 = vadd.f32 %v4382, %v4401
    %v4406 = vadd.f32 %v4383, %v4401
    %v4407 = vadd.f32 %v4384, %v4401
    %v4408 = vadd.f32 %v4385, %v4401
    %v4409 = vadd.f32 %v4386, %v4401
    %v4410 = vadd.f32 %v4387, %v4401
    %v4411 = vadd.f32 %v4388, %v4401
    %v4412 = vadd.f32 %v4389, %v4401
    %v4413 = vadd.f32 %v4390, %v4401
    %v4414 = vadd.f32 %v4391, %v4401
    %v4415 = vadd.f32 %v4392, %v4401
    %v4416 = vadd.f32 %v4393, %v4401
    %v4417 = vadd.f32 %v4394, %v4401
    %v4418 = vadd.f32 %v4395, %v4401
    %v4419 = vmax.f32 %v4403, 0.0
    %v4420 = vmax.f32 %v4404, 0.0
    %v4421 = vmax.f32 %v4405, 0.0
    %v4422 = vmax.f32 %v4406, 0.0
    %v4423 = vmax.f32 %v4407, 0.0
    %v4424 = vmax.f32 %v4408, 0.0
    %v4425 = vmax.f32 %v4409, 0.0
    %v4426 = vmax.f32 %v4410, 0.0
    %v4427 = vmax.f32 %v4411, 0.0
    %v4428 = vmax.f32 %v4412, 0.0
    %v4429 = vmax.f32 %v4413, 0.0
    %v4430 = vmax.f32 %v4414, 0.0
    %v4431 = vmax.f32 %v4415, 0.0
    %v4432 = vmax.f32 %v4416, 0.0
    %v4433 = vmax.f32 %v4417, 0.0
    %v4434 = vmax.f32 %v4418, 0.0
    %s4435 = scalar_lea.vmem [#allocation2], 592
    %4436 = vst [vmem:[%s4435 + $0x1] sm:$0xff] %v4419
    %4437 = vst [vmem:[%s4435 + $0x11] sm:$0xff] %v4420
    %4438 = vst [vmem:[%s4435 + $0x21] sm:$0xff] %v4421
    %4439 = vst [vmem:[%s4435 + $0x31] sm:$0xff] %v4422
    %4440 = vst [vmem:[%s4435 + $0x41] sm:$0xff] %v4423
    %4441 = vst [vmem:[%s4435 + $0x51] sm:$0xff] %v4424
    %4442 = vst [vmem:[%s4435 + $0x61] sm:$0xff] %v4425
    %4443 = vst [vmem:[%s4435 + $0x71] sm:$0xff] %v4426
    %4444 = vst [vmem:[%s4435 + $0x91] sm:$0xff] %v4427
    %4445 = vst [vmem:[%s4435 + $0xa1] sm:$0xff] %v4428
    %4446 = vst [vmem:[%s4435 + $0xb1] sm:$0xff] %v4429
    %4447 = vst [vmem:[%s4435 + $0xc1] sm:$0xff] %v4430
    %4448 = vst [vmem:[%s4435 + $0xd1] sm:$0xff] %v4431
    %4449 = vst [vmem:[%s4435 + $0xe1] sm:$0xff] %v4432
    %4450 = vst [vmem:[%s4435 + $0xf1] sm:$0xff] %v4433
    %4451 = vst [vmem:[%s4435 + $0x101] sm:$0xff] %v4434
    %s4452 = scalar_lea.vmem %s1, 648
    %v4453 = vld [vmem:[%s4452] sm:$0xf]
    %v4454 = vld [vmem:[%s4452 + $0x4] sm:$0xf]
    %v4455 = vld [vmem:[%s4452 + $0x8] sm:$0xf]
    %v4456 = vld [vmem:[%s4452 + $0xc] sm:$0xf]
    %v4457 = vld [vmem:[%s4452 + $0x10] sm:$0xf]
    %v4458 = vld [vmem:[%s4452 + $0x14] sm:$0xf]
    %s4459 = scalar_lea.vmem %s1, 672
    %v4460 = vld [vmem:[%s4459] sm:$0xf]
    %v4461 = vld [vmem:[%s4459 + $0x4] sm:$0xf]
    %v4462 = vld [vmem:[%s4459 + $0x8] sm:$0xf]
    %v4463 = vld [vmem:[%s4459 + $0xc] sm:$0xf]
    %v4464 = vld [vmem:[%s4459 + $0x10] sm:$0xf]
    %v4465 = vld [vmem:[%s4459 + $0x14] sm:$0xf]
    %v4472 = vunpack.c.l.b16 %v4460
    %v4473 = vunpack.c.l.b16 %v4461
    %v4474 = vunpack.c.l.b16 %v4462
    %v4475 = vunpack.c.l.b16 %v4463
    %v4476 = vunpack.c.l.b16 %v4464
    %v4477 = vunpack.c.l.b16 %v4465
    %v4478 = vpack.c.b16 %v4473, %v4472
    %v4479 = vpack.c.b16 %v4475, %v4474
    %v4480 = vpack.c.b16 %v4477, %v4476
    %4484 = vmatprep.subr.bf16.mxu0 0
    %4485 = vmatpush1.bf16.msra.mxu0 %v4478
    %4486 = vmatprep.subr.bf16.mxu0 0
    %4487 = vmatpush1.bf16.msra.mxu0 %v4479
    %4488 = vmatprep.subr.bf16.mxu0 0
    %4489 = vmatpush1.bf16.msra.mxu0 %v4480
    %4490 = vmatprep.subr.bf16.mxu0 0
    %4491 = vmatpush1.bf16.msra.mxu0 0
    %4492 = vmatprep.subr.bf16.mxu0 0
    %4493 = vmatpush1.bf16.msra.mxu0 0
    %4494 = vmatprep.subr.bf16.mxu0 0
    %4495 = vmatpush1.bf16.msra.mxu0 0
    %4496 = vmatprep.subr.bf16.mxu0 0
    %4497 = vmatpush1.bf16.msra.mxu0 0
    %4498 = vmatprep.subr.bf16.mxu0 0
    %4499 = vmatpush1.bf16.msra.mxu0 0
    %4500 = vmatprep.subr.bf16.mxu0 0
    %4501 = vmatpush1.bf16.msra.mxu0 0
    %4502 = vmatprep.subr.bf16.mxu0 0
    %4503 = vmatpush1.bf16.msra.mxu0 0
    %4504 = vmatprep.subr.bf16.mxu0 0
    %4505 = vmatpush1.bf16.msra.mxu0 0
    %4506 = vmatprep.subr.bf16.mxu0 0
    %4507 = vmatpush1.bf16.msra.mxu0 0
    %4508 = vmatprep.subr.bf16.mxu0 0
    %4509 = vmatpush1.bf16.msra.mxu0 0
    %4510 = vmatprep.subr.bf16.mxu0 0
    %4511 = vmatpush1.bf16.msra.mxu0 0
    %4512 = vmatprep.subr.bf16.mxu0 0
    %4513 = vmatpush1.bf16.msra.mxu0 0
    %4514 = vmatprep.subr.bf16.mxu0 0
    %4515 = vmatpush1.bf16.msra.mxu0 0
    %4516 = vmatprep.mubr.bf16.mxu0 0
    %4517 = vmatmul.mubr.bf16.gmra.mrb[0].mxu0 %v382
    %v4518 = vpop.f32.mrb[0].mxu0
    %v4519 = vadd.f32 0.0, %v4518
    %v4520 = vpop.f32.mrb[0].mxu0
    %v4521 = vpop.f32.mrb[0].mxu0
    %v4522 = vadd.f32 0.0, %v4521
    %v4523 = vpop.f32.mrb[0].mxu0
    %4524 = vmatprep.mubr.bf16.mxu0 0
    %4525 = vmatmul.mubr.bf16.gmra.mrb[0].mxu0 %v385
    %v4526 = vpop.f32.mrb[0].mxu0
    %v4527 = vadd.f32 0.0, %v4526
    %v4528 = vpop.f32.mrb[0].mxu0
    %v4529 = vpop.f32.mrb[0].mxu0
    %v4530 = vadd.f32 0.0, %v4529
    %v4531 = vpop.f32.mrb[0].mxu0
    %4532 = vmatprep.mubr.bf16.mxu0 0
    %4533 = vmatmul.mubr.bf16.gmra.mrb[0].mxu0 %v388
    %v4534 = vpop.f32.mrb[0].mxu0
    %v4535 = vadd.f32 0.0, %v4534
    %v4536 = vpop.f32.mrb[0].mxu0
    %v4537 = vpop.f32.mrb[0].mxu0
    %v4538 = vadd.f32 0.0, %v4537
    %v4539 = vpop.f32.mrb[0].mxu0
    %4540 = vmatprep.mubr.bf16.mxu0 0
    %4541 = vmatmul.mubr.bf16.gmra.mrb[0].mxu0 %v391
    %v4542 = vpop.f32.mrb[0].mxu0
    %v4543 = vadd.f32 0.0, %v4542
    %v4544 = vpop.f32.mrb[0].mxu0
    %v4545 = vpop.f32.mrb[0].mxu0
    %v4546 = vadd.f32 0.0, %v4545
    %v4547 = vpop.f32.mrb[0].mxu0
    %4548 = vmatprep.mubr.bf16.mxu0 0
    %4549 = vmatmul.mubr.bf16.gmra.mrb[0].mxu0 %v394
    %v4550 = vpop.f32.mrb[0].mxu0
    %v4551 = vadd.f32 0.0, %v4550
    %v4552 = vpop.f32.mrb[0].mxu0
    %v4553 = vpop.f32.mrb[0].mxu0
    %v4554 = vadd.f32 0.0, %v4553
    %v4555 = vpop.f32.mrb[0].mxu0
    %4556 = vmatprep.mubr.bf16.mxu0 0
    %4557 = vmatmul.mubr.bf16.gmra.mrb[0].mxu0 %v397
    %v4558 = vpop.f32.mrb[0].mxu0
    %v4559 = vadd.f32 0.0, %v4558
    %v4560 = vpop.f32.mrb[0].mxu0
    %v4561 = vpop.f32.mrb[0].mxu0
    %v4562 = vadd.f32 0.0, %v4561
    %v4563 = vpop.f32.mrb[0].mxu0
    %4564 = vmatprep.mubr.bf16.mxu0 0
    %4565 = vmatmul.mubr.bf16.gmra.mrb[0].mxu0 %v400
    %v4566 = vpop.f32.mrb[0].mxu0
    %v4567 = vadd.f32 0.0, %v4566
    %v4568 = vpop.f32.mrb[0].mxu0
    %v4569 = vpop.f32.mrb[0].mxu0
    %v4570 = vadd.f32 0.0, %v4569
    %v4571 = vpop.f32.mrb[0].mxu0
    %4572 = vmatprep.mubr.bf16.mxu0 0
    %4573 = vmatmul.mubr.bf16.gmra.mrb[0].mxu0 %v403
    %v4574 = vpop.f32.mrb[0].mxu0
    %v4575 = vadd.f32 0.0, %v4574
    %v4576 = vpop.f32.mrb[0].mxu0
    %v4577 = vpop.f32.mrb[0].mxu0
    %v4578 = vadd.f32 0.0, %v4577
    %v4579 = vpop.f32.mrb[0].mxu0
    %4580 = vdwg.mxu0
    %v4587 = vunpack.c.l.b16 %v4453
    %v4588 = vunpack.c.l.b16 %v4454
    %v4589 = vunpack.c.l.b16 %v4455
    %v4590 = vunpack.c.l.b16 %v4456
    %v4591 = vunpack.c.l.b16 %v4457
    %v4592 = vunpack.c.l.b16 %v4458
    %v4593 = vpack.c.b16 %v4588, %v4587
    %v4594 = vpack.c.b16 %v4590, %v4589
    %v4595 = vpack.c.b16 %v4592, %v4591
    %4599 = vmatprep.subr.bf16.mxu0 0
    %4600 = vmatpush1.bf16.msra.mxu0 %v4593
    %4601 = vmatprep.subr.bf16.mxu0 0
    %4602 = vmatpush1.bf16.msra.mxu0 %v4594
    %4603 = vmatprep.subr.bf16.mxu0 0
    %4604 = vmatpush1.bf16.msra.mxu0 %v4595
    %4605 = vmatprep.subr.bf16.mxu0 0
    %4606 = vmatpush1.bf16.msra.mxu0 0
    %4607 = vmatprep.subr.bf16.mxu0 0
    %4608 = vmatpush1.bf16.msra.mxu0 0
    %4609 = vmatprep.subr.bf16.mxu0 0
    %4610 = vmatpush1.bf16.msra.mxu0 0
    %4611 = vmatprep.subr.bf16.mxu0 0
    %4612 = vmatpush1.bf16.msra.mxu0 0
    %4613 = vmatprep.subr.bf16.mxu0 0
    %4614 = vmatpush1.bf16.msra.mxu0 0
    %4615 = vmatprep.subr.bf16.mxu0 0
    %4616 = vmatpush1.bf16.msra.mxu0 0
    %4617 = vmatprep.subr.bf16.mxu0 0
    %4618 = vmatpush1.bf16.msra.mxu0 0
    %4619 = vmatprep.subr.bf16.mxu0 0
    %4620 = vmatpush1.bf16.msra.mxu0 0
    %4621 = vmatprep.subr.bf16.mxu0 0
    %4622 = vmatpush1.bf16.msra.mxu0 0
    %4623 = vmatprep.subr.bf16.mxu0 0
    %4624 = vmatpush1.bf16.msra.mxu0 0
    %4625 = vmatprep.subr.bf16.mxu0 0
    %4626 = vmatpush1.bf16.msra.mxu0 0
    %4627 = vmatprep.subr.bf16.mxu0 0
    %4628 = vmatpush1.bf16.msra.mxu0 0
    %4629 = vmatprep.subr.bf16.mxu0 0
    %4630 = vmatpush1.bf16.msra.mxu0 0
    %4631 = vmatprep.mubr.bf16.mxu0 0
    %4632 = vmatmul.mubr.bf16.gmra.mrb[0].mxu0 %v521
    %v4633 = vpop.f32.mrb[0].mxu0
    %v4634 = vadd.f32 %v4519, %v4633
    %v4635 = vpop.f32.mrb[0].mxu0
    %v4636 = vpop.f32.mrb[0].mxu0
    %v4637 = vadd.f32 %v4522, %v4636
    %v4638 = vpop.f32.mrb[0].mxu0
    %4639 = vmatprep.mubr.bf16.mxu0 0
    %4640 = vmatmul.mubr.bf16.gmra.mrb[0].mxu0 %v524
    %v4641 = vpop.f32.mrb[0].mxu0
    %v4642 = vadd.f32 %v4527, %v4641
    %v4643 = vpop.f32.mrb[0].mxu0
    %v4644 = vpop.f32.mrb[0].mxu0
    %v4645 = vadd.f32 %v4530, %v4644
    %v4646 = vpop.f32.mrb[0].mxu0
    %4647 = vmatprep.mubr.bf16.mxu0 0
    %4648 = vmatmul.mubr.bf16.gmra.mrb[0].mxu0 %v527
    %v4649 = vpop.f32.mrb[0].mxu0
    %v4650 = vadd.f32 %v4535, %v4649
    %v4651 = vpop.f32.mrb[0].mxu0
    %v4652 = vpop.f32.mrb[0].mxu0
    %v4653 = vadd.f32 %v4538, %v4652
    %v4654 = vpop.f32.mrb[0].mxu0
    %4655 = vmatprep.mubr.bf16.mxu0 0
    %4656 = vmatmul.mubr.bf16.gmra.mrb[0].mxu0 %v530
    %v4657 = vpop.f32.mrb[0].mxu0
    %v4658 = vadd.f32 %v4543, %v4657
    %v4659 = vpop.f32.mrb[0].mxu0
    %v4660 = vpop.f32.mrb[0].mxu0
    %v4661 = vadd.f32 %v4546, %v4660
    %v4662 = vpop.f32.mrb[0].mxu0
    %4663 = vmatprep.mubr.bf16.mxu0 0
    %4664 = vmatmul.mubr.bf16.gmra.mrb[0].mxu0 %v533
    %v4665 = vpop.f32.mrb[0].mxu0
    %v4666 = vadd.f32 %v4551, %v4665
    %v4667 = vpop.f32.mrb[0].mxu0
    %v4668 = vpop.f32.mrb[0].mxu0
    %v4669 = vadd.f32 %v4554, %v4668
    %v4670 = vpop.f32.mrb[0].mxu0
    %4671 = vmatprep.mubr.bf16.mxu0 0
    %4672 = vmatmul.mubr.bf16.gmra.mrb[0].mxu0 %v536
    %v4673 = vpop.f32.mrb[0].mxu0
    %v4674 = vadd.f32 %v4559, %v4673
    %v4675 = vpop.f32.mrb[0].mxu0
    %v4676 = vpop.f32.mrb[0].mxu0
    %v4677 = vadd.f32 %v4562, %v4676
    %v4678 = vpop.f32.mrb[0].mxu0
    %4679 = vmatprep.mubr.bf16.mxu0 0
    %4680 = vmatmul.mubr.bf16.gmra.mrb[0].mxu0 %v539
    %v4681 = vpop.f32.mrb[0].mxu0
    %v4682 = vadd.f32 %v4567, %v4681
    %v4683 = vpop.f32.mrb[0].mxu0
    %v4684 = vpop.f32.mrb[0].mxu0
    %v4685 = vadd.f32 %v4570, %v4684
    %v4686 = vpop.f32.mrb[0].mxu0
    %4687 = vmatprep.mubr.bf16.mxu0 0
    %4688 = vmatmul.mubr.bf16.gmra.mrb[0].mxu0 %v542
    %v4689 = vpop.f32.mrb[0].mxu0
    %v4690 = vadd.f32 %v4575, %v4689
    %v4691 = vpop.f32.mrb[0].mxu0
    %v4692 = vpop.f32.mrb[0].mxu0
    %v4693 = vadd.f32 %v4578, %v4692
    %v4694 = vpop.f32.mrb[0].mxu0
    %4695 = vdwg.mxu0
    %s4696 = scalar_lea.vmem %s1, 696
    %v4697 = vld [vmem:[%s4696] sm:$0xf]
    %v4698 = vld [vmem:[%s4696 + $0x4] sm:$0xf]
    %v4699 = vld [vmem:[%s4696 + $0x8] sm:$0xf]
    %v4700 = vld [vmem:[%s4696 + $0xc] sm:$0xf]
    %v4701 = vld [vmem:[%s4696 + $0x10] sm:$0xf]
    %v4702 = vld [vmem:[%s4696 + $0x14] sm:$0xf]
    %v4709 = vunpack.c.l.b16 %v4697
    %v4710 = vunpack.c.l.b16 %v4698
    %v4711 = vunpack.c.l.b16 %v4699
    %v4712 = vunpack.c.l.b16 %v4700
    %v4713 = vunpack.c.l.b16 %v4701
    %v4714 = vunpack.c.l.b16 %v4702
    %v4715 = vpack.c.b16 %v4710, %v4709
    %v4716 = vpack.c.b16 %v4712, %v4711
    %v4717 = vpack.c.b16 %v4714, %v4713
    %4721 = vmatprep.subr.bf16.mxu0 0
    %4722 = vmatpush1.bf16.msra.mxu0 %v4715
    %4723 = vmatprep.subr.bf16.mxu0 0
    %4724 = vmatpush1.bf16.msra.mxu0 %v4716
    %4725 = vmatprep.subr.bf16.mxu0 0
    %4726 = vmatpush1.bf16.msra.mxu0 %v4717
    %4727 = vmatprep.subr.bf16.mxu0 0
    %4728 = vmatpush1.bf16.msra.mxu0 0
    %4729 = vmatprep.subr.bf16.mxu0 0
    %4730 = vmatpush1.bf16.msra.mxu0 0
    %4731 = vmatprep.subr.bf16.mxu0 0
    %4732 = vmatpush1.bf16.msra.mxu0 0
    %4733 = vmatprep.subr.bf16.mxu0 0
    %4734 = vmatpush1.bf16.msra.mxu0 0
    %4735 = vmatprep.subr.bf16.mxu0 0
    %4736 = vmatpush1.bf16.msra.mxu0 0
    %4737 = vmatprep.subr.bf16.mxu0 0
    %4738 = vmatpush1.bf16.msra.mxu0 0
    %4739 = vmatprep.subr.bf16.mxu0 0
    %4740 = vmatpush1.bf16.msra.mxu0 0
    %4741 = vmatprep.subr.bf16.mxu0 0
    %4742 = vmatpush1.bf16.msra.mxu0 0
    %4743 = vmatprep.subr.bf16.mxu0 0
    %4744 = vmatpush1.bf16.msra.mxu0 0
    %4745 = vmatprep.subr.bf16.mxu0 0
    %4746 = vmatpush1.bf16.msra.mxu0 0
    %4747 = vmatprep.subr.bf16.mxu0 0
    %4748 = vmatpush1.bf16.msra.mxu0 0
    %4749 = vmatprep.subr.bf16.mxu0 0
    %4750 = vmatpush1.bf16.msra.mxu0 0
    %4751 = vmatprep.subr.bf16.mxu0 0
    %4752 = vmatpush1.bf16.msra.mxu0 0
    %4753 = vmatprep.mubr.bf16.mxu0 0
    %4754 = vmatmul.mubr.bf16.gmra.mrb[0].mxu0 %v740
    %v4755 = vpop.f32.mrb[0].mxu0
    %v4756 = vadd.f32 0.0, %v4755
    %v4757 = vpop.f32.mrb[0].mxu0
    %v4758 = vpop.f32.mrb[0].mxu0
    %v4759 = vadd.f32 0.0, %v4758
    %v4760 = vpop.f32.mrb[0].mxu0
    %4761 = vmatprep.mubr.bf16.mxu0 0
    %4762 = vmatmul.mubr.bf16.gmra.mrb[0].mxu0 %v743
    %v4763 = vpop.f32.mrb[0].mxu0
    %v4764 = vadd.f32 0.0, %v4763
    %v4765 = vpop.f32.mrb[0].mxu0
    %v4766 = vpop.f32.mrb[0].mxu0
    %v4767 = vadd.f32 0.0, %v4766
    %v4768 = vpop.f32.mrb[0].mxu0
    %4769 = vmatprep.mubr.bf16.mxu0 0
    %4770 = vmatmul.mubr.bf16.gmra.mrb[0].mxu0 %v746
    %v4771 = vpop.f32.mrb[0].mxu0
    %v4772 = vadd.f32 0.0, %v4771
    %v4773 = vpop.f32.mrb[0].mxu0
    %v4774 = vpop.f32.mrb[0].mxu0
    %v4775 = vadd.f32 0.0, %v4774
    %v4776 = vpop.f32.mrb[0].mxu0
    %4777 = vmatprep.mubr.bf16.mxu0 0
    %4778 = vmatmul.mubr.bf16.gmra.mrb[0].mxu0 %v749
    %v4779 = vpop.f32.mrb[0].mxu0
    %v4780 = vadd.f32 0.0, %v4779
    %v4781 = vpop.f32.mrb[0].mxu0
    %v4782 = vpop.f32.mrb[0].mxu0
    %v4783 = vadd.f32 0.0, %v4782
    %v4784 = vpop.f32.mrb[0].mxu0
    %4785 = vmatprep.mubr.bf16.mxu0 0
    %4786 = vmatmul.mubr.bf16.gmra.mrb[0].mxu0 %v752
    %v4787 = vpop.f32.mrb[0].mxu0
    %v4788 = vadd.f32 0.0, %v4787
    %v4789 = vpop.f32.mrb[0].mxu0
    %v4790 = vpop.f32.mrb[0].mxu0
    %v4791 = vadd.f32 0.0, %v4790
    %v4792 = vpop.f32.mrb[0].mxu0
    %4793 = vmatprep.mubr.bf16.mxu0 0
    %4794 = vmatmul.mubr.bf16.gmra.mrb[0].mxu0 %v755
    %v4795 = vpop.f32.mrb[0].mxu0
    %v4796 = vadd.f32 0.0, %v4795
    %v4797 = vpop.f32.mrb[0].mxu0
    %v4798 = vpop.f32.mrb[0].mxu0
    %v4799 = vadd.f32 0.0, %v4798
    %v4800 = vpop.f32.mrb[0].mxu0
    %4801 = vmatprep.mubr.bf16.mxu0 0
    %4802 = vmatmul.mubr.bf16.gmra.mrb[0].mxu0 %v758
    %v4803 = vpop.f32.mrb[0].mxu0
    %v4804 = vadd.f32 0.0, %v4803
    %v4805 = vpop.f32.mrb[0].mxu0
    %v4806 = vpop.f32.mrb[0].mxu0
    %v4807 = vadd.f32 0.0, %v4806
    %v4808 = vpop.f32.mrb[0].mxu0
    %4809 = vmatprep.mubr.bf16.mxu0 0
    %4810 = vmatmul.mubr.bf16.gmra.mrb[0].mxu0 %v761
    %v4811 = vpop.f32.mrb[0].mxu0
    %v4812 = vadd.f32 0.0, %v4811
    %v4813 = vpop.f32.mrb[0].mxu0
    %v4814 = vpop.f32.mrb[0].mxu0
    %v4815 = vadd.f32 0.0, %v4814
    %v4816 = vpop.f32.mrb[0].mxu0
    %4817 = vdwg.mxu0
    %v4818 = vadd.f32 %v4634, %v4756
    %v4819 = vadd.f32 %v4637, %v4759
    %v4820 = vadd.f32 %v4642, %v4764
    %v4821 = vadd.f32 %v4645, %v4767
    %v4822 = vadd.f32 %v4650, %v4772
    %v4823 = vadd.f32 %v4653, %v4775
    %v4824 = vadd.f32 %v4658, %v4780
    %v4825 = vadd.f32 %v4661, %v4783
    %v4826 = vadd.f32 %v4666, %v4788
    %v4827 = vadd.f32 %v4669, %v4791
    %v4828 = vadd.f32 %v4674, %v4796
    %v4829 = vadd.f32 %v4677, %v4799
    %v4830 = vadd.f32 %v4682, %v4804
    %v4831 = vadd.f32 %v4685, %v4807
    %v4832 = vadd.f32 %v4690, %v4812
    %v4833 = vadd.f32 %v4693, %v4815
    %s4834 = scalar_lea.vmem %s1, 720
    %v4835 = vld [vmem:[%s4834] sm:$0xf]
    %v4836 = vld [vmem:[%s4834 + $0x4] sm:$0xf]
    %v4837 = vld [vmem:[%s4834 + $0x8] sm:$0xf]
    %v4838 = vld [vmem:[%s4834 + $0xc] sm:$0xf]
    %v4839 = vld [vmem:[%s4834 + $0x10] sm:$0xf]
    %v4840 = vld [vmem:[%s4834 + $0x14] sm:$0xf]
    %v4847 = vunpack.c.l.b16 %v4835
    %v4848 = vunpack.c.l.b16 %v4836
    %v4849 = vunpack.c.l.b16 %v4837
    %v4850 = vunpack.c.l.b16 %v4838
    %v4851 = vunpack.c.l.b16 %v4839
    %v4852 = vunpack.c.l.b16 %v4840
    %v4853 = vpack.c.b16 %v4848, %v4847
    %v4854 = vpack.c.b16 %v4850, %v4849
    %v4855 = vpack.c.b16 %v4852, %v4851
    %4859 = vmatprep.subr.bf16.mxu0 0
    %4860 = vmatpush1.bf16.msra.mxu0 %v4853
    %4861 = vmatprep.subr.bf16.mxu0 0
    %4862 = vmatpush1.bf16.msra.mxu0 %v4854
    %4863 = vmatprep.subr.bf16.mxu0 0
    %4864 = vmatpush1.bf16.msra.mxu0 %v4855
    %4865 = vmatprep.subr.bf16.mxu0 0
    %4866 = vmatpush1.bf16.msra.mxu0 0
    %4867 = vmatprep.subr.bf16.mxu0 0
    %4868 = vmatpush1.bf16.msra.mxu0 0
    %4869 = vmatprep.subr.bf16.mxu0 0
    %4870 = vmatpush1.bf16.msra.mxu0 0
    %4871 = vmatprep.subr.bf16.mxu0 0
    %4872 = vmatpush1.bf16.msra.mxu0 0
    %4873 = vmatprep.subr.bf16.mxu0 0
    %4874 = vmatpush1.bf16.msra.mxu0 0
    %4875 = vmatprep.subr.bf16.mxu0 0
    %4876 = vmatpush1.bf16.msra.mxu0 0
    %4877 = vmatprep.subr.bf16.mxu0 0
    %4878 = vmatpush1.bf16.msra.mxu0 0
    %4879 = vmatprep.subr.bf16.mxu0 0
    %4880 = vmatpush1.bf16.msra.mxu0 0
    %4881 = vmatprep.subr.bf16.mxu0 0
    %4882 = vmatpush1.bf16.msra.mxu0 0
    %4883 = vmatprep.subr.bf16.mxu0 0
    %4884 = vmatpush1.bf16.msra.mxu0 0
    %4885 = vmatprep.subr.bf16.mxu0 0
    %4886 = vmatpush1.bf16.msra.mxu0 0
    %4887 = vmatprep.subr.bf16.mxu0 0
    %4888 = vmatpush1.bf16.msra.mxu0 0
    %4889 = vmatprep.subr.bf16.mxu0 0
    %4890 = vmatpush1.bf16.msra.mxu0 0
    %4891 = vmatprep.mubr.bf16.mxu0 0
    %4892 = vmatmul.mubr.bf16.gmra.mrb[0].mxu0 %v910
    %v4893 = vpop.f32.mrb[0].mxu0
    %v4894 = vadd.f32 0.0, %v4893
    %v4895 = vpop.f32.mrb[0].mxu0
    %v4896 = vpop.f32.mrb[0].mxu0
    %v4897 = vadd.f32 0.0, %v4896
    %v4898 = vpop.f32.mrb[0].mxu0
    %4899 = vmatprep.mubr.bf16.mxu0 0
    %4900 = vmatmul.mubr.bf16.gmra.mrb[0].mxu0 %v913
    %v4901 = vpop.f32.mrb[0].mxu0
    %v4902 = vadd.f32 0.0, %v4901
    %v4903 = vpop.f32.mrb[0].mxu0
    %v4904 = vpop.f32.mrb[0].mxu0
    %v4905 = vadd.f32 0.0, %v4904
    %v4906 = vpop.f32.mrb[0].mxu0
    %4907 = vmatprep.mubr.bf16.mxu0 0
    %4908 = vmatmul.mubr.bf16.gmra.mrb[0].mxu0 %v916
    %v4909 = vpop.f32.mrb[0].mxu0
    %v4910 = vadd.f32 0.0, %v4909
    %v4911 = vpop.f32.mrb[0].mxu0
    %v4912 = vpop.f32.mrb[0].mxu0
    %v4913 = vadd.f32 0.0, %v4912
    %v4914 = vpop.f32.mrb[0].mxu0
    %4915 = vmatprep.mubr.bf16.mxu0 0
    %4916 = vmatmul.mubr.bf16.gmra.mrb[0].mxu0 %v919
    %v4917 = vpop.f32.mrb[0].mxu0
    %v4918 = vadd.f32 0.0, %v4917
    %v4919 = vpop.f32.mrb[0].mxu0
    %v4920 = vpop.f32.mrb[0].mxu0
    %v4921 = vadd.f32 0.0, %v4920
    %v4922 = vpop.f32.mrb[0].mxu0
    %4923 = vmatprep.mubr.bf16.mxu0 0
    %4924 = vmatmul.mubr.bf16.gmra.mrb[0].mxu0 %v922
    %v4925 = vpop.f32.mrb[0].mxu0
    %v4926 = vadd.f32 0.0, %v4925
    %v4927 = vpop.f32.mrb[0].mxu0
    %v4928 = vpop.f32.mrb[0].mxu0
    %v4929 = vadd.f32 0.0, %v4928
    %v4930 = vpop.f32.mrb[0].mxu0
    %4931 = vmatprep.mubr.bf16.mxu0 0
    %4932 = vmatmul.mubr.bf16.gmra.mrb[0].mxu0 %v925
    %v4933 = vpop.f32.mrb[0].mxu0
    %v4934 = vadd.f32 0.0, %v4933
    %v4935 = vpop.f32.mrb[0].mxu0
    %v4936 = vpop.f32.mrb[0].mxu0
    %v4937 = vadd.f32 0.0, %v4936
    %v4938 = vpop.f32.mrb[0].mxu0
    %4939 = vmatprep.mubr.bf16.mxu0 0
    %4940 = vmatmul.mubr.bf16.gmra.mrb[0].mxu0 %v928
    %v4941 = vpop.f32.mrb[0].mxu0
    %v4942 = vadd.f32 0.0, %v4941
    %v4943 = vpop.f32.mrb[0].mxu0
    %v4944 = vpop.f32.mrb[0].mxu0
    %v4945 = vadd.f32 0.0, %v4944
    %v4946 = vpop.f32.mrb[0].mxu0
    %4947 = vmatprep.mubr.bf16.mxu0 0
    %4948 = vmatmul.mubr.bf16.gmra.mrb[0].mxu0 %v931
    %v4949 = vpop.f32.mrb[0].mxu0
    %v4950 = vadd.f32 0.0, %v4949
    %v4951 = vpop.f32.mrb[0].mxu0
    %v4952 = vpop.f32.mrb[0].mxu0
    %v4953 = vadd.f32 0.0, %v4952
    %v4954 = vpop.f32.mrb[0].mxu0
    %4955 = vdwg.mxu0
    %v4956 = vadd.f32 %v4818, %v4894
    %v4957 = vadd.f32 %v4819, %v4897
    %v4958 = vadd.f32 %v4820, %v4902
    %v4959 = vadd.f32 %v4821, %v4905
    %v4960 = vadd.f32 %v4822, %v4910
    %v4961 = vadd.f32 %v4823, %v4913
    %v4962 = vadd.f32 %v4824, %v4918
    %v4963 = vadd.f32 %v4825, %v4921
    %v4964 = vadd.f32 %v4826, %v4926
    %v4965 = vadd.f32 %v4827, %v4929
    %v4966 = vadd.f32 %v4828, %v4934
    %v4967 = vadd.f32 %v4829, %v4937
    %v4968 = vadd.f32 %v4830, %v4942
    %v4969 = vadd.f32 %v4831, %v4945
    %v4970 = vadd.f32 %v4832, %v4950
    %v4971 = vadd.f32 %v4833, %v4953
    %s4972 = scalar_lea.vmem %s1, 744
    %v4973 = vld [vmem:[%s4972] sm:$0xf]
    %v4974 = vld [vmem:[%s4972 + $0x4] sm:$0xf]
    %v4975 = vld [vmem:[%s4972 + $0x8] sm:$0xf]
    %v4976 = vld [vmem:[%s4972 + $0xc] sm:$0xf]
    %v4977 = vld [vmem:[%s4972 + $0x10] sm:$0xf]
    %v4978 = vld [vmem:[%s4972 + $0x14] sm:$0xf]
    %v4985 = vunpack.c.l.b16 %v4973
    %v4986 = vunpack.c.l.b16 %v4974
    %v4987 = vunpack.c.l.b16 %v4975
    %v4988 = vunpack.c.l.b16 %v4976
    %v4989 = vunpack.c.l.b16 %v4977
    %v4990 = vunpack.c.l.b16 %v4978
    %v4991 = vpack.c.b16 %v4986, %v4985
    %v4992 = vpack.c.b16 %v4988, %v4987
    %v4993 = vpack.c.b16 %v4990, %v4989
    %4997 = vmatprep.subr.bf16.mxu0 0
    %4998 = vmatpush1.bf16.msra.mxu0 %v4991
    %4999 = vmatprep.subr.bf16.mxu0 0
    %5000 = vmatpush1.bf16.msra.mxu0 %v4992
    %5001 = vmatprep.subr.bf16.mxu0 0
    %5002 = vmatpush1.bf16.msra.mxu0 %v4993
    %5003 = vmatprep.subr.bf16.mxu0 0
    %5004 = vmatpush1.bf16.msra.mxu0 0
    %5005 = vmatprep.subr.bf16.mxu0 0
    %5006 = vmatpush1.bf16.msra.mxu0 0
    %5007 = vmatprep.subr.bf16.mxu0 0
    %5008 = vmatpush1.bf16.msra.mxu0 0
    %5009 = vmatprep.subr.bf16.mxu0 0
    %5010 = vmatpush1.bf16.msra.mxu0 0
    %5011 = vmatprep.subr.bf16.mxu0 0
    %5012 = vmatpush1.bf16.msra.mxu0 0
    %5013 = vmatprep.subr.bf16.mxu0 0
    %5014 = vmatpush1.bf16.msra.mxu0 0
    %5015 = vmatprep.subr.bf16.mxu0 0
    %5016 = vmatpush1.bf16.msra.mxu0 0
    %5017 = vmatprep.subr.bf16.mxu0 0
    %5018 = vmatpush1.bf16.msra.mxu0 0
    %5019 = vmatprep.subr.bf16.mxu0 0
    %5020 = vmatpush1.bf16.msra.mxu0 0
    %5021 = vmatprep.subr.bf16.mxu0 0
    %5022 = vmatpush1.bf16.msra.mxu0 0
    %5023 = vmatprep.subr.bf16.mxu0 0
    %5024 = vmatpush1.bf16.msra.mxu0 0
    %5025 = vmatprep.subr.bf16.mxu0 0
    %5026 = vmatpush1.bf16.msra.mxu0 0
    %5027 = vmatprep.subr.bf16.mxu0 0
    %5028 = vmatpush1.bf16.msra.mxu0 0
    %5029 = vmatprep.mubr.bf16.mxu0 0
    %5030 = vmatmul.mubr.bf16.gmra.mrb[0].mxu0 %v1092
    %v5031 = vpop.f32.mrb[0].mxu0
    %v5032 = vadd.f32 0.0, %v5031
    %v5033 = vpop.f32.mrb[0].mxu0
    %v5034 = vpop.f32.mrb[0].mxu0
    %v5035 = vadd.f32 0.0, %v5034
    %v5036 = vpop.f32.mrb[0].mxu0
    %5037 = vmatprep.mubr.bf16.mxu0 0
    %5038 = vmatmul.mubr.bf16.gmra.mrb[0].mxu0 %v1095
    %v5039 = vpop.f32.mrb[0].mxu0
    %v5040 = vadd.f32 0.0, %v5039
    %v5041 = vpop.f32.mrb[0].mxu0
    %v5042 = vpop.f32.mrb[0].mxu0
    %v5043 = vadd.f32 0.0, %v5042
    %v5044 = vpop.f32.mrb[0].mxu0
    %5045 = vmatprep.mubr.bf16.mxu0 0
    %5046 = vmatmul.mubr.bf16.gmra.mrb[0].mxu0 %v1098
    %v5047 = vpop.f32.mrb[0].mxu0
    %v5048 = vadd.f32 0.0, %v5047
    %v5049 = vpop.f32.mrb[0].mxu0
    %v5050 = vpop.f32.mrb[0].mxu0
    %v5051 = vadd.f32 0.0, %v5050
    %v5052 = vpop.f32.mrb[0].mxu0
    %5053 = vmatprep.mubr.bf16.mxu0 0
    %5054 = vmatmul.mubr.bf16.gmra.mrb[0].mxu0 %v1101
    %v5055 = vpop.f32.mrb[0].mxu0
    %v5056 = vadd.f32 0.0, %v5055
    %v5057 = vpop.f32.mrb[0].mxu0
    %v5058 = vpop.f32.mrb[0].mxu0
    %v5059 = vadd.f32 0.0, %v5058
    %v5060 = vpop.f32.mrb[0].mxu0
    %5061 = vmatprep.mubr.bf16.mxu0 0
    %5062 = vmatmul.mubr.bf16.gmra.mrb[0].mxu0 %v1104
    %v5063 = vpop.f32.mrb[0].mxu0
    %v5064 = vadd.f32 0.0, %v5063
    %v5065 = vpop.f32.mrb[0].mxu0
    %v5066 = vpop.f32.mrb[0].mxu0
    %v5067 = vadd.f32 0.0, %v5066
    %v5068 = vpop.f32.mrb[0].mxu0
    %5069 = vmatprep.mubr.bf16.mxu0 0
    %5070 = vmatmul.mubr.bf16.gmra.mrb[0].mxu0 %v1107
    %v5071 = vpop.f32.mrb[0].mxu0
    %v5072 = vadd.f32 0.0, %v5071
    %v5073 = vpop.f32.mrb[0].mxu0
    %v5074 = vpop.f32.mrb[0].mxu0
    %v5075 = vadd.f32 0.0, %v5074
    %v5076 = vpop.f32.mrb[0].mxu0
    %5077 = vmatprep.mubr.bf16.mxu0 0
    %5078 = vmatmul.mubr.bf16.gmra.mrb[0].mxu0 %v1110
    %v5079 = vpop.f32.mrb[0].mxu0
    %v5080 = vadd.f32 0.0, %v5079
    %v5081 = vpop.f32.mrb[0].mxu0
    %v5082 = vpop.f32.mrb[0].mxu0
    %v5083 = vadd.f32 0.0, %v5082
    %v5084 = vpop.f32.mrb[0].mxu0
    %5085 = vmatprep.mubr.bf16.mxu0 0
    %5086 = vmatmul.mubr.bf16.gmra.mrb[0].mxu0 %v1113
    %v5087 = vpop.f32.mrb[0].mxu0
    %v5088 = vadd.f32 0.0, %v5087
    %v5089 = vpop.f32.mrb[0].mxu0
    %v5090 = vpop.f32.mrb[0].mxu0
    %v5091 = vadd.f32 0.0, %v5090
    %v5092 = vpop.f32.mrb[0].mxu0
    %5093 = vdwg.mxu0
    %v5094 = vadd.f32 %v4956, %v5032
    %v5095 = vadd.f32 %v4957, %v5035
    %v5096 = vadd.f32 %v4958, %v5040
    %v5097 = vadd.f32 %v4959, %v5043
    %v5098 = vadd.f32 %v4960, %v5048
    %v5099 = vadd.f32 %v4961, %v5051
    %v5100 = vadd.f32 %v4962, %v5056
    %v5101 = vadd.f32 %v4963, %v5059
    %v5102 = vadd.f32 %v4964, %v5064
    %v5103 = vadd.f32 %v4965, %v5067
    %v5104 = vadd.f32 %v4966, %v5072
    %v5105 = vadd.f32 %v4967, %v5075
    %v5106 = vadd.f32 %v4968, %v5080
    %v5107 = vadd.f32 %v4969, %v5083
    %v5108 = vadd.f32 %v4970, %v5088
    %v5109 = vadd.f32 %v4971, %v5091
    %s5110 = scalar_lea.vmem %s1, 768
    %v5111 = vld [vmem:[%s5110] sm:$0xf]
    %v5112 = vld [vmem:[%s5110 + $0x4] sm:$0xf]
    %v5113 = vld [vmem:[%s5110 + $0x8] sm:$0xf]
    %v5114 = vld [vmem:[%s5110 + $0xc] sm:$0xf]
    %v5115 = vld [vmem:[%s5110 + $0x10] sm:$0xf]
    %v5116 = vld [vmem:[%s5110 + $0x14] sm:$0xf]
    %v5123 = vunpack.c.l.b16 %v5111
    %v5124 = vunpack.c.l.b16 %v5112
    %v5125 = vunpack.c.l.b16 %v5113
    %v5126 = vunpack.c.l.b16 %v5114
    %v5127 = vunpack.c.l.b16 %v5115
    %v5128 = vunpack.c.l.b16 %v5116
    %v5129 = vpack.c.b16 %v5124, %v5123
    %v5130 = vpack.c.b16 %v5126, %v5125
    %v5131 = vpack.c.b16 %v5128, %v5127
    %5135 = vmatprep.subr.bf16.mxu0 0
    %5136 = vmatpush1.bf16.msra.mxu0 %v5129
    %5137 = vmatprep.subr.bf16.mxu0 0
    %5138 = vmatpush1.bf16.msra.mxu0 %v5130
    %5139 = vmatprep.subr.bf16.mxu0 0
    %5140 = vmatpush1.bf16.msra.mxu0 %v5131
    %5141 = vmatprep.subr.bf16.mxu0 0
    %5142 = vmatpush1.bf16.msra.mxu0 0
    %5143 = vmatprep.subr.bf16.mxu0 0
    %5144 = vmatpush1.bf16.msra.mxu0 0
    %5145 = vmatprep.subr.bf16.mxu0 0
    %5146 = vmatpush1.bf16.msra.mxu0 0
    %5147 = vmatprep.subr.bf16.mxu0 0
    %5148 = vmatpush1.bf16.msra.mxu0 0
    %5149 = vmatprep.subr.bf16.mxu0 0
    %5150 = vmatpush1.bf16.msra.mxu0 0
    %5151 = vmatprep.subr.bf16.mxu0 0
    %5152 = vmatpush1.bf16.msra.mxu0 0
    %5153 = vmatprep.subr.bf16.mxu0 0
    %5154 = vmatpush1.bf16.msra.mxu0 0
    %5155 = vmatprep.subr.bf16.mxu0 0
    %5156 = vmatpush1.bf16.msra.mxu0 0
    %5157 = vmatprep.subr.bf16.mxu0 0
    %5158 = vmatpush1.bf16.msra.mxu0 0
    %5159 = vmatprep.subr.bf16.mxu0 0
    %5160 = vmatpush1.bf16.msra.mxu0 0
    %5161 = vmatprep.subr.bf16.mxu0 0
    %5162 = vmatpush1.bf16.msra.mxu0 0
    %5163 = vmatprep.subr.bf16.mxu0 0
    %5164 = vmatpush1.bf16.msra.mxu0 0
    %5165 = vmatprep.subr.bf16.mxu0 0
    %5166 = vmatpush1.bf16.msra.mxu0 0
    %5167 = vmatprep.mubr.bf16.mxu0 0
    %5168 = vmatmul.mubr.bf16.gmra.mrb[0].mxu0 %v1270
    %v5169 = vpop.f32.mrb[0].mxu0
    %v5170 = vadd.f32 0.0, %v5169
    %v5171 = vpop.f32.mrb[0].mxu0
    %v5172 = vpop.f32.mrb[0].mxu0
    %v5173 = vadd.f32 0.0, %v5172
    %v5174 = vpop.f32.mrb[0].mxu0
    %5175 = vmatprep.mubr.bf16.mxu0 0
    %5176 = vmatmul.mubr.bf16.gmra.mrb[0].mxu0 %v1273
    %v5177 = vpop.f32.mrb[0].mxu0
    %v5178 = vadd.f32 0.0, %v5177
    %v5179 = vpop.f32.mrb[0].mxu0
    %v5180 = vpop.f32.mrb[0].mxu0
    %v5181 = vadd.f32 0.0, %v5180
    %v5182 = vpop.f32.mrb[0].mxu0
    %5183 = vmatprep.mubr.bf16.mxu0 0
    %5184 = vmatmul.mubr.bf16.gmra.mrb[0].mxu0 %v1276
    %v5185 = vpop.f32.mrb[0].mxu0
    %v5186 = vadd.f32 0.0, %v5185
    %v5187 = vpop.f32.mrb[0].mxu0
    %v5188 = vpop.f32.mrb[0].mxu0
    %v5189 = vadd.f32 0.0, %v5188
    %v5190 = vpop.f32.mrb[0].mxu0
    %5191 = vmatprep.mubr.bf16.mxu0 0
    %5192 = vmatmul.mubr.bf16.gmra.mrb[0].mxu0 %v1279
    %v5193 = vpop.f32.mrb[0].mxu0
    %v5194 = vadd.f32 0.0, %v5193
    %v5195 = vpop.f32.mrb[0].mxu0
    %v5196 = vpop.f32.mrb[0].mxu0
    %v5197 = vadd.f32 0.0, %v5196
    %v5198 = vpop.f32.mrb[0].mxu0
    %5199 = vmatprep.mubr.bf16.mxu0 0
    %5200 = vmatmul.mubr.bf16.gmra.mrb[0].mxu0 %v1282
    %v5201 = vpop.f32.mrb[0].mxu0
    %v5202 = vadd.f32 0.0, %v5201
    %v5203 = vpop.f32.mrb[0].mxu0
    %v5204 = vpop.f32.mrb[0].mxu0
    %v5205 = vadd.f32 0.0, %v5204
    %v5206 = vpop.f32.mrb[0].mxu0
    %5207 = vmatprep.mubr.bf16.mxu0 0
    %5208 = vmatmul.mubr.bf16.gmra.mrb[0].mxu0 %v1285
    %v5209 = vpop.f32.mrb[0].mxu0
    %v5210 = vadd.f32 0.0, %v5209
    %v5211 = vpop.f32.mrb[0].mxu0
    %v5212 = vpop.f32.mrb[0].mxu0
    %v5213 = vadd.f32 0.0, %v5212
    %v5214 = vpop.f32.mrb[0].mxu0
    %5215 = vmatprep.mubr.bf16.mxu0 0
    %5216 = vmatmul.mubr.bf16.gmra.mrb[0].mxu0 %v1288
    %v5217 = vpop.f32.mrb[0].mxu0
    %v5218 = vadd.f32 0.0, %v5217
    %v5219 = vpop.f32.mrb[0].mxu0
    %v5220 = vpop.f32.mrb[0].mxu0
    %v5221 = vadd.f32 0.0, %v5220
    %v5222 = vpop.f32.mrb[0].mxu0
    %5223 = vmatprep.mubr.bf16.mxu0 0
    %5224 = vmatmul.mubr.bf16.gmra.mrb[0].mxu0 %v1291
    %v5225 = vpop.f32.mrb[0].mxu0
    %v5226 = vadd.f32 0.0, %v5225
    %v5227 = vpop.f32.mrb[0].mxu0
    %v5228 = vpop.f32.mrb[0].mxu0
    %v5229 = vadd.f32 0.0, %v5228
    %v5230 = vpop.f32.mrb[0].mxu0
    %5231 = vdwg.mxu0
    %v5232 = vadd.f32 %v5094, %v5170
    %v5233 = vadd.f32 %v5095, %v5173
    %v5234 = vadd.f32 %v5096, %v5178
    %v5235 = vadd.f32 %v5097, %v5181
    %v5236 = vadd.f32 %v5098, %v5186
    %v5237 = vadd.f32 %v5099, %v5189
    %v5238 = vadd.f32 %v5100, %v5194
    %v5239 = vadd.f32 %v5101, %v5197
    %v5240 = vadd.f32 %v5102, %v5202
    %v5241 = vadd.f32 %v5103, %v5205
    %v5242 = vadd.f32 %v5104, %v5210
    %v5243 = vadd.f32 %v5105, %v5213
    %v5244 = vadd.f32 %v5106, %v5218
    %v5245 = vadd.f32 %v5107, %v5221
    %v5246 = vadd.f32 %v5108, %v5226
    %v5247 = vadd.f32 %v5109, %v5229
    %s5248 = scalar_lea.vmem %s1, 792
    %v5249 = vld [vmem:[%s5248] sm:$0xf]
    %v5250 = vld [vmem:[%s5248 + $0x4] sm:$0xf]
    %v5251 = vld [vmem:[%s5248 + $0x8] sm:$0xf]
    %v5252 = vld [vmem:[%s5248 + $0xc] sm:$0xf]
    %v5253 = vld [vmem:[%s5248 + $0x10] sm:$0xf]
    %v5254 = vld [vmem:[%s5248 + $0x14] sm:$0xf]
    %v5261 = vunpack.c.l.b16 %v5249
    %v5262 = vunpack.c.l.b16 %v5250
    %v5263 = vunpack.c.l.b16 %v5251
    %v5264 = vunpack.c.l.b16 %v5252
    %v5265 = vunpack.c.l.b16 %v5253
    %v5266 = vunpack.c.l.b16 %v5254
    %v5267 = vpack.c.b16 %v5262, %v5261
    %v5268 = vpack.c.b16 %v5264, %v5263
    %v5269 = vpack.c.b16 %v5266, %v5265
    %5273 = vmatprep.subr.bf16.mxu0 0
    %5274 = vmatpush1.bf16.msra.mxu0 %v5267
    %5275 = vmatprep.subr.bf16.mxu0 0
    %5276 = vmatpush1.bf16.msra.mxu0 %v5268
    %5277 = vmatprep.subr.bf16.mxu0 0
    %5278 = vmatpush1.bf16.msra.mxu0 %v5269
    %5279 = vmatprep.subr.bf16.mxu0 0
    %5280 = vmatpush1.bf16.msra.mxu0 0
    %5281 = vmatprep.subr.bf16.mxu0 0
    %5282 = vmatpush1.bf16.msra.mxu0 0
    %5283 = vmatprep.subr.bf16.mxu0 0
    %5284 = vmatpush1.bf16.msra.mxu0 0
    %5285 = vmatprep.subr.bf16.mxu0 0
    %5286 = vmatpush1.bf16.msra.mxu0 0
    %5287 = vmatprep.subr.bf16.mxu0 0
    %5288 = vmatpush1.bf16.msra.mxu0 0
    %5289 = vmatprep.subr.bf16.mxu0 0
    %5290 = vmatpush1.bf16.msra.mxu0 0
    %5291 = vmatprep.subr.bf16.mxu0 0
    %5292 = vmatpush1.bf16.msra.mxu0 0
    %5293 = vmatprep.subr.bf16.mxu0 0
    %5294 = vmatpush1.bf16.msra.mxu0 0
    %5295 = vmatprep.subr.bf16.mxu0 0
    %5296 = vmatpush1.bf16.msra.mxu0 0
    %5297 = vmatprep.subr.bf16.mxu0 0
    %5298 = vmatpush1.bf16.msra.mxu0 0
    %5299 = vmatprep.subr.bf16.mxu0 0
    %5300 = vmatpush1.bf16.msra.mxu0 0
    %5301 = vmatprep.subr.bf16.mxu0 0
    %5302 = vmatpush1.bf16.msra.mxu0 0
    %5303 = vmatprep.subr.bf16.mxu0 0
    %5304 = vmatpush1.bf16.msra.mxu0 0
    %5305 = vmatprep.mubr.bf16.mxu0 0
    %5306 = vmatmul.mubr.bf16.gmra.mrb[0].mxu0 %v524
    %v5307 = vpop.f32.mrb[0].mxu0
    %v5308 = vadd.f32 0.0, %v5307
    %v5309 = vpop.f32.mrb[0].mxu0
    %v5310 = vpop.f32.mrb[0].mxu0
    %v5311 = vadd.f32 0.0, %v5310
    %v5312 = vpop.f32.mrb[0].mxu0
    %5313 = vmatprep.mubr.bf16.mxu0 0
    %5314 = vmatmul.mubr.bf16.gmra.mrb[0].mxu0 %v527
    %v5315 = vpop.f32.mrb[0].mxu0
    %v5316 = vadd.f32 0.0, %v5315
    %v5317 = vpop.f32.mrb[0].mxu0
    %v5318 = vpop.f32.mrb[0].mxu0
    %v5319 = vadd.f32 0.0, %v5318
    %v5320 = vpop.f32.mrb[0].mxu0
    %5321 = vmatprep.mubr.bf16.mxu0 0
    %5322 = vmatmul.mubr.bf16.gmra.mrb[0].mxu0 %v530
    %v5323 = vpop.f32.mrb[0].mxu0
    %v5324 = vadd.f32 0.0, %v5323
    %v5325 = vpop.f32.mrb[0].mxu0
    %v5326 = vpop.f32.mrb[0].mxu0
    %v5327 = vadd.f32 0.0, %v5326
    %v5328 = vpop.f32.mrb[0].mxu0
    %5329 = vmatprep.mubr.bf16.mxu0 0
    %5330 = vmatmul.mubr.bf16.gmra.mrb[0].mxu0 %v1434
    %v5331 = vpop.f32.mrb[0].mxu0
    %v5332 = vadd.f32 0.0, %v5331
    %v5333 = vpop.f32.mrb[0].mxu0
    %v5334 = vpop.f32.mrb[0].mxu0
    %v5335 = vadd.f32 0.0, %v5334
    %v5336 = vpop.f32.mrb[0].mxu0
    %5337 = vmatprep.mubr.bf16.mxu0 0
    %5338 = vmatmul.mubr.bf16.gmra.mrb[0].mxu0 %v536
    %v5339 = vpop.f32.mrb[0].mxu0
    %v5340 = vadd.f32 0.0, %v5339
    %v5341 = vpop.f32.mrb[0].mxu0
    %v5342 = vpop.f32.mrb[0].mxu0
    %v5343 = vadd.f32 0.0, %v5342
    %v5344 = vpop.f32.mrb[0].mxu0
    %5345 = vmatprep.mubr.bf16.mxu0 0
    %5346 = vmatmul.mubr.bf16.gmra.mrb[0].mxu0 %v539
    %v5347 = vpop.f32.mrb[0].mxu0
    %v5348 = vadd.f32 0.0, %v5347
    %v5349 = vpop.f32.mrb[0].mxu0
    %v5350 = vpop.f32.mrb[0].mxu0
    %v5351 = vadd.f32 0.0, %v5350
    %v5352 = vpop.f32.mrb[0].mxu0
    %5353 = vmatprep.mubr.bf16.mxu0 0
    %5354 = vmatmul.mubr.bf16.gmra.mrb[0].mxu0 %v542
    %v5355 = vpop.f32.mrb[0].mxu0
    %v5356 = vadd.f32 0.0, %v5355
    %v5357 = vpop.f32.mrb[0].mxu0
    %v5358 = vpop.f32.mrb[0].mxu0
    %v5359 = vadd.f32 0.0, %v5358
    %v5360 = vpop.f32.mrb[0].mxu0
    %5361 = vmatprep.mubr.bf16.mxu0 0
    %5362 = vmatmul.mubr.bf16.gmra.mrb[0].mxu0 %v1437
    %v5363 = vpop.f32.mrb[0].mxu0
    %v5364 = vadd.f32 0.0, %v5363
    %v5365 = vpop.f32.mrb[0].mxu0
    %v5366 = vpop.f32.mrb[0].mxu0
    %v5367 = vadd.f32 0.0, %v5366
    %v5368 = vpop.f32.mrb[0].mxu0
    %5369 = vdwg.mxu0
    %v5370 = vadd.f32 %v5232, %v5308
    %v5371 = vadd.f32 %v5233, %v5311
    %v5372 = vadd.f32 %v5234, %v5316
    %v5373 = vadd.f32 %v5235, %v5319
    %v5374 = vadd.f32 %v5236, %v5324
    %v5375 = vadd.f32 %v5237, %v5327
    %v5376 = vadd.f32 %v5238, %v5332
    %v5377 = vadd.f32 %v5239, %v5335
    %v5378 = vadd.f32 %v5240, %v5340
    %v5379 = vadd.f32 %v5241, %v5343
    %v5380 = vadd.f32 %v5242, %v5348
    %v5381 = vadd.f32 %v5243, %v5351
    %v5382 = vadd.f32 %v5244, %v5356
    %v5383 = vadd.f32 %v5245, %v5359
    %v5384 = vadd.f32 %v5246, %v5364
    %v5385 = vadd.f32 %v5247, %v5367
    %s5386 = scalar_lea.vmem %s1, 816
    %v5387 = vld [vmem:[%s5386] sm:$0xf]
    %v5388 = vld [vmem:[%s5386 + $0x4] sm:$0xf]
    %v5389 = vld [vmem:[%s5386 + $0x8] sm:$0xf]
    %v5390 = vld [vmem:[%s5386 + $0xc] sm:$0xf]
    %v5391 = vld [vmem:[%s5386 + $0x10] sm:$0xf]
    %v5392 = vld [vmem:[%s5386 + $0x14] sm:$0xf]
    %v5399 = vunpack.c.l.b16 %v5387
    %v5400 = vunpack.c.l.b16 %v5388
    %v5401 = vunpack.c.l.b16 %v5389
    %v5402 = vunpack.c.l.b16 %v5390
    %v5403 = vunpack.c.l.b16 %v5391
    %v5404 = vunpack.c.l.b16 %v5392
    %v5405 = vpack.c.b16 %v5400, %v5399
    %v5406 = vpack.c.b16 %v5402, %v5401
    %v5407 = vpack.c.b16 %v5404, %v5403
    %5411 = vmatprep.subr.bf16.mxu0 0
    %5412 = vmatpush1.bf16.msra.mxu0 %v5405
    %5413 = vmatprep.subr.bf16.mxu0 0
    %5414 = vmatpush1.bf16.msra.mxu0 %v5406
    %5415 = vmatprep.subr.bf16.mxu0 0
    %5416 = vmatpush1.bf16.msra.mxu0 %v5407
    %5417 = vmatprep.subr.bf16.mxu0 0
    %5418 = vmatpush1.bf16.msra.mxu0 0
    %5419 = vmatprep.subr.bf16.mxu0 0
    %5420 = vmatpush1.bf16.msra.mxu0 0
    %5421 = vmatprep.subr.bf16.mxu0 0
    %5422 = vmatpush1.bf16.msra.mxu0 0
    %5423 = vmatprep.subr.bf16.mxu0 0
    %5424 = vmatpush1.bf16.msra.mxu0 0
    %5425 = vmatprep.subr.bf16.mxu0 0
    %5426 = vmatpush1.bf16.msra.mxu0 0
    %5427 = vmatprep.subr.bf16.mxu0 0
    %5428 = vmatpush1.bf16.msra.mxu0 0
    %5429 = vmatprep.subr.bf16.mxu0 0
    %5430 = vmatpush1.bf16.msra.mxu0 0
    %5431 = vmatprep.subr.bf16.mxu0 0
    %5432 = vmatpush1.bf16.msra.mxu0 0
    %5433 = vmatprep.subr.bf16.mxu0 0
    %5434 = vmatpush1.bf16.msra.mxu0 0
    %5435 = vmatprep.subr.bf16.mxu0 0
    %5436 = vmatpush1.bf16.msra.mxu0 0
    %5437 = vmatprep.subr.bf16.mxu0 0
    %5438 = vmatpush1.bf16.msra.mxu0 0
    %5439 = vmatprep.subr.bf16.mxu0 0
    %5440 = vmatpush1.bf16.msra.mxu0 0
    %5441 = vmatprep.subr.bf16.mxu0 0
    %5442 = vmatpush1.bf16.msra.mxu0 0
    %5443 = vmatprep.mubr.bf16.mxu0 0
    %5444 = vmatmul.mubr.bf16.gmra.mrb[0].mxu0 %v385
    %v5445 = vpop.f32.mrb[0].mxu0
    %v5446 = vadd.f32 0.0, %v5445
    %v5447 = vpop.f32.mrb[0].mxu0
    %v5448 = vpop.f32.mrb[0].mxu0
    %v5449 = vadd.f32 0.0, %v5448
    %v5450 = vpop.f32.mrb[0].mxu0
    %5451 = vmatprep.mubr.bf16.mxu0 0
    %5452 = vmatmul.mubr.bf16.gmra.mrb[0].mxu0 %v388
    %v5453 = vpop.f32.mrb[0].mxu0
    %v5454 = vadd.f32 0.0, %v5453
    %v5455 = vpop.f32.mrb[0].mxu0
    %v5456 = vpop.f32.mrb[0].mxu0
    %v5457 = vadd.f32 0.0, %v5456
    %v5458 = vpop.f32.mrb[0].mxu0
    %5459 = vmatprep.mubr.bf16.mxu0 0
    %5460 = vmatmul.mubr.bf16.gmra.mrb[0].mxu0 %v391
    %v5461 = vpop.f32.mrb[0].mxu0
    %v5462 = vadd.f32 0.0, %v5461
    %v5463 = vpop.f32.mrb[0].mxu0
    %v5464 = vpop.f32.mrb[0].mxu0
    %v5465 = vadd.f32 0.0, %v5464
    %v5466 = vpop.f32.mrb[0].mxu0
    %5467 = vmatprep.mubr.bf16.mxu0 0
    %5468 = vmatmul.mubr.bf16.gmra.mrb[0].mxu0 %v1592
    %v5469 = vpop.f32.mrb[0].mxu0
    %v5470 = vadd.f32 0.0, %v5469
    %v5471 = vpop.f32.mrb[0].mxu0
    %v5472 = vpop.f32.mrb[0].mxu0
    %v5473 = vadd.f32 0.0, %v5472
    %v5474 = vpop.f32.mrb[0].mxu0
    %5475 = vmatprep.mubr.bf16.mxu0 0
    %5476 = vmatmul.mubr.bf16.gmra.mrb[0].mxu0 %v397
    %v5477 = vpop.f32.mrb[0].mxu0
    %v5478 = vadd.f32 0.0, %v5477
    %v5479 = vpop.f32.mrb[0].mxu0
    %v5480 = vpop.f32.mrb[0].mxu0
    %v5481 = vadd.f32 0.0, %v5480
    %v5482 = vpop.f32.mrb[0].mxu0
    %5483 = vmatprep.mubr.bf16.mxu0 0
    %5484 = vmatmul.mubr.bf16.gmra.mrb[0].mxu0 %v400
    %v5485 = vpop.f32.mrb[0].mxu0
    %v5486 = vadd.f32 0.0, %v5485
    %v5487 = vpop.f32.mrb[0].mxu0
    %v5488 = vpop.f32.mrb[0].mxu0
    %v5489 = vadd.f32 0.0, %v5488
    %v5490 = vpop.f32.mrb[0].mxu0
    %5491 = vmatprep.mubr.bf16.mxu0 0
    %5492 = vmatmul.mubr.bf16.gmra.mrb[0].mxu0 %v403
    %v5493 = vpop.f32.mrb[0].mxu0
    %v5494 = vadd.f32 0.0, %v5493
    %v5495 = vpop.f32.mrb[0].mxu0
    %v5496 = vpop.f32.mrb[0].mxu0
    %v5497 = vadd.f32 0.0, %v5496
    %v5498 = vpop.f32.mrb[0].mxu0
    %5499 = vmatprep.mubr.bf16.mxu0 0
    %5500 = vmatmul.mubr.bf16.gmra.mrb[0].mxu0 %v1595
    %v5501 = vpop.f32.mrb[0].mxu0
    %v5502 = vadd.f32 0.0, %v5501
    %v5503 = vpop.f32.mrb[0].mxu0
    %v5504 = vpop.f32.mrb[0].mxu0
    %v5505 = vadd.f32 0.0, %v5504
    %v5506 = vpop.f32.mrb[0].mxu0
    %5507 = vdwg.mxu0
    %v5508 = vadd.f32 %v5370, %v5446
    %v5509 = vadd.f32 %v5371, %v5449
    %v5510 = vadd.f32 %v5372, %v5454
    %v5511 = vadd.f32 %v5373, %v5457
    %v5512 = vadd.f32 %v5374, %v5462
    %v5513 = vadd.f32 %v5375, %v5465
    %v5514 = vadd.f32 %v5376, %v5470
    %v5515 = vadd.f32 %v5377, %v5473
    %v5516 = vadd.f32 %v5378, %v5478
    %v5517 = vadd.f32 %v5379, %v5481
    %v5518 = vadd.f32 %v5380, %v5486
    %v5519 = vadd.f32 %v5381, %v5489
    %v5520 = vadd.f32 %v5382, %v5494
    %v5521 = vadd.f32 %v5383, %v5497
    %v5522 = vadd.f32 %v5384, %v5502
    %v5523 = vadd.f32 %v5385, %v5505
    %s5524 = scalar_lea.vmem %s1, 840
    %v5525 = vld [vmem:[%s5524] sm:$0xf]
    %v5526 = vld [vmem:[%s5524 + $0x4] sm:$0xf]
    %v5527 = vld [vmem:[%s5524 + $0x8] sm:$0xf]
    %v5528 = vld [vmem:[%s5524 + $0xc] sm:$0xf]
    %v5529 = vld [vmem:[%s5524 + $0x10] sm:$0xf]
    %v5530 = vld [vmem:[%s5524 + $0x14] sm:$0xf]
    %v5537 = vunpack.c.l.b16 %v5525
    %v5538 = vunpack.c.l.b16 %v5526
    %v5539 = vunpack.c.l.b16 %v5527
    %v5540 = vunpack.c.l.b16 %v5528
    %v5541 = vunpack.c.l.b16 %v5529
    %v5542 = vunpack.c.l.b16 %v5530
    %v5543 = vpack.c.b16 %v5538, %v5537
    %v5544 = vpack.c.b16 %v5540, %v5539
    %v5545 = vpack.c.b16 %v5542, %v5541
    %5549 = vmatprep.subr.bf16.mxu0 0
    %5550 = vmatpush1.bf16.msra.mxu0 %v5543
    %5551 = vmatprep.subr.bf16.mxu0 0
    %5552 = vmatpush1.bf16.msra.mxu0 %v5544
    %5553 = vmatprep.subr.bf16.mxu0 0
    %5554 = vmatpush1.bf16.msra.mxu0 %v5545
    %5555 = vmatprep.subr.bf16.mxu0 0
    %5556 = vmatpush1.bf16.msra.mxu0 0
    %5557 = vmatprep.subr.bf16.mxu0 0
    %5558 = vmatpush1.bf16.msra.mxu0 0
    %5559 = vmatprep.subr.bf16.mxu0 0
    %5560 = vmatpush1.bf16.msra.mxu0 0
    %5561 = vmatprep.subr.bf16.mxu0 0
    %5562 = vmatpush1.bf16.msra.mxu0 0
    %5563 = vmatprep.subr.bf16.mxu0 0
    %5564 = vmatpush1.bf16.msra.mxu0 0
    %5565 = vmatprep.subr.bf16.mxu0 0
    %5566 = vmatpush1.bf16.msra.mxu0 0
    %5567 = vmatprep.subr.bf16.mxu0 0
    %5568 = vmatpush1.bf16.msra.mxu0 0
    %5569 = vmatprep.subr.bf16.mxu0 0
    %5570 = vmatpush1.bf16.msra.mxu0 0
    %5571 = vmatprep.subr.bf16.mxu0 0
    %5572 = vmatpush1.bf16.msra.mxu0 0
    %5573 = vmatprep.subr.bf16.mxu0 0
    %5574 = vmatpush1.bf16.msra.mxu0 0
    %5575 = vmatprep.subr.bf16.mxu0 0
    %5576 = vmatpush1.bf16.msra.mxu0 0
    %5577 = vmatprep.subr.bf16.mxu0 0
    %5578 = vmatpush1.bf16.msra.mxu0 0
    %5579 = vmatprep.subr.bf16.mxu0 0
    %5580 = vmatpush1.bf16.msra.mxu0 0
    %5581 = vmatprep.mubr.bf16.mxu0 0
    %5582 = vmatmul.mubr.bf16.gmra.mrb[0].mxu0 %v743
    %v5583 = vpop.f32.mrb[0].mxu0
    %v5584 = vadd.f32 0.0, %v5583
    %v5585 = vpop.f32.mrb[0].mxu0
    %v5586 = vpop.f32.mrb[0].mxu0
    %v5587 = vadd.f32 0.0, %v5586
    %v5588 = vpop.f32.mrb[0].mxu0
    %5589 = vmatprep.mubr.bf16.mxu0 0
    %5590 = vmatmul.mubr.bf16.gmra.mrb[0].mxu0 %v746
    %v5591 = vpop.f32.mrb[0].mxu0
    %v5592 = vadd.f32 0.0, %v5591
    %v5593 = vpop.f32.mrb[0].mxu0
    %v5594 = vpop.f32.mrb[0].mxu0
    %v5595 = vadd.f32 0.0, %v5594
    %v5596 = vpop.f32.mrb[0].mxu0
    %5597 = vmatprep.mubr.bf16.mxu0 0
    %5598 = vmatmul.mubr.bf16.gmra.mrb[0].mxu0 %v749
    %v5599 = vpop.f32.mrb[0].mxu0
    %v5600 = vadd.f32 0.0, %v5599
    %v5601 = vpop.f32.mrb[0].mxu0
    %v5602 = vpop.f32.mrb[0].mxu0
    %v5603 = vadd.f32 0.0, %v5602
    %v5604 = vpop.f32.mrb[0].mxu0
    %5605 = vmatprep.mubr.bf16.mxu0 0
    %5606 = vmatmul.mubr.bf16.gmra.mrb[0].mxu0 %v1746
    %v5607 = vpop.f32.mrb[0].mxu0
    %v5608 = vadd.f32 0.0, %v5607
    %v5609 = vpop.f32.mrb[0].mxu0
    %v5610 = vpop.f32.mrb[0].mxu0
    %v5611 = vadd.f32 0.0, %v5610
    %v5612 = vpop.f32.mrb[0].mxu0
    %5613 = vmatprep.mubr.bf16.mxu0 0
    %5614 = vmatmul.mubr.bf16.gmra.mrb[0].mxu0 %v755
    %v5615 = vpop.f32.mrb[0].mxu0
    %v5616 = vadd.f32 0.0, %v5615
    %v5617 = vpop.f32.mrb[0].mxu0
    %v5618 = vpop.f32.mrb[0].mxu0
    %v5619 = vadd.f32 0.0, %v5618
    %v5620 = vpop.f32.mrb[0].mxu0
    %5621 = vmatprep.mubr.bf16.mxu0 0
    %5622 = vmatmul.mubr.bf16.gmra.mrb[0].mxu0 %v758
    %v5623 = vpop.f32.mrb[0].mxu0
    %v5624 = vadd.f32 0.0, %v5623
    %v5625 = vpop.f32.mrb[0].mxu0
    %v5626 = vpop.f32.mrb[0].mxu0
    %v5627 = vadd.f32 0.0, %v5626
    %v5628 = vpop.f32.mrb[0].mxu0
    %5629 = vmatprep.mubr.bf16.mxu0 0
    %5630 = vmatmul.mubr.bf16.gmra.mrb[0].mxu0 %v761
    %v5631 = vpop.f32.mrb[0].mxu0
    %v5632 = vadd.f32 0.0, %v5631
    %v5633 = vpop.f32.mrb[0].mxu0
    %v5634 = vpop.f32.mrb[0].mxu0
    %v5635 = vadd.f32 0.0, %v5634
    %v5636 = vpop.f32.mrb[0].mxu0
    %5637 = vmatprep.mubr.bf16.mxu0 0
    %5638 = vmatmul.mubr.bf16.gmra.mrb[0].mxu0 %v1749
    %v5639 = vpop.f32.mrb[0].mxu0
    %v5640 = vadd.f32 0.0, %v5639
    %v5641 = vpop.f32.mrb[0].mxu0
    %v5642 = vpop.f32.mrb[0].mxu0
    %v5643 = vadd.f32 0.0, %v5642
    %v5644 = vpop.f32.mrb[0].mxu0
    %5645 = vdwg.mxu0
    %v5646 = vadd.f32 %v5508, %v5584
    %v5647 = vadd.f32 %v5509, %v5587
    %v5648 = vadd.f32 %v5510, %v5592
    %v5649 = vadd.f32 %v5511, %v5595
    %v5650 = vadd.f32 %v5512, %v5600
    %v5651 = vadd.f32 %v5513, %v5603
    %v5652 = vadd.f32 %v5514, %v5608
    %v5653 = vadd.f32 %v5515, %v5611
    %v5654 = vadd.f32 %v5516, %v5616
    %v5655 = vadd.f32 %v5517, %v5619
    %v5656 = vadd.f32 %v5518, %v5624
    %v5657 = vadd.f32 %v5519, %v5627
    %v5658 = vadd.f32 %v5520, %v5632
    %v5659 = vadd.f32 %v5521, %v5635
    %v5660 = vadd.f32 %v5522, %v5640
    %v5661 = vadd.f32 %v5523, %v5643
    %v5662 = vld [vmem:[%s2] sm:$0x1]
    %v5664 = vlaneseq
    %v5665 = vshrl.u32 %v5664, 7
    %v5666 = vsub.s32 0, %v5665
    %v5667 = vrot.slane %v5662, %v5666
    %v5669 = vadd.f32 %v5646, %v5667
    %v5670 = vadd.f32 %v5647, %v5667
    %v5671 = vadd.f32 %v5648, %v5667
    %v5672 = vadd.f32 %v5649, %v5667
    %v5673 = vadd.f32 %v5650, %v5667
    %v5674 = vadd.f32 %v5651, %v5667
    %v5675 = vadd.f32 %v5652, %v5667
    %v5676 = vadd.f32 %v5653, %v5667
    %v5677 = vadd.f32 %v5654, %v5667
    %v5678 = vadd.f32 %v5655, %v5667
    %v5679 = vadd.f32 %v5656, %v5667
    %v5680 = vadd.f32 %v5657, %v5667
    %v5681 = vadd.f32 %v5658, %v5667
    %v5682 = vadd.f32 %v5659, %v5667
    %v5683 = vadd.f32 %v5660, %v5667
    %v5684 = vadd.f32 %v5661, %v5667
    %v5685 = vmax.f32 %v5669, 0.0
    %v5686 = vmax.f32 %v5670, 0.0
    %v5687 = vmax.f32 %v5671, 0.0
    %v5688 = vmax.f32 %v5672, 0.0
    %v5689 = vmax.f32 %v5673, 0.0
    %v5690 = vmax.f32 %v5674, 0.0
    %v5691 = vmax.f32 %v5675, 0.0
    %v5692 = vmax.f32 %v5676, 0.0
    %v5693 = vmax.f32 %v5677, 0.0
    %v5694 = vmax.f32 %v5678, 0.0
    %v5695 = vmax.f32 %v5679, 0.0
    %v5696 = vmax.f32 %v5680, 0.0
    %v5697 = vmax.f32 %v5681, 0.0
    %v5698 = vmax.f32 %v5682, 0.0
    %v5699 = vmax.f32 %v5683, 0.0
    %v5700 = vmax.f32 %v5684, 0.0
    %s5701 = scalar_lea.vmem [#allocation2], 880
    %5702 = vst [vmem:[%s5701 + $0x1] sm:$0xff] %v5685
    %5703 = vst [vmem:[%s5701 + $0x11] sm:$0xff] %v5686
    %5704 = vst [vmem:[%s5701 + $0x21] sm:$0xff] %v5687
    %5705 = vst [vmem:[%s5701 + $0x31] sm:$0xff] %v5688
    %5706 = vst [vmem:[%s5701 + $0x41] sm:$0xff] %v5689
    %5707 = vst [vmem:[%s5701 + $0x51] sm:$0xff] %v5690
    %5708 = vst [vmem:[%s5701 + $0x61] sm:$0xff] %v5691
    %5709 = vst [vmem:[%s5701 + $0x71] sm:$0xff] %v5692
    %5710 = vst [vmem:[%s5701 + $0x91] sm:$0xff] %v5693
    %5711 = vst [vmem:[%s5701 + $0xa1] sm:$0xff] %v5694
    %5712 = vst [vmem:[%s5701 + $0xb1] sm:$0xff] %v5695
    %5713 = vst [vmem:[%s5701 + $0xc1] sm:$0xff] %v5696
    %5714 = vst [vmem:[%s5701 + $0xd1] sm:$0xff] %v5697
    %5715 = vst [vmem:[%s5701 + $0xe1] sm:$0xff] %v5698
    %5716 = vst [vmem:[%s5701 + $0xf1] sm:$0xff] %v5699
    %5717 = vst [vmem:[%s5701 + $0x101] sm:$0xff] %v5700
    %v5718 = vld [vmem:[%s1903 + $0x1] sm:$0xff]
    %v5719 = vld [vmem:[%s1903 + $0x11] sm:$0xff]
    %v5720 = vld [vmem:[%s1903 + $0x21] sm:$0xff]
    %v5721 = vld [vmem:[%s1903 + $0x31] sm:$0xff]
    %v5722 = vld [vmem:[%s1903 + $0x41] sm:$0xff]
    %v5723 = vld [vmem:[%s1903 + $0x51] sm:$0xff]
    %v5724 = vld [vmem:[%s1903 + $0x61] sm:$0xff]
    %v5725 = vld [vmem:[%s1903 + $0x71] sm:$0xff]
    %v5726 = vld [vmem:[%s1903 + $0x91] sm:$0xff]
    %v5727 = vld [vmem:[%s1903 + $0xa1] sm:$0xff]
    %v5728 = vld [vmem:[%s1903 + $0xb1] sm:$0xff]
    %v5729 = vld [vmem:[%s1903 + $0xc1] sm:$0xff]
    %v5730 = vld [vmem:[%s1903 + $0xd1] sm:$0xff]
    %v5731 = vld [vmem:[%s1903 + $0xe1] sm:$0xff]
    %v5732 = vld [vmem:[%s1903 + $0xf1] sm:$0xff]
    %v5733 = vld [vmem:[%s1903 + $0x101] sm:$0xff]
    %v5734 = vld [vmem:[%s3169 + $0x1] sm:$0xff]
    %v5735 = vld [vmem:[%s3169 + $0x11] sm:$0xff]
    %v5736 = vld [vmem:[%s3169 + $0x21] sm:$0xff]
    %v5737 = vld [vmem:[%s3169 + $0x31] sm:$0xff]
    %v5738 = vld [vmem:[%s3169 + $0x41] sm:$0xff]
    %v5739 = vld [vmem:[%s3169 + $0x51] sm:$0xff]
    %v5740 = vld [vmem:[%s3169 + $0x61] sm:$0xff]
    %v5741 = vld [vmem:[%s3169 + $0x71] sm:$0xff]
    %v5742 = vld [vmem:[%s3169 + $0x91] sm:$0xff]
    %v5743 = vld [vmem:[%s3169 + $0xa1] sm:$0xff]
    %v5744 = vld [vmem:[%s3169 + $0xb1] sm:$0xff]
    %v5745 = vld [vmem:[%s3169 + $0xc1] sm:$0xff]
    %v5746 = vld [vmem:[%s3169 + $0xd1] sm:$0xff]
    %v5747 = vld [vmem:[%s3169 + $0xe1] sm:$0xff]
    %v5748 = vld [vmem:[%s3169 + $0xf1] sm:$0xff]
    %v5749 = vld [vmem:[%s3169 + $0x101] sm:$0xff]
    %v5750 = vmax.f32 %v5718, %v5734
    %v5751 = vmax.f32 %v5719, %v5735
    %v5752 = vmax.f32 %v5720, %v5736
    %v5753 = vmax.f32 %v5721, %v5737
    %v5754 = vmax.f32 %v5722, %v5738
    %v5755 = vmax.f32 %v5723, %v5739
    %v5756 = vmax.f32 %v5724, %v5740
    %v5757 = vmax.f32 %v5725, %v5741
    %v5758 = vmax.f32 %v5726, %v5742
    %v5759 = vmax.f32 %v5727, %v5743
    %v5760 = vmax.f32 %v5728, %v5744
    %v5761 = vmax.f32 %v5729, %v5745
    %v5762 = vmax.f32 %v5730, %v5746
    %v5763 = vmax.f32 %v5731, %v5747
    %v5764 = vmax.f32 %v5732, %v5748
    %v5765 = vmax.f32 %v5733, %v5749
    %v5766 = vld [vmem:[%s3169] sm:$0xff]
    %v5767 = vld [vmem:[%s3169 + $0x10] sm:$0xff]
    %v5768 = vld [vmem:[%s3169 + $0x20] sm:$0xff]
    %v5769 = vld [vmem:[%s3169 + $0x30] sm:$0xff]
    %v5770 = vld [vmem:[%s3169 + $0x40] sm:$0xff]
    %v5771 = vld [vmem:[%s3169 + $0x50] sm:$0xff]
    %v5772 = vld [vmem:[%s3169 + $0x60] sm:$0xff]
    %v5773 = vld [vmem:[%s3169 + $0x70] sm:$0xff]
    %v5774 = vld [vmem:[%s3169 + $0x90] sm:$0xff]
    %v5775 = vld [vmem:[%s3169 + $0xa0] sm:$0xff]
    %v5776 = vld [vmem:[%s3169 + $0xb0] sm:$0xff]
    %v5777 = vld [vmem:[%s3169 + $0xc0] sm:$0xff]
    %v5778 = vld [vmem:[%s3169 + $0xd0] sm:$0xff]
    %v5779 = vld [vmem:[%s3169 + $0xe0] sm:$0xff]
    %v5780 = vld [vmem:[%s3169 + $0xf0] sm:$0xff]
    %v5781 = vld [vmem:[%s3169 + $0x100] sm:$0xff]
    %v5782 = vmax.f32 %v5750, %v5766
    %v5783 = vmax.f32 %v5751, %v5767
    %v5784 = vmax.f32 %v5752, %v5768
    %v5785 = vmax.f32 %v5753, %v5769
    %v5786 = vmax.f32 %v5754, %v5770
    %v5787 = vmax.f32 %v5755, %v5771
    %v5788 = vmax.f32 %v5756, %v5772
    %v5789 = vmax.f32 %v5757, %v5773
    %v5790 = vmax.f32 %v5758, %v5774
    %v5791 = vmax.f32 %v5759, %v5775
    %v5792 = vmax.f32 %v5760, %v5776
    %v5793 = vmax.f32 %v5761, %v5777
    %v5794 = vmax.f32 %v5762, %v5778
    %v5795 = vmax.f32 %v5763, %v5779
    %v5796 = vmax.f32 %v5764, %v5780
    %v5797 = vmax.f32 %v5765, %v5781
    %v5798 = vld [vmem:[%s4435 + $0x1] sm:$0xff]
    %v5799 = vld [vmem:[%s4435 + $0x11] sm:$0xff]
    %v5800 = vld [vmem:[%s4435 + $0x21] sm:$0xff]
    %v5801 = vld [vmem:[%s4435 + $0x31] sm:$0xff]
    %v5802 = vld [vmem:[%s4435 + $0x41] sm:$0xff]
    %v5803 = vld [vmem:[%s4435 + $0x51] sm:$0xff]
    %v5804 = vld [vmem:[%s4435 + $0x61] sm:$0xff]
    %v5805 = vld [vmem:[%s4435 + $0x71] sm:$0xff]
    %v5806 = vld [vmem:[%s4435 + $0x91] sm:$0xff]
    %v5807 = vld [vmem:[%s4435 + $0xa1] sm:$0xff]
    %v5808 = vld [vmem:[%s4435 + $0xb1] sm:$0xff]
    %v5809 = vld [vmem:[%s4435 + $0xc1] sm:$0xff]
    %v5810 = vld [vmem:[%s4435 + $0xd1] sm:$0xff]
    %v5811 = vld [vmem:[%s4435 + $0xe1] sm:$0xff]
    %v5812 = vld [vmem:[%s4435 + $0xf1] sm:$0xff]
    %v5813 = vld [vmem:[%s4435 + $0x101] sm:$0xff]
    %v5814 = vmax.f32 %v5782, %v5798
    %v5815 = vmax.f32 %v5783, %v5799
    %v5816 = vmax.f32 %v5784, %v5800
    %v5817 = vmax.f32 %v5785, %v5801
    %v5818 = vmax.f32 %v5786, %v5802
    %v5819 = vmax.f32 %v5787, %v5803
    %v5820 = vmax.f32 %v5788, %v5804
    %v5821 = vmax.f32 %v5789, %v5805
    %v5822 = vmax.f32 %v5790, %v5806
    %v5823 = vmax.f32 %v5791, %v5807
    %v5824 = vmax.f32 %v5792, %v5808
    %v5825 = vmax.f32 %v5793, %v5809
    %v5826 = vmax.f32 %v5794, %v5810
    %v5827 = vmax.f32 %v5795, %v5811
    %v5828 = vmax.f32 %v5796, %v5812
    %v5829 = vmax.f32 %v5797, %v5813
    %s5830 = scalar_lea.vmem [#allocation2], 576
    %v5831 = vld [vmem:[%s5830 + $0x1] sm:$0xff]
    %v5832 = vld [vmem:[%s5830 + $0x11] sm:$0xff]
    %v5833 = vld [vmem:[%s5830 + $0x21] sm:$0xff]
    %v5834 = vld [vmem:[%s5830 + $0x31] sm:$0xff]
    %v5835 = vld [vmem:[%s5830 + $0x41] sm:$0xff]
    %v5836 = vld [vmem:[%s5830 + $0x51] sm:$0xff]
    %v5837 = vld [vmem:[%s5830 + $0x61] sm:$0xff]
    %v5838 = vld [vmem:[%s5830 + $0x71] sm:$0xff]
    %v5839 = vld [vmem:[%s5830 + $0x91] sm:$0xff]
    %v5840 = vld [vmem:[%s5830 + $0xa1] sm:$0xff]
    %v5841 = vld [vmem:[%s5830 + $0xb1] sm:$0xff]
    %v5842 = vld [vmem:[%s5830 + $0xc1] sm:$0xff]
    %v5843 = vld [vmem:[%s5830 + $0xd1] sm:$0xff]
    %v5844 = vld [vmem:[%s5830 + $0xe1] sm:$0xff]
    %v5845 = vld [vmem:[%s5830 + $0xf1] sm:$0xff]
    %v5846 = vld [vmem:[%s5830 + $0x101] sm:$0xff]
    %v5847 = vmax.f32 %v5814, %v5831
    %v5848 = vmax.f32 %v5815, %v5832
    %v5849 = vmax.f32 %v5816, %v5833
    %v5850 = vmax.f32 %v5817, %v5834
    %v5851 = vmax.f32 %v5818, %v5835
    %v5852 = vmax.f32 %v5819, %v5836
    %v5853 = vmax.f32 %v5820, %v5837
    %v5854 = vmax.f32 %v5821, %v5838
    %v5855 = vmax.f32 %v5822, %v5839
    %v5856 = vmax.f32 %v5823, %v5840
    %v5857 = vmax.f32 %v5824, %v5841
    %v5858 = vmax.f32 %v5825, %v5842
    %v5859 = vmax.f32 %v5826, %v5843
    %v5860 = vmax.f32 %v5827, %v5844
    %v5861 = vmax.f32 %v5828, %v5845
    %v5862 = vmax.f32 %v5829, %v5846
    %v5863 = vld [vmem:[%s5701 + $0x1] sm:$0xff]
    %v5864 = vld [vmem:[%s5701 + $0x11] sm:$0xff]
    %v5865 = vld [vmem:[%s5701 + $0x21] sm:$0xff]
    %v5866 = vld [vmem:[%s5701 + $0x31] sm:$0xff]
    %v5867 = vld [vmem:[%s5701 + $0x41] sm:$0xff]
    %v5868 = vld [vmem:[%s5701 + $0x51] sm:$0xff]
    %v5869 = vld [vmem:[%s5701 + $0x61] sm:$0xff]
    %v5870 = vld [vmem:[%s5701 + $0x71] sm:$0xff]
    %v5871 = vld [vmem:[%s5701 + $0x91] sm:$0xff]
    %v5872 = vld [vmem:[%s5701 + $0xa1] sm:$0xff]
    %v5873 = vld [vmem:[%s5701 + $0xb1] sm:$0xff]
    %v5874 = vld [vmem:[%s5701 + $0xc1] sm:$0xff]
    %v5875 = vld [vmem:[%s5701 + $0xd1] sm:$0xff]
    %v5876 = vld [vmem:[%s5701 + $0xe1] sm:$0xff]
    %v5877 = vld [vmem:[%s5701 + $0xf1] sm:$0xff]
    %v5878 = vld [vmem:[%s5701 + $0x101] sm:$0xff]
    %v5879 = vmax.f32 %v5847, %v5863
    %v5880 = vmax.f32 %v5848, %v5864
    %v5881 = vmax.f32 %v5849, %v5865
    %v5882 = vmax.f32 %v5850, %v5866
    %v5883 = vmax.f32 %v5851, %v5867
    %v5884 = vmax.f32 %v5852, %v5868
    %v5885 = vmax.f32 %v5853, %v5869
    %v5886 = vmax.f32 %v5854, %v5870
    %v5887 = vmax.f32 %v5855, %v5871
    %v5888 = vmax.f32 %v5856, %v5872
    %v5889 = vmax.f32 %v5857, %v5873
    %v5890 = vmax.f32 %v5858, %v5874
    %v5891 = vmax.f32 %v5859, %v5875
    %v5892 = vmax.f32 %v5860, %v5876
    %v5893 = vmax.f32 %v5861, %v5877
    %v5894 = vmax.f32 %v5862, %v5878
    %v5895 = vld [vmem:[%s5701] sm:$0xff]
    %v5896 = vld [vmem:[%s5701 + $0x10] sm:$0xff]
    %v5897 = vld [vmem:[%s5701 + $0x20] sm:$0xff]
    %v5898 = vld [vmem:[%s5701 + $0x30] sm:$0xff]
    %v5899 = vld [vmem:[%s5701 + $0x40] sm:$0xff]
    %v5900 = vld [vmem:[%s5701 + $0x50] sm:$0xff]
    %v5901 = vld [vmem:[%s5701 + $0x60] sm:$0xff]
    %v5902 = vld [vmem:[%s5701 + $0x70] sm:$0xff]
    %v5903 = vld [vmem:[%s5701 + $0x90] sm:$0xff]
    %v5904 = vld [vmem:[%s5701 + $0xa0] sm:$0xff]
    %v5905 = vld [vmem:[%s5701 + $0xb0] sm:$0xff]
    %v5906 = vld [vmem:[%s5701 + $0xc0] sm:$0xff]
    %v5907 = vld [vmem:[%s5701 + $0xd0] sm:$0xff]
    %v5908 = vld [vmem:[%s5701 + $0xe0] sm:$0xff]
    %v5909 = vld [vmem:[%s5701 + $0xf0] sm:$0xff]
    %v5910 = vld [vmem:[%s5701 + $0x100] sm:$0xff]
    %v5911 = vmax.f32 %v5879, %v5895
    %v5912 = vmax.f32 %v5880, %v5896
    %v5913 = vmax.f32 %v5881, %v5897
    %v5914 = vmax.f32 %v5882, %v5898
    %v5915 = vmax.f32 %v5883, %v5899
    %v5916 = vmax.f32 %v5884, %v5900
    %v5917 = vmax.f32 %v5885, %v5901
    %v5918 = vmax.f32 %v5886, %v5902
    %v5919 = vmax.f32 %v5887, %v5903
    %v5920 = vmax.f32 %v5888, %v5904
    %v5921 = vmax.f32 %v5889, %v5905
    %v5922 = vmax.f32 %v5890, %v5906
    %v5923 = vmax.f32 %v5891, %v5907
    %v5924 = vmax.f32 %v5892, %v5908
    %v5925 = vmax.f32 %v5893, %v5909
    %v5926 = vmax.f32 %v5894, %v5910
    %s5927 = scalar_lea.vmem [#allocation2], 864
    %v5928 = vld [vmem:[%s5927 + $0x1] sm:$0xff]
    %v5929 = vld [vmem:[%s5927 + $0x11] sm:$0xff]
    %v5930 = vld [vmem:[%s5927 + $0x21] sm:$0xff]
    %v5931 = vld [vmem:[%s5927 + $0x31] sm:$0xff]
    %v5932 = vld [vmem:[%s5927 + $0x41] sm:$0xff]
    %v5933 = vld [vmem:[%s5927 + $0x51] sm:$0xff]
    %v5934 = vld [vmem:[%s5927 + $0x61] sm:$0xff]
    %v5935 = vld [vmem:[%s5927 + $0x71] sm:$0xff]
    %v5936 = vld [vmem:[%s5927 + $0x91] sm:$0xff]
    %v5937 = vld [vmem:[%s5927 + $0xa1] sm:$0xff]
    %v5938 = vld [vmem:[%s5927 + $0xb1] sm:$0xff]
    %v5939 = vld [vmem:[%s5927 + $0xc1] sm:$0xff]
    %v5940 = vld [vmem:[%s5927 + $0xd1] sm:$0xff]
    %v5941 = vld [vmem:[%s5927 + $0xe1] sm:$0xff]
    %v5942 = vld [vmem:[%s5927 + $0xf1] sm:$0xff]
    %v5943 = vld [vmem:[%s5927 + $0x101] sm:$0xff]
    %v5944 = vmax.f32 %v5911, %v5928
    %v5945 = vmax.f32 %v5912, %v5929
    %v5946 = vmax.f32 %v5913, %v5930
    %v5947 = vmax.f32 %v5914, %v5931
    %v5948 = vmax.f32 %v5915, %v5932
    %v5949 = vmax.f32 %v5916, %v5933
    %v5950 = vmax.f32 %v5917, %v5934
    %v5951 = vmax.f32 %v5918, %v5935
    %v5952 = vmax.f32 %v5919, %v5936
    %v5953 = vmax.f32 %v5920, %v5937
    %v5954 = vmax.f32 %v5921, %v5938
    %v5955 = vmax.f32 %v5922, %v5939
    %v5956 = vmax.f32 %v5923, %v5940
    %v5957 = vmax.f32 %v5924, %v5941
    %v5958 = vmax.f32 %v5925, %v5942
    %v5959 = vmax.f32 %v5926, %v5943
    %v5960 = vld [vmem:[%s5927] sm:$0xff]
    %v5961 = vld [vmem:[%s5927 + $0x10] sm:$0xff]
    %v5962 = vld [vmem:[%s5927 + $0x20] sm:$0xff]
    %v5963 = vld [vmem:[%s5927 + $0x30] sm:$0xff]
    %v5964 = vld [vmem:[%s5927 + $0x40] sm:$0xff]
    %v5965 = vld [vmem:[%s5927 + $0x50] sm:$0xff]
    %v5966 = vld [vmem:[%s5927 + $0x60] sm:$0xff]
    %v5967 = vld [vmem:[%s5927 + $0x70] sm:$0xff]
    %v5968 = vld [vmem:[%s5927 + $0x90] sm:$0xff]
    %v5969 = vld [vmem:[%s5927 + $0xa0] sm:$0xff]
    %v5970 = vld [vmem:[%s5927 + $0xb0] sm:$0xff]
    %v5971 = vld [vmem:[%s5927 + $0xc0] sm:$0xff]
    %v5972 = vld [vmem:[%s5927 + $0xd0] sm:$0xff]
    %v5973 = vld [vmem:[%s5927 + $0xe0] sm:$0xff]
    %v5974 = vld [vmem:[%s5927 + $0xf0] sm:$0xff]
    %v5975 = vld [vmem:[%s5927 + $0x100] sm:$0xff]
    %v5976 = vmax.f32 %v5944, %v5960
    %v5977 = vmax.f32 %v5945, %v5961
    %v5978 = vmax.f32 %v5946, %v5962
    %v5979 = vmax.f32 %v5947, %v5963
    %v5980 = vmax.f32 %v5948, %v5964
    %v5981 = vmax.f32 %v5949, %v5965
    %v5982 = vmax.f32 %v5950, %v5966
    %v5983 = vmax.f32 %v5951, %v5967
    %v5984 = vmax.f32 %v5952, %v5968
    %v5985 = vmax.f32 %v5953, %v5969
    %v5986 = vmax.f32 %v5954, %v5970
    %v5987 = vmax.f32 %v5955, %v5971
    %v5988 = vmax.f32 %v5956, %v5972
    %v5989 = vmax.f32 %v5957, %v5973
    %v5990 = vmax.f32 %v5958, %v5974
    %v5991 = vmax.f32 %v5959, %v5975
    %v5992 = vpack.c.bf16 %v5977, %v5976
    %v5993 = vpack.c.bf16 %v5979, %v5978
    %v5994 = vpack.c.bf16 %v5981, %v5980
    %v5995 = vpack.c.bf16 %v5983, %v5982
    %v5996 = vpack.c.bf16 %v5985, %v5984
    %v5997 = vpack.c.bf16 %v5987, %v5986
    %v5998 = vpack.c.bf16 %v5989, %v5988
    %v5999 = vpack.c.bf16 %v5991, %v5990
    %v6000 = vld [vmem:[%s3] sm:$0xf]
    %v6001 = vld [vmem:[%s3 + $0x4] sm:$0xf]
    %v6002 = vld [vmem:[%s3 + $0x8] sm:$0xf]
    %v6003 = vld [vmem:[%s3 + $0xc] sm:$0xf]
    %v6004 = vld [vmem:[%s3 + $0x10] sm:$0xf]
    %v6005 = vld [vmem:[%s3 + $0x14] sm:$0xf]
    %v6006 = vld [vmem:[%s3 + $0x18] sm:$0xf]
    %v6007 = vld [vmem:[%s3 + $0x1c] sm:$0xf]
    %v6008 = vld [vmem:[%s3 + $0x20] sm:$0xf]
    %v6009 = vld [vmem:[%s3 + $0x24] sm:$0xf]
    %v6010 = vld [vmem:[%s3 + $0x28] sm:$0xf]
    %v6011 = vld [vmem:[%s3 + $0x2c] sm:$0xf]
    %v6012 = vld [vmem:[%s3 + $0x30] sm:$0xf]
    %v6013 = vld [vmem:[%s3 + $0x34] sm:$0xf]
    %v6014 = vld [vmem:[%s3 + $0x38] sm:$0xf]
    %v6015 = vld [vmem:[%s3 + $0x3c] sm:$0xf]
    %v6016 = vld [vmem:[%s4] sm:$0x1]
    %v6018 = vlaneseq
    %v6019 = vshrl.u32 %v6018, 7
    %v6020 = vsub.s32 0, %v6019
    %v6021 = vrot.slane %v6016, %v6020
    %v6039 = vunpack.c.l.b16 %v6000
    %v6040 = vunpack.c.l.b16 %v6001
    %v6041 = vunpack.c.l.b16 %v6002
    %v6042 = vunpack.c.l.b16 %v6003
    %v6043 = vunpack.c.l.b16 %v6004
    %v6044 = vunpack.c.l.b16 %v6005
    %v6045 = vunpack.c.l.b16 %v6006
    %v6046 = vunpack.c.l.b16 %v6007
    %v6047 = vunpack.c.l.b16 %v6008
    %v6048 = vunpack.c.l.b16 %v6009
    %v6049 = vunpack.c.l.b16 %v6010
    %v6050 = vunpack.c.l.b16 %v6011
    %v6051 = vunpack.c.l.b16 %v6012
    %v6052 = vunpack.c.l.b16 %v6013
    %v6053 = vunpack.c.l.b16 %v6014
    %v6054 = vunpack.c.l.b16 %v6015
    %v6055 = vpack.c.b16 %v6040, %v6039
    %v6056 = vpack.c.b16 %v6042, %v6041
    %v6057 = vpack.c.b16 %v6044, %v6043
    %v6058 = vpack.c.b16 %v6046, %v6045
    %v6059 = vpack.c.b16 %v6048, %v6047
    %v6060 = vpack.c.b16 %v6050, %v6049
    %v6061 = vpack.c.b16 %v6052, %v6051
    %v6062 = vpack.c.b16 %v6054, %v6053
    %6071 = vmatprep.subr.bf16.mxu0 0
    %6072 = vmatpush1.bf16.msra.mxu0 %v6055
    %6073 = vmatprep.subr.bf16.mxu0 0
    %6074 = vmatpush1.bf16.msra.mxu0 %v6056
    %6075 = vmatprep.subr.bf16.mxu0 0
    %6076 = vmatpush1.bf16.msra.mxu0 %v6057
    %6077 = vmatprep.subr.bf16.mxu0 0
    %6078 = vmatpush1.bf16.msra.mxu0 %v6058
    %6079 = vmatprep.subr.bf16.mxu0 0
    %6080 = vmatpush1.bf16.msra.mxu0 %v6059
    %6081 = vmatprep.subr.bf16.mxu0 0
    %6082 = vmatpush1.bf16.msra.mxu0 %v6060
    %6083 = vmatprep.subr.bf16.mxu0 0
    %6084 = vmatpush1.bf16.msra.mxu0 %v6061
    %6085 = vmatprep.subr.bf16.mxu0 0
    %6086 = vmatpush1.bf16.msra.mxu0 %v6062
    %6087 = vmatprep.subr.bf16.mxu0 0
    %6088 = vmatpush1.bf16.msra.mxu0 0
    %6089 = vmatprep.subr.bf16.mxu0 0
    %6090 = vmatpush1.bf16.msra.mxu0 0
    %6091 = vmatprep.subr.bf16.mxu0 0
    %6092 = vmatpush1.bf16.msra.mxu0 0
    %6093 = vmatprep.subr.bf16.mxu0 0
    %6094 = vmatpush1.bf16.msra.mxu0 0
    %6095 = vmatprep.subr.bf16.mxu0 0
    %6096 = vmatpush1.bf16.msra.mxu0 0
    %6097 = vmatprep.subr.bf16.mxu0 0
    %6098 = vmatpush1.bf16.msra.mxu0 0
    %6099 = vmatprep.subr.bf16.mxu0 0
    %6100 = vmatpush1.bf16.msra.mxu0 0
    %6101 = vmatprep.subr.bf16.mxu0 0
    %6102 = vmatpush1.bf16.msra.mxu0 0
    %6103 = vmatprep.mubr.bf16.mxu0 0
    %6104 = vmatmul.mubr.bf16.gmra.mrb[0].mxu0 %v5992
    %v6105 = vpop.f32.mrb[0].mxu0
    %v6106 = vadd.f32 %v6021, %v6105
    %v6107 = vpop.f32.mrb[0].mxu0
    %v6108 = vpop.f32.mrb[0].mxu0
    %v6109 = vadd.f32 %v6021, %v6108
    %v6110 = vpop.f32.mrb[0].mxu0
    %6111 = vmatprep.mubr.bf16.mxu0 0
    %6112 = vmatmul.mubr.bf16.gmra.mrb[0].mxu0 %v5993
    %v6113 = vpop.f32.mrb[0].mxu0
    %v6114 = vadd.f32 %v6021, %v6113
    %v6115 = vpop.f32.mrb[0].mxu0
    %v6116 = vpop.f32.mrb[0].mxu0
    %v6117 = vadd.f32 %v6021, %v6116
    %v6118 = vpop.f32.mrb[0].mxu0
    %6119 = vmatprep.mubr.bf16.mxu0 0
    %6120 = vmatmul.mubr.bf16.gmra.mrb[0].mxu0 %v5994
    %v6121 = vpop.f32.mrb[0].mxu0
    %v6122 = vadd.f32 %v6021, %v6121
    %v6123 = vpop.f32.mrb[0].mxu0
    %v6124 = vpop.f32.mrb[0].mxu0
    %v6125 = vadd.f32 %v6021, %v6124
    %v6126 = vpop.f32.mrb[0].mxu0
    %6127 = vmatprep.mubr.bf16.mxu0 0
    %6128 = vmatmul.mubr.bf16.gmra.mrb[0].mxu0 %v5995
    %v6129 = vpop.f32.mrb[0].mxu0
    %v6130 = vadd.f32 %v6021, %v6129
    %v6131 = vpop.f32.mrb[0].mxu0
    %v6132 = vpop.f32.mrb[0].mxu0
    %v6133 = vadd.f32 %v6021, %v6132
    %v6134 = vpop.f32.mrb[0].mxu0
    %6135 = vmatprep.mubr.bf16.mxu0 0
    %6136 = vmatmul.mubr.bf16.gmra.mrb[0].mxu0 %v5996
    %v6137 = vpop.f32.mrb[0].mxu0
    %v6138 = vadd.f32 %v6021, %v6137
    %v6139 = vpop.f32.mrb[0].mxu0
    %v6140 = vpop.f32.mrb[0].mxu0
    %v6141 = vadd.f32 %v6021, %v6140
    %v6142 = vpop.f32.mrb[0].mxu0
    %6143 = vmatprep.mubr.bf16.mxu0 0
    %6144 = vmatmul.mubr.bf16.gmra.mrb[0].mxu0 %v5997
    %v6145 = vpop.f32.mrb[0].mxu0
    %v6146 = vadd.f32 %v6021, %v6145
    %v6147 = vpop.f32.mrb[0].mxu0
    %v6148 = vpop.f32.mrb[0].mxu0
    %v6149 = vadd.f32 %v6021, %v6148
    %v6150 = vpop.f32.mrb[0].mxu0
    %6151 = vmatprep.mubr.bf16.mxu0 0
    %6152 = vmatmul.mubr.bf16.gmra.mrb[0].mxu0 %v5998
    %v6153 = vpop.f32.mrb[0].mxu0
    %v6154 = vadd.f32 %v6021, %v6153
    %v6155 = vpop.f32.mrb[0].mxu0
    %v6156 = vpop.f32.mrb[0].mxu0
    %v6157 = vadd.f32 %v6021, %v6156
    %v6158 = vpop.f32.mrb[0].mxu0
    %6159 = vmatprep.mubr.bf16.mxu0 0
    %6160 = vmatmul.mubr.bf16.gmra.mrb[0].mxu0 %v5999
    %v6161 = vpop.f32.mrb[0].mxu0
    %v6162 = vadd.f32 %v6021, %v6161
    %v6163 = vpop.f32.mrb[0].mxu0
    %v6164 = vpop.f32.mrb[0].mxu0
    %v6165 = vadd.f32 %v6021, %v6164
    %v6166 = vpop.f32.mrb[0].mxu0
    %6167 = vdwg.mxu0
    %v6168 = vmax.f32 %v6106, 0.0
    %v6169 = vmax.f32 %v6109, 0.0
    %v6170 = vmax.f32 %v6114, 0.0
    %v6171 = vmax.f32 %v6117, 0.0
    %v6172 = vmax.f32 %v6122, 0.0
    %v6173 = vmax.f32 %v6125, 0.0
    %v6174 = vmax.f32 %v6130, 0.0
    %v6175 = vmax.f32 %v6133, 0.0
    %v6176 = vmax.f32 %v6138, 0.0
    %v6177 = vmax.f32 %v6141, 0.0
    %v6178 = vmax.f32 %v6146, 0.0
    %v6179 = vmax.f32 %v6149, 0.0
    %v6180 = vmax.f32 %v6154, 0.0
    %v6181 = vmax.f32 %v6157, 0.0
    %v6182 = vmax.f32 %v6162, 0.0
    %v6183 = vmax.f32 %v6165, 0.0
    %6184 = vst [vmem:[#allocation3] sm:$0xff] 0.0
    %6185 = vst [vmem:[#allocation3 + $0x8] sm:$0x3] 0.0
    %6186 = vst [vmem:[#allocation3 + $0x10] sm:$0xff] 0.0
    %6187 = vst [vmem:[#allocation3 + $0x18] sm:$0x3] 0.0
    %6188 = vst [vmem:[#allocation3 + $0x20] sm:$0xff] 0.0
    %6189 = vst [vmem:[#allocation3 + $0x28] sm:$0x3] 0.0
    %6190 = vst [vmem:[#allocation3 + $0x30] sm:$0xff] 0.0
    %6191 = vst [vmem:[#allocation3 + $0x38] sm:$0x3] 0.0
    %6192 = vst [vmem:[#allocation3 + $0x40] sm:$0xff] 0.0
    %6193 = vst [vmem:[#allocation3 + $0x48] sm:$0x3] 0.0
    %6194 = vst [vmem:[#allocation3 + $0x50] sm:$0xff] 0.0
    %6195 = vst [vmem:[#allocation3 + $0x58] sm:$0x3] 0.0
    %6196 = vst [vmem:[#allocation3 + $0x60] sm:$0xff] 0.0
    %6197 = vst [vmem:[#allocation3 + $0x68] sm:$0x3] 0.0
    %6198 = vst [vmem:[#allocation3 + $0x70] sm:$0xff] 0.0
    %6199 = vst [vmem:[#allocation3 + $0x78] sm:$0x3] 0.0
    %6200 = vst [vmem:[#allocation3 + $0x80] sm:$0xff] 0.0
    %6201 = vst [vmem:[#allocation3 + $0x88] sm:$0x3] 0.0
    %6202 = vst [vmem:[#allocation3 + $0x90] sm:$0xff] 0.0
    %6203 = vst [vmem:[#allocation3 + $0x98] sm:$0x3] 0.0
    %6204 = vst [vmem:[#allocation3 + $0xa0] sm:$0xff] 0.0
    %6205 = vst [vmem:[#allocation3 + $0xa8] sm:$0x3] 0.0
    %6206 = vst [vmem:[#allocation3 + $0xb0] sm:$0xff] 0.0
    %6207 = vst [vmem:[#allocation3 + $0xb8] sm:$0x3] 0.0
    %6208 = vst [vmem:[#allocation3 + $0xc0] sm:$0xff] 0.0
    %6209 = vst [vmem:[#allocation3 + $0xc8] sm:$0x3] 0.0
    %6210 = vst [vmem:[#allocation3 + $0xd0] sm:$0xff] 0.0
    %6211 = vst [vmem:[#allocation3 + $0xd8] sm:$0x3] 0.0
    %6212 = vst [vmem:[#allocation3 + $0xe0] sm:$0xff] 0.0
    %6213 = vst [vmem:[#allocation3 + $0xe8] sm:$0x3] 0.0
    %6214 = vst [vmem:[#allocation3 + $0xf0] sm:$0xff] 0.0
    %6215 = vst [vmem:[#allocation3 + $0xf8] sm:$0x3] 0.0
    %6216 = vst [vmem:[#allocation3 + $0x100] sm:$0xff] 0.0
    %6217 = vst [vmem:[#allocation3 + $0x108] sm:$0x3] 0.0
    %6218 = vst [vmem:[#allocation3 + $0x110] sm:$0xff] 0.0
    %6219 = vst [vmem:[#allocation3 + $0x118] sm:$0x3] 0.0
    %6220 = vst [vmem:[#allocation3 + $0x120] sm:$0xff] 0.0
    %6221 = vst [vmem:[#allocation3 + $0x128] sm:$0x3] 0.0
    %6222 = vst [vmem:[#allocation3 + $0x130] sm:$0xff] 0.0
    %6223 = vst [vmem:[#allocation3 + $0x138] sm:$0x3] 0.0
    %s6224 = scalar_lea.vmem [#allocation3], 16
    %6225 = vst [vmem:[%s6224 + $0x1] sm:$0xff] %v6168
    %6226 = vst [vmem:[%s6224 + $0x11] sm:$0xff] %v6169
    %6227 = vst [vmem:[%s6224 + $0x21] sm:$0xff] %v6170
    %6228 = vst [vmem:[%s6224 + $0x31] sm:$0xff] %v6171
    %6229 = vst [vmem:[%s6224 + $0x41] sm:$0xff] %v6172
    %6230 = vst [vmem:[%s6224 + $0x51] sm:$0xff] %v6173
    %6231 = vst [vmem:[%s6224 + $0x61] sm:$0xff] %v6174
    %6232 = vst [vmem:[%s6224 + $0x71] sm:$0xff] %v6175
    %6233 = vst [vmem:[%s6224 + $0xa1] sm:$0xff] %v6176
    %6234 = vst [vmem:[%s6224 + $0xb1] sm:$0xff] %v6177
    %6235 = vst [vmem:[%s6224 + $0xc1] sm:$0xff] %v6178
    %6236 = vst [vmem:[%s6224 + $0xd1] sm:$0xff] %v6179
    %6237 = vst [vmem:[%s6224 + $0xe1] sm:$0xff] %v6180
    %6238 = vst [vmem:[%s6224 + $0xf1] sm:$0xff] %v6181
    %6239 = vst [vmem:[%s6224 + $0x101] sm:$0xff] %v6182
    %6240 = vst [vmem:[%s6224 + $0x111] sm:$0xff] %v6183
    %v6241 = vld [vmem:[#allocation3] sm:$0xff]
    %v6242 = vld [vmem:[#allocation3 + $0x10] sm:$0xff]
    %v6243 = vld [vmem:[#allocation3 + $0x20] sm:$0xff]
    %v6244 = vld [vmem:[#allocation3 + $0x30] sm:$0xff]
    %v6245 = vld [vmem:[#allocation3 + $0x40] sm:$0xff]
    %v6246 = vld [vmem:[#allocation3 + $0x50] sm:$0xff]
    %v6247 = vld [vmem:[#allocation3 + $0x60] sm:$0xff]
    %v6248 = vld [vmem:[#allocation3 + $0x70] sm:$0xff]
    %v6249 = vld [vmem:[#allocation3 + $0xa0] sm:$0xff]
    %v6250 = vld [vmem:[#allocation3 + $0xb0] sm:$0xff]
    %v6251 = vld [vmem:[#allocation3 + $0xc0] sm:$0xff]
    %v6252 = vld [vmem:[#allocation3 + $0xd0] sm:$0xff]
    %v6253 = vld [vmem:[#allocation3 + $0xe0] sm:$0xff]
    %v6254 = vld [vmem:[#allocation3 + $0xf0] sm:$0xff]
    %v6255 = vld [vmem:[#allocation3 + $0x100] sm:$0xff]
    %v6256 = vld [vmem:[#allocation3 + $0x110] sm:$0xff]
    %v6257 = vpack.c.bf16 %v6242, %v6241
    %v6258 = vpack.c.bf16 %v6244, %v6243
    %v6259 = vpack.c.bf16 %v6246, %v6245
    %v6260 = vpack.c.bf16 %v6248, %v6247
    %v6261 = vpack.c.bf16 %v6250, %v6249
    %v6262 = vpack.c.bf16 %v6252, %v6251
    %v6263 = vpack.c.bf16 %v6254, %v6253
    %v6264 = vpack.c.bf16 %v6256, %v6255
    %v6265 = vld [vmem:[%s5] sm:$0xf]
    %v6266 = vld [vmem:[%s5 + $0x4] sm:$0xf]
    %v6267 = vld [vmem:[%s5 + $0x8] sm:$0xf]
    %v6268 = vld [vmem:[%s5 + $0xc] sm:$0xf]
    %v6269 = vld [vmem:[%s5 + $0x10] sm:$0xf]
    %v6270 = vld [vmem:[%s5 + $0x14] sm:$0xf]
    %v6271 = vld [vmem:[%s5 + $0x18] sm:$0xf]
    %v6272 = vld [vmem:[%s5 + $0x1c] sm:$0xf]
    %v6273 = vld [vmem:[%s5 + $0x20] sm:$0xf]
    %v6274 = vld [vmem:[%s5 + $0x24] sm:$0xf]
    %v6275 = vld [vmem:[%s5 + $0x28] sm:$0xf]
    %v6276 = vld [vmem:[%s5 + $0x2c] sm:$0xf]
    %v6277 = vld [vmem:[%s5 + $0x30] sm:$0xf]
    %v6278 = vld [vmem:[%s5 + $0x34] sm:$0xf]
    %v6279 = vld [vmem:[%s5 + $0x38] sm:$0xf]
    %v6280 = vld [vmem:[%s5 + $0x3c] sm:$0xf]
    %v6281 = vld [vmem:[#allocation3 + $0x1] sm:$0xff]
    %v6282 = vld [vmem:[#allocation3 + $0x11] sm:$0xff]
    %v6283 = vld [vmem:[#allocation3 + $0x21] sm:$0xff]
    %v6284 = vld [vmem:[#allocation3 + $0x31] sm:$0xff]
    %v6285 = vld [vmem:[#allocation3 + $0x41] sm:$0xff]
    %v6286 = vld [vmem:[#allocation3 + $0x51] sm:$0xff]
    %v6287 = vld [vmem:[#allocation3 + $0x61] sm:$0xff]
    %v6288 = vld [vmem:[#allocation3 + $0x71] sm:$0xff]
    %v6289 = vld [vmem:[#allocation3 + $0xa1] sm:$0xff]
    %v6290 = vld [vmem:[#allocation3 + $0xb1] sm:$0xff]
    %v6291 = vld [vmem:[#allocation3 + $0xc1] sm:$0xff]
    %v6292 = vld [vmem:[#allocation3 + $0xd1] sm:$0xff]
    %v6293 = vld [vmem:[#allocation3 + $0xe1] sm:$0xff]
    %v6294 = vld [vmem:[#allocation3 + $0xf1] sm:$0xff]
    %v6295 = vld [vmem:[#allocation3 + $0x101] sm:$0xff]
    %v6296 = vld [vmem:[#allocation3 + $0x111] sm:$0xff]
    %v6297 = vpack.c.bf16 %v6282, %v6281
    %v6298 = vpack.c.bf16 %v6284, %v6283
    %v6299 = vpack.c.bf16 %v6286, %v6285
    %v6300 = vpack.c.bf16 %v6288, %v6287
    %v6301 = vpack.c.bf16 %v6290, %v6289
    %v6302 = vpack.c.bf16 %v6292, %v6291
    %v6303 = vpack.c.bf16 %v6294, %v6293
    %v6304 = vpack.c.bf16 %v6296, %v6295
    %s6305 = scalar_lea.vmem %s5, 64
    %v6306 = vld [vmem:[%s6305] sm:$0xf]
    %v6307 = vld [vmem:[%s6305 + $0x4] sm:$0xf]
    %v6308 = vld [vmem:[%s6305 + $0x8] sm:$0xf]
    %v6309 = vld [vmem:[%s6305 + $0xc] sm:$0xf]
    %v6310 = vld [vmem:[%s6305 + $0x10] sm:$0xf]
    %v6311 = vld [vmem:[%s6305 + $0x14] sm:$0xf]
    %v6312 = vld [vmem:[%s6305 + $0x18] sm:$0xf]
    %v6313 = vld [vmem:[%s6305 + $0x1c] sm:$0xf]
    %v6314 = vld [vmem:[%s6305 + $0x20] sm:$0xf]
    %v6315 = vld [vmem:[%s6305 + $0x24] sm:$0xf]
    %v6316 = vld [vmem:[%s6305 + $0x28] sm:$0xf]
    %v6317 = vld [vmem:[%s6305 + $0x2c] sm:$0xf]
    %v6318 = vld [vmem:[%s6305 + $0x30] sm:$0xf]
    %v6319 = vld [vmem:[%s6305 + $0x34] sm:$0xf]
    %v6320 = vld [vmem:[%s6305 + $0x38] sm:$0xf]
    %v6321 = vld [vmem:[%s6305 + $0x3c] sm:$0xf]
    %v6338 = vunpack.c.l.b16 %v6306
    %v6339 = vunpack.c.l.b16 %v6307
    %v6340 = vunpack.c.l.b16 %v6308
    %v6341 = vunpack.c.l.b16 %v6309
    %v6342 = vunpack.c.l.b16 %v6310
    %v6343 = vunpack.c.l.b16 %v6311
    %v6344 = vunpack.c.l.b16 %v6312
    %v6345 = vunpack.c.l.b16 %v6313
    %v6346 = vunpack.c.l.b16 %v6314
    %v6347 = vunpack.c.l.b16 %v6315
    %v6348 = vunpack.c.l.b16 %v6316
    %v6349 = vunpack.c.l.b16 %v6317
    %v6350 = vunpack.c.l.b16 %v6318
    %v6351 = vunpack.c.l.b16 %v6319
    %v6352 = vunpack.c.l.b16 %v6320
    %v6353 = vunpack.c.l.b16 %v6321
    %v6354 = vpack.c.b16 %v6339, %v6338
    %v6355 = vpack.c.b16 %v6341, %v6340
    %v6356 = vpack.c.b16 %v6343, %v6342
    %v6357 = vpack.c.b16 %v6345, %v6344
    %v6358 = vpack.c.b16 %v6347, %v6346
    %v6359 = vpack.c.b16 %v6349, %v6348
    %v6360 = vpack.c.b16 %v6351, %v6350
    %v6361 = vpack.c.b16 %v6353, %v6352
    %6370 = vmatprep.subr.bf16.mxu0 0
    %6371 = vmatpush1.bf16.msra.mxu0 %v6354
    %6372 = vmatprep.subr.bf16.mxu0 0
    %6373 = vmatpush1.bf16.msra.mxu0 %v6355
    %6374 = vmatprep.subr.bf16.mxu0 0
    %6375 = vmatpush1.bf16.msra.mxu0 %v6356
    %6376 = vmatprep.subr.bf16.mxu0 0
    %6377 = vmatpush1.bf16.msra.mxu0 %v6357
    %6378 = vmatprep.subr.bf16.mxu0 0
    %6379 = vmatpush1.bf16.msra.mxu0 %v6358
    %6380 = vmatprep.subr.bf16.mxu0 0
    %6381 = vmatpush1.bf16.msra.mxu0 %v6359
    %6382 = vmatprep.subr.bf16.mxu0 0
    %6383 = vmatpush1.bf16.msra.mxu0 %v6360
    %6384 = vmatprep.subr.bf16.mxu0 0
    %6385 = vmatpush1.bf16.msra.mxu0 %v6361
    %6386 = vmatprep.subr.bf16.mxu0 0
    %6387 = vmatpush1.bf16.msra.mxu0 0
    %6388 = vmatprep.subr.bf16.mxu0 0
    %6389 = vmatpush1.bf16.msra.mxu0 0
    %6390 = vmatprep.subr.bf16.mxu0 0
    %6391 = vmatpush1.bf16.msra.mxu0 0
    %6392 = vmatprep.subr.bf16.mxu0 0
    %6393 = vmatpush1.bf16.msra.mxu0 0
    %6394 = vmatprep.subr.bf16.mxu0 0
    %6395 = vmatpush1.bf16.msra.mxu0 0
    %6396 = vmatprep.subr.bf16.mxu0 0
    %6397 = vmatpush1.bf16.msra.mxu0 0
    %6398 = vmatprep.subr.bf16.mxu0 0
    %6399 = vmatpush1.bf16.msra.mxu0 0
    %6400 = vmatprep.subr.bf16.mxu0 0
    %6401 = vmatpush1.bf16.msra.mxu0 0
    %6402 = vmatprep.mubr.bf16.mxu0 0
    %6403 = vmatmul.mubr.bf16.gmra.mrb[0].mxu0 %v6297
    %v6404 = vpop.f32.mrb[0].mxu0
    %v6405 = vadd.f32 0.0, %v6404
    %v6406 = vpop.f32.mrb[0].mxu0
    %v6407 = vpop.f32.mrb[0].mxu0
    %v6408 = vadd.f32 0.0, %v6407
    %v6409 = vpop.f32.mrb[0].mxu0
    %6410 = vmatprep.mubr.bf16.mxu0 0
    %6411 = vmatmul.mubr.bf16.gmra.mrb[0].mxu0 %v6298
    %v6412 = vpop.f32.mrb[0].mxu0
    %v6413 = vadd.f32 0.0, %v6412
    %v6414 = vpop.f32.mrb[0].mxu0
    %v6415 = vpop.f32.mrb[0].mxu0
    %v6416 = vadd.f32 0.0, %v6415
    %v6417 = vpop.f32.mrb[0].mxu0
    %6418 = vmatprep.mubr.bf16.mxu0 0
    %6419 = vmatmul.mubr.bf16.gmra.mrb[0].mxu0 %v6299
    %v6420 = vpop.f32.mrb[0].mxu0
    %v6421 = vadd.f32 0.0, %v6420
    %v6422 = vpop.f32.mrb[0].mxu0
    %v6423 = vpop.f32.mrb[0].mxu0
    %v6424 = vadd.f32 0.0, %v6423
    %v6425 = vpop.f32.mrb[0].mxu0
    %6426 = vmatprep.mubr.bf16.mxu0 0
    %6427 = vmatmul.mubr.bf16.gmra.mrb[0].mxu0 %v6300
    %v6428 = vpop.f32.mrb[0].mxu0
    %v6429 = vadd.f32 0.0, %v6428
    %v6430 = vpop.f32.mrb[0].mxu0
    %v6431 = vpop.f32.mrb[0].mxu0
    %v6432 = vadd.f32 0.0, %v6431
    %v6433 = vpop.f32.mrb[0].mxu0
    %6434 = vmatprep.mubr.bf16.mxu0 0
    %6435 = vmatmul.mubr.bf16.gmra.mrb[0].mxu0 %v6301
    %v6436 = vpop.f32.mrb[0].mxu0
    %v6437 = vadd.f32 0.0, %v6436
    %v6438 = vpop.f32.mrb[0].mxu0
    %v6439 = vpop.f32.mrb[0].mxu0
    %v6440 = vadd.f32 0.0, %v6439
    %v6441 = vpop.f32.mrb[0].mxu0
    %6442 = vmatprep.mubr.bf16.mxu0 0
    %6443 = vmatmul.mubr.bf16.gmra.mrb[0].mxu0 %v6302
    %v6444 = vpop.f32.mrb[0].mxu0
    %v6445 = vadd.f32 0.0, %v6444
    %v6446 = vpop.f32.mrb[0].mxu0
    %v6447 = vpop.f32.mrb[0].mxu0
    %v6448 = vadd.f32 0.0, %v6447
    %v6449 = vpop.f32.mrb[0].mxu0
    %6450 = vmatprep.mubr.bf16.mxu0 0
    %6451 = vmatmul.mubr.bf16.gmra.mrb[0].mxu0 %v6303
    %v6452 = vpop.f32.mrb[0].mxu0
    %v6453 = vadd.f32 0.0, %v6452
    %v6454 = vpop.f32.mrb[0].mxu0
    %v6455 = vpop.f32.mrb[0].mxu0
    %v6456 = vadd.f32 0.0, %v6455
    %v6457 = vpop.f32.mrb[0].mxu0
    %6458 = vmatprep.mubr.bf16.mxu0 0
    %6459 = vmatmul.mubr.bf16.gmra.mrb[0].mxu0 %v6304
    %v6460 = vpop.f32.mrb[0].mxu0
    %v6461 = vadd.f32 0.0, %v6460
    %v6462 = vpop.f32.mrb[0].mxu0
    %v6463 = vpop.f32.mrb[0].mxu0
    %v6464 = vadd.f32 0.0, %v6463
    %v6465 = vpop.f32.mrb[0].mxu0
    %6466 = vdwg.mxu0
    %v6483 = vunpack.c.l.b16 %v6265
    %v6484 = vunpack.c.l.b16 %v6266
    %v6485 = vunpack.c.l.b16 %v6267
    %v6486 = vunpack.c.l.b16 %v6268
    %v6487 = vunpack.c.l.b16 %v6269
    %v6488 = vunpack.c.l.b16 %v6270
    %v6489 = vunpack.c.l.b16 %v6271
    %v6490 = vunpack.c.l.b16 %v6272
    %v6491 = vunpack.c.l.b16 %v6273
    %v6492 = vunpack.c.l.b16 %v6274
    %v6493 = vunpack.c.l.b16 %v6275
    %v6494 = vunpack.c.l.b16 %v6276
    %v6495 = vunpack.c.l.b16 %v6277
    %v6496 = vunpack.c.l.b16 %v6278
    %v6497 = vunpack.c.l.b16 %v6279
    %v6498 = vunpack.c.l.b16 %v6280
    %v6499 = vpack.c.b16 %v6484, %v6483
    %v6500 = vpack.c.b16 %v6486, %v6485
    %v6501 = vpack.c.b16 %v6488, %v6487
    %v6502 = vpack.c.b16 %v6490, %v6489
    %v6503 = vpack.c.b16 %v6492, %v6491
    %v6504 = vpack.c.b16 %v6494, %v6493
    %v6505 = vpack.c.b16 %v6496, %v6495
    %v6506 = vpack.c.b16 %v6498, %v6497
    %6515 = vmatprep.subr.bf16.mxu0 0
    %6516 = vmatpush1.bf16.msra.mxu0 %v6499
    %6517 = vmatprep.subr.bf16.mxu0 0
    %6518 = vmatpush1.bf16.msra.mxu0 %v6500
    %6519 = vmatprep.subr.bf16.mxu0 0
    %6520 = vmatpush1.bf16.msra.mxu0 %v6501
    %6521 = vmatprep.subr.bf16.mxu0 0
    %6522 = vmatpush1.bf16.msra.mxu0 %v6502
    %6523 = vmatprep.subr.bf16.mxu0 0
    %6524 = vmatpush1.bf16.msra.mxu0 %v6503
    %6525 = vmatprep.subr.bf16.mxu0 0
    %6526 = vmatpush1.bf16.msra.mxu0 %v6504
    %6527 = vmatprep.subr.bf16.mxu0 0
    %6528 = vmatpush1.bf16.msra.mxu0 %v6505
    %6529 = vmatprep.subr.bf16.mxu0 0
    %6530 = vmatpush1.bf16.msra.mxu0 %v6506
    %6531 = vmatprep.subr.bf16.mxu0 0
    %6532 = vmatpush1.bf16.msra.mxu0 0
    %6533 = vmatprep.subr.bf16.mxu0 0
    %6534 = vmatpush1.bf16.msra.mxu0 0
    %6535 = vmatprep.subr.bf16.mxu0 0
    %6536 = vmatpush1.bf16.msra.mxu0 0
    %6537 = vmatprep.subr.bf16.mxu0 0
    %6538 = vmatpush1.bf16.msra.mxu0 0
    %6539 = vmatprep.subr.bf16.mxu0 0
    %6540 = vmatpush1.bf16.msra.mxu0 0
    %6541 = vmatprep.subr.bf16.mxu0 0
    %6542 = vmatpush1.bf16.msra.mxu0 0
    %6543 = vmatprep.subr.bf16.mxu0 0
    %6544 = vmatpush1.bf16.msra.mxu0 0
    %6545 = vmatprep.subr.bf16.mxu0 0
    %6546 = vmatpush1.bf16.msra.mxu0 0
    %6547 = vmatprep.mubr.bf16.mxu0 0
    %6548 = vmatmul.mubr.bf16.gmra.mrb[0].mxu0 %v6257
    %v6549 = vpop.f32.mrb[0].mxu0
    %v6550 = vadd.f32 %v6405, %v6549
    %v6551 = vpop.f32.mrb[0].mxu0
    %v6552 = vpop.f32.mrb[0].mxu0
    %v6553 = vadd.f32 %v6408, %v6552
    %v6554 = vpop.f32.mrb[0].mxu0
    %6555 = vmatprep.mubr.bf16.mxu0 0
    %6556 = vmatmul.mubr.bf16.gmra.mrb[0].mxu0 %v6258
    %v6557 = vpop.f32.mrb[0].mxu0
    %v6558 = vadd.f32 %v6413, %v6557
    %v6559 = vpop.f32.mrb[0].mxu0
    %v6560 = vpop.f32.mrb[0].mxu0
    %v6561 = vadd.f32 %v6416, %v6560
    %v6562 = vpop.f32.mrb[0].mxu0
    %6563 = vmatprep.mubr.bf16.mxu0 0
    %6564 = vmatmul.mubr.bf16.gmra.mrb[0].mxu0 %v6259
    %v6565 = vpop.f32.mrb[0].mxu0
    %v6566 = vadd.f32 %v6421, %v6565
    %v6567 = vpop.f32.mrb[0].mxu0
    %v6568 = vpop.f32.mrb[0].mxu0
    %v6569 = vadd.f32 %v6424, %v6568
    %v6570 = vpop.f32.mrb[0].mxu0
    %6571 = vmatprep.mubr.bf16.mxu0 0
    %6572 = vmatmul.mubr.bf16.gmra.mrb[0].mxu0 %v6260
    %v6573 = vpop.f32.mrb[0].mxu0
    %v6574 = vadd.f32 %v6429, %v6573
    %v6575 = vpop.f32.mrb[0].mxu0
    %v6576 = vpop.f32.mrb[0].mxu0
    %v6577 = vadd.f32 %v6432, %v6576
    %v6578 = vpop.f32.mrb[0].mxu0
    %6579 = vmatprep.mubr.bf16.mxu0 0
    %6580 = vmatmul.mubr.bf16.gmra.mrb[0].mxu0 %v6261
    %v6581 = vpop.f32.mrb[0].mxu0
    %v6582 = vadd.f32 %v6437, %v6581
    %v6583 = vpop.f32.mrb[0].mxu0
    %v6584 = vpop.f32.mrb[0].mxu0
    %v6585 = vadd.f32 %v6440, %v6584
    %v6586 = vpop.f32.mrb[0].mxu0
    %6587 = vmatprep.mubr.bf16.mxu0 0
    %6588 = vmatmul.mubr.bf16.gmra.mrb[0].mxu0 %v6262
    %v6589 = vpop.f32.mrb[0].mxu0
    %v6590 = vadd.f32 %v6445, %v6589
    %v6591 = vpop.f32.mrb[0].mxu0
    %v6592 = vpop.f32.mrb[0].mxu0
    %v6593 = vadd.f32 %v6448, %v6592
    %v6594 = vpop.f32.mrb[0].mxu0
    %6595 = vmatprep.mubr.bf16.mxu0 0
    %6596 = vmatmul.mubr.bf16.gmra.mrb[0].mxu0 %v6263
    %v6597 = vpop.f32.mrb[0].mxu0
    %v6598 = vadd.f32 %v6453, %v6597
    %v6599 = vpop.f32.mrb[0].mxu0
    %v6600 = vpop.f32.mrb[0].mxu0
    %v6601 = vadd.f32 %v6456, %v6600
    %v6602 = vpop.f32.mrb[0].mxu0
    %6603 = vmatprep.mubr.bf16.mxu0 0
    %6604 = vmatmul.mubr.bf16.gmra.mrb[0].mxu0 %v6264
    %v6605 = vpop.f32.mrb[0].mxu0
    %v6606 = vadd.f32 %v6461, %v6605
    %v6607 = vpop.f32.mrb[0].mxu0
    %v6608 = vpop.f32.mrb[0].mxu0
    %v6609 = vadd.f32 %v6464, %v6608
    %v6610 = vpop.f32.mrb[0].mxu0
    %6611 = vdwg.mxu0
    %v6612 = vld [vmem:[#allocation3 + $0x2] sm:$0xff]
    %v6613 = vld [vmem:[#allocation3 + $0x12] sm:$0xff]
    %v6614 = vld [vmem:[#allocation3 + $0x22] sm:$0xff]
    %v6615 = vld [vmem:[#allocation3 + $0x32] sm:$0xff]
    %v6616 = vld [vmem:[#allocation3 + $0x42] sm:$0xff]
    %v6617 = vld [vmem:[#allocation3 + $0x52] sm:$0xff]
    %v6618 = vld [vmem:[#allocation3 + $0x62] sm:$0xff]
    %v6619 = vld [vmem:[#allocation3 + $0x72] sm:$0xff]
    %v6620 = vld [vmem:[#allocation3 + $0xa2] sm:$0xff]
    %v6621 = vld [vmem:[#allocation3 + $0xb2] sm:$0xff]
    %v6622 = vld [vmem:[#allocation3 + $0xc2] sm:$0xff]
    %v6623 = vld [vmem:[#allocation3 + $0xd2] sm:$0xff]
    %v6624 = vld [vmem:[#allocation3 + $0xe2] sm:$0xff]
    %v6625 = vld [vmem:[#allocation3 + $0xf2] sm:$0xff]
    %v6626 = vld [vmem:[#allocation3 + $0x102] sm:$0xff]
    %v6627 = vld [vmem:[#allocation3 + $0x112] sm:$0xff]
    %v6628 = vpack.c.bf16 %v6613, %v6612
    %v6629 = vpack.c.bf16 %v6615, %v6614
    %v6630 = vpack.c.bf16 %v6617, %v6616
    %v6631 = vpack.c.bf16 %v6619, %v6618
    %v6632 = vpack.c.bf16 %v6621, %v6620
    %v6633 = vpack.c.bf16 %v6623, %v6622
    %v6634 = vpack.c.bf16 %v6625, %v6624
    %v6635 = vpack.c.bf16 %v6627, %v6626
    %s6636 = scalar_lea.vmem %s5, 128
    %v6637 = vld [vmem:[%s6636] sm:$0xf]
    %v6638 = vld [vmem:[%s6636 + $0x4] sm:$0xf]
    %v6639 = vld [vmem:[%s6636 + $0x8] sm:$0xf]
    %v6640 = vld [vmem:[%s6636 + $0xc] sm:$0xf]
    %v6641 = vld [vmem:[%s6636 + $0x10] sm:$0xf]
    %v6642 = vld [vmem:[%s6636 + $0x14] sm:$0xf]
    %v6643 = vld [vmem:[%s6636 + $0x18] sm:$0xf]
    %v6644 = vld [vmem:[%s6636 + $0x1c] sm:$0xf]
    %v6645 = vld [vmem:[%s6636 + $0x20] sm:$0xf]
    %v6646 = vld [vmem:[%s6636 + $0x24] sm:$0xf]
    %v6647 = vld [vmem:[%s6636 + $0x28] sm:$0xf]
    %v6648 = vld [vmem:[%s6636 + $0x2c] sm:$0xf]
    %v6649 = vld [vmem:[%s6636 + $0x30] sm:$0xf]
    %v6650 = vld [vmem:[%s6636 + $0x34] sm:$0xf]
    %v6651 = vld [vmem:[%s6636 + $0x38] sm:$0xf]
    %v6652 = vld [vmem:[%s6636 + $0x3c] sm:$0xf]
    %v6669 = vunpack.c.l.b16 %v6637
    %v6670 = vunpack.c.l.b16 %v6638
    %v6671 = vunpack.c.l.b16 %v6639
    %v6672 = vunpack.c.l.b16 %v6640
    %v6673 = vunpack.c.l.b16 %v6641
    %v6674 = vunpack.c.l.b16 %v6642
    %v6675 = vunpack.c.l.b16 %v6643
    %v6676 = vunpack.c.l.b16 %v6644
    %v6677 = vunpack.c.l.b16 %v6645
    %v6678 = vunpack.c.l.b16 %v6646
    %v6679 = vunpack.c.l.b16 %v6647
    %v6680 = vunpack.c.l.b16 %v6648
    %v6681 = vunpack.c.l.b16 %v6649
    %v6682 = vunpack.c.l.b16 %v6650
    %v6683 = vunpack.c.l.b16 %v6651
    %v6684 = vunpack.c.l.b16 %v6652
    %v6685 = vpack.c.b16 %v6670, %v6669
    %v6686 = vpack.c.b16 %v6672, %v6671
    %v6687 = vpack.c.b16 %v6674, %v6673
    %v6688 = vpack.c.b16 %v6676, %v6675
    %v6689 = vpack.c.b16 %v6678, %v6677
    %v6690 = vpack.c.b16 %v6680, %v6679
    %v6691 = vpack.c.b16 %v6682, %v6681
    %v6692 = vpack.c.b16 %v6684, %v6683
    %6701 = vmatprep.subr.bf16.mxu0 0
    %6702 = vmatpush1.bf16.msra.mxu0 %v6685
    %6703 = vmatprep.subr.bf16.mxu0 0
    %6704 = vmatpush1.bf16.msra.mxu0 %v6686
    %6705 = vmatprep.subr.bf16.mxu0 0
    %6706 = vmatpush1.bf16.msra.mxu0 %v6687
    %6707 = vmatprep.subr.bf16.mxu0 0
    %6708 = vmatpush1.bf16.msra.mxu0 %v6688
    %6709 = vmatprep.subr.bf16.mxu0 0
    %6710 = vmatpush1.bf16.msra.mxu0 %v6689
    %6711 = vmatprep.subr.bf16.mxu0 0
    %6712 = vmatpush1.bf16.msra.mxu0 %v6690
    %6713 = vmatprep.subr.bf16.mxu0 0
    %6714 = vmatpush1.bf16.msra.mxu0 %v6691
    %6715 = vmatprep.subr.bf16.mxu0 0
    %6716 = vmatpush1.bf16.msra.mxu0 %v6692
    %6717 = vmatprep.subr.bf16.mxu0 0
    %6718 = vmatpush1.bf16.msra.mxu0 0
    %6719 = vmatprep.subr.bf16.mxu0 0
    %6720 = vmatpush1.bf16.msra.mxu0 0
    %6721 = vmatprep.subr.bf16.mxu0 0
    %6722 = vmatpush1.bf16.msra.mxu0 0
    %6723 = vmatprep.subr.bf16.mxu0 0
    %6724 = vmatpush1.bf16.msra.mxu0 0
    %6725 = vmatprep.subr.bf16.mxu0 0
    %6726 = vmatpush1.bf16.msra.mxu0 0
    %6727 = vmatprep.subr.bf16.mxu0 0
    %6728 = vmatpush1.bf16.msra.mxu0 0
    %6729 = vmatprep.subr.bf16.mxu0 0
    %6730 = vmatpush1.bf16.msra.mxu0 0
    %6731 = vmatprep.subr.bf16.mxu0 0
    %6732 = vmatpush1.bf16.msra.mxu0 0
    %6733 = vmatprep.mubr.bf16.mxu0 0
    %6734 = vmatmul.mubr.bf16.gmra.mrb[0].mxu0 %v6628
    %v6735 = vpop.f32.mrb[0].mxu0
    %v6736 = vadd.f32 0.0, %v6735
    %v6737 = vpop.f32.mrb[0].mxu0
    %v6738 = vpop.f32.mrb[0].mxu0
    %v6739 = vadd.f32 0.0, %v6738
    %v6740 = vpop.f32.mrb[0].mxu0
    %6741 = vmatprep.mubr.bf16.mxu0 0
    %6742 = vmatmul.mubr.bf16.gmra.mrb[0].mxu0 %v6629
    %v6743 = vpop.f32.mrb[0].mxu0
    %v6744 = vadd.f32 0.0, %v6743
    %v6745 = vpop.f32.mrb[0].mxu0
    %v6746 = vpop.f32.mrb[0].mxu0
    %v6747 = vadd.f32 0.0, %v6746
    %v6748 = vpop.f32.mrb[0].mxu0
    %6749 = vmatprep.mubr.bf16.mxu0 0
    %6750 = vmatmul.mubr.bf16.gmra.mrb[0].mxu0 %v6630
    %v6751 = vpop.f32.mrb[0].mxu0
    %v6752 = vadd.f32 0.0, %v6751
    %v6753 = vpop.f32.mrb[0].mxu0
    %v6754 = vpop.f32.mrb[0].mxu0
    %v6755 = vadd.f32 0.0, %v6754
    %v6756 = vpop.f32.mrb[0].mxu0
    %6757 = vmatprep.mubr.bf16.mxu0 0
    %6758 = vmatmul.mubr.bf16.gmra.mrb[0].mxu0 %v6631
    %v6759 = vpop.f32.mrb[0].mxu0
    %v6760 = vadd.f32 0.0, %v6759
    %v6761 = vpop.f32.mrb[0].mxu0
    %v6762 = vpop.f32.mrb[0].mxu0
    %v6763 = vadd.f32 0.0, %v6762
    %v6764 = vpop.f32.mrb[0].mxu0
    %6765 = vmatprep.mubr.bf16.mxu0 0
    %6766 = vmatmul.mubr.bf16.gmra.mrb[0].mxu0 %v6632
    %v6767 = vpop.f32.mrb[0].mxu0
    %v6768 = vadd.f32 0.0, %v6767
    %v6769 = vpop.f32.mrb[0].mxu0
    %v6770 = vpop.f32.mrb[0].mxu0
    %v6771 = vadd.f32 0.0, %v6770
    %v6772 = vpop.f32.mrb[0].mxu0
    %6773 = vmatprep.mubr.bf16.mxu0 0
    %6774 = vmatmul.mubr.bf16.gmra.mrb[0].mxu0 %v6633
    %v6775 = vpop.f32.mrb[0].mxu0
    %v6776 = vadd.f32 0.0, %v6775
    %v6777 = vpop.f32.mrb[0].mxu0
    %v6778 = vpop.f32.mrb[0].mxu0
    %v6779 = vadd.f32 0.0, %v6778
    %v6780 = vpop.f32.mrb[0].mxu0
    %6781 = vmatprep.mubr.bf16.mxu0 0
    %6782 = vmatmul.mubr.bf16.gmra.mrb[0].mxu0 %v6634
    %v6783 = vpop.f32.mrb[0].mxu0
    %v6784 = vadd.f32 0.0, %v6783
    %v6785 = vpop.f32.mrb[0].mxu0
    %v6786 = vpop.f32.mrb[0].mxu0
    %v6787 = vadd.f32 0.0, %v6786
    %v6788 = vpop.f32.mrb[0].mxu0
    %6789 = vmatprep.mubr.bf16.mxu0 0
    %6790 = vmatmul.mubr.bf16.gmra.mrb[0].mxu0 %v6635
    %v6791 = vpop.f32.mrb[0].mxu0
    %v6792 = vadd.f32 0.0, %v6791
    %v6793 = vpop.f32.mrb[0].mxu0
    %v6794 = vpop.f32.mrb[0].mxu0
    %v6795 = vadd.f32 0.0, %v6794
    %v6796 = vpop.f32.mrb[0].mxu0
    %6797 = vdwg.mxu0
    %v6798 = vadd.f32 %v6550, %v6736
    %v6799 = vadd.f32 %v6553, %v6739
    %v6800 = vadd.f32 %v6558, %v6744
    %v6801 = vadd.f32 %v6561, %v6747
    %v6802 = vadd.f32 %v6566, %v6752
    %v6803 = vadd.f32 %v6569, %v6755
    %v6804 = vadd.f32 %v6574, %v6760
    %v6805 = vadd.f32 %v6577, %v6763
    %v6806 = vadd.f32 %v6582, %v6768
    %v6807 = vadd.f32 %v6585, %v6771
    %v6808 = vadd.f32 %v6590, %v6776
    %v6809 = vadd.f32 %v6593, %v6779
    %v6810 = vadd.f32 %v6598, %v6784
    %v6811 = vadd.f32 %v6601, %v6787
    %v6812 = vadd.f32 %v6606, %v6792
    %v6813 = vadd.f32 %v6609, %v6795
    %v6814 = vld [vmem:[%s6224] sm:$0xff]
    %v6815 = vld [vmem:[%s6224 + $0x10] sm:$0xff]
    %v6816 = vld [vmem:[%s6224 + $0x20] sm:$0xff]
    %v6817 = vld [vmem:[%s6224 + $0x30] sm:$0xff]
    %v6818 = vld [vmem:[%s6224 + $0x40] sm:$0xff]
    %v6819 = vld [vmem:[%s6224 + $0x50] sm:$0xff]
    %v6820 = vld [vmem:[%s6224 + $0x60] sm:$0xff]
    %v6821 = vld [vmem:[%s6224 + $0x70] sm:$0xff]
    %v6822 = vld [vmem:[%s6224 + $0xa0] sm:$0xff]
    %v6823 = vld [vmem:[%s6224 + $0xb0] sm:$0xff]
    %v6824 = vld [vmem:[%s6224 + $0xc0] sm:$0xff]
    %v6825 = vld [vmem:[%s6224 + $0xd0] sm:$0xff]
    %v6826 = vld [vmem:[%s6224 + $0xe0] sm:$0xff]
    %v6827 = vld [vmem:[%s6224 + $0xf0] sm:$0xff]
    %v6828 = vld [vmem:[%s6224 + $0x100] sm:$0xff]
    %v6829 = vld [vmem:[%s6224 + $0x110] sm:$0xff]
    %v6830 = vpack.c.bf16 %v6815, %v6814
    %v6831 = vpack.c.bf16 %v6817, %v6816
    %v6832 = vpack.c.bf16 %v6819, %v6818
    %v6833 = vpack.c.bf16 %v6821, %v6820
    %v6834 = vpack.c.bf16 %v6823, %v6822
    %v6835 = vpack.c.bf16 %v6825, %v6824
    %v6836 = vpack.c.bf16 %v6827, %v6826
    %v6837 = vpack.c.bf16 %v6829, %v6828
    %s6838 = scalar_lea.vmem %s5, 192
    %v6839 = vld [vmem:[%s6838] sm:$0xf]
    %v6840 = vld [vmem:[%s6838 + $0x4] sm:$0xf]
    %v6841 = vld [vmem:[%s6838 + $0x8] sm:$0xf]
    %v6842 = vld [vmem:[%s6838 + $0xc] sm:$0xf]
    %v6843 = vld [vmem:[%s6838 + $0x10] sm:$0xf]
    %v6844 = vld [vmem:[%s6838 + $0x14] sm:$0xf]
    %v6845 = vld [vmem:[%s6838 + $0x18] sm:$0xf]
    %v6846 = vld [vmem:[%s6838 + $0x1c] sm:$0xf]
    %v6847 = vld [vmem:[%s6838 + $0x20] sm:$0xf]
    %v6848 = vld [vmem:[%s6838 + $0x24] sm:$0xf]
    %v6849 = vld [vmem:[%s6838 + $0x28] sm:$0xf]
    %v6850 = vld [vmem:[%s6838 + $0x2c] sm:$0xf]
    %v6851 = vld [vmem:[%s6838 + $0x30] sm:$0xf]
    %v6852 = vld [vmem:[%s6838 + $0x34] sm:$0xf]
    %v6853 = vld [vmem:[%s6838 + $0x38] sm:$0xf]
    %v6854 = vld [vmem:[%s6838 + $0x3c] sm:$0xf]
    %v6871 = vunpack.c.l.b16 %v6839
    %v6872 = vunpack.c.l.b16 %v6840
    %v6873 = vunpack.c.l.b16 %v6841
    %v6874 = vunpack.c.l.b16 %v6842
    %v6875 = vunpack.c.l.b16 %v6843
    %v6876 = vunpack.c.l.b16 %v6844
    %v6877 = vunpack.c.l.b16 %v6845
    %v6878 = vunpack.c.l.b16 %v6846
    %v6879 = vunpack.c.l.b16 %v6847
    %v6880 = vunpack.c.l.b16 %v6848
    %v6881 = vunpack.c.l.b16 %v6849
    %v6882 = vunpack.c.l.b16 %v6850
    %v6883 = vunpack.c.l.b16 %v6851
    %v6884 = vunpack.c.l.b16 %v6852
    %v6885 = vunpack.c.l.b16 %v6853
    %v6886 = vunpack.c.l.b16 %v6854
    %v6887 = vpack.c.b16 %v6872, %v6871
    %v6888 = vpack.c.b16 %v6874, %v6873
    %v6889 = vpack.c.b16 %v6876, %v6875
    %v6890 = vpack.c.b16 %v6878, %v6877
    %v6891 = vpack.c.b16 %v6880, %v6879
    %v6892 = vpack.c.b16 %v6882, %v6881
    %v6893 = vpack.c.b16 %v6884, %v6883
    %v6894 = vpack.c.b16 %v6886, %v6885
    %6903 = vmatprep.subr.bf16.mxu0 0
    %6904 = vmatpush1.bf16.msra.mxu0 %v6887
    %6905 = vmatprep.subr.bf16.mxu0 0
    %6906 = vmatpush1.bf16.msra.mxu0 %v6888
    %6907 = vmatprep.subr.bf16.mxu0 0
    %6908 = vmatpush1.bf16.msra.mxu0 %v6889
    %6909 = vmatprep.subr.bf16.mxu0 0
    %6910 = vmatpush1.bf16.msra.mxu0 %v6890
    %6911 = vmatprep.subr.bf16.mxu0 0
    %6912 = vmatpush1.bf16.msra.mxu0 %v6891
    %6913 = vmatprep.subr.bf16.mxu0 0
    %6914 = vmatpush1.bf16.msra.mxu0 %v6892
    %6915 = vmatprep.subr.bf16.mxu0 0
    %6916 = vmatpush1.bf16.msra.mxu0 %v6893
    %6917 = vmatprep.subr.bf16.mxu0 0
    %6918 = vmatpush1.bf16.msra.mxu0 %v6894
    %6919 = vmatprep.subr.bf16.mxu0 0
    %6920 = vmatpush1.bf16.msra.mxu0 0
    %6921 = vmatprep.subr.bf16.mxu0 0
    %6922 = vmatpush1.bf16.msra.mxu0 0
    %6923 = vmatprep.subr.bf16.mxu0 0
    %6924 = vmatpush1.bf16.msra.mxu0 0
    %6925 = vmatprep.subr.bf16.mxu0 0
    %6926 = vmatpush1.bf16.msra.mxu0 0
    %6927 = vmatprep.subr.bf16.mxu0 0
    %6928 = vmatpush1.bf16.msra.mxu0 0
    %6929 = vmatprep.subr.bf16.mxu0 0
    %6930 = vmatpush1.bf16.msra.mxu0 0
    %6931 = vmatprep.subr.bf16.mxu0 0
    %6932 = vmatpush1.bf16.msra.mxu0 0
    %6933 = vmatprep.subr.bf16.mxu0 0
    %6934 = vmatpush1.bf16.msra.mxu0 0
    %6935 = vmatprep.mubr.bf16.mxu0 0
    %6936 = vmatmul.mubr.bf16.gmra.mrb[0].mxu0 %v6830
    %v6937 = vpop.f32.mrb[0].mxu0
    %v6938 = vadd.f32 0.0, %v6937
    %v6939 = vpop.f32.mrb[0].mxu0
    %v6940 = vpop.f32.mrb[0].mxu0
    %v6941 = vadd.f32 0.0, %v6940
    %v6942 = vpop.f32.mrb[0].mxu0
    %6943 = vmatprep.mubr.bf16.mxu0 0
    %6944 = vmatmul.mubr.bf16.gmra.mrb[0].mxu0 %v6831
    %v6945 = vpop.f32.mrb[0].mxu0
    %v6946 = vadd.f32 0.0, %v6945
    %v6947 = vpop.f32.mrb[0].mxu0
    %v6948 = vpop.f32.mrb[0].mxu0
    %v6949 = vadd.f32 0.0, %v6948
    %v6950 = vpop.f32.mrb[0].mxu0
    %6951 = vmatprep.mubr.bf16.mxu0 0
    %6952 = vmatmul.mubr.bf16.gmra.mrb[0].mxu0 %v6832
    %v6953 = vpop.f32.mrb[0].mxu0
    %v6954 = vadd.f32 0.0, %v6953
    %v6955 = vpop.f32.mrb[0].mxu0
    %v6956 = vpop.f32.mrb[0].mxu0
    %v6957 = vadd.f32 0.0, %v6956
    %v6958 = vpop.f32.mrb[0].mxu0
    %6959 = vmatprep.mubr.bf16.mxu0 0
    %6960 = vmatmul.mubr.bf16.gmra.mrb[0].mxu0 %v6833
    %v6961 = vpop.f32.mrb[0].mxu0
    %v6962 = vadd.f32 0.0, %v6961
    %v6963 = vpop.f32.mrb[0].mxu0
    %v6964 = vpop.f32.mrb[0].mxu0
    %v6965 = vadd.f32 0.0, %v6964
    %v6966 = vpop.f32.mrb[0].mxu0
    %6967 = vmatprep.mubr.bf16.mxu0 0
    %6968 = vmatmul.mubr.bf16.gmra.mrb[0].mxu0 %v6834
    %v6969 = vpop.f32.mrb[0].mxu0
    %v6970 = vadd.f32 0.0, %v6969
    %v6971 = vpop.f32.mrb[0].mxu0
    %v6972 = vpop.f32.mrb[0].mxu0
    %v6973 = vadd.f32 0.0, %v6972
    %v6974 = vpop.f32.mrb[0].mxu0
    %6975 = vmatprep.mubr.bf16.mxu0 0
    %6976 = vmatmul.mubr.bf16.gmra.mrb[0].mxu0 %v6835
    %v6977 = vpop.f32.mrb[0].mxu0
    %v6978 = vadd.f32 0.0, %v6977
    %v6979 = vpop.f32.mrb[0].mxu0
    %v6980 = vpop.f32.mrb[0].mxu0
    %v6981 = vadd.f32 0.0, %v6980
    %v6982 = vpop.f32.mrb[0].mxu0
    %6983 = vmatprep.mubr.bf16.mxu0 0
    %6984 = vmatmul.mubr.bf16.gmra.mrb[0].mxu0 %v6836
    %v6985 = vpop.f32.mrb[0].mxu0
    %v6986 = vadd.f32 0.0, %v6985
    %v6987 = vpop.f32.mrb[0].mxu0
    %v6988 = vpop.f32.mrb[0].mxu0
    %v6989 = vadd.f32 0.0, %v6988
    %v6990 = vpop.f32.mrb[0].mxu0
    %6991 = vmatprep.mubr.bf16.mxu0 0
    %6992 = vmatmul.mubr.bf16.gmra.mrb[0].mxu0 %v6837
    %v6993 = vpop.f32.mrb[0].mxu0
    %v6994 = vadd.f32 0.0, %v6993
    %v6995 = vpop.f32.mrb[0].mxu0
    %v6996 = vpop.f32.mrb[0].mxu0
    %v6997 = vadd.f32 0.0, %v6996
    %v6998 = vpop.f32.mrb[0].mxu0
    %6999 = vdwg.mxu0
    %v7000 = vadd.f32 %v6798, %v6938
    %v7001 = vadd.f32 %v6799, %v6941
    %v7002 = vadd.f32 %v6800, %v6946
    %v7003 = vadd.f32 %v6801, %v6949
    %v7004 = vadd.f32 %v6802, %v6954
    %v7005 = vadd.f32 %v6803, %v6957
    %v7006 = vadd.f32 %v6804, %v6962
    %v7007 = vadd.f32 %v6805, %v6965
    %v7008 = vadd.f32 %v6806, %v6970
    %v7009 = vadd.f32 %v6807, %v6973
    %v7010 = vadd.f32 %v6808, %v6978
    %v7011 = vadd.f32 %v6809, %v6981
    %v7012 = vadd.f32 %v6810, %v6986
    %v7013 = vadd.f32 %v6811, %v6989
    %v7014 = vadd.f32 %v6812, %v6994
    %v7015 = vadd.f32 %v6813, %v6997
    %v7016 = vld [vmem:[%s6224 + $0x1] sm:$0xff]
    %v7017 = vld [vmem:[%s6224 + $0x11] sm:$0xff]
    %v7018 = vld [vmem:[%s6224 + $0x21] sm:$0xff]
    %v7019 = vld [vmem:[%s6224 + $0x31] sm:$0xff]
    %v7020 = vld [vmem:[%s6224 + $0x41] sm:$0xff]
    %v7021 = vld [vmem:[%s6224 + $0x51] sm:$0xff]
    %v7022 = vld [vmem:[%s6224 + $0x61] sm:$0xff]
    %v7023 = vld [vmem:[%s6224 + $0x71] sm:$0xff]
    %v7024 = vld [vmem:[%s6224 + $0xa1] sm:$0xff]
    %v7025 = vld [vmem:[%s6224 + $0xb1] sm:$0xff]
    %v7026 = vld [vmem:[%s6224 + $0xc1] sm:$0xff]
    %v7027 = vld [vmem:[%s6224 + $0xd1] sm:$0xff]
    %v7028 = vld [vmem:[%s6224 + $0xe1] sm:$0xff]
    %v7029 = vld [vmem:[%s6224 + $0xf1] sm:$0xff]
    %v7030 = vld [vmem:[%s6224 + $0x101] sm:$0xff]
    %v7031 = vld [vmem:[%s6224 + $0x111] sm:$0xff]
    %v7032 = vpack.c.bf16 %v7017, %v7016
    %v7033 = vpack.c.bf16 %v7019, %v7018
    %v7034 = vpack.c.bf16 %v7021, %v7020
    %v7035 = vpack.c.bf16 %v7023, %v7022
    %v7036 = vpack.c.bf16 %v7025, %v7024
    %v7037 = vpack.c.bf16 %v7027, %v7026
    %v7038 = vpack.c.bf16 %v7029, %v7028
    %v7039 = vpack.c.bf16 %v7031, %v7030
    %s7040 = scalar_lea.vmem %s5, 256
    %v7041 = vld [vmem:[%s7040] sm:$0xf]
    %v7042 = vld [vmem:[%s7040 + $0x4] sm:$0xf]
    %v7043 = vld [vmem:[%s7040 + $0x8] sm:$0xf]
    %v7044 = vld [vmem:[%s7040 + $0xc] sm:$0xf]
    %v7045 = vld [vmem:[%s7040 + $0x10] sm:$0xf]
    %v7046 = vld [vmem:[%s7040 + $0x14] sm:$0xf]
    %v7047 = vld [vmem:[%s7040 + $0x18] sm:$0xf]
    %v7048 = vld [vmem:[%s7040 + $0x1c] sm:$0xf]
    %v7049 = vld [vmem:[%s7040 + $0x20] sm:$0xf]
    %v7050 = vld [vmem:[%s7040 + $0x24] sm:$0xf]
    %v7051 = vld [vmem:[%s7040 + $0x28] sm:$0xf]
    %v7052 = vld [vmem:[%s7040 + $0x2c] sm:$0xf]
    %v7053 = vld [vmem:[%s7040 + $0x30] sm:$0xf]
    %v7054 = vld [vmem:[%s7040 + $0x34] sm:$0xf]
    %v7055 = vld [vmem:[%s7040 + $0x38] sm:$0xf]
    %v7056 = vld [vmem:[%s7040 + $0x3c] sm:$0xf]
    %v7073 = vunpack.c.l.b16 %v7041
    %v7074 = vunpack.c.l.b16 %v7042
    %v7075 = vunpack.c.l.b16 %v7043
    %v7076 = vunpack.c.l.b16 %v7044
    %v7077 = vunpack.c.l.b16 %v7045
    %v7078 = vunpack.c.l.b16 %v7046
    %v7079 = vunpack.c.l.b16 %v7047
    %v7080 = vunpack.c.l.b16 %v7048
    %v7081 = vunpack.c.l.b16 %v7049
    %v7082 = vunpack.c.l.b16 %v7050
    %v7083 = vunpack.c.l.b16 %v7051
    %v7084 = vunpack.c.l.b16 %v7052
    %v7085 = vunpack.c.l.b16 %v7053
    %v7086 = vunpack.c.l.b16 %v7054
    %v7087 = vunpack.c.l.b16 %v7055
    %v7088 = vunpack.c.l.b16 %v7056
    %v7089 = vpack.c.b16 %v7074, %v7073
    %v7090 = vpack.c.b16 %v7076, %v7075
    %v7091 = vpack.c.b16 %v7078, %v7077
    %v7092 = vpack.c.b16 %v7080, %v7079
    %v7093 = vpack.c.b16 %v7082, %v7081
    %v7094 = vpack.c.b16 %v7084, %v7083
    %v7095 = vpack.c.b16 %v7086, %v7085
    %v7096 = vpack.c.b16 %v7088, %v7087
    %7105 = vmatprep.subr.bf16.mxu0 0
    %7106 = vmatpush1.bf16.msra.mxu0 %v7089
    %7107 = vmatprep.subr.bf16.mxu0 0
    %7108 = vmatpush1.bf16.msra.mxu0 %v7090
    %7109 = vmatprep.subr.bf16.mxu0 0
    %7110 = vmatpush1.bf16.msra.mxu0 %v7091
    %7111 = vmatprep.subr.bf16.mxu0 0
    %7112 = vmatpush1.bf16.msra.mxu0 %v7092
    %7113 = vmatprep.subr.bf16.mxu0 0
    %7114 = vmatpush1.bf16.msra.mxu0 %v7093
    %7115 = vmatprep.subr.bf16.mxu0 0
    %7116 = vmatpush1.bf16.msra.mxu0 %v7094
    %7117 = vmatprep.subr.bf16.mxu0 0
    %7118 = vmatpush1.bf16.msra.mxu0 %v7095
    %7119 = vmatprep.subr.bf16.mxu0 0
    %7120 = vmatpush1.bf16.msra.mxu0 %v7096
    %7121 = vmatprep.subr.bf16.mxu0 0
    %7122 = vmatpush1.bf16.msra.mxu0 0
    %7123 = vmatprep.subr.bf16.mxu0 0
    %7124 = vmatpush1.bf16.msra.mxu0 0
    %7125 = vmatprep.subr.bf16.mxu0 0
    %7126 = vmatpush1.bf16.msra.mxu0 0
    %7127 = vmatprep.subr.bf16.mxu0 0
    %7128 = vmatpush1.bf16.msra.mxu0 0
    %7129 = vmatprep.subr.bf16.mxu0 0
    %7130 = vmatpush1.bf16.msra.mxu0 0
    %7131 = vmatprep.subr.bf16.mxu0 0
    %7132 = vmatpush1.bf16.msra.mxu0 0
    %7133 = vmatprep.subr.bf16.mxu0 0
    %7134 = vmatpush1.bf16.msra.mxu0 0
    %7135 = vmatprep.subr.bf16.mxu0 0
    %7136 = vmatpush1.bf16.msra.mxu0 0
    %7137 = vmatprep.mubr.bf16.mxu0 0
    %7138 = vmatmul.mubr.bf16.gmra.mrb[0].mxu0 %v7032
    %v7139 = vpop.f32.mrb[0].mxu0
    %v7140 = vadd.f32 0.0, %v7139
    %v7141 = vpop.f32.mrb[0].mxu0
    %v7142 = vpop.f32.mrb[0].mxu0
    %v7143 = vadd.f32 0.0, %v7142
    %v7144 = vpop.f32.mrb[0].mxu0
    %7145 = vmatprep.mubr.bf16.mxu0 0
    %7146 = vmatmul.mubr.bf16.gmra.mrb[0].mxu0 %v7033
    %v7147 = vpop.f32.mrb[0].mxu0
    %v7148 = vadd.f32 0.0, %v7147
    %v7149 = vpop.f32.mrb[0].mxu0
    %v7150 = vpop.f32.mrb[0].mxu0
    %v7151 = vadd.f32 0.0, %v7150
    %v7152 = vpop.f32.mrb[0].mxu0
    %7153 = vmatprep.mubr.bf16.mxu0 0
    %7154 = vmatmul.mubr.bf16.gmra.mrb[0].mxu0 %v7034
    %v7155 = vpop.f32.mrb[0].mxu0
    %v7156 = vadd.f32 0.0, %v7155
    %v7157 = vpop.f32.mrb[0].mxu0
    %v7158 = vpop.f32.mrb[0].mxu0
    %v7159 = vadd.f32 0.0, %v7158
    %v7160 = vpop.f32.mrb[0].mxu0
    %7161 = vmatprep.mubr.bf16.mxu0 0
    %7162 = vmatmul.mubr.bf16.gmra.mrb[0].mxu0 %v7035
    %v7163 = vpop.f32.mrb[0].mxu0
    %v7164 = vadd.f32 0.0, %v7163
    %v7165 = vpop.f32.mrb[0].mxu0
    %v7166 = vpop.f32.mrb[0].mxu0
    %v7167 = vadd.f32 0.0, %v7166
    %v7168 = vpop.f32.mrb[0].mxu0
    %7169 = vmatprep.mubr.bf16.mxu0 0
    %7170 = vmatmul.mubr.bf16.gmra.mrb[0].mxu0 %v7036
    %v7171 = vpop.f32.mrb[0].mxu0
    %v7172 = vadd.f32 0.0, %v7171
    %v7173 = vpop.f32.mrb[0].mxu0
    %v7174 = vpop.f32.mrb[0].mxu0
    %v7175 = vadd.f32 0.0, %v7174
    %v7176 = vpop.f32.mrb[0].mxu0
    %7177 = vmatprep.mubr.bf16.mxu0 0
    %7178 = vmatmul.mubr.bf16.gmra.mrb[0].mxu0 %v7037
    %v7179 = vpop.f32.mrb[0].mxu0
    %v7180 = vadd.f32 0.0, %v7179
    %v7181 = vpop.f32.mrb[0].mxu0
    %v7182 = vpop.f32.mrb[0].mxu0
    %v7183 = vadd.f32 0.0, %v7182
    %v7184 = vpop.f32.mrb[0].mxu0
    %7185 = vmatprep.mubr.bf16.mxu0 0
    %7186 = vmatmul.mubr.bf16.gmra.mrb[0].mxu0 %v7038
    %v7187 = vpop.f32.mrb[0].mxu0
    %v7188 = vadd.f32 0.0, %v7187
    %v7189 = vpop.f32.mrb[0].mxu0
    %v7190 = vpop.f32.mrb[0].mxu0
    %v7191 = vadd.f32 0.0, %v7190
    %v7192 = vpop.f32.mrb[0].mxu0
    %7193 = vmatprep.mubr.bf16.mxu0 0
    %7194 = vmatmul.mubr.bf16.gmra.mrb[0].mxu0 %v7039
    %v7195 = vpop.f32.mrb[0].mxu0
    %v7196 = vadd.f32 0.0, %v7195
    %v7197 = vpop.f32.mrb[0].mxu0
    %v7198 = vpop.f32.mrb[0].mxu0
    %v7199 = vadd.f32 0.0, %v7198
    %v7200 = vpop.f32.mrb[0].mxu0
    %7201 = vdwg.mxu0
    %v7202 = vadd.f32 %v7000, %v7140
    %v7203 = vadd.f32 %v7001, %v7143
    %v7204 = vadd.f32 %v7002, %v7148
    %v7205 = vadd.f32 %v7003, %v7151
    %v7206 = vadd.f32 %v7004, %v7156
    %v7207 = vadd.f32 %v7005, %v7159
    %v7208 = vadd.f32 %v7006, %v7164
    %v7209 = vadd.f32 %v7007, %v7167
    %v7210 = vadd.f32 %v7008, %v7172
    %v7211 = vadd.f32 %v7009, %v7175
    %v7212 = vadd.f32 %v7010, %v7180
    %v7213 = vadd.f32 %v7011, %v7183
    %v7214 = vadd.f32 %v7012, %v7188
    %v7215 = vadd.f32 %v7013, %v7191
    %v7216 = vadd.f32 %v7014, %v7196
    %v7217 = vadd.f32 %v7015, %v7199
    %v7218 = vld [vmem:[%s6224 + $0x2] sm:$0xff]
    %v7219 = vld [vmem:[%s6224 + $0x12] sm:$0xff]
    %v7220 = vld [vmem:[%s6224 + $0x22] sm:$0xff]
    %v7221 = vld [vmem:[%s6224 + $0x32] sm:$0xff]
    %v7222 = vld [vmem:[%s6224 + $0x42] sm:$0xff]
    %v7223 = vld [vmem:[%s6224 + $0x52] sm:$0xff]
    %v7224 = vld [vmem:[%s6224 + $0x62] sm:$0xff]
    %v7225 = vld [vmem:[%s6224 + $0x72] sm:$0xff]
    %v7226 = vld [vmem:[%s6224 + $0xa2] sm:$0xff]
    %v7227 = vld [vmem:[%s6224 + $0xb2] sm:$0xff]
    %v7228 = vld [vmem:[%s6224 + $0xc2] sm:$0xff]
    %v7229 = vld [vmem:[%s6224 + $0xd2] sm:$0xff]
    %v7230 = vld [vmem:[%s6224 + $0xe2] sm:$0xff]
    %v7231 = vld [vmem:[%s6224 + $0xf2] sm:$0xff]
    %v7232 = vld [vmem:[%s6224 + $0x102] sm:$0xff]
    %v7233 = vld [vmem:[%s6224 + $0x112] sm:$0xff]
    %v7234 = vpack.c.bf16 %v7219, %v7218
    %v7235 = vpack.c.bf16 %v7221, %v7220
    %v7236 = vpack.c.bf16 %v7223, %v7222
    %v7237 = vpack.c.bf16 %v7225, %v7224
    %v7238 = vpack.c.bf16 %v7227, %v7226
    %v7239 = vpack.c.bf16 %v7229, %v7228
    %v7240 = vpack.c.bf16 %v7231, %v7230
    %v7241 = vpack.c.bf16 %v7233, %v7232
    %s7242 = scalar_lea.vmem %s5, 320
    %v7243 = vld [vmem:[%s7242] sm:$0xf]
    %v7244 = vld [vmem:[%s7242 + $0x4] sm:$0xf]
    %v7245 = vld [vmem:[%s7242 + $0x8] sm:$0xf]
    %v7246 = vld [vmem:[%s7242 + $0xc] sm:$0xf]
    %v7247 = vld [vmem:[%s7242 + $0x10] sm:$0xf]
    %v7248 = vld [vmem:[%s7242 + $0x14] sm:$0xf]
    %v7249 = vld [vmem:[%s7242 + $0x18] sm:$0xf]
    %v7250 = vld [vmem:[%s7242 + $0x1c] sm:$0xf]
    %v7251 = vld [vmem:[%s7242 + $0x20] sm:$0xf]
    %v7252 = vld [vmem:[%s7242 + $0x24] sm:$0xf]
    %v7253 = vld [vmem:[%s7242 + $0x28] sm:$0xf]
    %v7254 = vld [vmem:[%s7242 + $0x2c] sm:$0xf]
    %v7255 = vld [vmem:[%s7242 + $0x30] sm:$0xf]
    %v7256 = vld [vmem:[%s7242 + $0x34] sm:$0xf]
    %v7257 = vld [vmem:[%s7242 + $0x38] sm:$0xf]
    %v7258 = vld [vmem:[%s7242 + $0x3c] sm:$0xf]
    %v7275 = vunpack.c.l.b16 %v7243
    %v7276 = vunpack.c.l.b16 %v7244
    %v7277 = vunpack.c.l.b16 %v7245
    %v7278 = vunpack.c.l.b16 %v7246
    %v7279 = vunpack.c.l.b16 %v7247
    %v7280 = vunpack.c.l.b16 %v7248
    %v7281 = vunpack.c.l.b16 %v7249
    %v7282 = vunpack.c.l.b16 %v7250
    %v7283 = vunpack.c.l.b16 %v7251
    %v7284 = vunpack.c.l.b16 %v7252
    %v7285 = vunpack.c.l.b16 %v7253
    %v7286 = vunpack.c.l.b16 %v7254
    %v7287 = vunpack.c.l.b16 %v7255
    %v7288 = vunpack.c.l.b16 %v7256
    %v7289 = vunpack.c.l.b16 %v7257
    %v7290 = vunpack.c.l.b16 %v7258
    %v7291 = vpack.c.b16 %v7276, %v7275
    %v7292 = vpack.c.b16 %v7278, %v7277
    %v7293 = vpack.c.b16 %v7280, %v7279
    %v7294 = vpack.c.b16 %v7282, %v7281
    %v7295 = vpack.c.b16 %v7284, %v7283
    %v7296 = vpack.c.b16 %v7286, %v7285
    %v7297 = vpack.c.b16 %v7288, %v7287
    %v7298 = vpack.c.b16 %v7290, %v7289
    %7307 = vmatprep.subr.bf16.mxu0 0
    %7308 = vmatpush1.bf16.msra.mxu0 %v7291
    %7309 = vmatprep.subr.bf16.mxu0 0
    %7310 = vmatpush1.bf16.msra.mxu0 %v7292
    %7311 = vmatprep.subr.bf16.mxu0 0
    %7312 = vmatpush1.bf16.msra.mxu0 %v7293
    %7313 = vmatprep.subr.bf16.mxu0 0
    %7314 = vmatpush1.bf16.msra.mxu0 %v7294
    %7315 = vmatprep.subr.bf16.mxu0 0
    %7316 = vmatpush1.bf16.msra.mxu0 %v7295
    %7317 = vmatprep.subr.bf16.mxu0 0
    %7318 = vmatpush1.bf16.msra.mxu0 %v7296
    %7319 = vmatprep.subr.bf16.mxu0 0
    %7320 = vmatpush1.bf16.msra.mxu0 %v7297
    %7321 = vmatprep.subr.bf16.mxu0 0
    %7322 = vmatpush1.bf16.msra.mxu0 %v7298
    %7323 = vmatprep.subr.bf16.mxu0 0
    %7324 = vmatpush1.bf16.msra.mxu0 0
    %7325 = vmatprep.subr.bf16.mxu0 0
    %7326 = vmatpush1.bf16.msra.mxu0 0
    %7327 = vmatprep.subr.bf16.mxu0 0
    %7328 = vmatpush1.bf16.msra.mxu0 0
    %7329 = vmatprep.subr.bf16.mxu0 0
    %7330 = vmatpush1.bf16.msra.mxu0 0
    %7331 = vmatprep.subr.bf16.mxu0 0
    %7332 = vmatpush1.bf16.msra.mxu0 0
    %7333 = vmatprep.subr.bf16.mxu0 0
    %7334 = vmatpush1.bf16.msra.mxu0 0
    %7335 = vmatprep.subr.bf16.mxu0 0
    %7336 = vmatpush1.bf16.msra.mxu0 0
    %7337 = vmatprep.subr.bf16.mxu0 0
    %7338 = vmatpush1.bf16.msra.mxu0 0
    %7339 = vmatprep.mubr.bf16.mxu0 0
    %7340 = vmatmul.mubr.bf16.gmra.mrb[0].mxu0 %v7234
    %v7341 = vpop.f32.mrb[0].mxu0
    %v7342 = vadd.f32 0.0, %v7341
    %v7343 = vpop.f32.mrb[0].mxu0
    %v7344 = vpop.f32.mrb[0].mxu0
    %v7345 = vadd.f32 0.0, %v7344
    %v7346 = vpop.f32.mrb[0].mxu0
    %7347 = vmatprep.mubr.bf16.mxu0 0
    %7348 = vmatmul.mubr.bf16.gmra.mrb[0].mxu0 %v7235
    %v7349 = vpop.f32.mrb[0].mxu0
    %v7350 = vadd.f32 0.0, %v7349
    %v7351 = vpop.f32.mrb[0].mxu0
    %v7352 = vpop.f32.mrb[0].mxu0
    %v7353 = vadd.f32 0.0, %v7352
    %v7354 = vpop.f32.mrb[0].mxu0
    %7355 = vmatprep.mubr.bf16.mxu0 0
    %7356 = vmatmul.mubr.bf16.gmra.mrb[0].mxu0 %v7236
    %v7357 = vpop.f32.mrb[0].mxu0
    %v7358 = vadd.f32 0.0, %v7357
    %v7359 = vpop.f32.mrb[0].mxu0
    %v7360 = vpop.f32.mrb[0].mxu0
    %v7361 = vadd.f32 0.0, %v7360
    %v7362 = vpop.f32.mrb[0].mxu0
    %7363 = vmatprep.mubr.bf16.mxu0 0
    %7364 = vmatmul.mubr.bf16.gmra.mrb[0].mxu0 %v7237
    %v7365 = vpop.f32.mrb[0].mxu0
    %v7366 = vadd.f32 0.0, %v7365
    %v7367 = vpop.f32.mrb[0].mxu0
    %v7368 = vpop.f32.mrb[0].mxu0
    %v7369 = vadd.f32 0.0, %v7368
    %v7370 = vpop.f32.mrb[0].mxu0
    %7371 = vmatprep.mubr.bf16.mxu0 0
    %7372 = vmatmul.mubr.bf16.gmra.mrb[0].mxu0 %v7238
    %v7373 = vpop.f32.mrb[0].mxu0
    %v7374 = vadd.f32 0.0, %v7373
    %v7375 = vpop.f32.mrb[0].mxu0
    %v7376 = vpop.f32.mrb[0].mxu0
    %v7377 = vadd.f32 0.0, %v7376
    %v7378 = vpop.f32.mrb[0].mxu0
    %7379 = vmatprep.mubr.bf16.mxu0 0
    %7380 = vmatmul.mubr.bf16.gmra.mrb[0].mxu0 %v7239
    %v7381 = vpop.f32.mrb[0].mxu0
    %v7382 = vadd.f32 0.0, %v7381
    %v7383 = vpop.f32.mrb[0].mxu0
    %v7384 = vpop.f32.mrb[0].mxu0
    %v7385 = vadd.f32 0.0, %v7384
    %v7386 = vpop.f32.mrb[0].mxu0
    %7387 = vmatprep.mubr.bf16.mxu0 0
    %7388 = vmatmul.mubr.bf16.gmra.mrb[0].mxu0 %v7240
    %v7389 = vpop.f32.mrb[0].mxu0
    %v7390 = vadd.f32 0.0, %v7389
    %v7391 = vpop.f32.mrb[0].mxu0
    %v7392 = vpop.f32.mrb[0].mxu0
    %v7393 = vadd.f32 0.0, %v7392
    %v7394 = vpop.f32.mrb[0].mxu0
    %7395 = vmatprep.mubr.bf16.mxu0 0
    %7396 = vmatmul.mubr.bf16.gmra.mrb[0].mxu0 %v7241
    %v7397 = vpop.f32.mrb[0].mxu0
    %v7398 = vadd.f32 0.0, %v7397
    %v7399 = vpop.f32.mrb[0].mxu0
    %v7400 = vpop.f32.mrb[0].mxu0
    %v7401 = vadd.f32 0.0, %v7400
    %v7402 = vpop.f32.mrb[0].mxu0
    %7403 = vdwg.mxu0
    %v7404 = vadd.f32 %v7202, %v7342
    %v7405 = vadd.f32 %v7203, %v7345
    %v7406 = vadd.f32 %v7204, %v7350
    %v7407 = vadd.f32 %v7205, %v7353
    %v7408 = vadd.f32 %v7206, %v7358
    %v7409 = vadd.f32 %v7207, %v7361
    %v7410 = vadd.f32 %v7208, %v7366
    %v7411 = vadd.f32 %v7209, %v7369
    %v7412 = vadd.f32 %v7210, %v7374
    %v7413 = vadd.f32 %v7211, %v7377
    %v7414 = vadd.f32 %v7212, %v7382
    %v7415 = vadd.f32 %v7213, %v7385
    %v7416 = vadd.f32 %v7214, %v7390
    %v7417 = vadd.f32 %v7215, %v7393
    %v7418 = vadd.f32 %v7216, %v7398
    %v7419 = vadd.f32 %v7217, %v7401
    %s7420 = scalar_lea.vmem [#allocation3], 32
    %v7421 = vld [vmem:[%s7420] sm:$0xff]
    %v7422 = vld [vmem:[%s7420 + $0x10] sm:$0xff]
    %v7423 = vld [vmem:[%s7420 + $0x20] sm:$0xff]
    %v7424 = vld [vmem:[%s7420 + $0x30] sm:$0xff]
    %v7425 = vld [vmem:[%s7420 + $0x40] sm:$0xff]
    %v7426 = vld [vmem:[%s7420 + $0x50] sm:$0xff]
    %v7427 = vld [vmem:[%s7420 + $0x60] sm:$0xff]
    %v7428 = vld [vmem:[%s7420 + $0x70] sm:$0xff]
    %v7429 = vld [vmem:[%s7420 + $0xa0] sm:$0xff]
    %v7430 = vld [vmem:[%s7420 + $0xb0] sm:$0xff]
    %v7431 = vld [vmem:[%s7420 + $0xc0] sm:$0xff]
    %v7432 = vld [vmem:[%s7420 + $0xd0] sm:$0xff]
    %v7433 = vld [vmem:[%s7420 + $0xe0] sm:$0xff]
    %v7434 = vld [vmem:[%s7420 + $0xf0] sm:$0xff]
    %v7435 = vld [vmem:[%s7420 + $0x100] sm:$0xff]
    %v7436 = vld [vmem:[%s7420 + $0x110] sm:$0xff]
    %v7437 = vpack.c.bf16 %v7422, %v7421
    %v7438 = vpack.c.bf16 %v7424, %v7423
    %v7439 = vpack.c.bf16 %v7426, %v7425
    %v7440 = vpack.c.bf16 %v7428, %v7427
    %v7441 = vpack.c.bf16 %v7430, %v7429
    %v7442 = vpack.c.bf16 %v7432, %v7431
    %v7443 = vpack.c.bf16 %v7434, %v7433
    %v7444 = vpack.c.bf16 %v7436, %v7435
    %s7445 = scalar_lea.vmem %s5, 384
    %v7446 = vld [vmem:[%s7445] sm:$0xf]
    %v7447 = vld [vmem:[%s7445 + $0x4] sm:$0xf]
    %v7448 = vld [vmem:[%s7445 + $0x8] sm:$0xf]
    %v7449 = vld [vmem:[%s7445 + $0xc] sm:$0xf]
    %v7450 = vld [vmem:[%s7445 + $0x10] sm:$0xf]
    %v7451 = vld [vmem:[%s7445 + $0x14] sm:$0xf]
    %v7452 = vld [vmem:[%s7445 + $0x18] sm:$0xf]
    %v7453 = vld [vmem:[%s7445 + $0x1c] sm:$0xf]
    %v7454 = vld [vmem:[%s7445 + $0x20] sm:$0xf]
    %v7455 = vld [vmem:[%s7445 + $0x24] sm:$0xf]
    %v7456 = vld [vmem:[%s7445 + $0x28] sm:$0xf]
    %v7457 = vld [vmem:[%s7445 + $0x2c] sm:$0xf]
    %v7458 = vld [vmem:[%s7445 + $0x30] sm:$0xf]
    %v7459 = vld [vmem:[%s7445 + $0x34] sm:$0xf]
    %v7460 = vld [vmem:[%s7445 + $0x38] sm:$0xf]
    %v7461 = vld [vmem:[%s7445 + $0x3c] sm:$0xf]
    %v7478 = vunpack.c.l.b16 %v7446
    %v7479 = vunpack.c.l.b16 %v7447
    %v7480 = vunpack.c.l.b16 %v7448
    %v7481 = vunpack.c.l.b16 %v7449
    %v7482 = vunpack.c.l.b16 %v7450
    %v7483 = vunpack.c.l.b16 %v7451
    %v7484 = vunpack.c.l.b16 %v7452
    %v7485 = vunpack.c.l.b16 %v7453
    %v7486 = vunpack.c.l.b16 %v7454
    %v7487 = vunpack.c.l.b16 %v7455
    %v7488 = vunpack.c.l.b16 %v7456
    %v7489 = vunpack.c.l.b16 %v7457
    %v7490 = vunpack.c.l.b16 %v7458
    %v7491 = vunpack.c.l.b16 %v7459
    %v7492 = vunpack.c.l.b16 %v7460
    %v7493 = vunpack.c.l.b16 %v7461
    %v7494 = vpack.c.b16 %v7479, %v7478
    %v7495 = vpack.c.b16 %v7481, %v7480
    %v7496 = vpack.c.b16 %v7483, %v7482
    %v7497 = vpack.c.b16 %v7485, %v7484
    %v7498 = vpack.c.b16 %v7487, %v7486
    %v7499 = vpack.c.b16 %v7489, %v7488
    %v7500 = vpack.c.b16 %v7491, %v7490
    %v7501 = vpack.c.b16 %v7493, %v7492
    %7510 = vmatprep.subr.bf16.mxu0 0
    %7511 = vmatpush1.bf16.msra.mxu0 %v7494
    %7512 = vmatprep.subr.bf16.mxu0 0
    %7513 = vmatpush1.bf16.msra.mxu0 %v7495
    %7514 = vmatprep.subr.bf16.mxu0 0
    %7515 = vmatpush1.bf16.msra.mxu0 %v7496
    %7516 = vmatprep.subr.bf16.mxu0 0
    %7517 = vmatpush1.bf16.msra.mxu0 %v7497
    %7518 = vmatprep.subr.bf16.mxu0 0
    %7519 = vmatpush1.bf16.msra.mxu0 %v7498
    %7520 = vmatprep.subr.bf16.mxu0 0
    %7521 = vmatpush1.bf16.msra.mxu0 %v7499
    %7522 = vmatprep.subr.bf16.mxu0 0
    %7523 = vmatpush1.bf16.msra.mxu0 %v7500
    %7524 = vmatprep.subr.bf16.mxu0 0
    %7525 = vmatpush1.bf16.msra.mxu0 %v7501
    %7526 = vmatprep.subr.bf16.mxu0 0
    %7527 = vmatpush1.bf16.msra.mxu0 0
    %7528 = vmatprep.subr.bf16.mxu0 0
    %7529 = vmatpush1.bf16.msra.mxu0 0
    %7530 = vmatprep.subr.bf16.mxu0 0
    %7531 = vmatpush1.bf16.msra.mxu0 0
    %7532 = vmatprep.subr.bf16.mxu0 0
    %7533 = vmatpush1.bf16.msra.mxu0 0
    %7534 = vmatprep.subr.bf16.mxu0 0
    %7535 = vmatpush1.bf16.msra.mxu0 0
    %7536 = vmatprep.subr.bf16.mxu0 0
    %7537 = vmatpush1.bf16.msra.mxu0 0
    %7538 = vmatprep.subr.bf16.mxu0 0
    %7539 = vmatpush1.bf16.msra.mxu0 0
    %7540 = vmatprep.subr.bf16.mxu0 0
    %7541 = vmatpush1.bf16.msra.mxu0 0
    %7542 = vmatprep.mubr.bf16.mxu0 0
    %7543 = vmatmul.mubr.bf16.gmra.mrb[0].mxu0 %v7437
    %v7544 = vpop.f32.mrb[0].mxu0
    %v7545 = vadd.f32 0.0, %v7544
    %v7546 = vpop.f32.mrb[0].mxu0
    %v7547 = vpop.f32.mrb[0].mxu0
    %v7548 = vadd.f32 0.0, %v7547
    %v7549 = vpop.f32.mrb[0].mxu0
    %7550 = vmatprep.mubr.bf16.mxu0 0
    %7551 = vmatmul.mubr.bf16.gmra.mrb[0].mxu0 %v7438
    %v7552 = vpop.f32.mrb[0].mxu0
    %v7553 = vadd.f32 0.0, %v7552
    %v7554 = vpop.f32.mrb[0].mxu0
    %v7555 = vpop.f32.mrb[0].mxu0
    %v7556 = vadd.f32 0.0, %v7555
    %v7557 = vpop.f32.mrb[0].mxu0
    %7558 = vmatprep.mubr.bf16.mxu0 0
    %7559 = vmatmul.mubr.bf16.gmra.mrb[0].mxu0 %v7439
    %v7560 = vpop.f32.mrb[0].mxu0
    %v7561 = vadd.f32 0.0, %v7560
    %v7562 = vpop.f32.mrb[0].mxu0
    %v7563 = vpop.f32.mrb[0].mxu0
    %v7564 = vadd.f32 0.0, %v7563
    %v7565 = vpop.f32.mrb[0].mxu0
    %7566 = vmatprep.mubr.bf16.mxu0 0
    %7567 = vmatmul.mubr.bf16.gmra.mrb[0].mxu0 %v7440
    %v7568 = vpop.f32.mrb[0].mxu0
    %v7569 = vadd.f32 0.0, %v7568
    %v7570 = vpop.f32.mrb[0].mxu0
    %v7571 = vpop.f32.mrb[0].mxu0
    %v7572 = vadd.f32 0.0, %v7571
    %v7573 = vpop.f32.mrb[0].mxu0
    %7574 = vmatprep.mubr.bf16.mxu0 0
    %7575 = vmatmul.mubr.bf16.gmra.mrb[0].mxu0 %v7441
    %v7576 = vpop.f32.mrb[0].mxu0
    %v7577 = vadd.f32 0.0, %v7576
    %v7578 = vpop.f32.mrb[0].mxu0
    %v7579 = vpop.f32.mrb[0].mxu0
    %v7580 = vadd.f32 0.0, %v7579
    %v7581 = vpop.f32.mrb[0].mxu0
    %7582 = vmatprep.mubr.bf16.mxu0 0
    %7583 = vmatmul.mubr.bf16.gmra.mrb[0].mxu0 %v7442
    %v7584 = vpop.f32.mrb[0].mxu0
    %v7585 = vadd.f32 0.0, %v7584
    %v7586 = vpop.f32.mrb[0].mxu0
    %v7587 = vpop.f32.mrb[0].mxu0
    %v7588 = vadd.f32 0.0, %v7587
    %v7589 = vpop.f32.mrb[0].mxu0
    %7590 = vmatprep.mubr.bf16.mxu0 0
    %7591 = vmatmul.mubr.bf16.gmra.mrb[0].mxu0 %v7443
    %v7592 = vpop.f32.mrb[0].mxu0
    %v7593 = vadd.f32 0.0, %v7592
    %v7594 = vpop.f32.mrb[0].mxu0
    %v7595 = vpop.f32.mrb[0].mxu0
    %v7596 = vadd.f32 0.0, %v7595
    %v7597 = vpop.f32.mrb[0].mxu0
    %7598 = vmatprep.mubr.bf16.mxu0 0
    %7599 = vmatmul.mubr.bf16.gmra.mrb[0].mxu0 %v7444
    %v7600 = vpop.f32.mrb[0].mxu0
    %v7601 = vadd.f32 0.0, %v7600
    %v7602 = vpop.f32.mrb[0].mxu0
    %v7603 = vpop.f32.mrb[0].mxu0
    %v7604 = vadd.f32 0.0, %v7603
    %v7605 = vpop.f32.mrb[0].mxu0
    %7606 = vdwg.mxu0
    %v7607 = vadd.f32 %v7404, %v7545
    %v7608 = vadd.f32 %v7405, %v7548
    %v7609 = vadd.f32 %v7406, %v7553
    %v7610 = vadd.f32 %v7407, %v7556
    %v7611 = vadd.f32 %v7408, %v7561
    %v7612 = vadd.f32 %v7409, %v7564
    %v7613 = vadd.f32 %v7410, %v7569
    %v7614 = vadd.f32 %v7411, %v7572
    %v7615 = vadd.f32 %v7412, %v7577
    %v7616 = vadd.f32 %v7413, %v7580
    %v7617 = vadd.f32 %v7414, %v7585
    %v7618 = vadd.f32 %v7415, %v7588
    %v7619 = vadd.f32 %v7416, %v7593
    %v7620 = vadd.f32 %v7417, %v7596
    %v7621 = vadd.f32 %v7418, %v7601
    %v7622 = vadd.f32 %v7419, %v7604
    %v7623 = vld [vmem:[%s7420 + $0x1] sm:$0xff]
    %v7624 = vld [vmem:[%s7420 + $0x11] sm:$0xff]
    %v7625 = vld [vmem:[%s7420 + $0x21] sm:$0xff]
    %v7626 = vld [vmem:[%s7420 + $0x31] sm:$0xff]
    %v7627 = vld [vmem:[%s7420 + $0x41] sm:$0xff]
    %v7628 = vld [vmem:[%s7420 + $0x51] sm:$0xff]
    %v7629 = vld [vmem:[%s7420 + $0x61] sm:$0xff]
    %v7630 = vld [vmem:[%s7420 + $0x71] sm:$0xff]
    %v7631 = vld [vmem:[%s7420 + $0xa1] sm:$0xff]
    %v7632 = vld [vmem:[%s7420 + $0xb1] sm:$0xff]
    %v7633 = vld [vmem:[%s7420 + $0xc1] sm:$0xff]
    %v7634 = vld [vmem:[%s7420 + $0xd1] sm:$0xff]
    %v7635 = vld [vmem:[%s7420 + $0xe1] sm:$0xff]
    %v7636 = vld [vmem:[%s7420 + $0xf1] sm:$0xff]
    %v7637 = vld [vmem:[%s7420 + $0x101] sm:$0xff]
    %v7638 = vld [vmem:[%s7420 + $0x111] sm:$0xff]
    %v7639 = vpack.c.bf16 %v7624, %v7623
    %v7640 = vpack.c.bf16 %v7626, %v7625
    %v7641 = vpack.c.bf16 %v7628, %v7627
    %v7642 = vpack.c.bf16 %v7630, %v7629
    %v7643 = vpack.c.bf16 %v7632, %v7631
    %v7644 = vpack.c.bf16 %v7634, %v7633
    %v7645 = vpack.c.bf16 %v7636, %v7635
    %v7646 = vpack.c.bf16 %v7638, %v7637
    %s7647 = scalar_lea.vmem %s5, 448
    %v7648 = vld [vmem:[%s7647] sm:$0xf]
    %v7649 = vld [vmem:[%s7647 + $0x4] sm:$0xf]
    %v7650 = vld [vmem:[%s7647 + $0x8] sm:$0xf]
    %v7651 = vld [vmem:[%s7647 + $0xc] sm:$0xf]
    %v7652 = vld [vmem:[%s7647 + $0x10] sm:$0xf]
    %v7653 = vld [vmem:[%s7647 + $0x14] sm:$0xf]
    %v7654 = vld [vmem:[%s7647 + $0x18] sm:$0xf]
    %v7655 = vld [vmem:[%s7647 + $0x1c] sm:$0xf]
    %v7656 = vld [vmem:[%s7647 + $0x20] sm:$0xf]
    %v7657 = vld [vmem:[%s7647 + $0x24] sm:$0xf]
    %v7658 = vld [vmem:[%s7647 + $0x28] sm:$0xf]
    %v7659 = vld [vmem:[%s7647 + $0x2c] sm:$0xf]
    %v7660 = vld [vmem:[%s7647 + $0x30] sm:$0xf]
    %v7661 = vld [vmem:[%s7647 + $0x34] sm:$0xf]
    %v7662 = vld [vmem:[%s7647 + $0x38] sm:$0xf]
    %v7663 = vld [vmem:[%s7647 + $0x3c] sm:$0xf]
    %v7680 = vunpack.c.l.b16 %v7648
    %v7681 = vunpack.c.l.b16 %v7649
    %v7682 = vunpack.c.l.b16 %v7650
    %v7683 = vunpack.c.l.b16 %v7651
    %v7684 = vunpack.c.l.b16 %v7652
    %v7685 = vunpack.c.l.b16 %v7653
    %v7686 = vunpack.c.l.b16 %v7654
    %v7687 = vunpack.c.l.b16 %v7655
    %v7688 = vunpack.c.l.b16 %v7656
    %v7689 = vunpack.c.l.b16 %v7657
    %v7690 = vunpack.c.l.b16 %v7658
    %v7691 = vunpack.c.l.b16 %v7659
    %v7692 = vunpack.c.l.b16 %v7660
    %v7693 = vunpack.c.l.b16 %v7661
    %v7694 = vunpack.c.l.b16 %v7662
    %v7695 = vunpack.c.l.b16 %v7663
    %v7696 = vpack.c.b16 %v7681, %v7680
    %v7697 = vpack.c.b16 %v7683, %v7682
    %v7698 = vpack.c.b16 %v7685, %v7684
    %v7699 = vpack.c.b16 %v7687, %v7686
    %v7700 = vpack.c.b16 %v7689, %v7688
    %v7701 = vpack.c.b16 %v7691, %v7690
    %v7702 = vpack.c.b16 %v7693, %v7692
    %v7703 = vpack.c.b16 %v7695, %v7694
    %7712 = vmatprep.subr.bf16.mxu0 0
    %7713 = vmatpush1.bf16.msra.mxu0 %v7696
    %7714 = vmatprep.subr.bf16.mxu0 0
    %7715 = vmatpush1.bf16.msra.mxu0 %v7697
    %7716 = vmatprep.subr.bf16.mxu0 0
    %7717 = vmatpush1.bf16.msra.mxu0 %v7698
    %7718 = vmatprep.subr.bf16.mxu0 0
    %7719 = vmatpush1.bf16.msra.mxu0 %v7699
    %7720 = vmatprep.subr.bf16.mxu0 0
    %7721 = vmatpush1.bf16.msra.mxu0 %v7700
    %7722 = vmatprep.subr.bf16.mxu0 0
    %7723 = vmatpush1.bf16.msra.mxu0 %v7701
    %7724 = vmatprep.subr.bf16.mxu0 0
    %7725 = vmatpush1.bf16.msra.mxu0 %v7702
    %7726 = vmatprep.subr.bf16.mxu0 0
    %7727 = vmatpush1.bf16.msra.mxu0 %v7703
    %7728 = vmatprep.subr.bf16.mxu0 0
    %7729 = vmatpush1.bf16.msra.mxu0 0
    %7730 = vmatprep.subr.bf16.mxu0 0
    %7731 = vmatpush1.bf16.msra.mxu0 0
    %7732 = vmatprep.subr.bf16.mxu0 0
    %7733 = vmatpush1.bf16.msra.mxu0 0
    %7734 = vmatprep.subr.bf16.mxu0 0
    %7735 = vmatpush1.bf16.msra.mxu0 0
    %7736 = vmatprep.subr.bf16.mxu0 0
    %7737 = vmatpush1.bf16.msra.mxu0 0
    %7738 = vmatprep.subr.bf16.mxu0 0
    %7739 = vmatpush1.bf16.msra.mxu0 0
    %7740 = vmatprep.subr.bf16.mxu0 0
    %7741 = vmatpush1.bf16.msra.mxu0 0
    %7742 = vmatprep.subr.bf16.mxu0 0
    %7743 = vmatpush1.bf16.msra.mxu0 0
    %7744 = vmatprep.mubr.bf16.mxu0 0
    %7745 = vmatmul.mubr.bf16.gmra.mrb[0].mxu0 %v7639
    %v7746 = vpop.f32.mrb[0].mxu0
    %v7747 = vadd.f32 0.0, %v7746
    %v7748 = vpop.f32.mrb[0].mxu0
    %v7749 = vpop.f32.mrb[0].mxu0
    %v7750 = vadd.f32 0.0, %v7749
    %v7751 = vpop.f32.mrb[0].mxu0
    %7752 = vmatprep.mubr.bf16.mxu0 0
    %7753 = vmatmul.mubr.bf16.gmra.mrb[0].mxu0 %v7640
    %v7754 = vpop.f32.mrb[0].mxu0
    %v7755 = vadd.f32 0.0, %v7754
    %v7756 = vpop.f32.mrb[0].mxu0
    %v7757 = vpop.f32.mrb[0].mxu0
    %v7758 = vadd.f32 0.0, %v7757
    %v7759 = vpop.f32.mrb[0].mxu0
    %7760 = vmatprep.mubr.bf16.mxu0 0
    %7761 = vmatmul.mubr.bf16.gmra.mrb[0].mxu0 %v7641
    %v7762 = vpop.f32.mrb[0].mxu0
    %v7763 = vadd.f32 0.0, %v7762
    %v7764 = vpop.f32.mrb[0].mxu0
    %v7765 = vpop.f32.mrb[0].mxu0
    %v7766 = vadd.f32 0.0, %v7765
    %v7767 = vpop.f32.mrb[0].mxu0
    %7768 = vmatprep.mubr.bf16.mxu0 0
    %7769 = vmatmul.mubr.bf16.gmra.mrb[0].mxu0 %v7642
    %v7770 = vpop.f32.mrb[0].mxu0
    %v7771 = vadd.f32 0.0, %v7770
    %v7772 = vpop.f32.mrb[0].mxu0
    %v7773 = vpop.f32.mrb[0].mxu0
    %v7774 = vadd.f32 0.0, %v7773
    %v7775 = vpop.f32.mrb[0].mxu0
    %7776 = vmatprep.mubr.bf16.mxu0 0
    %7777 = vmatmul.mubr.bf16.gmra.mrb[0].mxu0 %v7643
    %v7778 = vpop.f32.mrb[0].mxu0
    %v7779 = vadd.f32 0.0, %v7778
    %v7780 = vpop.f32.mrb[0].mxu0
    %v7781 = vpop.f32.mrb[0].mxu0
    %v7782 = vadd.f32 0.0, %v7781
    %v7783 = vpop.f32.mrb[0].mxu0
    %7784 = vmatprep.mubr.bf16.mxu0 0
    %7785 = vmatmul.mubr.bf16.gmra.mrb[0].mxu0 %v7644
    %v7786 = vpop.f32.mrb[0].mxu0
    %v7787 = vadd.f32 0.0, %v7786
    %v7788 = vpop.f32.mrb[0].mxu0
    %v7789 = vpop.f32.mrb[0].mxu0
    %v7790 = vadd.f32 0.0, %v7789
    %v7791 = vpop.f32.mrb[0].mxu0
    %7792 = vmatprep.mubr.bf16.mxu0 0
    %7793 = vmatmul.mubr.bf16.gmra.mrb[0].mxu0 %v7645
    %v7794 = vpop.f32.mrb[0].mxu0
    %v7795 = vadd.f32 0.0, %v7794
    %v7796 = vpop.f32.mrb[0].mxu0
    %v7797 = vpop.f32.mrb[0].mxu0
    %v7798 = vadd.f32 0.0, %v7797
    %v7799 = vpop.f32.mrb[0].mxu0
    %7800 = vmatprep.mubr.bf16.mxu0 0
    %7801 = vmatmul.mubr.bf16.gmra.mrb[0].mxu0 %v7646
    %v7802 = vpop.f32.mrb[0].mxu0
    %v7803 = vadd.f32 0.0, %v7802
    %v7804 = vpop.f32.mrb[0].mxu0
    %v7805 = vpop.f32.mrb[0].mxu0
    %v7806 = vadd.f32 0.0, %v7805
    %v7807 = vpop.f32.mrb[0].mxu0
    %7808 = vdwg.mxu0
    %v7809 = vadd.f32 %v7607, %v7747
    %v7810 = vadd.f32 %v7608, %v7750
    %v7811 = vadd.f32 %v7609, %v7755
    %v7812 = vadd.f32 %v7610, %v7758
    %v7813 = vadd.f32 %v7611, %v7763
    %v7814 = vadd.f32 %v7612, %v7766
    %v7815 = vadd.f32 %v7613, %v7771
    %v7816 = vadd.f32 %v7614, %v7774
    %v7817 = vadd.f32 %v7615, %v7779
    %v7818 = vadd.f32 %v7616, %v7782
    %v7819 = vadd.f32 %v7617, %v7787
    %v7820 = vadd.f32 %v7618, %v7790
    %v7821 = vadd.f32 %v7619, %v7795
    %v7822 = vadd.f32 %v7620, %v7798
    %v7823 = vadd.f32 %v7621, %v7803
    %v7824 = vadd.f32 %v7622, %v7806
    %v7825 = vld [vmem:[%s7420 + $0x2] sm:$0xff]
    %v7826 = vld [vmem:[%s7420 + $0x12] sm:$0xff]
    %v7827 = vld [vmem:[%s7420 + $0x22] sm:$0xff]
    %v7828 = vld [vmem:[%s7420 + $0x32] sm:$0xff]
    %v7829 = vld [vmem:[%s7420 + $0x42] sm:$0xff]
    %v7830 = vld [vmem:[%s7420 + $0x52] sm:$0xff]
    %v7831 = vld [vmem:[%s7420 + $0x62] sm:$0xff]
    %v7832 = vld [vmem:[%s7420 + $0x72] sm:$0xff]
    %v7833 = vld [vmem:[%s7420 + $0xa2] sm:$0xff]
    %v7834 = vld [vmem:[%s7420 + $0xb2] sm:$0xff]
    %v7835 = vld [vmem:[%s7420 + $0xc2] sm:$0xff]
    %v7836 = vld [vmem:[%s7420 + $0xd2] sm:$0xff]
    %v7837 = vld [vmem:[%s7420 + $0xe2] sm:$0xff]
    %v7838 = vld [vmem:[%s7420 + $0xf2] sm:$0xff]
    %v7839 = vld [vmem:[%s7420 + $0x102] sm:$0xff]
    %v7840 = vld [vmem:[%s7420 + $0x112] sm:$0xff]
    %v7841 = vpack.c.bf16 %v7826, %v7825
    %v7842 = vpack.c.bf16 %v7828, %v7827
    %v7843 = vpack.c.bf16 %v7830, %v7829
    %v7844 = vpack.c.bf16 %v7832, %v7831
    %v7845 = vpack.c.bf16 %v7834, %v7833
    %v7846 = vpack.c.bf16 %v7836, %v7835
    %v7847 = vpack.c.bf16 %v7838, %v7837
    %v7848 = vpack.c.bf16 %v7840, %v7839
    %s7849 = scalar_lea.vmem %s5, 512
    %v7850 = vld [vmem:[%s7849] sm:$0xf]
    %v7851 = vld [vmem:[%s7849 + $0x4] sm:$0xf]
    %v7852 = vld [vmem:[%s7849 + $0x8] sm:$0xf]
    %v7853 = vld [vmem:[%s7849 + $0xc] sm:$0xf]
    %v7854 = vld [vmem:[%s7849 + $0x10] sm:$0xf]
    %v7855 = vld [vmem:[%s7849 + $0x14] sm:$0xf]
    %v7856 = vld [vmem:[%s7849 + $0x18] sm:$0xf]
    %v7857 = vld [vmem:[%s7849 + $0x1c] sm:$0xf]
    %v7858 = vld [vmem:[%s7849 + $0x20] sm:$0xf]
    %v7859 = vld [vmem:[%s7849 + $0x24] sm:$0xf]
    %v7860 = vld [vmem:[%s7849 + $0x28] sm:$0xf]
    %v7861 = vld [vmem:[%s7849 + $0x2c] sm:$0xf]
    %v7862 = vld [vmem:[%s7849 + $0x30] sm:$0xf]
    %v7863 = vld [vmem:[%s7849 + $0x34] sm:$0xf]
    %v7864 = vld [vmem:[%s7849 + $0x38] sm:$0xf]
    %v7865 = vld [vmem:[%s7849 + $0x3c] sm:$0xf]
    %v7882 = vunpack.c.l.b16 %v7850
    %v7883 = vunpack.c.l.b16 %v7851
    %v7884 = vunpack.c.l.b16 %v7852
    %v7885 = vunpack.c.l.b16 %v7853
    %v7886 = vunpack.c.l.b16 %v7854
    %v7887 = vunpack.c.l.b16 %v7855
    %v7888 = vunpack.c.l.b16 %v7856
    %v7889 = vunpack.c.l.b16 %v7857
    %v7890 = vunpack.c.l.b16 %v7858
    %v7891 = vunpack.c.l.b16 %v7859
    %v7892 = vunpack.c.l.b16 %v7860
    %v7893 = vunpack.c.l.b16 %v7861
    %v7894 = vunpack.c.l.b16 %v7862
    %v7895 = vunpack.c.l.b16 %v7863
    %v7896 = vunpack.c.l.b16 %v7864
    %v7897 = vunpack.c.l.b16 %v7865
    %v7898 = vpack.c.b16 %v7883, %v7882
    %v7899 = vpack.c.b16 %v7885, %v7884
    %v7900 = vpack.c.b16 %v7887, %v7886
    %v7901 = vpack.c.b16 %v7889, %v7888
    %v7902 = vpack.c.b16 %v7891, %v7890
    %v7903 = vpack.c.b16 %v7893, %v7892
    %v7904 = vpack.c.b16 %v7895, %v7894
    %v7905 = vpack.c.b16 %v7897, %v7896
    %7914 = vmatprep.subr.bf16.mxu0 0
    %7915 = vmatpush1.bf16.msra.mxu0 %v7898
    %7916 = vmatprep.subr.bf16.mxu0 0
    %7917 = vmatpush1.bf16.msra.mxu0 %v7899
    %7918 = vmatprep.subr.bf16.mxu0 0
    %7919 = vmatpush1.bf16.msra.mxu0 %v7900
    %7920 = vmatprep.subr.bf16.mxu0 0
    %7921 = vmatpush1.bf16.msra.mxu0 %v7901
    %7922 = vmatprep.subr.bf16.mxu0 0
    %7923 = vmatpush1.bf16.msra.mxu0 %v7902
    %7924 = vmatprep.subr.bf16.mxu0 0
    %7925 = vmatpush1.bf16.msra.mxu0 %v7903
    %7926 = vmatprep.subr.bf16.mxu0 0
    %7927 = vmatpush1.bf16.msra.mxu0 %v7904
    %7928 = vmatprep.subr.bf16.mxu0 0
    %7929 = vmatpush1.bf16.msra.mxu0 %v7905
    %7930 = vmatprep.subr.bf16.mxu0 0
    %7931 = vmatpush1.bf16.msra.mxu0 0
    %7932 = vmatprep.subr.bf16.mxu0 0
    %7933 = vmatpush1.bf16.msra.mxu0 0
    %7934 = vmatprep.subr.bf16.mxu0 0
    %7935 = vmatpush1.bf16.msra.mxu0 0
    %7936 = vmatprep.subr.bf16.mxu0 0
    %7937 = vmatpush1.bf16.msra.mxu0 0
    %7938 = vmatprep.subr.bf16.mxu0 0
    %7939 = vmatpush1.bf16.msra.mxu0 0
    %7940 = vmatprep.subr.bf16.mxu0 0
    %7941 = vmatpush1.bf16.msra.mxu0 0
    %7942 = vmatprep.subr.bf16.mxu0 0
    %7943 = vmatpush1.bf16.msra.mxu0 0
    %7944 = vmatprep.subr.bf16.mxu0 0
    %7945 = vmatpush1.bf16.msra.mxu0 0
    %7946 = vmatprep.mubr.bf16.mxu0 0
    %7947 = vmatmul.mubr.bf16.gmra.mrb[0].mxu0 %v7841
    %v7948 = vpop.f32.mrb[0].mxu0
    %v7949 = vadd.f32 0.0, %v7948
    %v7950 = vpop.f32.mrb[0].mxu0
    %v7951 = vpop.f32.mrb[0].mxu0
    %v7952 = vadd.f32 0.0, %v7951
    %v7953 = vpop.f32.mrb[0].mxu0
    %7954 = vmatprep.mubr.bf16.mxu0 0
    %7955 = vmatmul.mubr.bf16.gmra.mrb[0].mxu0 %v7842
    %v7956 = vpop.f32.mrb[0].mxu0
    %v7957 = vadd.f32 0.0, %v7956
    %v7958 = vpop.f32.mrb[0].mxu0
    %v7959 = vpop.f32.mrb[0].mxu0
    %v7960 = vadd.f32 0.0, %v7959
    %v7961 = vpop.f32.mrb[0].mxu0
    %7962 = vmatprep.mubr.bf16.mxu0 0
    %7963 = vmatmul.mubr.bf16.gmra.mrb[0].mxu0 %v7843
    %v7964 = vpop.f32.mrb[0].mxu0
    %v7965 = vadd.f32 0.0, %v7964
    %v7966 = vpop.f32.mrb[0].mxu0
    %v7967 = vpop.f32.mrb[0].mxu0
    %v7968 = vadd.f32 0.0, %v7967
    %v7969 = vpop.f32.mrb[0].mxu0
    %7970 = vmatprep.mubr.bf16.mxu0 0
    %7971 = vmatmul.mubr.bf16.gmra.mrb[0].mxu0 %v7844
    %v7972 = vpop.f32.mrb[0].mxu0
    %v7973 = vadd.f32 0.0, %v7972
    %v7974 = vpop.f32.mrb[0].mxu0
    %v7975 = vpop.f32.mrb[0].mxu0
    %v7976 = vadd.f32 0.0, %v7975
    %v7977 = vpop.f32.mrb[0].mxu0
    %7978 = vmatprep.mubr.bf16.mxu0 0
    %7979 = vmatmul.mubr.bf16.gmra.mrb[0].mxu0 %v7845
    %v7980 = vpop.f32.mrb[0].mxu0
    %v7981 = vadd.f32 0.0, %v7980
    %v7982 = vpop.f32.mrb[0].mxu0
    %v7983 = vpop.f32.mrb[0].mxu0
    %v7984 = vadd.f32 0.0, %v7983
    %v7985 = vpop.f32.mrb[0].mxu0
    %7986 = vmatprep.mubr.bf16.mxu0 0
    %7987 = vmatmul.mubr.bf16.gmra.mrb[0].mxu0 %v7846
    %v7988 = vpop.f32.mrb[0].mxu0
    %v7989 = vadd.f32 0.0, %v7988
    %v7990 = vpop.f32.mrb[0].mxu0
    %v7991 = vpop.f32.mrb[0].mxu0
    %v7992 = vadd.f32 0.0, %v7991
    %v7993 = vpop.f32.mrb[0].mxu0
    %7994 = vmatprep.mubr.bf16.mxu0 0
    %7995 = vmatmul.mubr.bf16.gmra.mrb[0].mxu0 %v7847
    %v7996 = vpop.f32.mrb[0].mxu0
    %v7997 = vadd.f32 0.0, %v7996
    %v7998 = vpop.f32.mrb[0].mxu0
    %v7999 = vpop.f32.mrb[0].mxu0
    %v8000 = vadd.f32 0.0, %v7999
    %v8001 = vpop.f32.mrb[0].mxu0
    %8002 = vmatprep.mubr.bf16.mxu0 0
    %8003 = vmatmul.mubr.bf16.gmra.mrb[0].mxu0 %v7848
    %v8004 = vpop.f32.mrb[0].mxu0
    %v8005 = vadd.f32 0.0, %v8004
    %v8006 = vpop.f32.mrb[0].mxu0
    %v8007 = vpop.f32.mrb[0].mxu0
    %v8008 = vadd.f32 0.0, %v8007
    %v8009 = vpop.f32.mrb[0].mxu0
    %8010 = vdwg.mxu0
    %v8011 = vadd.f32 %v7809, %v7949
    %v8012 = vadd.f32 %v7810, %v7952
    %v8013 = vadd.f32 %v7811, %v7957
    %v8014 = vadd.f32 %v7812, %v7960
    %v8015 = vadd.f32 %v7813, %v7965
    %v8016 = vadd.f32 %v7814, %v7968
    %v8017 = vadd.f32 %v7815, %v7973
    %v8018 = vadd.f32 %v7816, %v7976
    %v8019 = vadd.f32 %v7817, %v7981
    %v8020 = vadd.f32 %v7818, %v7984
    %v8021 = vadd.f32 %v7819, %v7989
    %v8022 = vadd.f32 %v7820, %v7992
    %v8023 = vadd.f32 %v7821, %v7997
    %v8024 = vadd.f32 %v7822, %v8000
    %v8025 = vadd.f32 %v7823, %v8005
    %v8026 = vadd.f32 %v7824, %v8008
    %v8027 = vld [vmem:[%s6] sm:$0x1]
    %v8029 = vlaneseq
    %v8030 = vshrl.u32 %v8029, 7
    %v8031 = vsub.s32 0, %v8030
    %v8032 = vrot.slane %v8027, %v8031
    %v8034 = vadd.f32 %v8011, %v8032
    %v8035 = vadd.f32 %v8012, %v8032
    %v8036 = vadd.f32 %v8013, %v8032
    %v8037 = vadd.f32 %v8014, %v8032
    %v8038 = vadd.f32 %v8015, %v8032
    %v8039 = vadd.f32 %v8016, %v8032
    %v8040 = vadd.f32 %v8017, %v8032
    %v8041 = vadd.f32 %v8018, %v8032
    %v8042 = vadd.f32 %v8019, %v8032
    %v8043 = vadd.f32 %v8020, %v8032
    %v8044 = vadd.f32 %v8021, %v8032
    %v8045 = vadd.f32 %v8022, %v8032
    %v8046 = vadd.f32 %v8023, %v8032
    %v8047 = vadd.f32 %v8024, %v8032
    %v8048 = vadd.f32 %v8025, %v8032
    %v8049 = vadd.f32 %v8026, %v8032
    %v8050 = vmax.f32 %v8034, 0.0
    %v8051 = vmax.f32 %v8035, 0.0
    %v8052 = vmax.f32 %v8036, 0.0
    %v8053 = vmax.f32 %v8037, 0.0
    %v8054 = vmax.f32 %v8038, 0.0
    %v8055 = vmax.f32 %v8039, 0.0
    %v8056 = vmax.f32 %v8040, 0.0
    %v8057 = vmax.f32 %v8041, 0.0
    %v8058 = vmax.f32 %v8042, 0.0
    %v8059 = vmax.f32 %v8043, 0.0
    %v8060 = vmax.f32 %v8044, 0.0
    %v8061 = vmax.f32 %v8045, 0.0
    %v8062 = vmax.f32 %v8046, 0.0
    %v8063 = vmax.f32 %v8047, 0.0
    %v8064 = vmax.f32 %v8048, 0.0
    %v8065 = vmax.f32 %v8049, 0.0
    %v8066 = vpack.c.bf16 %v8051, %v8050
    %v8067 = vpack.c.bf16 %v8053, %v8052
    %v8068 = vpack.c.bf16 %v8055, %v8054
    %v8069 = vpack.c.bf16 %v8057, %v8056
    %v8070 = vpack.c.bf16 %v8059, %v8058
    %v8071 = vpack.c.bf16 %v8061, %v8060
    %v8072 = vpack.c.bf16 %v8063, %v8062
    %v8073 = vpack.c.bf16 %v8065, %v8064
    %v8074 = vld [vmem:[%s7] sm:$0xff]
    %v8075 = vld [vmem:[%s7 + $0x8] sm:$0xff]
    %v8076 = vld [vmem:[%s7 + $0x10] sm:$0xff]
    %v8077 = vld [vmem:[%s7 + $0x18] sm:$0xff]
    %v8078 = vld [vmem:[%s7 + $0x20] sm:$0xff]
    %v8079 = vld [vmem:[%s7 + $0x28] sm:$0xff]
    %v8080 = vld [vmem:[%s7 + $0x30] sm:$0xff]
    %v8081 = vld [vmem:[%s7 + $0x38] sm:$0xff]
    %v8082 = vld [vmem:[%s7 + $0x40] sm:$0xff]
    %v8083 = vld [vmem:[%s7 + $0x48] sm:$0xff]
    %v8084 = vld [vmem:[%s7 + $0x50] sm:$0xff]
    %v8085 = vld [vmem:[%s7 + $0x58] sm:$0xff]
    %v8086 = vld [vmem:[%s7 + $0x60] sm:$0xff]
    %v8087 = vld [vmem:[%s7 + $0x68] sm:$0xff]
    %v8088 = vld [vmem:[%s7 + $0x70] sm:$0xff]
    %v8089 = vld [vmem:[%s7 + $0x78] sm:$0xff]
    %v8090 = vld [vmem:[%s8] sm:$0x3]
    %v8092 = vlaneseq
    %v8093 = vshrl.u32 %v8092, 7
    %v8094 = vsub.s32 0, %v8093
    %v8095 = vrot.slane %v8090, %v8094
    %v8096 = vlaneseq
    %v8097 = vshrl.u32 %v8096, 7
    %v8098 = vsub.s32 1, %v8097
    %v8099 = vrot.slane %v8090, %v8098
    %v8118 = vunpack.c.l.b16 %v8074
    %v8119 = vunpack.c.h.b16 %v8074
    %v8120 = vunpack.c.l.b16 %v8075
    %v8121 = vunpack.c.h.b16 %v8075
    %v8122 = vunpack.c.l.b16 %v8076
    %v8123 = vunpack.c.h.b16 %v8076
    %v8124 = vunpack.c.l.b16 %v8077
    %v8125 = vunpack.c.h.b16 %v8077
    %v8126 = vunpack.c.l.b16 %v8078
    %v8127 = vunpack.c.h.b16 %v8078
    %v8128 = vunpack.c.l.b16 %v8079
    %v8129 = vunpack.c.h.b16 %v8079
    %v8130 = vunpack.c.l.b16 %v8080
    %v8131 = vunpack.c.h.b16 %v8080
    %v8132 = vunpack.c.l.b16 %v8081
    %v8133 = vunpack.c.h.b16 %v8081
    %v8134 = vunpack.c.l.b16 %v8082
    %v8135 = vunpack.c.h.b16 %v8082
    %v8136 = vunpack.c.l.b16 %v8083
    %v8137 = vunpack.c.h.b16 %v8083
    %v8138 = vunpack.c.l.b16 %v8084
    %v8139 = vunpack.c.h.b16 %v8084
    %v8140 = vunpack.c.l.b16 %v8085
    %v8141 = vunpack.c.h.b16 %v8085
    %v8142 = vunpack.c.l.b16 %v8086
    %v8143 = vunpack.c.h.b16 %v8086
    %v8144 = vunpack.c.l.b16 %v8087
    %v8145 = vunpack.c.h.b16 %v8087
    %v8146 = vunpack.c.l.b16 %v8088
    %v8147 = vunpack.c.h.b16 %v8088
    %v8148 = vunpack.c.l.b16 %v8089
    %v8149 = vunpack.c.h.b16 %v8089
    %v8150 = vpack.c.b16 %v8120, %v8118
    %v8151 = vpack.c.b16 %v8121, %v8119
    %v8152 = vpack.c.b16 %v8124, %v8122
    %v8153 = vpack.c.b16 %v8125, %v8123
    %v8154 = vpack.c.b16 %v8128, %v8126
    %v8155 = vpack.c.b16 %v8129, %v8127
    %v8156 = vpack.c.b16 %v8132, %v8130
    %v8157 = vpack.c.b16 %v8133, %v8131
    %v8158 = vpack.c.b16 %v8136, %v8134
    %v8159 = vpack.c.b16 %v8137, %v8135
    %v8160 = vpack.c.b16 %v8140, %v8138
    %v8161 = vpack.c.b16 %v8141, %v8139
    %v8162 = vpack.c.b16 %v8144, %v8142
    %v8163 = vpack.c.b16 %v8145, %v8143
    %v8164 = vpack.c.b16 %v8148, %v8146
    %v8165 = vpack.c.b16 %v8149, %v8147
    %8182 = vmatprep.subr.bf16.mxu0 %v8151
    %8183 = vmatpush1.bf16.msra.mxu0 %v8150
    %8184 = vmatprep.subr.bf16.mxu0 %v8153
    %8185 = vmatpush1.bf16.msra.mxu0 %v8152
    %8186 = vmatprep.subr.bf16.mxu0 %v8155
    %8187 = vmatpush1.bf16.msra.mxu0 %v8154
    %8188 = vmatprep.subr.bf16.mxu0 %v8157
    %8189 = vmatpush1.bf16.msra.mxu0 %v8156
    %8190 = vmatprep.subr.bf16.mxu0 %v8159
    %8191 = vmatpush1.bf16.msra.mxu0 %v8158
    %8192 = vmatprep.subr.bf16.mxu0 %v8161
    %8193 = vmatpush1.bf16.msra.mxu0 %v8160
    %8194 = vmatprep.subr.bf16.mxu0 %v8163
    %8195 = vmatpush1.bf16.msra.mxu0 %v8162
    %8196 = vmatprep.subr.bf16.mxu0 %v8165
    %8197 = vmatpush1.bf16.msra.mxu0 %v8164
    %8198 = vmatprep.subr.bf16.mxu0 0
    %8199 = vmatpush1.bf16.msra.mxu0 0
    %8200 = vmatprep.subr.bf16.mxu0 0
    %8201 = vmatpush1.bf16.msra.mxu0 0
    %8202 = vmatprep.subr.bf16.mxu0 0
    %8203 = vmatpush1.bf16.msra.mxu0 0
    %8204 = vmatprep.subr.bf16.mxu0 0
    %8205 = vmatpush1.bf16.msra.mxu0 0
    %8206 = vmatprep.subr.bf16.mxu0 0
    %8207 = vmatpush1.bf16.msra.mxu0 0
    %8208 = vmatprep.subr.bf16.mxu0 0
    %8209 = vmatpush1.bf16.msra.mxu0 0
    %8210 = vmatprep.subr.bf16.mxu0 0
    %8211 = vmatpush1.bf16.msra.mxu0 0
    %8212 = vmatprep.subr.bf16.mxu0 0
    %8213 = vmatpush1.bf16.msra.mxu0 0
    %8214 = vmatprep.mubr.bf16.mxu0 0
    %8215 = vmatmul.mubr.bf16.gmra.mrb[0].mxu0 %v8066
    %v8216 = vpop.f32.mrb[0].mxu0
    %v8217 = vadd.f32 %v8095, %v8216
    %v8218 = vpop.f32.mrb[0].mxu0
    %v8219 = vadd.f32 %v8099, %v8218
    %v8220 = vpop.f32.mrb[0].mxu0
    %v8221 = vadd.f32 %v8095, %v8220
    %v8222 = vpop.f32.mrb[0].mxu0
    %v8223 = vadd.f32 %v8099, %v8222
    %8224 = vmatprep.mubr.bf16.mxu0 0
    %8225 = vmatmul.mubr.bf16.gmra.mrb[0].mxu0 %v8067
    %v8226 = vpop.f32.mrb[0].mxu0
    %v8227 = vadd.f32 %v8095, %v8226
    %v8228 = vpop.f32.mrb[0].mxu0
    %v8229 = vadd.f32 %v8099, %v8228
    %v8230 = vpop.f32.mrb[0].mxu0
    %v8231 = vadd.f32 %v8095, %v8230
    %v8232 = vpop.f32.mrb[0].mxu0
    %v8233 = vadd.f32 %v8099, %v8232
    %8234 = vmatprep.mubr.bf16.mxu0 0
    %8235 = vmatmul.mubr.bf16.gmra.mrb[0].mxu0 %v8068
    %v8236 = vpop.f32.mrb[0].mxu0
    %v8237 = vadd.f32 %v8095, %v8236
    %v8238 = vpop.f32.mrb[0].mxu0
    %v8239 = vadd.f32 %v8099, %v8238
    %v8240 = vpop.f32.mrb[0].mxu0
    %v8241 = vadd.f32 %v8095, %v8240
    %v8242 = vpop.f32.mrb[0].mxu0
    %v8243 = vadd.f32 %v8099, %v8242
    %8244 = vmatprep.mubr.bf16.mxu0 0
    %8245 = vmatmul.mubr.bf16.gmra.mrb[0].mxu0 %v8069
    %v8246 = vpop.f32.mrb[0].mxu0
    %v8247 = vadd.f32 %v8095, %v8246
    %v8248 = vpop.f32.mrb[0].mxu0
    %v8249 = vadd.f32 %v8099, %v8248
    %v8250 = vpop.f32.mrb[0].mxu0
    %v8251 = vadd.f32 %v8095, %v8250
    %v8252 = vpop.f32.mrb[0].mxu0
    %v8253 = vadd.f32 %v8099, %v8252
    %8254 = vmatprep.mubr.bf16.mxu0 0
    %8255 = vmatmul.mubr.bf16.gmra.mrb[0].mxu0 %v8070
    %v8256 = vpop.f32.mrb[0].mxu0
    %v8257 = vadd.f32 %v8095, %v8256
    %v8258 = vpop.f32.mrb[0].mxu0
    %v8259 = vadd.f32 %v8099, %v8258
    %v8260 = vpop.f32.mrb[0].mxu0
    %v8261 = vadd.f32 %v8095, %v8260
    %v8262 = vpop.f32.mrb[0].mxu0
    %v8263 = vadd.f32 %v8099, %v8262
    %8264 = vmatprep.mubr.bf16.mxu0 0
    %8265 = vmatmul.mubr.bf16.gmra.mrb[0].mxu0 %v8071
    %v8266 = vpop.f32.mrb[0].mxu0
    %v8267 = vadd.f32 %v8095, %v8266
    %v8268 = vpop.f32.mrb[0].mxu0
    %v8269 = vadd.f32 %v8099, %v8268
    %v8270 = vpop.f32.mrb[0].mxu0
    %v8271 = vadd.f32 %v8095, %v8270
    %v8272 = vpop.f32.mrb[0].mxu0
    %v8273 = vadd.f32 %v8099, %v8272
    %8274 = vmatprep.mubr.bf16.mxu0 0
    %8275 = vmatmul.mubr.bf16.gmra.mrb[0].mxu0 %v8072
    %v8276 = vpop.f32.mrb[0].mxu0
    %v8277 = vadd.f32 %v8095, %v8276
    %v8278 = vpop.f32.mrb[0].mxu0
    %v8279 = vadd.f32 %v8099, %v8278
    %v8280 = vpop.f32.mrb[0].mxu0
    %v8281 = vadd.f32 %v8095, %v8280
    %v8282 = vpop.f32.mrb[0].mxu0
    %v8283 = vadd.f32 %v8099, %v8282
    %8284 = vmatprep.mubr.bf16.mxu0 0
    %8285 = vmatmul.mubr.bf16.gmra.mrb[0].mxu0 %v8073
    %v8286 = vpop.f32.mrb[0].mxu0
    %v8287 = vadd.f32 %v8095, %v8286
    %v8288 = vpop.f32.mrb[0].mxu0
    %v8289 = vadd.f32 %v8099, %v8288
    %v8290 = vpop.f32.mrb[0].mxu0
    %v8291 = vadd.f32 %v8095, %v8290
    %v8292 = vpop.f32.mrb[0].mxu0
    %v8293 = vadd.f32 %v8099, %v8292
    %8294 = vdwg.mxu0
    %v8295 = vld [vmem:[%s9] sm:$0xff]
    %v8296 = vld [vmem:[%s9 + $0x8] sm:$0xff]
    %v8297 = vld [vmem:[%s9 + $0x10] sm:$0xff]
    %v8298 = vld [vmem:[%s9 + $0x18] sm:$0xff]
    %v8299 = vld [vmem:[%s9 + $0x20] sm:$0xff]
    %v8300 = vld [vmem:[%s9 + $0x28] sm:$0xff]
    %v8301 = vld [vmem:[%s9 + $0x30] sm:$0xff]
    %v8302 = vld [vmem:[%s9 + $0x38] sm:$0xff]
    %v8303 = vld [vmem:[%s9 + $0x40] sm:$0xff]
    %v8304 = vld [vmem:[%s9 + $0x48] sm:$0xff]
    %v8305 = vld [vmem:[%s9 + $0x50] sm:$0xff]
    %v8306 = vld [vmem:[%s9 + $0x58] sm:$0xff]
    %v8307 = vld [vmem:[%s9 + $0x60] sm:$0xff]
    %v8308 = vld [vmem:[%s9 + $0x68] sm:$0xff]
    %v8309 = vld [vmem:[%s9 + $0x70] sm:$0xff]
    %v8310 = vld [vmem:[%s9 + $0x78] sm:$0xff]
    %v8311 = vld [vmem:[%s10] sm:$0x3]
    %v8313 = vlaneseq
    %v8314 = vshrl.u32 %v8313, 7
    %v8315 = vsub.s32 0, %v8314
    %v8316 = vrot.slane %v8311, %v8315
    %v8317 = vlaneseq
    %v8318 = vshrl.u32 %v8317, 7
    %v8319 = vsub.s32 1, %v8318
    %v8320 = vrot.slane %v8311, %v8319
    %v8339 = vunpack.c.l.b16 %v8295
    %v8340 = vunpack.c.h.b16 %v8295
    %v8341 = vunpack.c.l.b16 %v8296
    %v8342 = vunpack.c.h.b16 %v8296
    %v8343 = vunpack.c.l.b16 %v8297
    %v8344 = vunpack.c.h.b16 %v8297
    %v8345 = vunpack.c.l.b16 %v8298
    %v8346 = vunpack.c.h.b16 %v8298
    %v8347 = vunpack.c.l.b16 %v8299
    %v8348 = vunpack.c.h.b16 %v8299
    %v8349 = vunpack.c.l.b16 %v8300
    %v8350 = vunpack.c.h.b16 %v8300
    %v8351 = vunpack.c.l.b16 %v8301
    %v8352 = vunpack.c.h.b16 %v8301
    %v8353 = vunpack.c.l.b16 %v8302
    %v8354 = vunpack.c.h.b16 %v8302
    %v8355 = vunpack.c.l.b16 %v8303
    %v8356 = vunpack.c.h.b16 %v8303
    %v8357 = vunpack.c.l.b16 %v8304
    %v8358 = vunpack.c.h.b16 %v8304
    %v8359 = vunpack.c.l.b16 %v8305
    %v8360 = vunpack.c.h.b16 %v8305
    %v8361 = vunpack.c.l.b16 %v8306
    %v8362 = vunpack.c.h.b16 %v8306
    %v8363 = vunpack.c.l.b16 %v8307
    %v8364 = vunpack.c.h.b16 %v8307
    %v8365 = vunpack.c.l.b16 %v8308
    %v8366 = vunpack.c.h.b16 %v8308
    %v8367 = vunpack.c.l.b16 %v8309
    %v8368 = vunpack.c.h.b16 %v8309
    %v8369 = vunpack.c.l.b16 %v8310
    %v8370 = vunpack.c.h.b16 %v8310
    %v8371 = vpack.c.b16 %v8341, %v8339
    %v8372 = vpack.c.b16 %v8342, %v8340
    %v8373 = vpack.c.b16 %v8345, %v8343
    %v8374 = vpack.c.b16 %v8346, %v8344
    %v8375 = vpack.c.b16 %v8349, %v8347
    %v8376 = vpack.c.b16 %v8350, %v8348
    %v8377 = vpack.c.b16 %v8353, %v8351
    %v8378 = vpack.c.b16 %v8354, %v8352
    %v8379 = vpack.c.b16 %v8357, %v8355
    %v8380 = vpack.c.b16 %v8358, %v8356
    %v8381 = vpack.c.b16 %v8361, %v8359
    %v8382 = vpack.c.b16 %v8362, %v8360
    %v8383 = vpack.c.b16 %v8365, %v8363
    %v8384 = vpack.c.b16 %v8366, %v8364
    %v8385 = vpack.c.b16 %v8369, %v8367
    %v8386 = vpack.c.b16 %v8370, %v8368
    %8403 = vmatprep.subr.bf16.mxu0 %v8372
    %8404 = vmatpush1.bf16.msra.mxu0 %v8371
    %8405 = vmatprep.subr.bf16.mxu0 %v8374
    %8406 = vmatpush1.bf16.msra.mxu0 %v8373
    %8407 = vmatprep.subr.bf16.mxu0 %v8376
    %8408 = vmatpush1.bf16.msra.mxu0 %v8375
    %8409 = vmatprep.subr.bf16.mxu0 %v8378
    %8410 = vmatpush1.bf16.msra.mxu0 %v8377
    %8411 = vmatprep.subr.bf16.mxu0 %v8380
    %8412 = vmatpush1.bf16.msra.mxu0 %v8379
    %8413 = vmatprep.subr.bf16.mxu0 %v8382
    %8414 = vmatpush1.bf16.msra.mxu0 %v8381
    %8415 = vmatprep.subr.bf16.mxu0 %v8384
    %8416 = vmatpush1.bf16.msra.mxu0 %v8383
    %8417 = vmatprep.subr.bf16.mxu0 %v8386
    %8418 = vmatpush1.bf16.msra.mxu0 %v8385
    %8419 = vmatprep.subr.bf16.mxu0 0
    %8420 = vmatpush1.bf16.msra.mxu0 0
    %8421 = vmatprep.subr.bf16.mxu0 0
    %8422 = vmatpush1.bf16.msra.mxu0 0
    %8423 = vmatprep.subr.bf16.mxu0 0
    %8424 = vmatpush1.bf16.msra.mxu0 0
    %8425 = vmatprep.subr.bf16.mxu0 0
    %8426 = vmatpush1.bf16.msra.mxu0 0
    %8427 = vmatprep.subr.bf16.mxu0 0
    %8428 = vmatpush1.bf16.msra.mxu0 0
    %8429 = vmatprep.subr.bf16.mxu0 0
    %8430 = vmatpush1.bf16.msra.mxu0 0
    %8431 = vmatprep.subr.bf16.mxu0 0
    %8432 = vmatpush1.bf16.msra.mxu0 0
    %8433 = vmatprep.subr.bf16.mxu0 0
    %8434 = vmatpush1.bf16.msra.mxu0 0
    %8435 = vmatprep.mubr.bf16.mxu0 0
    %8436 = vmatmul.mubr.bf16.gmra.mrb[0].mxu0 %v5992
    %v8437 = vpop.f32.mrb[0].mxu0
    %v8438 = vadd.f32 %v8316, %v8437
    %v8439 = vpop.f32.mrb[0].mxu0
    %v8440 = vadd.f32 %v8320, %v8439
    %v8441 = vpop.f32.mrb[0].mxu0
    %v8442 = vadd.f32 %v8316, %v8441
    %v8443 = vpop.f32.mrb[0].mxu0
    %v8444 = vadd.f32 %v8320, %v8443
    %8445 = vmatprep.mubr.bf16.mxu0 0
    %8446 = vmatmul.mubr.bf16.gmra.mrb[0].mxu0 %v5993
    %v8447 = vpop.f32.mrb[0].mxu0
    %v8448 = vadd.f32 %v8316, %v8447
    %v8449 = vpop.f32.mrb[0].mxu0
    %v8450 = vadd.f32 %v8320, %v8449
    %v8451 = vpop.f32.mrb[0].mxu0
    %v8452 = vadd.f32 %v8316, %v8451
    %v8453 = vpop.f32.mrb[0].mxu0
    %v8454 = vadd.f32 %v8320, %v8453
    %8455 = vmatprep.mubr.bf16.mxu0 0
    %8456 = vmatmul.mubr.bf16.gmra.mrb[0].mxu0 %v5994
    %v8457 = vpop.f32.mrb[0].mxu0
    %v8458 = vadd.f32 %v8316, %v8457
    %v8459 = vpop.f32.mrb[0].mxu0
    %v8460 = vadd.f32 %v8320, %v8459
    %v8461 = vpop.f32.mrb[0].mxu0
    %v8462 = vadd.f32 %v8316, %v8461
    %v8463 = vpop.f32.mrb[0].mxu0
    %v8464 = vadd.f32 %v8320, %v8463
    %8465 = vmatprep.mubr.bf16.mxu0 0
    %8466 = vmatmul.mubr.bf16.gmra.mrb[0].mxu0 %v5995
    %v8467 = vpop.f32.mrb[0].mxu0
    %v8468 = vadd.f32 %v8316, %v8467
    %v8469 = vpop.f32.mrb[0].mxu0
    %v8470 = vadd.f32 %v8320, %v8469
    %v8471 = vpop.f32.mrb[0].mxu0
    %v8472 = vadd.f32 %v8316, %v8471
    %v8473 = vpop.f32.mrb[0].mxu0
    %v8474 = vadd.f32 %v8320, %v8473
    %8475 = vmatprep.mubr.bf16.mxu0 0
    %8476 = vmatmul.mubr.bf16.gmra.mrb[0].mxu0 %v5996
    %v8477 = vpop.f32.mrb[0].mxu0
    %v8478 = vadd.f32 %v8316, %v8477
    %v8479 = vpop.f32.mrb[0].mxu0
    %v8480 = vadd.f32 %v8320, %v8479
    %v8481 = vpop.f32.mrb[0].mxu0
    %v8482 = vadd.f32 %v8316, %v8481
    %v8483 = vpop.f32.mrb[0].mxu0
    %v8484 = vadd.f32 %v8320, %v8483
    %8485 = vmatprep.mubr.bf16.mxu0 0
    %8486 = vmatmul.mubr.bf16.gmra.mrb[0].mxu0 %v5997
    %v8487 = vpop.f32.mrb[0].mxu0
    %v8488 = vadd.f32 %v8316, %v8487
    %v8489 = vpop.f32.mrb[0].mxu0
    %v8490 = vadd.f32 %v8320, %v8489
    %v8491 = vpop.f32.mrb[0].mxu0
    %v8492 = vadd.f32 %v8316, %v8491
    %v8493 = vpop.f32.mrb[0].mxu0
    %v8494 = vadd.f32 %v8320, %v8493
    %8495 = vmatprep.mubr.bf16.mxu0 0
    %8496 = vmatmul.mubr.bf16.gmra.mrb[0].mxu0 %v5998
    %v8497 = vpop.f32.mrb[0].mxu0
    %v8498 = vadd.f32 %v8316, %v8497
    %v8499 = vpop.f32.mrb[0].mxu0
    %v8500 = vadd.f32 %v8320, %v8499
    %v8501 = vpop.f32.mrb[0].mxu0
    %v8502 = vadd.f32 %v8316, %v8501
    %v8503 = vpop.f32.mrb[0].mxu0
    %v8504 = vadd.f32 %v8320, %v8503
    %8505 = vmatprep.mubr.bf16.mxu0 0
    %8506 = vmatmul.mubr.bf16.gmra.mrb[0].mxu0 %v5999
    %v8507 = vpop.f32.mrb[0].mxu0
    %v8508 = vadd.f32 %v8316, %v8507
    %v8509 = vpop.f32.mrb[0].mxu0
    %v8510 = vadd.f32 %v8320, %v8509
    %v8511 = vpop.f32.mrb[0].mxu0
    %v8512 = vadd.f32 %v8316, %v8511
    %v8513 = vpop.f32.mrb[0].mxu0
    %v8514 = vadd.f32 %v8320, %v8513
    %8515 = vdwg.mxu0
    %v8516 = vadd.f32 %v8217, %v8438
    %v8517 = vadd.f32 %v8219, %v8440
    %v8518 = vadd.f32 %v8221, %v8442
    %v8519 = vadd.f32 %v8223, %v8444
    %v8520 = vadd.f32 %v8227, %v8448
    %v8521 = vadd.f32 %v8229, %v8450
    %v8522 = vadd.f32 %v8231, %v8452
    %v8523 = vadd.f32 %v8233, %v8454
    %v8524 = vadd.f32 %v8237, %v8458
    %v8525 = vadd.f32 %v8239, %v8460
    %v8526 = vadd.f32 %v8241, %v8462
    %v8527 = vadd.f32 %v8243, %v8464
    %v8528 = vadd.f32 %v8247, %v8468
    %v8529 = vadd.f32 %v8249, %v8470
    %v8530 = vadd.f32 %v8251, %v8472
    %v8531 = vadd.f32 %v8253, %v8474
    %v8532 = vadd.f32 %v8257, %v8478
    %v8533 = vadd.f32 %v8259, %v8480
    %v8534 = vadd.f32 %v8261, %v8482
    %v8535 = vadd.f32 %v8263, %v8484
    %v8536 = vadd.f32 %v8267, %v8488
    %v8537 = vadd.f32 %v8269, %v8490
    %v8538 = vadd.f32 %v8271, %v8492
    %v8539 = vadd.f32 %v8273, %v8494
    %v8540 = vadd.f32 %v8277, %v8498
    %v8541 = vadd.f32 %v8279, %v8500
    %v8542 = vadd.f32 %v8281, %v8502
    %v8543 = vadd.f32 %v8283, %v8504
    %v8544 = vadd.f32 %v8287, %v8508
    %v8545 = vadd.f32 %v8289, %v8510
    %v8546 = vadd.f32 %v8291, %v8512
    %v8547 = vadd.f32 %v8293, %v8514
    %v8548 = vmax.f32 %v8516, 0.0
    %v8549 = vmax.f32 %v8517, 0.0
    %v8550 = vmax.f32 %v8518, 0.0
    %v8551 = vmax.f32 %v8519, 0.0
    %v8552 = vmax.f32 %v8520, 0.0
    %v8553 = vmax.f32 %v8521, 0.0
    %v8554 = vmax.f32 %v8522, 0.0
    %v8555 = vmax.f32 %v8523, 0.0
    %v8556 = vmax.f32 %v8524, 0.0
    %v8557 = vmax.f32 %v8525, 0.0
    %v8558 = vmax.f32 %v8526, 0.0
    %v8559 = vmax.f32 %v8527, 0.0
    %v8560 = vmax.f32 %v8528, 0.0
    %v8561 = vmax.f32 %v8529, 0.0
    %v8562 = vmax.f32 %v8530, 0.0
    %v8563 = vmax.f32 %v8531, 0.0
    %v8564 = vmax.f32 %v8532, 0.0
    %v8565 = vmax.f32 %v8533, 0.0
    %v8566 = vmax.f32 %v8534, 0.0
    %v8567 = vmax.f32 %v8535, 0.0
    %v8568 = vmax.f32 %v8536, 0.0
    %v8569 = vmax.f32 %v8537, 0.0
    %v8570 = vmax.f32 %v8538, 0.0
    %v8571 = vmax.f32 %v8539, 0.0
    %v8572 = vmax.f32 %v8540, 0.0
    %v8573 = vmax.f32 %v8541, 0.0
    %v8574 = vmax.f32 %v8542, 0.0
    %v8575 = vmax.f32 %v8543, 0.0
    %v8576 = vmax.f32 %v8544, 0.0
    %v8577 = vmax.f32 %v8545, 0.0
    %v8578 = vmax.f32 %v8546, 0.0
    %v8579 = vmax.f32 %v8547, 0.0
    %v8580 = vpack.c.bf16 %v8550, %v8548
    %v8581 = vpack.c.bf16 %v8551, %v8549
    %v8582 = vpack.c.bf16 %v8554, %v8552
    %v8583 = vpack.c.bf16 %v8555, %v8553
    %v8584 = vpack.c.bf16 %v8558, %v8556
    %v8585 = vpack.c.bf16 %v8559, %v8557
    %v8586 = vpack.c.bf16 %v8562, %v8560
    %v8587 = vpack.c.bf16 %v8563, %v8561
    %v8588 = vpack.c.bf16 %v8566, %v8564
    %v8589 = vpack.c.bf16 %v8567, %v8565
    %v8590 = vpack.c.bf16 %v8570, %v8568
    %v8591 = vpack.c.bf16 %v8571, %v8569
    %v8592 = vpack.c.bf16 %v8574, %v8572
    %v8593 = vpack.c.bf16 %v8575, %v8573
    %v8594 = vpack.c.bf16 %v8578, %v8576
    %v8595 = vpack.c.bf16 %v8579, %v8577
    %v8596 = vld [vmem:[%s11] sm:$0xf]
    %v8597 = vld [vmem:[%s11 + $0x4] sm:$0xf]
    %v8598 = vld [vmem:[%s11 + $0x8] sm:$0xf]
    %v8599 = vld [vmem:[%s11 + $0xc] sm:$0xf]
    %v8600 = vld [vmem:[%s11 + $0x10] sm:$0xf]
    %v8601 = vld [vmem:[%s11 + $0x14] sm:$0xf]
    %v8602 = vld [vmem:[%s11 + $0x18] sm:$0xf]
    %v8603 = vld [vmem:[%s11 + $0x1c] sm:$0xf]
    %v8604 = vld [vmem:[%s11 + $0x20] sm:$0xf]
    %v8605 = vld [vmem:[%s11 + $0x24] sm:$0xf]
    %v8606 = vld [vmem:[%s11 + $0x28] sm:$0xf]
    %v8607 = vld [vmem:[%s11 + $0x2c] sm:$0xf]
    %v8608 = vld [vmem:[%s11 + $0x30] sm:$0xf]
    %v8609 = vld [vmem:[%s11 + $0x34] sm:$0xf]
    %v8610 = vld [vmem:[%s11 + $0x38] sm:$0xf]
    %v8611 = vld [vmem:[%s11 + $0x3c] sm:$0xf]
    %v8612 = vld [vmem:[%s11 + $0x40] sm:$0xf]
    %v8613 = vld [vmem:[%s11 + $0x44] sm:$0xf]
    %v8614 = vld [vmem:[%s11 + $0x48] sm:$0xf]
    %v8615 = vld [vmem:[%s11 + $0x4c] sm:$0xf]
    %v8616 = vld [vmem:[%s11 + $0x50] sm:$0xf]
    %v8617 = vld [vmem:[%s11 + $0x54] sm:$0xf]
    %v8618 = vld [vmem:[%s11 + $0x58] sm:$0xf]
    %v8619 = vld [vmem:[%s11 + $0x5c] sm:$0xf]
    %v8620 = vld [vmem:[%s11 + $0x60] sm:$0xf]
    %v8621 = vld [vmem:[%s11 + $0x64] sm:$0xf]
    %v8622 = vld [vmem:[%s11 + $0x68] sm:$0xf]
    %v8623 = vld [vmem:[%s11 + $0x6c] sm:$0xf]
    %v8624 = vld [vmem:[%s11 + $0x70] sm:$0xf]
    %v8625 = vld [vmem:[%s11 + $0x74] sm:$0xf]
    %v8626 = vld [vmem:[%s11 + $0x78] sm:$0xf]
    %v8627 = vld [vmem:[%s11 + $0x7c] sm:$0xf]
    %v8628 = vld [vmem:[%s12] sm:$0x1]
    %v8630 = vlaneseq
    %v8631 = vshrl.u32 %v8630, 7
    %v8632 = vsub.s32 0, %v8631
    %v8633 = vrot.slane %v8628, %v8632
    %v8667 = vunpack.c.l.b16 %v8596
    %v8668 = vunpack.c.l.b16 %v8597
    %v8669 = vunpack.c.l.b16 %v8598
    %v8670 = vunpack.c.l.b16 %v8599
    %v8671 = vunpack.c.l.b16 %v8600
    %v8672 = vunpack.c.l.b16 %v8601
    %v8673 = vunpack.c.l.b16 %v8602
    %v8674 = vunpack.c.l.b16 %v8603
    %v8675 = vunpack.c.l.b16 %v8604
    %v8676 = vunpack.c.l.b16 %v8605
    %v8677 = vunpack.c.l.b16 %v8606
    %v8678 = vunpack.c.l.b16 %v8607
    %v8679 = vunpack.c.l.b16 %v8608
    %v8680 = vunpack.c.l.b16 %v8609
    %v8681 = vunpack.c.l.b16 %v8610
    %v8682 = vunpack.c.l.b16 %v8611
    %v8683 = vunpack.c.l.b16 %v8612
    %v8684 = vunpack.c.l.b16 %v8613
    %v8685 = vunpack.c.l.b16 %v8614
    %v8686 = vunpack.c.l.b16 %v8615
    %v8687 = vunpack.c.l.b16 %v8616
    %v8688 = vunpack.c.l.b16 %v8617
    %v8689 = vunpack.c.l.b16 %v8618
    %v8690 = vunpack.c.l.b16 %v8619
    %v8691 = vunpack.c.l.b16 %v8620
    %v8692 = vunpack.c.l.b16 %v8621
    %v8693 = vunpack.c.l.b16 %v8622
    %v8694 = vunpack.c.l.b16 %v8623
    %v8695 = vunpack.c.l.b16 %v8624
    %v8696 = vunpack.c.l.b16 %v8625
    %v8697 = vunpack.c.l.b16 %v8626
    %v8698 = vunpack.c.l.b16 %v8627
    %v8699 = vpack.c.b16 %v8668, %v8667
    %v8700 = vpack.c.b16 %v8670, %v8669
    %v8701 = vpack.c.b16 %v8672, %v8671
    %v8702 = vpack.c.b16 %v8674, %v8673
    %v8703 = vpack.c.b16 %v8676, %v8675
    %v8704 = vpack.c.b16 %v8678, %v8677
    %v8705 = vpack.c.b16 %v8680, %v8679
    %v8706 = vpack.c.b16 %v8682, %v8681
    %v8707 = vpack.c.b16 %v8684, %v8683
    %v8708 = vpack.c.b16 %v8686, %v8685
    %v8709 = vpack.c.b16 %v8688, %v8687
    %v8710 = vpack.c.b16 %v8690, %v8689
    %v8711 = vpack.c.b16 %v8692, %v8691
    %v8712 = vpack.c.b16 %v8694, %v8693
    %v8713 = vpack.c.b16 %v8696, %v8695
    %v8714 = vpack.c.b16 %v8698, %v8697
    %8731 = vmatprep.subr.bf16.mxu0 0
    %8732 = vmatpush1.bf16.msra.mxu0 %v8699
    %8733 = vmatprep.subr.bf16.mxu0 0
    %8734 = vmatpush1.bf16.msra.mxu0 %v8700
    %8735 = vmatprep.subr.bf16.mxu0 0
    %8736 = vmatpush1.bf16.msra.mxu0 %v8701
    %8737 = vmatprep.subr.bf16.mxu0 0
    %8738 = vmatpush1.bf16.msra.mxu0 %v8702
    %8739 = vmatprep.subr.bf16.mxu0 0
    %8740 = vmatpush1.bf16.msra.mxu0 %v8703
    %8741 = vmatprep.subr.bf16.mxu0 0
    %8742 = vmatpush1.bf16.msra.mxu0 %v8704
    %8743 = vmatprep.subr.bf16.mxu0 0
    %8744 = vmatpush1.bf16.msra.mxu0 %v8705
    %8745 = vmatprep.subr.bf16.mxu0 0
    %8746 = vmatpush1.bf16.msra.mxu0 %v8706
    %8747 = vmatprep.subr.bf16.mxu0 0
    %8748 = vmatpush1.bf16.msra.mxu0 %v8707
    %8749 = vmatprep.subr.bf16.mxu0 0
    %8750 = vmatpush1.bf16.msra.mxu0 %v8708
    %8751 = vmatprep.subr.bf16.mxu0 0
    %8752 = vmatpush1.bf16.msra.mxu0 %v8709
    %8753 = vmatprep.subr.bf16.mxu0 0
    %8754 = vmatpush1.bf16.msra.mxu0 %v8710
    %8755 = vmatprep.subr.bf16.mxu0 0
    %8756 = vmatpush1.bf16.msra.mxu0 %v8711
    %8757 = vmatprep.subr.bf16.mxu0 0
    %8758 = vmatpush1.bf16.msra.mxu0 %v8712
    %8759 = vmatprep.subr.bf16.mxu0 0
    %8760 = vmatpush1.bf16.msra.mxu0 %v8713
    %8761 = vmatprep.subr.bf16.mxu0 0
    %8762 = vmatpush1.bf16.msra.mxu0 %v8714
    %8763 = vmatprep.mubr.bf16.mxu0 %v8581
    %8764 = vmatmul.mubr.bf16.gmra.mrb[0].mxu0 %v8580
    %v8765 = vpop.f32.mrb[0].mxu0
    %v8766 = vadd.f32 %v8633, %v8765
    %v8767 = vpop.f32.mrb[0].mxu0
    %v8768 = vpop.f32.mrb[0].mxu0
    %v8769 = vadd.f32 %v8633, %v8768
    %v8770 = vpop.f32.mrb[0].mxu0
    %8771 = vmatprep.mubr.bf16.mxu0 %v8583
    %8772 = vmatmul.mubr.bf16.gmra.mrb[0].mxu0 %v8582
    %v8773 = vpop.f32.mrb[0].mxu0
    %v8774 = vadd.f32 %v8633, %v8773
    %v8775 = vpop.f32.mrb[0].mxu0
    %v8776 = vpop.f32.mrb[0].mxu0
    %v8777 = vadd.f32 %v8633, %v8776
    %v8778 = vpop.f32.mrb[0].mxu0
    %8779 = vmatprep.mubr.bf16.mxu0 %v8585
    %8780 = vmatmul.mubr.bf16.gmra.mrb[0].mxu0 %v8584
    %v8781 = vpop.f32.mrb[0].mxu0
    %v8782 = vadd.f32 %v8633, %v8781
    %v8783 = vpop.f32.mrb[0].mxu0
    %v8784 = vpop.f32.mrb[0].mxu0
    %v8785 = vadd.f32 %v8633, %v8784
    %v8786 = vpop.f32.mrb[0].mxu0
    %8787 = vmatprep.mubr.bf16.mxu0 %v8587
    %8788 = vmatmul.mubr.bf16.gmra.mrb[0].mxu0 %v8586
    %v8789 = vpop.f32.mrb[0].mxu0
    %v8790 = vadd.f32 %v8633, %v8789
    %v8791 = vpop.f32.mrb[0].mxu0
    %v8792 = vpop.f32.mrb[0].mxu0
    %v8793 = vadd.f32 %v8633, %v8792
    %v8794 = vpop.f32.mrb[0].mxu0
    %8795 = vmatprep.mubr.bf16.mxu0 %v8589
    %8796 = vmatmul.mubr.bf16.gmra.mrb[0].mxu0 %v8588
    %v8797 = vpop.f32.mrb[0].mxu0
    %v8798 = vadd.f32 %v8633, %v8797
    %v8799 = vpop.f32.mrb[0].mxu0
    %v8800 = vpop.f32.mrb[0].mxu0
    %v8801 = vadd.f32 %v8633, %v8800
    %v8802 = vpop.f32.mrb[0].mxu0
    %8803 = vmatprep.mubr.bf16.mxu0 %v8591
    %8804 = vmatmul.mubr.bf16.gmra.mrb[0].mxu0 %v8590
    %v8805 = vpop.f32.mrb[0].mxu0
    %v8806 = vadd.f32 %v8633, %v8805
    %v8807 = vpop.f32.mrb[0].mxu0
    %v8808 = vpop.f32.mrb[0].mxu0
    %v8809 = vadd.f32 %v8633, %v8808
    %v8810 = vpop.f32.mrb[0].mxu0
    %8811 = vmatprep.mubr.bf16.mxu0 %v8593
    %8812 = vmatmul.mubr.bf16.gmra.mrb[0].mxu0 %v8592
    %v8813 = vpop.f32.mrb[0].mxu0
    %v8814 = vadd.f32 %v8633, %v8813
    %v8815 = vpop.f32.mrb[0].mxu0
    %v8816 = vpop.f32.mrb[0].mxu0
    %v8817 = vadd.f32 %v8633, %v8816
    %v8818 = vpop.f32.mrb[0].mxu0
    %8819 = vmatprep.mubr.bf16.mxu0 %v8595
    %8820 = vmatmul.mubr.bf16.gmra.mrb[0].mxu0 %v8594
    %v8821 = vpop.f32.mrb[0].mxu0
    %v8822 = vadd.f32 %v8633, %v8821
    %v8823 = vpop.f32.mrb[0].mxu0
    %v8824 = vpop.f32.mrb[0].mxu0
    %v8825 = vadd.f32 %v8633, %v8824
    %v8826 = vpop.f32.mrb[0].mxu0
    %8827 = vdwg.mxu0
    %v8828 = vmax.f32 %v8766, 0.0
    %v8829 = vmax.f32 %v8769, 0.0
    %v8830 = vmax.f32 %v8774, 0.0
    %v8831 = vmax.f32 %v8777, 0.0
    %v8832 = vmax.f32 %v8782, 0.0
    %v8833 = vmax.f32 %v8785, 0.0
    %v8834 = vmax.f32 %v8790, 0.0
    %v8835 = vmax.f32 %v8793, 0.0
    %v8836 = vmax.f32 %v8798, 0.0
    %v8837 = vmax.f32 %v8801, 0.0
    %v8838 = vmax.f32 %v8806, 0.0
    %v8839 = vmax.f32 %v8809, 0.0
    %v8840 = vmax.f32 %v8814, 0.0
    %v8841 = vmax.f32 %v8817, 0.0
    %v8842 = vmax.f32 %v8822, 0.0
    %v8843 = vmax.f32 %v8825, 0.0
    %v8844 = vlaneseq
    %v8845 = vand.u32 %v8844, 127
    %v8846 = vld [vmem:[%s14] sm:$0x1]
    %v8848 = vlaneseq
    %v8849 = vshrl.u32 %v8848, 7
    %v8850 = vsub.s32 0, %v8849
    %v8851 = vrot.slane %v8846, %v8850
    %v8853 = vadd.f32 %v8851, 0.0
    %v8854 = vld [vmem:[%s13] sm:$0xff]
    %v8855 = vld [vmem:[%s13 + $0x8] sm:$0xff]
    %v8856 = vld [vmem:[%s13 + $0x10] sm:$0xff]
    %v8857 = vld [vmem:[%s13 + $0x18] sm:$0xff]
    %v8858 = vld [vmem:[%s13 + $0x20] sm:$0xff]
    %v8859 = vld [vmem:[%s13 + $0x28] sm:$0xff]
    %v8860 = vld [vmem:[%s13 + $0x30] sm:$0xff]
    %v8861 = vld [vmem:[%s13 + $0x38] sm:$0xff]
    %v8862 = vmul.f32 %v8828, %v8854
    %v8863 = vmul.f32 %v8829, %v8855
    %v8864 = vmul.f32 %v8830, %v8856
    %v8865 = vmul.f32 %v8831, %v8857
    %v8866 = vmul.f32 %v8832, %v8858
    %v8867 = vmul.f32 %v8833, %v8859
    %v8868 = vmul.f32 %v8834, %v8860
    %v8869 = vmul.f32 %v8835, %v8861
    %v8870 = vmul.f32 %v8836, %v8854
    %v8871 = vmul.f32 %v8837, %v8855
    %v8872 = vmul.f32 %v8838, %v8856
    %v8873 = vmul.f32 %v8839, %v8857
    %v8874 = vmul.f32 %v8840, %v8858
    %v8875 = vmul.f32 %v8841, %v8859
    %v8876 = vmul.f32 %v8842, %v8860
    %v8877 = vmul.f32 %v8843, %v8861
    %v8878 = vadd.f32 %v8862, %v8863
    %v8879 = vadd.f32 %v8878, %v8864
    %v8880 = vadd.f32 %v8879, %v8865
    %v8881 = vadd.f32 %v8880, %v8866
    %v8882 = vadd.f32 %v8881, %v8867
    %v8883 = vadd.f32 %v8882, %v8868
    %v8884 = vadd.f32 %v8883, %v8869
    %v8885 = vrot.slane %v8884, 4
    %v8886 = vadd.f32 %v8884, %v8885
    %v8887 = vrot.slane %v8886, 2
    %v8888 = vadd.f32 %v8886, %v8887
    %v8889 = vrot.slane %v8888, 1
    %v8890 = vadd.f32 %v8888, %v8889
    %v8891 = vadd.f32 %v8870, %v8871
    %v8892 = vadd.f32 %v8891, %v8872
    %v8893 = vadd.f32 %v8892, %v8873
    %v8894 = vadd.f32 %v8893, %v8874
    %v8895 = vadd.f32 %v8894, %v8875
    %v8896 = vadd.f32 %v8895, %v8876
    %v8897 = vadd.f32 %v8896, %v8877
    %v8898 = vrot.slane %v8897, 4
    %v8899 = vadd.f32 %v8897, %v8898
    %v8900 = vrot.slane %v8899, 2
    %v8901 = vadd.f32 %v8899, %v8900
    %v8902 = vrot.slane %v8901, 1
    %v8903 = vadd.f32 %v8901, %v8902
    %8904 = vadd.xlane.f32.xlu0 %v8890
    %v8905 = vpop.xlane.xlu0 %8904
    %8906 = vadd.xlane.f32.xlu0 %v8903
    %v8907 = vpop.xlane.xlu0 %8906
    %vm8908 = vcmp.eq.s32.totalorder %v8845, 0
    %v8909 = vsel %vm8908, 1.0, 0.0
    %vm8912 = vcmask 1041409
    %v8913 = vsel %vm8912, %v8907, %v8905
    %v8915 = vmul.f32 %v8909, %v8913
    %v8916 = vadd.f32 %v8853, %v8915
    %s8917 = scalar_lea.vmem %s13, 64
    %v8918 = vld [vmem:[%s8917] sm:$0xff]
    %v8919 = vld [vmem:[%s8917 + $0x8] sm:$0xff]
    %v8920 = vld [vmem:[%s8917 + $0x10] sm:$0xff]
    %v8921 = vld [vmem:[%s8917 + $0x18] sm:$0xff]
    %v8922 = vld [vmem:[%s8917 + $0x20] sm:$0xff]
    %v8923 = vld [vmem:[%s8917 + $0x28] sm:$0xff]
    %v8924 = vld [vmem:[%s8917 + $0x30] sm:$0xff]
    %v8925 = vld [vmem:[%s8917 + $0x38] sm:$0xff]
    %v8926 = vmul.f32 %v8828, %v8918
    %v8927 = vmul.f32 %v8829, %v8919
    %v8928 = vmul.f32 %v8830, %v8920
    %v8929 = vmul.f32 %v8831, %v8921
    %v8930 = vmul.f32 %v8832, %v8922
    %v8931 = vmul.f32 %v8833, %v8923
    %v8932 = vmul.f32 %v8834, %v8924
    %v8933 = vmul.f32 %v8835, %v8925
    %v8934 = vmul.f32 %v8836, %v8918
    %v8935 = vmul.f32 %v8837, %v8919
    %v8936 = vmul.f32 %v8838, %v8920
    %v8937 = vmul.f32 %v8839, %v8921
    %v8938 = vmul.f32 %v8840, %v8922
    %v8939 = vmul.f32 %v8841, %v8923
    %v8940 = vmul.f32 %v8842, %v8924
    %v8941 = vmul.f32 %v8843, %v8925
    %v8942 = vadd.f32 %v8926, %v8927
    %v8943 = vadd.f32 %v8942, %v8928
    %v8944 = vadd.f32 %v8943, %v8929
    %v8945 = vadd.f32 %v8944, %v8930
    %v8946 = vadd.f32 %v8945, %v8931
    %v8947 = vadd.f32 %v8946, %v8932
    %v8948 = vadd.f32 %v8947, %v8933
    %v8949 = vrot.slane %v8948, 4
    %v8950 = vadd.f32 %v8948, %v8949
    %v8951 = vrot.slane %v8950, 2
    %v8952 = vadd.f32 %v8950, %v8951
    %v8953 = vrot.slane %v8952, 1
    %v8954 = vadd.f32 %v8952, %v8953
    %v8955 = vadd.f32 %v8934, %v8935
    %v8956 = vadd.f32 %v8955, %v8936
    %v8957 = vadd.f32 %v8956, %v8937
    %v8958 = vadd.f32 %v8957, %v8938
    %v8959 = vadd.f32 %v8958, %v8939
    %v8960 = vadd.f32 %v8959, %v8940
    %v8961 = vadd.f32 %v8960, %v8941
    %v8962 = vrot.slane %v8961, 4
    %v8963 = vadd.f32 %v8961, %v8962
    %v8964 = vrot.slane %v8963, 2
    %v8965 = vadd.f32 %v8963, %v8964
    %v8966 = vrot.slane %v8965, 1
    %v8967 = vadd.f32 %v8965, %v8966
    %8968 = vadd.xlane.f32.xlu0 %v8954
    %v8969 = vpop.xlane.xlu0 %8968
    %8970 = vadd.xlane.f32.xlu0 %v8967
    %v8971 = vpop.xlane.xlu0 %8970
    %vm8972 = vcmp.eq.s32.totalorder %v8845, 1
    %v8973 = vsel %vm8972, 1.0, 0.0
    %v8976 = vsel %vm8912, %v8971, %v8969
    %v8978 = vmul.f32 %v8973, %v8976
    %v8979 = vadd.f32 %v8916, %v8978
    %8980 = vst [vmem:[#allocation4] sm:$0x3] %v8979
    // Predicated region
    $region62: #{res_sf_forward.1} parent=1 // pred_check
      _
    $region63: #{res_sf_forward.1} parent=1 // pred_check_branch
      %8982 = sbr.rel (0) target = $region65
    $region64: #{res_sf_forward.1} parent=1 // pred_region
      %s8984 = ssub.s32 32, 32
      %8985 = vsyncadd [#allocation5], %s8984
      %s8987 = sshll.u32 [#allocation4], 4
      %s8988 = int_to_ptr.vmem [resolvable:$true] %s8987
      %8990 = dma.vmem_to_hbm [thread:$0]  %s8988, 32, %s15, [#allocation5]
    $region65: #{res_sf_forward.1} parent=1 // pred_fallthru
      _
    // Predicated region
    $region66: #{res_sf_forward.1} parent=1 // pred_check
      _
    $region67: #{res_sf_forward.1} parent=1 // pred_check_branch
      %8992 = sbr.rel (0) target = $region69
    $region68: #{res_sf_forward.1} parent=1 // pred_region
      %8993 = dma.done [#allocation5], 32
    $region69: #{res_sf_forward.1} parent=1 // pred_fallthru
      _
    %8994 = vsyncpa [#allocation5], 1

</llo_original>
